<compile_context>
chip_gen: v7x
topology: tpu7x:2x2x1
jax: 0.10.0
libtpu: 0.0.40
codegen_flags: <defaults>
</compile_context>

<pallas_src>
import functools

import jax
import jax.numpy as jnp
import numpy as np
from jax.experimental import pallas as pl
from jax.experimental.pallas import tpu as pltpu


# ------------------------------ Static config ------------------------------ #

K = 5                                    # conv kernel size (both convs)
CIN1, CIN1_PAD, COUT1 = 3, 8, 32         # conv1 channels (3 padded to 8)
H1 = W1 = 32                             # input spatial size pinned by fc1 = 128*5*5
IN1_ROWS = H1 * W1                       # 1024 row-flattened input pixels
CONV1_ROWS = (H1 - K + 1) * W1           # 896 = 28 x 32 full-width conv1 outputs

CIN2, COUT2 = 32, 128
S2 = 16                                  # padded row stride of the pooled 14x14 map
CONV2_ROWS = (14 - K + 1) * S2           # 160 = 10 x 16 full-width conv2 outputs
X2_ROWS = CONV2_ROWS + (K - 1) * S2      # 224 rows of the dj-expanded stage-2 input
P1_ROWS = X2_ROWS + 8                    # 232 >= X2_ROWS + (K-1), multiple of 8

P2_ROWS = 32                             # 25 pooled 5x5 positions, padded to 32 rows
FC_SP = 25                               # spatial positions feeding fc1
FC_H = 128                               # fc1 (120) / fc2 (30) widths padded to 128


# ----------------------------- Fused Pallas kernel -------------------------- #

def _net_fused_kernel(x_ref, w1_ref, b1_ref, p1_ref, w2_ref, b2_ref, p2_ref,
                      wf1_ref, bf1_ref, wf2_ref, bf2_ref, wf3_ref, bf3_ref,
                      o_ref, *, bb):
    """Whole forward pass for `bb` images; everything stays in VMEM/vregs."""
    f32, bf16 = jnp.float32, jnp.bfloat16

    # Grid-invariant operands: load once per step, reuse for every image.
    b1, b2 = b1_ref[...], b2_ref[...]
    p1, p2 = p1_ref[...], p2_ref[...]
    bf1, bf2, bf3 = bf1_ref[...], bf2_ref[...], bf3_ref[...]
    wf2, wf3 = wf2_ref[...], wf3_ref[...]

    for bi in range(bb):                  # static unroll over the batch block
        # ---- conv1 (5x5, 3->32): dj taps pre-folded into lanes (K*8 = 40), so the
        #      conv is K sublane-aligned shifted slices -> K accumulated MXU dots.
        #      Full-width columns wo >= 28 are garbage but never selected by p1.
        acc1 = None
        for di in range(K):
            xs = x_ref[bi, pl.ds(di * W1, CONV1_ROWS), :]               # (896, 40)
            ws = w1_ref[pl.ds(di * K * CIN1_PAD, K * CIN1_PAD), :]      # (40, 32)
            t = jnp.dot(xs, ws, preferred_element_type=f32)
            acc1 = t if acc1 is None else acc1 + t
        a1 = jnp.tanh(acc1 + b1).astype(bf16)                           # (896, 32)

        # ---- AvgPool2d(2,2) as a 0/0.25 selection matmul; p1 re-emits the pooled
        #      14x14 map in the zero-padded stride-16 row layout conv2 expects.
        pooled1 = jnp.dot(p1, a1, preferred_element_type=f32).astype(bf16)  # (232, 32)

        # ---- conv2 (5x5, 32->128): fold dj into lanes (K*32 = 160 contraction)
        #      with 5 shifted slices, then K aligned accumulated dots.
        x2 = jnp.concatenate(
            [pooled1[dj:dj + X2_ROWS, :] for dj in range(K)], axis=-1)  # (224, 160)
        acc2 = None
        for di in range(K):
            ws = w2_ref[pl.ds(di * K * CIN2, K * CIN2), :]              # (160, 128)
            t = jnp.dot(x2[di * S2:di * S2 + CONV2_ROWS, :], ws,
                        preferred_element_type=f32)
            acc2 = t if acc2 is None else acc2 + t
        a2 = jnp.tanh(acc2 + b2).astype(bf16)                           # (160, 128)
        pooled2 = jnp.dot(p2, a2, preferred_element_type=f32).astype(bf16)  # (32, 128)

        # ---- fc1 (3200->120 padded 128): contract over the 25 spatial rows; the
        #      torch CHW flatten order is folded into wf1[p, c, f].
        h = None
        for p in range(FC_SP):
            t = jnp.dot(pooled2[p:p + 1, :], wf1_ref[p],
                        preferred_element_type=f32)                     # (1, 128)
            h = t if h is None else h + t
        h = jnp.tanh(h + bf1).astype(bf16)
        # ---- fc2 (120->30 padded 128) and fc3 (30->2)
        h = jnp.tanh(jnp.dot(h, wf2, preferred_element_type=f32) + bf2).astype(bf16)
        o_ref[bi] = jnp.dot(h, wf3, preferred_element_type=f32) + bf3   # (1, 2) f32


# ------------------------------ Pallas wrapper ------------------------------ #

def _pick_block_batch(batch):
    """Amortize per-grid-step overhead, but keep >=2 steps for v7x's 2 TCs."""
    for bb in (8, 4, 2):
        if batch % bb == 0 and batch // bb >= 2:
            return bb
    return 1


def net_forward(x_nchw, params, *, block_batch=None):
    """Forward pass matching PyTorch `Net.forward`.  x_nchw: (B, 3, 32, 32) f32."""
    B = x_nchw.shape[0]
    bb = block_batch if block_batch is not None else _pick_block_batch(B)
    assert B % bb == 0

    # Small input-prep glue (~80 KB/image): NCHW -> row-flattened NHWC, channels
    # padded 3->8, width (dj) taps folded into lanes -> (B, 1024, 40) bf16.
    x = jnp.transpose(x_nchw, (0, 2, 3, 1))
    x = jnp.pad(x, ((0, 0), (0, 0), (0, 0), (0, CIN1_PAD - CIN1)))
    x = x.reshape(B, IN1_ROWS, CIN1_PAD).astype(jnp.bfloat16)
    x = jnp.pad(x, ((0, 0), (0, K - 1), (0, 0)))                    # (B, 1028, 8)
    x = jnp.concatenate([x[:, dj:dj + IN1_ROWS, :] for dj in range(K)],
                        axis=-1)                                    # (B, 1024, 40)

    kernel = functools.partial(_net_fused_kernel, bb=bb)
    c2 = lambda i: (0, 0)
    c3 = lambda i: (0, 0, 0)

    out = pl.pallas_call(
        kernel,
        grid=(B // bb,),
        out_shape=jax.ShapeDtypeStruct((B, 1, 2), jnp.float32),
        in_specs=[
            pl.BlockSpec((bb, IN1_ROWS, K * CIN1_PAD), lambda i: (i, 0, 0)),
            pl.BlockSpec((K * K * CIN1_PAD, COUT1), c2),     # w1 (200, 32)
            pl.BlockSpec((1, COUT1), c2),                    # b1
            pl.BlockSpec((P1_ROWS, CONV1_ROWS), c2),         # p1 (232, 896)
            pl.BlockSpec((K * K * CIN2, COUT2), c2),         # w2 (800, 128)
            pl.BlockSpec((1, COUT2), c2),                    # b2
            pl.BlockSpec((P2_ROWS, CONV2_ROWS), c2),         # p2 (32, 160)
            pl.BlockSpec((FC_SP, FC_H, FC_H), c3),           # wf1 (25, 128, 128)
            pl.BlockSpec((1, FC_H), c2),                     # bf1
            pl.BlockSpec((FC_H, FC_H), c2),                  # wf2
            pl.BlockSpec((1, FC_H), c2),                     # bf2
            pl.BlockSpec((FC_H, 2), c2),                     # wf3
            pl.BlockSpec((1, 2), c2),                        # bf3
        ],
        out_specs=pl.BlockSpec((bb, 1, 2), lambda i: (i, 0, 0)),
        compiler_params=pltpu.CompilerParams(
            dimension_semantics=("parallel",)),
    )(x, params["w1"], params["b1"], params["p1"],
      params["w2"], params["b2"], params["p2"],
      params["wf1"], params["bf1"], params["wf2"], params["bf2"],
      params["wf3"], params["bf3"])
    return out.reshape(B, 2)


# --------------------------------- Params ----------------------------------- #

def _pool_matrix_1():
    """28x28 -> 14x14 AvgPool as (232, 896) selection matrix emitting the padded
    stride-16 row layout (r = h*16 + w); rows with w >= 14 or r >= 224 stay zero."""
    p = np.zeros((P1_ROWS, CONV1_ROWS), np.float32)
    for h in range(14):
        for w in range(14):
            r = h * S2 + w
            for dr in range(2):
                for dc in range(2):
                    p[r, (2 * h + dr) * W1 + (2 * w + dc)] = 0.25
    return jnp.asarray(p, jnp.bfloat16)


def _pool_matrix_2():
    """10x10 -> 5x5 AvgPool as (32, 160) selection matrix (rows p = h*5 + w)."""
    p = np.zeros((P2_ROWS, CONV2_ROWS), np.float32)
    for h in range(5):
        for w in range(5):
            r = h * 5 + w
            for dr in range(2):
                for dc in range(2):
                    p[r, (2 * h + dr) * S2 + (2 * w + dc)] = 0.25
    return jnp.asarray(p, jnp.bfloat16)


def make_torch_params(key):
    """Deterministic synthetic parameters in PyTorch layout (OIHW / (out,in))."""
    ks = jax.random.split(key, 10)
    s = 0.05
    n = jax.random.normal
    return dict(
        w1=n(ks[0], (COUT1, CIN1, K, K), jnp.float32) * s,
        b1=n(ks[1], (COUT1,), jnp.float32) * s,
        w2=n(ks[2], (COUT2, CIN2, K, K), jnp.float32) * s,
        b2=n(ks[3], (COUT2,), jnp.float32) * s,
        wf1=n(ks[4], (120, COUT2 * FC_SP), jnp.float32) * s,
        bf1=n(ks[5], (120,), jnp.float32) * s,
        wf2=n(ks[6], (30, 120), jnp.float32) * s,
        bf2=n(ks[7], (30,), jnp.float32) * s,
        wf3=n(ks[8], (2, 30), jnp.float32) * s,
        bf3=n(ks[9], (2,), jnp.float32) * s,
    )


def pack_params(tp):
    """Torch-layout -> kernel-layout (row orders, channel/lane padding, bf16)."""
    # conv1: rows (di, dj, c_pad8) -> (200, 32)
    w1 = jnp.transpose(tp["w1"], (2, 3, 1, 0))
    w1 = jnp.pad(w1, ((0, 0), (0, 0), (0, CIN1_PAD - CIN1), (0, 0)))
    w1 = w1.reshape(K * K * CIN1_PAD, COUT1).astype(jnp.bfloat16)
    # conv2: rows (di, dj, c) -> (800, 128)
    w2 = jnp.transpose(tp["w2"], (2, 3, 1, 0)).reshape(K * K * CIN2, COUT2)
    w2 = w2.astype(jnp.bfloat16)
    # fc1: torch input feature index = c*25 + p (CHW flatten) -> wf1[p, c, f]
    wf1 = tp["wf1"].T.reshape(COUT2, FC_SP, 120)
    wf1 = jnp.transpose(wf1, (1, 0, 2))
    wf1 = jnp.pad(wf1, ((0, 0), (0, 0), (0, FC_H - 120))).astype(jnp.bfloat16)
    wf2 = jnp.pad(tp["wf2"].T, ((0, FC_H - 120), (0, FC_H - 30))).astype(jnp.bfloat16)
    wf3 = jnp.pad(tp["wf3"].T, ((0, FC_H - 30), (0, 0))).astype(jnp.bfloat16)
    return dict(
        w1=w1, b1=tp["b1"].reshape(1, COUT1).astype(jnp.float32), p1=_pool_matrix_1(),
        w2=w2, b2=tp["b2"].reshape(1, COUT2).astype(jnp.float32), p2=_pool_matrix_2(),
        wf1=wf1, bf1=jnp.pad(tp["bf1"], (0, FC_H - 120)).reshape(1, FC_H),
        wf2=wf2, bf2=jnp.pad(tp["bf2"], (0, FC_H - 30)).reshape(1, FC_H),
        wf3=wf3, bf3=tp["bf3"].reshape(1, 2).astype(jnp.float32),
    )


# --------------------------- Pure-JAX f32 reference -------------------------- #

def _avg_pool_2x2(y):                     # NCHW, even spatial dims
    b, c, h, w = y.shape
    return y.reshape(b, c, h // 2, 2, w // 2, 2).mean(axis=(3, 5))


def reference_forward(x, tp):
    dn = ("NCHW", "OIHW", "NCHW")
    hp = jax.lax.Precision.HIGHEST
    y = jax.lax.conv_general_dilated(x, tp["w1"], (1, 1), "VALID",
                                     dimension_numbers=dn, precision=hp)
    y = _avg_pool_2x2(jnp.tanh(y + tp["b1"][None, :, None, None]))
    y = jax.lax.conv_general_dilated(y, tp["w2"], (1, 1), "VALID",
                                     dimension_numbers=dn, precision=hp)
    y = _avg_pool_2x2(jnp.tanh(y + tp["b2"][None, :, None, None]))
    y = y.reshape(y.shape[0], -1)                       # torch .view: CHW flatten
    y = jnp.tanh(jnp.dot(y, tp["wf1"].T, precision=hp) + tp["bf1"])
    y = jnp.tanh(jnp.dot(y, tp["wf2"].T, precision=hp) + tp["bf2"])
    return jnp.dot(y, tp["wf3"].T, precision=hp) + tp["bf3"]


# ----------------------------------- Main ------------------------------------ #

if __name__ == "__main__":
    root = jax.random.PRNGKey(0)
    k_x, k_p = jax.random.split(root)

    batch = 2                                  # fc1 = 128*5*5 pins the input to 3x32x32
    x = jax.random.normal(k_x, (batch, 3, 32, 32), jnp.float32)
    torch_params = make_torch_params(k_p)
    params = pack_params(torch_params)

    out = jax.block_until_ready(jax.jit(net_forward)(x, params))

    assert out.shape == (batch, 2), out.shape
    assert out.dtype == jnp.float32
    assert bool(jnp.all(jnp.isfinite(out)))

    # Validate the torch->kernel weight mapping / layout plumbing against a pure
    # JAX f32 reference (loose tolerance: matmul operands are bf16 in the kernel).
    ref = reference_forward(x, torch_params)
    err = float(jnp.max(jnp.abs(out - ref)))
    assert err < 1e-1, f"max |kernel - reference| = {err}"

    print("KERNEL_OK")
</pallas_src>

<mosaic_0001>
module attributes {stable_mosaic.version = 11 : i64} {
  func.func @_net_fused_kernel(%arg0: i32, %arg1: memref<1x1024x40xbf16, #tpu.memory_space<vmem>>, %arg2: memref<200x32xbf16, #tpu.memory_space<vmem>>, %arg3: memref<1x32xf32, #tpu.memory_space<vmem>>, %arg4: memref<232x896xbf16, #tpu.memory_space<vmem>>, %arg5: memref<800x128xbf16, #tpu.memory_space<vmem>>, %arg6: memref<1x128xf32, #tpu.memory_space<vmem>>, %arg7: memref<32x160xbf16, #tpu.memory_space<vmem>>, %arg8: memref<25x128x128xbf16, #tpu.memory_space<vmem>>, %arg9: memref<1x128xf32, #tpu.memory_space<vmem>>, %arg10: memref<128x128xbf16, #tpu.memory_space<vmem>>, %arg11: memref<1x128xf32, #tpu.memory_space<vmem>>, %arg12: memref<128x2xbf16, #tpu.memory_space<vmem>>, %arg13: memref<1x2xf32, #tpu.memory_space<vmem>>, %arg14: memref<1x1x2xf32, #tpu.memory_space<vmem>>) attributes {dimension_semantics = [#tpu.dimension_semantics<parallel>], iteration_bounds = array<i64: 2>, scalar_prefetch = 0 : i64, scratch_operands = 0 : i64, tpu.core_type = #tpu.core_type<tc>, window_params = [{transform_indices = @transform_0, window_bounds = array<i64: 1, 1024, 40>}, {pipeline_mode = #tpu.pipeline_mode<synchronous>, transform_indices = @transform_1, window_bounds = array<i64: 200, 32>}, {pipeline_mode = #tpu.pipeline_mode<synchronous>, transform_indices = @transform_2, window_bounds = array<i64: 1, 32>}, {pipeline_mode = #tpu.pipeline_mode<synchronous>, transform_indices = @transform_3, window_bounds = array<i64: 232, 896>}, {pipeline_mode = #tpu.pipeline_mode<synchronous>, transform_indices = @transform_4, window_bounds = array<i64: 800, 128>}, {pipeline_mode = #tpu.pipeline_mode<synchronous>, transform_indices = @transform_5, window_bounds = array<i64: 1, 128>}, {pipeline_mode = #tpu.pipeline_mode<synchronous>, transform_indices = @transform_6, window_bounds = array<i64: 32, 160>}, {pipeline_mode = #tpu.pipeline_mode<synchronous>, transform_indices = @transform_7, window_bounds = array<i64: 25, 128, 128>}, {pipeline_mode = #tpu.pipeline_mode<synchronous>, transform_indices = @transform_8, window_bounds = array<i64: 1, 128>}, {pipeline_mode = #tpu.pipeline_mode<synchronous>, transform_indices = @transform_9, window_bounds = array<i64: 128, 128>}, {pipeline_mode = #tpu.pipeline_mode<synchronous>, transform_indices = @transform_10, window_bounds = array<i64: 1, 128>}, {pipeline_mode = #tpu.pipeline_mode<synchronous>, transform_indices = @transform_11, window_bounds = array<i64: 128, 2>}, {pipeline_mode = #tpu.pipeline_mode<synchronous>, transform_indices = @transform_12, window_bounds = array<i64: 1, 2>}, {transform_indices = @transform_13, window_bounds = array<i64: 1, 1, 2>}]} {
    %c0 = arith.constant 0 : index
    %c0_0 = arith.constant 0 : index
    %0 = vector.load %arg3[%c0, %c0_0] : memref<1x32xf32, #tpu.memory_space<vmem>>, vector<1x32xf32>
    %c0_1 = arith.constant 0 : index
    %c0_2 = arith.constant 0 : index
    %1 = vector.load %arg6[%c0_1, %c0_2] : memref<1x128xf32, #tpu.memory_space<vmem>>, vector<1x128xf32>
    %c0_3 = arith.constant 0 : index
    %c0_4 = arith.constant 0 : index
    %2 = vector.load %arg4[%c0_3, %c0_4] : memref<232x896xbf16, #tpu.memory_space<vmem>>, vector<232x896xbf16>
    %c0_5 = arith.constant 0 : index
    %c0_6 = arith.constant 0 : index
    %3 = vector.load %arg7[%c0_5, %c0_6] : memref<32x160xbf16, #tpu.memory_space<vmem>>, vector<32x160xbf16>
    %c0_7 = arith.constant 0 : index
    %c0_8 = arith.constant 0 : index
    %4 = vector.load %arg9[%c0_7, %c0_8] : memref<1x128xf32, #tpu.memory_space<vmem>>, vector<1x128xf32>
    %c0_9 = arith.constant 0 : index
    %c0_10 = arith.constant 0 : index
    %5 = vector.load %arg11[%c0_9, %c0_10] : memref<1x128xf32, #tpu.memory_space<vmem>>, vector<1x128xf32>
    %c0_11 = arith.constant 0 : index
    %c0_12 = arith.constant 0 : index
    %6 = vector.load %arg13[%c0_11, %c0_12] : memref<1x2xf32, #tpu.memory_space<vmem>>, vector<1x2xf32>
    %c0_13 = arith.constant 0 : index
    %c0_14 = arith.constant 0 : index
    %7 = vector.load %arg10[%c0_13, %c0_14] : memref<128x128xbf16, #tpu.memory_space<vmem>>, vector<128x128xbf16>
    %c0_15 = arith.constant 0 : index
    %c0_16 = arith.constant 0 : index
    %8 = vector.load %arg12[%c0_15, %c0_16] : memref<128x2xbf16, #tpu.memory_space<vmem>>, vector<128x2xbf16>
    %c0_17 = arith.constant 0 : index
    %c0_18 = arith.constant 0 : index
    %c0_19 = arith.constant 0 : index
    %9 = vector.load %arg1[%c0_17, %c0_18, %c0_19] : memref<1x1024x40xbf16, #tpu.memory_space<vmem>>, vector<1x896x40xbf16>
    %10 = vector.shape_cast %9 : vector<1x896x40xbf16> to vector<896x40xbf16>
    %c0_20 = arith.constant 0 : index
    %c0_21 = arith.constant 0 : index
    %11 = vector.load %arg2[%c0_20, %c0_21] : memref<200x32xbf16, #tpu.memory_space<vmem>>, vector<40x32xbf16>
    %cst = arith.constant dense<0.000000e+00> : vector<896x32xf32>
    %12 = tpu.matmul %10, %11, %cst {dimension_numbers = #tpu.dot_dimension_numbers<[1], [0], [0], [1], [0, 0, 1, 1], [], []>} : vector<896x40xbf16>, vector<40x32xbf16>, vector<896x32xf32> -> vector<896x32xf32>
    %c0_22 = arith.constant 0 : index
    %c32 = arith.constant 32 : index
    %c0_23 = arith.constant 0 : index
    %13 = vector.load %arg1[%c0_22, %c32, %c0_23] : memref<1x1024x40xbf16, #tpu.memory_space<vmem>>, vector<1x896x40xbf16>
    %14 = vector.shape_cast %13 : vector<1x896x40xbf16> to vector<896x40xbf16>
    %c40 = arith.constant 40 : index
    %c0_24 = arith.constant 0 : index
    %15 = vector.load %arg2[%c40, %c0_24] : memref<200x32xbf16, #tpu.memory_space<vmem>>, vector<40x32xbf16>
    %cst_25 = arith.constant dense<0.000000e+00> : vector<896x32xf32>
    %16 = tpu.matmul %14, %15, %cst_25 {dimension_numbers = #tpu.dot_dimension_numbers<[1], [0], [0], [1], [0, 0, 1, 1], [], []>} : vector<896x40xbf16>, vector<40x32xbf16>, vector<896x32xf32> -> vector<896x32xf32>
    %17 = arith.addf %12, %16 : vector<896x32xf32>
    %c0_26 = arith.constant 0 : index
    %c64 = arith.constant 64 : index
    %c0_27 = arith.constant 0 : index
    %18 = vector.load %arg1[%c0_26, %c64, %c0_27] : memref<1x1024x40xbf16, #tpu.memory_space<vmem>>, vector<1x896x40xbf16>
    %19 = vector.shape_cast %18 : vector<1x896x40xbf16> to vector<896x40xbf16>
    %c80 = arith.constant 80 : index
    %c0_28 = arith.constant 0 : index
    %20 = vector.load %arg2[%c80, %c0_28] : memref<200x32xbf16, #tpu.memory_space<vmem>>, vector<40x32xbf16>
    %cst_29 = arith.constant dense<0.000000e+00> : vector<896x32xf32>
    %21 = tpu.matmul %19, %20, %cst_29 {dimension_numbers = #tpu.dot_dimension_numbers<[1], [0], [0], [1], [0, 0, 1, 1], [], []>} : vector<896x40xbf16>, vector<40x32xbf16>, vector<896x32xf32> -> vector<896x32xf32>
    %22 = arith.addf %17, %21 : vector<896x32xf32>
    %c0_30 = arith.constant 0 : index
    %c96 = arith.constant 96 : index
    %c0_31 = arith.constant 0 : index
    %23 = vector.load %arg1[%c0_30, %c96, %c0_31] : memref<1x1024x40xbf16, #tpu.memory_space<vmem>>, vector<1x896x40xbf16>
    %24 = vector.shape_cast %23 : vector<1x896x40xbf16> to vector<896x40xbf16>
    %c120 = arith.constant 120 : index
    %c0_32 = arith.constant 0 : index
    %25 = vector.load %arg2[%c120, %c0_32] : memref<200x32xbf16, #tpu.memory_space<vmem>>, vector<40x32xbf16>
    %cst_33 = arith.constant dense<0.000000e+00> : vector<896x32xf32>
    %26 = tpu.matmul %24, %25, %cst_33 {dimension_numbers = #tpu.dot_dimension_numbers<[1], [0], [0], [1], [0, 0, 1, 1], [], []>} : vector<896x40xbf16>, vector<40x32xbf16>, vector<896x32xf32> -> vector<896x32xf32>
    %27 = arith.addf %22, %26 : vector<896x32xf32>
    %c0_34 = arith.constant 0 : index
    %c128 = arith.constant 128 : index
    %c0_35 = arith.constant 0 : index
    %28 = vector.load %arg1[%c0_34, %c128, %c0_35] : memref<1x1024x40xbf16, #tpu.memory_space<vmem>>, vector<1x896x40xbf16>
    %29 = vector.shape_cast %28 : vector<1x896x40xbf16> to vector<896x40xbf16>
    %c160 = arith.constant 160 : index
    %c0_36 = arith.constant 0 : index
    %30 = vector.load %arg2[%c160, %c0_36] : memref<200x32xbf16, #tpu.memory_space<vmem>>, vector<40x32xbf16>
    %cst_37 = arith.constant dense<0.000000e+00> : vector<896x32xf32>
    %31 = tpu.matmul %29, %30, %cst_37 {dimension_numbers = #tpu.dot_dimension_numbers<[1], [0], [0], [1], [0, 0, 1, 1], [], []>} : vector<896x40xbf16>, vector<40x32xbf16>, vector<896x32xf32> -> vector<896x32xf32>
    %32 = arith.addf %27, %31 : vector<896x32xf32>
    %33 = vector.broadcast %0 : vector<1x32xf32> to vector<896x32xf32>
    %34 = arith.addf %32, %33 : vector<896x32xf32>
    %35 = math.tanh %34 : vector<896x32xf32>
    %36 = arith.truncf %35 : vector<896x32xf32> to vector<896x32xbf16>
    %cst_38 = arith.constant dense<0.000000e+00> : vector<232x32xf32>
    %37 = tpu.matmul %2, %36, %cst_38 {dimension_numbers = #tpu.dot_dimension_numbers<[1], [0], [0], [1], [0, 0, 1, 1], [], []>} : vector<232x896xbf16>, vector<896x32xbf16>, vector<232x32xf32> -> vector<232x32xf32>
    %38 = arith.truncf %37 : vector<232x32xf32> to vector<232x32xbf16>
    %39 = vector.extract_strided_slice %38 {offsets = [0, 0], sizes = [224, 32], strides = [1, 1]} : vector<232x32xbf16> to vector<224x32xbf16>
    %40 = vector.extract_strided_slice %38 {offsets = [1, 0], sizes = [224, 32], strides = [1, 1]} : vector<232x32xbf16> to vector<224x32xbf16>
    %41 = vector.extract_strided_slice %38 {offsets = [2, 0], sizes = [224, 32], strides = [1, 1]} : vector<232x32xbf16> to vector<224x32xbf16>
    %42 = vector.extract_strided_slice %38 {offsets = [3, 0], sizes = [224, 32], strides = [1, 1]} : vector<232x32xbf16> to vector<224x32xbf16>
    %43 = vector.extract_strided_slice %38 {offsets = [4, 0], sizes = [224, 32], strides = [1, 1]} : vector<232x32xbf16> to vector<224x32xbf16>
    %44 = tpu.concatenate %39, %40, %41, %42, %43 in 1 : vector<224x32xbf16>, vector<224x32xbf16>, vector<224x32xbf16>, vector<224x32xbf16>, vector<224x32xbf16> -> vector<224x160xbf16>
    %c0_39 = arith.constant 0 : index
    %c0_40 = arith.constant 0 : index
    %45 = vector.load %arg5[%c0_39, %c0_40] : memref<800x128xbf16, #tpu.memory_space<vmem>>, vector<160x128xbf16>
    %46 = vector.extract_strided_slice %44 {offsets = [0, 0], sizes = [160, 160], strides = [1, 1]} : vector<224x160xbf16> to vector<160x160xbf16>
    %cst_41 = arith.constant dense<0.000000e+00> : vector<160x128xf32>
    %47 = tpu.matmul %46, %45, %cst_41 {dimension_numbers = #tpu.dot_dimension_numbers<[1], [0], [0], [1], [0, 0, 1, 1], [], []>} : vector<160x160xbf16>, vector<160x128xbf16>, vector<160x128xf32> -> vector<160x128xf32>
    %c160_42 = arith.constant 160 : index
    %c0_43 = arith.constant 0 : index
    %48 = vector.load %arg5[%c160_42, %c0_43] : memref<800x128xbf16, #tpu.memory_space<vmem>>, vector<160x128xbf16>
    %49 = vector.extract_strided_slice %44 {offsets = [16, 0], sizes = [160, 160], strides = [1, 1]} : vector<224x160xbf16> to vector<160x160xbf16>
    %cst_44 = arith.constant dense<0.000000e+00> : vector<160x128xf32>
    %50 = tpu.matmul %49, %48, %cst_44 {dimension_numbers = #tpu.dot_dimension_numbers<[1], [0], [0], [1], [0, 0, 1, 1], [], []>} : vector<160x160xbf16>, vector<160x128xbf16>, vector<160x128xf32> -> vector<160x128xf32>
    %51 = arith.addf %47, %50 : vector<160x128xf32>
    %c320 = arith.constant 320 : index
    %c0_45 = arith.constant 0 : index
    %52 = vector.load %arg5[%c320, %c0_45] : memref<800x128xbf16, #tpu.memory_space<vmem>>, vector<160x128xbf16>
    %53 = vector.extract_strided_slice %44 {offsets = [32, 0], sizes = [160, 160], strides = [1, 1]} : vector<224x160xbf16> to vector<160x160xbf16>
    %cst_46 = arith.constant dense<0.000000e+00> : vector<160x128xf32>
    %54 = tpu.matmul %53, %52, %cst_46 {dimension_numbers = #tpu.dot_dimension_numbers<[1], [0], [0], [1], [0, 0, 1, 1], [], []>} : vector<160x160xbf16>, vector<160x128xbf16>, vector<160x128xf32> -> vector<160x128xf32>
    %55 = arith.addf %51, %54 : vector<160x128xf32>
    %c480 = arith.constant 480 : index
    %c0_47 = arith.constant 0 : index
    %56 = vector.load %arg5[%c480, %c0_47] : memref<800x128xbf16, #tpu.memory_space<vmem>>, vector<160x128xbf16>
    %57 = vector.extract_strided_slice %44 {offsets = [48, 0], sizes = [160, 160], strides = [1, 1]} : vector<224x160xbf16> to vector<160x160xbf16>
    %cst_48 = arith.constant dense<0.000000e+00> : vector<160x128xf32>
    %58 = tpu.matmul %57, %56, %cst_48 {dimension_numbers = #tpu.dot_dimension_numbers<[1], [0], [0], [1], [0, 0, 1, 1], [], []>} : vector<160x160xbf16>, vector<160x128xbf16>, vector<160x128xf32> -> vector<160x128xf32>
    %59 = arith.addf %55, %58 : vector<160x128xf32>
    %c640 = arith.constant 640 : index
    %c0_49 = arith.constant 0 : index
    %60 = vector.load %arg5[%c640, %c0_49] : memref<800x128xbf16, #tpu.memory_space<vmem>>, vector<160x128xbf16>
    %61 = vector.extract_strided_slice %44 {offsets = [64, 0], sizes = [160, 160], strides = [1, 1]} : vector<224x160xbf16> to vector<160x160xbf16>
    %cst_50 = arith.constant dense<0.000000e+00> : vector<160x128xf32>
    %62 = tpu.matmul %61, %60, %cst_50 {dimension_numbers = #tpu.dot_dimension_numbers<[1], [0], [0], [1], [0, 0, 1, 1], [], []>} : vector<160x160xbf16>, vector<160x128xbf16>, vector<160x128xf32> -> vector<160x128xf32>
    %63 = arith.addf %59, %62 : vector<160x128xf32>
    %64 = vector.broadcast %1 : vector<1x128xf32> to vector<160x128xf32>
    %65 = arith.addf %63, %64 : vector<160x128xf32>
    %66 = math.tanh %65 : vector<160x128xf32>
    %67 = arith.truncf %66 : vector<160x128xf32> to vector<160x128xbf16>
    %cst_51 = arith.constant dense<0.000000e+00> : vector<32x128xf32>
    %68 = tpu.matmul %3, %67, %cst_51 {dimension_numbers = #tpu.dot_dimension_numbers<[1], [0], [0], [1], [0, 0, 1, 1], [], []>} : vector<32x160xbf16>, vector<160x128xbf16>, vector<32x128xf32> -> vector<32x128xf32>
    %69 = arith.truncf %68 : vector<32x128xf32> to vector<32x128xbf16>
    %70 = vector.extract_strided_slice %69 {offsets = [0, 0], sizes = [1, 128], strides = [1, 1]} : vector<32x128xbf16> to vector<1x128xbf16>
    %c0_52 = arith.constant 0 : index
    %c0_53 = arith.constant 0 : index
    %c0_54 = arith.constant 0 : index
    %71 = vector.load %arg8[%c0_52, %c0_53, %c0_54] : memref<25x128x128xbf16, #tpu.memory_space<vmem>>, vector<1x128x128xbf16>
    %72 = vector.shape_cast %71 : vector<1x128x128xbf16> to vector<128x128xbf16>
    %cst_55 = arith.constant dense<0.000000e+00> : vector<1x128xf32>
    %73 = tpu.matmul %70, %72, %cst_55 {dimension_numbers = #tpu.dot_dimension_numbers<[1], [0], [0], [1], [0, 0, 1, 1], [], []>} : vector<1x128xbf16>, vector<128x128xbf16>, vector<1x128xf32> -> vector<1x128xf32>
    %74 = vector.extract_strided_slice %69 {offsets = [1, 0], sizes = [1, 128], strides = [1, 1]} : vector<32x128xbf16> to vector<1x128xbf16>
    %c1 = arith.constant 1 : index
    %c0_56 = arith.constant 0 : index
    %c0_57 = arith.constant 0 : index
    %75 = vector.load %arg8[%c1, %c0_56, %c0_57] : memref<25x128x128xbf16, #tpu.memory_space<vmem>>, vector<1x128x128xbf16>
    %76 = vector.shape_cast %75 : vector<1x128x128xbf16> to vector<128x128xbf16>
    %cst_58 = arith.constant dense<0.000000e+00> : vector<1x128xf32>
    %77 = tpu.matmul %74, %76, %cst_58 {dimension_numbers = #tpu.dot_dimension_numbers<[1], [0], [0], [1], [0, 0, 1, 1], [], []>} : vector<1x128xbf16>, vector<128x128xbf16>, vector<1x128xf32> -> vector<1x128xf32>
    %78 = arith.addf %73, %77 : vector<1x128xf32>
    %79 = vector.extract_strided_slice %69 {offsets = [2, 0], sizes = [1, 128], strides = [1, 1]} : vector<32x128xbf16> to vector<1x128xbf16>
    %c2 = arith.constant 2 : index
    %c0_59 = arith.constant 0 : index
    %c0_60 = arith.constant 0 : index
    %80 = vector.load %arg8[%c2, %c0_59, %c0_60] : memref<25x128x128xbf16, #tpu.memory_space<vmem>>, vector<1x128x128xbf16>
    %81 = vector.shape_cast %80 : vector<1x128x128xbf16> to vector<128x128xbf16>
    %cst_61 = arith.constant dense<0.000000e+00> : vector<1x128xf32>
    %82 = tpu.matmul %79, %81, %cst_61 {dimension_numbers = #tpu.dot_dimension_numbers<[1], [0], [0], [1], [0, 0, 1, 1], [], []>} : vector<1x128xbf16>, vector<128x128xbf16>, vector<1x128xf32> -> vector<1x128xf32>
    %83 = arith.addf %78, %82 : vector<1x128xf32>
    %84 = vector.extract_strided_slice %69 {offsets = [3, 0], sizes = [1, 128], strides = [1, 1]} : vector<32x128xbf16> to vector<1x128xbf16>
    %c3 = arith.constant 3 : index
    %c0_62 = arith.constant 0 : index
    %c0_63 = arith.constant 0 : index
    %85 = vector.load %arg8[%c3, %c0_62, %c0_63] : memref<25x128x128xbf16, #tpu.memory_space<vmem>>, vector<1x128x128xbf16>
    %86 = vector.shape_cast %85 : vector<1x128x128xbf16> to vector<128x128xbf16>
    %cst_64 = arith.constant dense<0.000000e+00> : vector<1x128xf32>
    %87 = tpu.matmul %84, %86, %cst_64 {dimension_numbers = #tpu.dot_dimension_numbers<[1], [0], [0], [1], [0, 0, 1, 1], [], []>} : vector<1x128xbf16>, vector<128x128xbf16>, vector<1x128xf32> -> vector<1x128xf32>
    %88 = arith.addf %83, %87 : vector<1x128xf32>
    %89 = vector.extract_strided_slice %69 {offsets = [4, 0], sizes = [1, 128], strides = [1, 1]} : vector<32x128xbf16> to vector<1x128xbf16>
    %c4 = arith.constant 4 : index
    %c0_65 = arith.constant 0 : index
    %c0_66 = arith.constant 0 : index
    %90 = vector.load %arg8[%c4, %c0_65, %c0_66] : memref<25x128x128xbf16, #tpu.memory_space<vmem>>, vector<1x128x128xbf16>
    %91 = vector.shape_cast %90 : vector<1x128x128xbf16> to vector<128x128xbf16>
    %cst_67 = arith.constant dense<0.000000e+00> : vector<1x128xf32>
    %92 = tpu.matmul %89, %91, %cst_67 {dimension_numbers = #tpu.dot_dimension_numbers<[1], [0], [0], [1], [0, 0, 1, 1], [], []>} : vector<1x128xbf16>, vector<128x128xbf16>, vector<1x128xf32> -> vector<1x128xf32>
    %93 = arith.addf %88, %92 : vector<1x128xf32>
    %94 = vector.extract_strided_slice %69 {offsets = [5, 0], sizes = [1, 128], strides = [1, 1]} : vector<32x128xbf16> to vector<1x128xbf16>
    %c5 = arith.constant 5 : index
    %c0_68 = arith.constant 0 : index
    %c0_69 = arith.constant 0 : index
    %95 = vector.load %arg8[%c5, %c0_68, %c0_69] : memref<25x128x128xbf16, #tpu.memory_space<vmem>>, vector<1x128x128xbf16>
    %96 = vector.shape_cast %95 : vector<1x128x128xbf16> to vector<128x128xbf16>
    %cst_70 = arith.constant dense<0.000000e+00> : vector<1x128xf32>
    %97 = tpu.matmul %94, %96, %cst_70 {dimension_numbers = #tpu.dot_dimension_numbers<[1], [0], [0], [1], [0, 0, 1, 1], [], []>} : vector<1x128xbf16>, vector<128x128xbf16>, vector<1x128xf32> -> vector<1x128xf32>
    %98 = arith.addf %93, %97 : vector<1x128xf32>
    %99 = vector.extract_strided_slice %69 {offsets = [6, 0], sizes = [1, 128], strides = [1, 1]} : vector<32x128xbf16> to vector<1x128xbf16>
    %c6 = arith.constant 6 : index
    %c0_71 = arith.constant 0 : index
    %c0_72 = arith.constant 0 : index
    %100 = vector.load %arg8[%c6, %c0_71, %c0_72] : memref<25x128x128xbf16, #tpu.memory_space<vmem>>, vector<1x128x128xbf16>
    %101 = vector.shape_cast %100 : vector<1x128x128xbf16> to vector<128x128xbf16>
    %cst_73 = arith.constant dense<0.000000e+00> : vector<1x128xf32>
    %102 = tpu.matmul %99, %101, %cst_73 {dimension_numbers = #tpu.dot_dimension_numbers<[1], [0], [0], [1], [0, 0, 1, 1], [], []>} : vector<1x128xbf16>, vector<128x128xbf16>, vector<1x128xf32> -> vector<1x128xf32>
    %103 = arith.addf %98, %102 : vector<1x128xf32>
    %104 = vector.extract_strided_slice %69 {offsets = [7, 0], sizes = [1, 128], strides = [1, 1]} : vector<32x128xbf16> to vector<1x128xbf16>
    %c7 = arith.constant 7 : index
    %c0_74 = arith.constant 0 : index
    %c0_75 = arith.constant 0 : index
    %105 = vector.load %arg8[%c7, %c0_74, %c0_75] : memref<25x128x128xbf16, #tpu.memory_space<vmem>>, vector<1x128x128xbf16>
    %106 = vector.shape_cast %105 : vector<1x128x128xbf16> to vector<128x128xbf16>
    %cst_76 = arith.constant dense<0.000000e+00> : vector<1x128xf32>
    %107 = tpu.matmul %104, %106, %cst_76 {dimension_numbers = #tpu.dot_dimension_numbers<[1], [0], [0], [1], [0, 0, 1, 1], [], []>} : vector<1x128xbf16>, vector<128x128xbf16>, vector<1x128xf32> -> vector<1x128xf32>
    %108 = arith.addf %103, %107 : vector<1x128xf32>
    %109 = vector.extract_strided_slice %69 {offsets = [8, 0], sizes = [1, 128], strides = [1, 1]} : vector<32x128xbf16> to vector<1x128xbf16>
    %c8 = arith.constant 8 : index
    %c0_77 = arith.constant 0 : index
    %c0_78 = arith.constant 0 : index
    %110 = vector.load %arg8[%c8, %c0_77, %c0_78] : memref<25x128x128xbf16, #tpu.memory_space<vmem>>, vector<1x128x128xbf16>
    %111 = vector.shape_cast %110 : vector<1x128x128xbf16> to vector<128x128xbf16>
    %cst_79 = arith.constant dense<0.000000e+00> : vector<1x128xf32>
    %112 = tpu.matmul %109, %111, %cst_79 {dimension_numbers = #tpu.dot_dimension_numbers<[1], [0], [0], [1], [0, 0, 1, 1], [], []>} : vector<1x128xbf16>, vector<128x128xbf16>, vector<1x128xf32> -> vector<1x128xf32>
    %113 = arith.addf %108, %112 : vector<1x128xf32>
    %114 = vector.extract_strided_slice %69 {offsets = [9, 0], sizes = [1, 128], strides = [1, 1]} : vector<32x128xbf16> to vector<1x128xbf16>
    %c9 = arith.constant 9 : index
    %c0_80 = arith.constant 0 : index
    %c0_81 = arith.constant 0 : index
    %115 = vector.load %arg8[%c9, %c0_80, %c0_81] : memref<25x128x128xbf16, #tpu.memory_space<vmem>>, vector<1x128x128xbf16>
    %116 = vector.shape_cast %115 : vector<1x128x128xbf16> to vector<128x128xbf16>
    %cst_82 = arith.constant dense<0.000000e+00> : vector<1x128xf32>
    %117 = tpu.matmul %114, %116, %cst_82 {dimension_numbers = #tpu.dot_dimension_numbers<[1], [0], [0], [1], [0, 0, 1, 1], [], []>} : vector<1x128xbf16>, vector<128x128xbf16>, vector<1x128xf32> -> vector<1x128xf32>
    %118 = arith.addf %113, %117 : vector<1x128xf32>
    %119 = vector.extract_strided_slice %69 {offsets = [10, 0], sizes = [1, 128], strides = [1, 1]} : vector<32x128xbf16> to vector<1x128xbf16>
    %c10 = arith.constant 10 : index
    %c0_83 = arith.constant 0 : index
    %c0_84 = arith.constant 0 : index
    %120 = vector.load %arg8[%c10, %c0_83, %c0_84] : memref<25x128x128xbf16, #tpu.memory_space<vmem>>, vector<1x128x128xbf16>
    %121 = vector.shape_cast %120 : vector<1x128x128xbf16> to vector<128x128xbf16>
    %cst_85 = arith.constant dense<0.000000e+00> : vector<1x128xf32>
    %122 = tpu.matmul %119, %121, %cst_85 {dimension_numbers = #tpu.dot_dimension_numbers<[1], [0], [0], [1], [0, 0, 1, 1], [], []>} : vector<1x128xbf16>, vector<128x128xbf16>, vector<1x128xf32> -> vector<1x128xf32>
    %123 = arith.addf %118, %122 : vector<1x128xf32>
    %124 = vector.extract_strided_slice %69 {offsets = [11, 0], sizes = [1, 128], strides = [1, 1]} : vector<32x128xbf16> to vector<1x128xbf16>
    %c11 = arith.constant 11 : index
    %c0_86 = arith.constant 0 : index
    %c0_87 = arith.constant 0 : index
    %125 = vector.load %arg8[%c11, %c0_86, %c0_87] : memref<25x128x128xbf16, #tpu.memory_space<vmem>>, vector<1x128x128xbf16>
    %126 = vector.shape_cast %125 : vector<1x128x128xbf16> to vector<128x128xbf16>
    %cst_88 = arith.constant dense<0.000000e+00> : vector<1x128xf32>
    %127 = tpu.matmul %124, %126, %cst_88 {dimension_numbers = #tpu.dot_dimension_numbers<[1], [0], [0], [1], [0, 0, 1, 1], [], []>} : vector<1x128xbf16>, vector<128x128xbf16>, vector<1x128xf32> -> vector<1x128xf32>
    %128 = arith.addf %123, %127 : vector<1x128xf32>
    %129 = vector.extract_strided_slice %69 {offsets = [12, 0], sizes = [1, 128], strides = [1, 1]} : vector<32x128xbf16> to vector<1x128xbf16>
    %c12 = arith.constant 12 : index
    %c0_89 = arith.constant 0 : index
    %c0_90 = arith.constant 0 : index
    %130 = vector.load %arg8[%c12, %c0_89, %c0_90] : memref<25x128x128xbf16, #tpu.memory_space<vmem>>, vector<1x128x128xbf16>
    %131 = vector.shape_cast %130 : vector<1x128x128xbf16> to vector<128x128xbf16>
    %cst_91 = arith.constant dense<0.000000e+00> : vector<1x128xf32>
    %132 = tpu.matmul %129, %131, %cst_91 {dimension_numbers = #tpu.dot_dimension_numbers<[1], [0], [0], [1], [0, 0, 1, 1], [], []>} : vector<1x128xbf16>, vector<128x128xbf16>, vector<1x128xf32> -> vector<1x128xf32>
    %133 = arith.addf %128, %132 : vector<1x128xf32>
    %134 = vector.extract_strided_slice %69 {offsets = [13, 0], sizes = [1, 128], strides = [1, 1]} : vector<32x128xbf16> to vector<1x128xbf16>
    %c13 = arith.constant 13 : index
    %c0_92 = arith.constant 0 : index
    %c0_93 = arith.constant 0 : index
    %135 = vector.load %arg8[%c13, %c0_92, %c0_93] : memref<25x128x128xbf16, #tpu.memory_space<vmem>>, vector<1x128x128xbf16>
    %136 = vector.shape_cast %135 : vector<1x128x128xbf16> to vector<128x128xbf16>
    %cst_94 = arith.constant dense<0.000000e+00> : vector<1x128xf32>
    %137 = tpu.matmul %134, %136, %cst_94 {dimension_numbers = #tpu.dot_dimension_numbers<[1], [0], [0], [1], [0, 0, 1, 1], [], []>} : vector<1x128xbf16>, vector<128x128xbf16>, vector<1x128xf32> -> vector<1x128xf32>
    %138 = arith.addf %133, %137 : vector<1x128xf32>
    %139 = vector.extract_strided_slice %69 {offsets = [14, 0], sizes = [1, 128], strides = [1, 1]} : vector<32x128xbf16> to vector<1x128xbf16>
    %c14 = arith.constant 14 : index
    %c0_95 = arith.constant 0 : index
    %c0_96 = arith.constant 0 : index
    %140 = vector.load %arg8[%c14, %c0_95, %c0_96] : memref<25x128x128xbf16, #tpu.memory_space<vmem>>, vector<1x128x128xbf16>
    %141 = vector.shape_cast %140 : vector<1x128x128xbf16> to vector<128x128xbf16>
    %cst_97 = arith.constant dense<0.000000e+00> : vector<1x128xf32>
    %142 = tpu.matmul %139, %141, %cst_97 {dimension_numbers = #tpu.dot_dimension_numbers<[1], [0], [0], [1], [0, 0, 1, 1], [], []>} : vector<1x128xbf16>, vector<128x128xbf16>, vector<1x128xf32> -> vector<1x128xf32>
    %143 = arith.addf %138, %142 : vector<1x128xf32>
    %144 = vector.extract_strided_slice %69 {offsets = [15, 0], sizes = [1, 128], strides = [1, 1]} : vector<32x128xbf16> to vector<1x128xbf16>
    %c15 = arith.constant 15 : index
    %c0_98 = arith.constant 0 : index
    %c0_99 = arith.constant 0 : index
    %145 = vector.load %arg8[%c15, %c0_98, %c0_99] : memref<25x128x128xbf16, #tpu.memory_space<vmem>>, vector<1x128x128xbf16>
    %146 = vector.shape_cast %145 : vector<1x128x128xbf16> to vector<128x128xbf16>
    %cst_100 = arith.constant dense<0.000000e+00> : vector<1x128xf32>
    %147 = tpu.matmul %144, %146, %cst_100 {dimension_numbers = #tpu.dot_dimension_numbers<[1], [0], [0], [1], [0, 0, 1, 1], [], []>} : vector<1x128xbf16>, vector<128x128xbf16>, vector<1x128xf32> -> vector<1x128xf32>
    %148 = arith.addf %143, %147 : vector<1x128xf32>
    %149 = vector.extract_strided_slice %69 {offsets = [16, 0], sizes = [1, 128], strides = [1, 1]} : vector<32x128xbf16> to vector<1x128xbf16>
    %c16 = arith.constant 16 : index
    %c0_101 = arith.constant 0 : index
    %c0_102 = arith.constant 0 : index
    %150 = vector.load %arg8[%c16, %c0_101, %c0_102] : memref<25x128x128xbf16, #tpu.memory_space<vmem>>, vector<1x128x128xbf16>
    %151 = vector.shape_cast %150 : vector<1x128x128xbf16> to vector<128x128xbf16>
    %cst_103 = arith.constant dense<0.000000e+00> : vector<1x128xf32>
    %152 = tpu.matmul %149, %151, %cst_103 {dimension_numbers = #tpu.dot_dimension_numbers<[1], [0], [0], [1], [0, 0, 1, 1], [], []>} : vector<1x128xbf16>, vector<128x128xbf16>, vector<1x128xf32> -> vector<1x128xf32>
    %153 = arith.addf %148, %152 : vector<1x128xf32>
    %154 = vector.extract_strided_slice %69 {offsets = [17, 0], sizes = [1, 128], strides = [1, 1]} : vector<32x128xbf16> to vector<1x128xbf16>
    %c17 = arith.constant 17 : index
    %c0_104 = arith.constant 0 : index
    %c0_105 = arith.constant 0 : index
    %155 = vector.load %arg8[%c17, %c0_104, %c0_105] : memref<25x128x128xbf16, #tpu.memory_space<vmem>>, vector<1x128x128xbf16>
    %156 = vector.shape_cast %155 : vector<1x128x128xbf16> to vector<128x128xbf16>
    %cst_106 = arith.constant dense<0.000000e+00> : vector<1x128xf32>
    %157 = tpu.matmul %154, %156, %cst_106 {dimension_numbers = #tpu.dot_dimension_numbers<[1], [0], [0], [1], [0, 0, 1, 1], [], []>} : vector<1x128xbf16>, vector<128x128xbf16>, vector<1x128xf32> -> vector<1x128xf32>
    %158 = arith.addf %153, %157 : vector<1x128xf32>
    %159 = vector.extract_strided_slice %69 {offsets = [18, 0], sizes = [1, 128], strides = [1, 1]} : vector<32x128xbf16> to vector<1x128xbf16>
    %c18 = arith.constant 18 : index
    %c0_107 = arith.constant 0 : index
    %c0_108 = arith.constant 0 : index
    %160 = vector.load %arg8[%c18, %c0_107, %c0_108] : memref<25x128x128xbf16, #tpu.memory_space<vmem>>, vector<1x128x128xbf16>
    %161 = vector.shape_cast %160 : vector<1x128x128xbf16> to vector<128x128xbf16>
    %cst_109 = arith.constant dense<0.000000e+00> : vector<1x128xf32>
    %162 = tpu.matmul %159, %161, %cst_109 {dimension_numbers = #tpu.dot_dimension_numbers<[1], [0], [0], [1], [0, 0, 1, 1], [], []>} : vector<1x128xbf16>, vector<128x128xbf16>, vector<1x128xf32> -> vector<1x128xf32>
    %163 = arith.addf %158, %162 : vector<1x128xf32>
    %164 = vector.extract_strided_slice %69 {offsets = [19, 0], sizes = [1, 128], strides = [1, 1]} : vector<32x128xbf16> to vector<1x128xbf16>
    %c19 = arith.constant 19 : index
    %c0_110 = arith.constant 0 : index
    %c0_111 = arith.constant 0 : index
    %165 = vector.load %arg8[%c19, %c0_110, %c0_111] : memref<25x128x128xbf16, #tpu.memory_space<vmem>>, vector<1x128x128xbf16>
    %166 = vector.shape_cast %165 : vector<1x128x128xbf16> to vector<128x128xbf16>
    %cst_112 = arith.constant dense<0.000000e+00> : vector<1x128xf32>
    %167 = tpu.matmul %164, %166, %cst_112 {dimension_numbers = #tpu.dot_dimension_numbers<[1], [0], [0], [1], [0, 0, 1, 1], [], []>} : vector<1x128xbf16>, vector<128x128xbf16>, vector<1x128xf32> -> vector<1x128xf32>
    %168 = arith.addf %163, %167 : vector<1x128xf32>
    %169 = vector.extract_strided_slice %69 {offsets = [20, 0], sizes = [1, 128], strides = [1, 1]} : vector<32x128xbf16> to vector<1x128xbf16>
    %c20 = arith.constant 20 : index
    %c0_113 = arith.constant 0 : index
    %c0_114 = arith.constant 0 : index
    %170 = vector.load %arg8[%c20, %c0_113, %c0_114] : memref<25x128x128xbf16, #tpu.memory_space<vmem>>, vector<1x128x128xbf16>
    %171 = vector.shape_cast %170 : vector<1x128x128xbf16> to vector<128x128xbf16>
    %cst_115 = arith.constant dense<0.000000e+00> : vector<1x128xf32>
    %172 = tpu.matmul %169, %171, %cst_115 {dimension_numbers = #tpu.dot_dimension_numbers<[1], [0], [0], [1], [0, 0, 1, 1], [], []>} : vector<1x128xbf16>, vector<128x128xbf16>, vector<1x128xf32> -> vector<1x128xf32>
    %173 = arith.addf %168, %172 : vector<1x128xf32>
    %174 = vector.extract_strided_slice %69 {offsets = [21, 0], sizes = [1, 128], strides = [1, 1]} : vector<32x128xbf16> to vector<1x128xbf16>
    %c21 = arith.constant 21 : index
    %c0_116 = arith.constant 0 : index
    %c0_117 = arith.constant 0 : index
    %175 = vector.load %arg8[%c21, %c0_116, %c0_117] : memref<25x128x128xbf16, #tpu.memory_space<vmem>>, vector<1x128x128xbf16>
    %176 = vector.shape_cast %175 : vector<1x128x128xbf16> to vector<128x128xbf16>
    %cst_118 = arith.constant dense<0.000000e+00> : vector<1x128xf32>
    %177 = tpu.matmul %174, %176, %cst_118 {dimension_numbers = #tpu.dot_dimension_numbers<[1], [0], [0], [1], [0, 0, 1, 1], [], []>} : vector<1x128xbf16>, vector<128x128xbf16>, vector<1x128xf32> -> vector<1x128xf32>
    %178 = arith.addf %173, %177 : vector<1x128xf32>
    %179 = vector.extract_strided_slice %69 {offsets = [22, 0], sizes = [1, 128], strides = [1, 1]} : vector<32x128xbf16> to vector<1x128xbf16>
    %c22 = arith.constant 22 : index
    %c0_119 = arith.constant 0 : index
    %c0_120 = arith.constant 0 : index
    %180 = vector.load %arg8[%c22, %c0_119, %c0_120] : memref<25x128x128xbf16, #tpu.memory_space<vmem>>, vector<1x128x128xbf16>
    %181 = vector.shape_cast %180 : vector<1x128x128xbf16> to vector<128x128xbf16>
    %cst_121 = arith.constant dense<0.000000e+00> : vector<1x128xf32>
    %182 = tpu.matmul %179, %181, %cst_121 {dimension_numbers = #tpu.dot_dimension_numbers<[1], [0], [0], [1], [0, 0, 1, 1], [], []>} : vector<1x128xbf16>, vector<128x128xbf16>, vector<1x128xf32> -> vector<1x128xf32>
    %183 = arith.addf %178, %182 : vector<1x128xf32>
    %184 = vector.extract_strided_slice %69 {offsets = [23, 0], sizes = [1, 128], strides = [1, 1]} : vector<32x128xbf16> to vector<1x128xbf16>
    %c23 = arith.constant 23 : index
    %c0_122 = arith.constant 0 : index
    %c0_123 = arith.constant 0 : index
    %185 = vector.load %arg8[%c23, %c0_122, %c0_123] : memref<25x128x128xbf16, #tpu.memory_space<vmem>>, vector<1x128x128xbf16>
    %186 = vector.shape_cast %185 : vector<1x128x128xbf16> to vector<128x128xbf16>
    %cst_124 = arith.constant dense<0.000000e+00> : vector<1x128xf32>
    %187 = tpu.matmul %184, %186, %cst_124 {dimension_numbers = #tpu.dot_dimension_numbers<[1], [0], [0], [1], [0, 0, 1, 1], [], []>} : vector<1x128xbf16>, vector<128x128xbf16>, vector<1x128xf32> -> vector<1x128xf32>
    %188 = arith.addf %183, %187 : vector<1x128xf32>
    %189 = vector.extract_strided_slice %69 {offsets = [24, 0], sizes = [1, 128], strides = [1, 1]} : vector<32x128xbf16> to vector<1x128xbf16>
    %c24 = arith.constant 24 : index
    %c0_125 = arith.constant 0 : index
    %c0_126 = arith.constant 0 : index
    %190 = vector.load %arg8[%c24, %c0_125, %c0_126] : memref<25x128x128xbf16, #tpu.memory_space<vmem>>, vector<1x128x128xbf16>
    %191 = vector.shape_cast %190 : vector<1x128x128xbf16> to vector<128x128xbf16>
    %cst_127 = arith.constant dense<0.000000e+00> : vector<1x128xf32>
    %192 = tpu.matmul %189, %191, %cst_127 {dimension_numbers = #tpu.dot_dimension_numbers<[1], [0], [0], [1], [0, 0, 1, 1], [], []>} : vector<1x128xbf16>, vector<128x128xbf16>, vector<1x128xf32> -> vector<1x128xf32>
    %193 = arith.addf %188, %192 : vector<1x128xf32>
    %194 = arith.addf %193, %4 : vector<1x128xf32>
    %195 = math.tanh %194 : vector<1x128xf32>
    %196 = arith.truncf %195 : vector<1x128xf32> to vector<1x128xbf16>
    %cst_128 = arith.constant dense<0.000000e+00> : vector<1x128xf32>
    %197 = tpu.matmul %196, %7, %cst_128 {dimension_numbers = #tpu.dot_dimension_numbers<[1], [0], [0], [1], [0, 0, 1, 1], [], []>} : vector<1x128xbf16>, vector<128x128xbf16>, vector<1x128xf32> -> vector<1x128xf32>
    %198 = arith.addf %197, %5 : vector<1x128xf32>
    %199 = math.tanh %198 : vector<1x128xf32>
    %200 = arith.truncf %199 : vector<1x128xf32> to vector<1x128xbf16>
    %cst_129 = arith.constant dense<0.000000e+00> : vector<1x2xf32>
    %201 = tpu.matmul %200, %8, %cst_129 {dimension_numbers = #tpu.dot_dimension_numbers<[1], [0], [0], [1], [0, 0, 1, 1], [], []>} : vector<1x128xbf16>, vector<128x2xbf16>, vector<1x2xf32> -> vector<1x2xf32>
    %202 = arith.addf %201, %6 : vector<1x2xf32>
    %c0_130 = arith.constant 0 : index
    %c0_131 = arith.constant 0 : index
    %c0_132 = arith.constant 0 : index
    %203 = vector.load %arg14[%c0_130, %c0_131, %c0_132] : memref<1x1x2xf32, #tpu.memory_space<vmem>>, vector<1x1x2xf32>
    %204 = vector.shape_cast %203 : vector<1x1x2xf32> to vector<1x2xf32>
    %205 = vector.shape_cast %202 : vector<1x2xf32> to vector<1x1x2xf32>
    tpu.vector_store %arg14[%c0_130, %c0_131, %c0_132], %205 {strides = array<i32>} : memref<1x1x2xf32, #tpu.memory_space<vmem>>, vector<1x1x2xf32>,
    return
  }
  func.func @transform_0(%arg0: i32) -> (i32, i32, i32) {
    %c0_i32 = arith.constant 0 : i32
    %c0_i32_0 = arith.constant 0 : i32
    %c0_i32_1 = arith.constant 0 : i32
    return %arg0, %c0_i32, %c0_i32_0 : i32, i32, i32
  }
  func.func @transform_1(%arg0: i32) -> (i32, i32) {
    %c0_i32 = arith.constant 0 : i32
    %c0_i32_0 = arith.constant 0 : i32
    %c0_i32_1 = arith.constant 0 : i32
    return %c0_i32, %c0_i32_0 : i32, i32
  }
  func.func @transform_2(%arg0: i32) -> (i32, i32) {
    %c0_i32 = arith.constant 0 : i32
    %c0_i32_0 = arith.constant 0 : i32
    %c0_i32_1 = arith.constant 0 : i32
    return %c0_i32, %c0_i32_0 : i32, i32
  }
  func.func @transform_3(%arg0: i32) -> (i32, i32) {
    %c0_i32 = arith.constant 0 : i32
    %c0_i32_0 = arith.constant 0 : i32
    %c0_i32_1 = arith.constant 0 : i32
    return %c0_i32, %c0_i32_0 : i32, i32
  }
  func.func @transform_4(%arg0: i32) -> (i32, i32) {
    %c0_i32 = arith.constant 0 : i32
    %c0_i32_0 = arith.constant 0 : i32
    %c0_i32_1 = arith.constant 0 : i32
    return %c0_i32, %c0_i32_0 : i32, i32
  }
  func.func @transform_5(%arg0: i32) -> (i32, i32) {
    %c0_i32 = arith.constant 0 : i32
    %c0_i32_0 = arith.constant 0 : i32
    %c0_i32_1 = arith.constant 0 : i32
    return %c0_i32, %c0_i32_0 : i32, i32
  }
  func.func @transform_6(%arg0: i32) -> (i32, i32) {
    %c0_i32 = arith.constant 0 : i32
    %c0_i32_0 = arith.constant 0 : i32
    %c0_i32_1 = arith.constant 0 : i32
    return %c0_i32, %c0_i32_0 : i32, i32
  }
  func.func @transform_7(%arg0: i32) -> (i32, i32, i32) {
    %c0_i32 = arith.constant 0 : i32
    %c0_i32_0 = arith.constant 0 : i32
    %c0_i32_1 = arith.constant 0 : i32
    %c0_i32_2 = arith.constant 0 : i32
    return %c0_i32, %c0_i32_0, %c0_i32_1 : i32, i32, i32
  }
  func.func @transform_8(%arg0: i32) -> (i32, i32) {
    %c0_i32 = arith.constant 0 : i32
    %c0_i32_0 = arith.constant 0 : i32
    %c0_i32_1 = arith.constant 0 : i32
    return %c0_i32, %c0_i32_0 : i32, i32
  }
  func.func @transform_9(%arg0: i32) -> (i32, i32) {
    %c0_i32 = arith.constant 0 : i32
    %c0_i32_0 = arith.constant 0 : i32
    %c0_i32_1 = arith.constant 0 : i32
    return %c0_i32, %c0_i32_0 : i32, i32
  }
  func.func @transform_10(%arg0: i32) -> (i32, i32) {
    %c0_i32 = arith.constant 0 : i32
    %c0_i32_0 = arith.constant 0 : i32
    %c0_i32_1 = arith.constant 0 : i32
    return %c0_i32, %c0_i32_0 : i32, i32
  }
  func.func @transform_11(%arg0: i32) -> (i32, i32) {
    %c0_i32 = arith.constant 0 : i32
    %c0_i32_0 = arith.constant 0 : i32
    %c0_i32_1 = arith.constant 0 : i32
    return %c0_i32, %c0_i32_0 : i32, i32
  }
  func.func @transform_12(%arg0: i32) -> (i32, i32) {
    %c0_i32 = arith.constant 0 : i32
    %c0_i32_0 = arith.constant 0 : i32
    %c0_i32_1 = arith.constant 0 : i32
    return %c0_i32, %c0_i32_0 : i32, i32
  }
  func.func @transform_13(%arg0: i32) -> (i32, i32, i32) {
    %c0_i32 = arith.constant 0 : i32
    %c0_i32_0 = arith.constant 0 : i32
    %c0_i32_1 = arith.constant 0 : i32
    return %arg0, %c0_i32, %c0_i32_0 : i32, i32, i32
  }
}

</mosaic_0001>

<llo_original>
// kernel: net_forward.1
$region0: #{net_forward.1}
  #allocation0 [shape = 'u32[]', space=smem, size = 0x4, offset = 0x4, fixed_abs, tag = 'smem constant byte address 0x4 - core index']
  #allocation1 [shape = 'u32[144,128]{1,0:T(1,128)}', space=vmem, size = 0x12000, scoped, tag = 'internal scratch']
  %s0 = inlined_call_operand.vmem [shape: bf16[2,1024,40], index: 0, kind: input, shape index: {}]
  %s1 = inlined_call_operand.vmem [shape: bf16[200,32], index: 1, kind: input, shape index: {}]
  %s2 = inlined_call_operand.vmem [shape: f32[1,32], index: 2, kind: input, shape index: {}]
  %s3 = inlined_call_operand.vmem [shape: bf16[232,896], index: 3, kind: input, shape index: {}]
  %s4 = inlined_call_operand.vmem [shape: bf16[800,128], index: 4, kind: input, shape index: {}]
  %s5 = inlined_call_operand.vmem [shape: f32[1,128], index: 5, kind: input, shape index: {}]
  %s6 = inlined_call_operand.vmem [shape: bf16[32,160], index: 6, kind: input, shape index: {}]
  %s7 = inlined_call_operand.vmem [shape: bf16[25,128,128], index: 7, kind: input, shape index: {}]
  %s8 = inlined_call_operand.vmem [shape: f32[1,128], index: 8, kind: input, shape index: {}]
  %s9 = inlined_call_operand.vmem [shape: bf16[128,128], index: 9, kind: input, shape index: {}]
  %s10 = inlined_call_operand.vmem [shape: f32[1,128], index: 10, kind: input, shape index: {}]
  %s11 = inlined_call_operand.vmem [shape: bf16[128,2], index: 11, kind: input, shape index: {}]
  %s12 = inlined_call_operand.vmem [shape: f32[1,2], index: 12, kind: input, shape index: {}]
  %s13 = inlined_call_operand.hbm [shape: f32[2,1,2], index: 13, kind: output, shape index: {}]
  %s14 = sld [smem:[#allocation0]]
  $region85: #{net_forward.1} parent=0
    _
  %s16 = ssub.s32 1, %s14
  %s17 = scalar_select 0, %s16, %s14
  $region1: #{net_forward.1} parent=0
    #allocation2 [shape = 'u8[1024]{0}', space=vmem, size = 0x400, scoped, tag = 'output window, operand 0']
    #allocation3 [shape = 's32[2]{0}', space=sflag, size = 0x8, scoped, tag = 'scoped memory for net_forward.1']
    %18 = vsyncpa [#allocation3], 0
    %s19 = scalar_lea.sflag [#allocation3], 1
    %20 = vsyncpa %s19, 0
    loop: start=0, step=1, limit=4
    $region2: #{net_forward.1} parent=1 // loop_pre_header
      _
    $region3: #{net_forward.1} parent=1 // loop_header
      %s22 = sphi 0, %s26
      %p23 = scmp.ge.s32.totalorder %s22, 4
      %s32 = sphi 0, %s34
      %s35 = sphi 0, %s32
      %s36 = sphi 0, %s35
      %s52 = sphi 0, %s36
      %s56 = sphi 0, %s56
      %s58 = sphi 0, %s56
      %s59 = sphi 0, %s58
      %s73 = sphi 0, %s59
      %s77 = sphi 0, %s77
      %s79 = sphi 0, %s77
      %s80 = sphi 0, %s79
      %s94 = sphi 0, %s80
      %s98 = sphi 0, %s98
      %s100 = sphi 0, %s98
      %s101 = sphi 0, %s100
      %s115 = sphi 0, %s101
      %s119 = sphi 0, %s119
      %s121 = sphi 0, %s119
      %s122 = sphi 0, %s121
      %s136 = sphi 0, %s122
      %s140 = sphi 0, %s140
      %s142 = sphi 0, %s140
      %s143 = sphi 0, %s142
      %s157 = sphi 0, %s143
      %s161 = sphi 0, %s161
      %s163 = sphi 0, %s161
      %s164 = sphi 0, %s163
      %s178 = sphi 0, %s164
      %s182 = sphi 0, %s182
      %s184 = sphi 0, %s182
      %s185 = sphi 0, %s184
      %s199 = sphi 0, %s185
      %s203 = sphi 0, %s203
      %s205 = sphi 0, %s203
      %s206 = sphi 0, %s205
      %s220 = sphi 0, %s206
      %s224 = sphi 0, %s224
      %s226 = sphi 0, %s224
      %s227 = sphi 0, %s226
      %s241 = sphi 0, %s227
      %s245 = sphi 0, %s245
      %s247 = sphi 0, %s245
      %s248 = sphi 0, %s247
      %s262 = sphi 0, %s248
      %s266 = sphi 0, %s266
      %s268 = sphi 0, %s266
      %s269 = sphi 0, %s268
      %s283 = sphi 0, %s269
      %s287 = sphi 0, %s287
      %s289 = sphi 0, %s287
      %s290 = sphi 0, %s289
      %s304 = sphi 0, %s290
      %s310 = sphi 0, %s312
      %s313 = sphi 0, %s310
      %s314 = sphi 0, %s313
      %s330 = sphi 0, %s314
    $region4: #{net_forward.1} parent=1 // loop_header_branch
      %25 = sbr.rel (%p23) target = $region8
    $region5: #{net_forward.1} parent=1 // loop_body
      %s27 = ssub.s32 %s22, 1
      %s28 = ssub.s32 %s22, 2
      %s29 = sadd.s32 %s22, 1
      %s30 = ssub.s32 %s22, %s29
      %p31 = scmp.eq.s32.totalorder %s30, 0
      %s33 = sadd.s32 %s32, 1
      %s34 = scalar_select %p31, %s32, %s33
      %p37 = pneg %p31
      %p38 = scmp.eq.s32.totalorder %s22, 1
      %p39 = por %p37, %p38
      %p40 = scmp.ne.s32.totalorder %s32, %s35
      %p41 = scmp.eq.s32.totalorder %s22, 0
      %p42 = por %p40, %p41
      %p43 = scmp.ne.s32.totalorder %s32, %s35
      %p44 = scmp.eq.s32.totalorder %s27, 1
      %p45 = por %p43, %p44
      %p46 = scmp.ne.s32.totalorder %s35, %s36
      %p47 = scmp.eq.s32.totalorder %s27, 0
      %p48 = por %p46, %p47
      %p49 = scmp.ne.s32.totalorder %s35, %s36
      %p50 = scmp.eq.s32.totalorder %s28, 1
      %p51 = por %p49, %p50
      %p53 = scmp.ne.s32.totalorder %s36, %s52
      %p54 = scmp.eq.s32.totalorder %s28, 0
      %p55 = por %p53, %p54
      %s57 = sadd.s32 %s56, 1
      %p60 = scmp.eq.s32.totalorder %s22, 1
      %p61 = scmp.ne.s32.totalorder %s56, %s58
      %p62 = scmp.eq.s32.totalorder %s22, 0
      %p63 = por %p61, %p62
      %p64 = scmp.ne.s32.totalorder %s56, %s58
      %p65 = scmp.eq.s32.totalorder %s27, 1
      %p66 = por %p64, %p65
      %p67 = scmp.ne.s32.totalorder %s58, %s59
      %p68 = scmp.eq.s32.totalorder %s27, 0
      %p69 = por %p67, %p68
      %p70 = scmp.ne.s32.totalorder %s58, %s59
      %p71 = scmp.eq.s32.totalorder %s28, 1
      %p72 = por %p70, %p71
      %p74 = scmp.ne.s32.totalorder %s59, %s73
      %p75 = scmp.eq.s32.totalorder %s28, 0
      %p76 = por %p74, %p75
      %s78 = sadd.s32 %s77, 1
      %p81 = scmp.eq.s32.totalorder %s22, 1
      %p82 = scmp.ne.s32.totalorder %s77, %s79
      %p83 = scmp.eq.s32.totalorder %s22, 0
      %p84 = por %p82, %p83
      %p85 = scmp.ne.s32.totalorder %s77, %s79
      %p86 = scmp.eq.s32.totalorder %s27, 1
      %p87 = por %p85, %p86
      %p88 = scmp.ne.s32.totalorder %s79, %s80
      %p89 = scmp.eq.s32.totalorder %s27, 0
      %p90 = por %p88, %p89
      %p91 = scmp.ne.s32.totalorder %s79, %s80
      %p92 = scmp.eq.s32.totalorder %s28, 1
      %p93 = por %p91, %p92
      %p95 = scmp.ne.s32.totalorder %s80, %s94
      %p96 = scmp.eq.s32.totalorder %s28, 0
      %p97 = por %p95, %p96
      %s99 = sadd.s32 %s98, 1
      %p102 = scmp.eq.s32.totalorder %s22, 1
      %p103 = scmp.ne.s32.totalorder %s98, %s100
      %p104 = scmp.eq.s32.totalorder %s22, 0
      %p105 = por %p103, %p104
      %p106 = scmp.ne.s32.totalorder %s98, %s100
      %p107 = scmp.eq.s32.totalorder %s27, 1
      %p108 = por %p106, %p107
      %p109 = scmp.ne.s32.totalorder %s100, %s101
      %p110 = scmp.eq.s32.totalorder %s27, 0
      %p111 = por %p109, %p110
      %p112 = scmp.ne.s32.totalorder %s100, %s101
      %p113 = scmp.eq.s32.totalorder %s28, 1
      %p114 = por %p112, %p113
      %p116 = scmp.ne.s32.totalorder %s101, %s115
      %p117 = scmp.eq.s32.totalorder %s28, 0
      %p118 = por %p116, %p117
      %s120 = sadd.s32 %s119, 1
      %p123 = scmp.eq.s32.totalorder %s22, 1
      %p124 = scmp.ne.s32.totalorder %s119, %s121
      %p125 = scmp.eq.s32.totalorder %s22, 0
      %p126 = por %p124, %p125
      %p127 = scmp.ne.s32.totalorder %s119, %s121
      %p128 = scmp.eq.s32.totalorder %s27, 1
      %p129 = por %p127, %p128
      %p130 = scmp.ne.s32.totalorder %s121, %s122
      %p131 = scmp.eq.s32.totalorder %s27, 0
      %p132 = por %p130, %p131
      %p133 = scmp.ne.s32.totalorder %s121, %s122
      %p134 = scmp.eq.s32.totalorder %s28, 1
      %p135 = por %p133, %p134
      %p137 = scmp.ne.s32.totalorder %s122, %s136
      %p138 = scmp.eq.s32.totalorder %s28, 0
      %p139 = por %p137, %p138
      %s141 = sadd.s32 %s140, 1
      %p144 = scmp.eq.s32.totalorder %s22, 1
      %p145 = scmp.ne.s32.totalorder %s140, %s142
      %p146 = scmp.eq.s32.totalorder %s22, 0
      %p147 = por %p145, %p146
      %p148 = scmp.ne.s32.totalorder %s140, %s142
      %p149 = scmp.eq.s32.totalorder %s27, 1
      %p150 = por %p148, %p149
      %p151 = scmp.ne.s32.totalorder %s142, %s143
      %p152 = scmp.eq.s32.totalorder %s27, 0
      %p153 = por %p151, %p152
      %p154 = scmp.ne.s32.totalorder %s142, %s143
      %p155 = scmp.eq.s32.totalorder %s28, 1
      %p156 = por %p154, %p155
      %p158 = scmp.ne.s32.totalorder %s143, %s157
      %p159 = scmp.eq.s32.totalorder %s28, 0
      %p160 = por %p158, %p159
      %s162 = sadd.s32 %s161, 1
      %p165 = scmp.eq.s32.totalorder %s22, 1
      %p166 = scmp.ne.s32.totalorder %s161, %s163
      %p167 = scmp.eq.s32.totalorder %s22, 0
      %p168 = por %p166, %p167
      %p169 = scmp.ne.s32.totalorder %s161, %s163
      %p170 = scmp.eq.s32.totalorder %s27, 1
      %p171 = por %p169, %p170
      %p172 = scmp.ne.s32.totalorder %s163, %s164
      %p173 = scmp.eq.s32.totalorder %s27, 0
      %p174 = por %p172, %p173
      %p175 = scmp.ne.s32.totalorder %s163, %s164
      %p176 = scmp.eq.s32.totalorder %s28, 1
      %p177 = por %p175, %p176
      %p179 = scmp.ne.s32.totalorder %s164, %s178
      %p180 = scmp.eq.s32.totalorder %s28, 0
      %p181 = por %p179, %p180
      %s183 = sadd.s32 %s182, 1
      %p186 = scmp.eq.s32.totalorder %s22, 1
      %p187 = scmp.ne.s32.totalorder %s182, %s184
      %p188 = scmp.eq.s32.totalorder %s22, 0
      %p189 = por %p187, %p188
      %p190 = scmp.ne.s32.totalorder %s182, %s184
      %p191 = scmp.eq.s32.totalorder %s27, 1
      %p192 = por %p190, %p191
      %p193 = scmp.ne.s32.totalorder %s184, %s185
      %p194 = scmp.eq.s32.totalorder %s27, 0
      %p195 = por %p193, %p194
      %p196 = scmp.ne.s32.totalorder %s184, %s185
      %p197 = scmp.eq.s32.totalorder %s28, 1
      %p198 = por %p196, %p197
      %p200 = scmp.ne.s32.totalorder %s185, %s199
      %p201 = scmp.eq.s32.totalorder %s28, 0
      %p202 = por %p200, %p201
      %s204 = sadd.s32 %s203, 1
      %p207 = scmp.eq.s32.totalorder %s22, 1
      %p208 = scmp.ne.s32.totalorder %s203, %s205
      %p209 = scmp.eq.s32.totalorder %s22, 0
      %p210 = por %p208, %p209
      %p211 = scmp.ne.s32.totalorder %s203, %s205
      %p212 = scmp.eq.s32.totalorder %s27, 1
      %p213 = por %p211, %p212
      %p214 = scmp.ne.s32.totalorder %s205, %s206
      %p215 = scmp.eq.s32.totalorder %s27, 0
      %p216 = por %p214, %p215
      %p217 = scmp.ne.s32.totalorder %s205, %s206
      %p218 = scmp.eq.s32.totalorder %s28, 1
      %p219 = por %p217, %p218
      %p221 = scmp.ne.s32.totalorder %s206, %s220
      %p222 = scmp.eq.s32.totalorder %s28, 0
      %p223 = por %p221, %p222
      %s225 = sadd.s32 %s224, 1
      %p228 = scmp.eq.s32.totalorder %s22, 1
      %p229 = scmp.ne.s32.totalorder %s224, %s226
      %p230 = scmp.eq.s32.totalorder %s22, 0
      %p231 = por %p229, %p230
      %p232 = scmp.ne.s32.totalorder %s224, %s226
      %p233 = scmp.eq.s32.totalorder %s27, 1
      %p234 = por %p232, %p233
      %p235 = scmp.ne.s32.totalorder %s226, %s227
      %p236 = scmp.eq.s32.totalorder %s27, 0
      %p237 = por %p235, %p236
      %p238 = scmp.ne.s32.totalorder %s226, %s227
      %p239 = scmp.eq.s32.totalorder %s28, 1
      %p240 = por %p238, %p239
      %p242 = scmp.ne.s32.totalorder %s227, %s241
      %p243 = scmp.eq.s32.totalorder %s28, 0
      %p244 = por %p242, %p243
      %s246 = sadd.s32 %s245, 1
      %p249 = scmp.eq.s32.totalorder %s22, 1
      %p250 = scmp.ne.s32.totalorder %s245, %s247
      %p251 = scmp.eq.s32.totalorder %s22, 0
      %p252 = por %p250, %p251
      %p253 = scmp.ne.s32.totalorder %s245, %s247
      %p254 = scmp.eq.s32.totalorder %s27, 1
      %p255 = por %p253, %p254
      %p256 = scmp.ne.s32.totalorder %s247, %s248
      %p257 = scmp.eq.s32.totalorder %s27, 0
      %p258 = por %p256, %p257
      %p259 = scmp.ne.s32.totalorder %s247, %s248
      %p260 = scmp.eq.s32.totalorder %s28, 1
      %p261 = por %p259, %p260
      %p263 = scmp.ne.s32.totalorder %s248, %s262
      %p264 = scmp.eq.s32.totalorder %s28, 0
      %p265 = por %p263, %p264
      %s267 = sadd.s32 %s266, 1
      %p270 = scmp.eq.s32.totalorder %s22, 1
      %p271 = scmp.ne.s32.totalorder %s266, %s268
      %p272 = scmp.eq.s32.totalorder %s22, 0
      %p273 = por %p271, %p272
      %p274 = scmp.ne.s32.totalorder %s266, %s268
      %p275 = scmp.eq.s32.totalorder %s27, 1
      %p276 = por %p274, %p275
      %p277 = scmp.ne.s32.totalorder %s268, %s269
      %p278 = scmp.eq.s32.totalorder %s27, 0
      %p279 = por %p277, %p278
      %p280 = scmp.ne.s32.totalorder %s268, %s269
      %p281 = scmp.eq.s32.totalorder %s28, 1
      %p282 = por %p280, %p281
      %p284 = scmp.ne.s32.totalorder %s269, %s283
      %p285 = scmp.eq.s32.totalorder %s28, 0
      %p286 = por %p284, %p285
      %s288 = sadd.s32 %s287, 1
      %p291 = scmp.eq.s32.totalorder %s22, 1
      %p292 = scmp.ne.s32.totalorder %s287, %s289
      %p293 = scmp.eq.s32.totalorder %s22, 0
      %p294 = por %p292, %p293
      %p295 = scmp.ne.s32.totalorder %s287, %s289
      %p296 = scmp.eq.s32.totalorder %s27, 1
      %p297 = por %p295, %p296
      %p298 = scmp.ne.s32.totalorder %s289, %s290
      %p299 = scmp.eq.s32.totalorder %s27, 0
      %p300 = por %p298, %p299
      %p301 = scmp.ne.s32.totalorder %s289, %s290
      %p302 = scmp.eq.s32.totalorder %s28, 1
      %p303 = por %p301, %p302
      %p305 = scmp.ne.s32.totalorder %s290, %s304
      %p306 = scmp.eq.s32.totalorder %s28, 0
      %p307 = por %p305, %p306
      %s308 = ssub.s32 %s22, %s29
      %p309 = scmp.eq.s32.totalorder %s308, 0
      %s311 = sadd.s32 %s310, 1
      %s312 = scalar_select %p309, %s310, %s311
      %p315 = pneg %p309
      %p316 = scmp.eq.s32.totalorder %s22, 1
      %p317 = por %p315, %p316
      %p318 = scmp.ne.s32.totalorder %s310, %s313
      %p319 = scmp.eq.s32.totalorder %s22, 0
      %p320 = por %p318, %p319
      %p321 = scmp.ne.s32.totalorder %s310, %s313
      %p322 = scmp.eq.s32.totalorder %s27, 1
      %p323 = por %p321, %p322
      %p324 = scmp.ne.s32.totalorder %s313, %s314
      %p325 = scmp.eq.s32.totalorder %s27, 0
      %p326 = por %p324, %p325
      %p327 = scmp.ne.s32.totalorder %s313, %s314
      %p328 = scmp.eq.s32.totalorder %s28, 1
      %p329 = por %p327, %p328
      %p331 = scmp.ne.s32.totalorder %s314, %s330
      %p332 = scmp.eq.s32.totalorder %s28, 0
      %p333 = por %p331, %p332
      %p334 = scmp.le.s32.totalorder 1, %s22
      %p335 = scmp.lt.s32.totalorder %s22, 3
      %p336 = pnand %p334, %p335
      %p337 = pneg %p336
      // Predicated region
      $region9: #{net_forward.1} parent=5 // pred_check
        _
      $region10: #{net_forward.1} parent=5 // pred_check_branch
        %339 = sbr.rel (%p336) target = $region12
      $region11: #{net_forward.1} parent=5 // pred_region
        %s340 = ssub.s32 %s22, 1
        // Predicated region
        $region13: #{net_forward.1} parent=11 // pred_check
          %p341 = pneg %p69
        $region14: #{net_forward.1} parent=11 // pred_check_branch
          %343 = sbr.rel (%p341) target = $region16
        $region15: #{net_forward.1} parent=11 // pred_region
          _
        $region16: #{net_forward.1} parent=11 // pred_fallthru
          _
        // Predicated region
        $region17: #{net_forward.1} parent=11 // pred_check
          %p344 = pneg %p90
        $region18: #{net_forward.1} parent=11 // pred_check_branch
          %346 = sbr.rel (%p344) target = $region20
        $region19: #{net_forward.1} parent=11 // pred_region
          _
        $region20: #{net_forward.1} parent=11 // pred_fallthru
          _
        // Predicated region
        $region21: #{net_forward.1} parent=11 // pred_check
          %p347 = pneg %p111
        $region22: #{net_forward.1} parent=11 // pred_check_branch
          %349 = sbr.rel (%p347) target = $region24
        $region23: #{net_forward.1} parent=11 // pred_region
          _
        $region24: #{net_forward.1} parent=11 // pred_fallthru
          _
        // Predicated region
        $region25: #{net_forward.1} parent=11 // pred_check
          %p350 = pneg %p132
        $region26: #{net_forward.1} parent=11 // pred_check_branch
          %352 = sbr.rel (%p350) target = $region28
        $region27: #{net_forward.1} parent=11 // pred_region
          _
        $region28: #{net_forward.1} parent=11 // pred_fallthru
          _
        // Predicated region
        $region29: #{net_forward.1} parent=11 // pred_check
          %p353 = pneg %p153
        $region30: #{net_forward.1} parent=11 // pred_check_branch
          %355 = sbr.rel (%p353) target = $region32
        $region31: #{net_forward.1} parent=11 // pred_region
          _
        $region32: #{net_forward.1} parent=11 // pred_fallthru
          _
        // Predicated region
        $region33: #{net_forward.1} parent=11 // pred_check
          %p356 = pneg %p174
        $region34: #{net_forward.1} parent=11 // pred_check_branch
          %358 = sbr.rel (%p356) target = $region36
        $region35: #{net_forward.1} parent=11 // pred_region
          _
        $region36: #{net_forward.1} parent=11 // pred_fallthru
          _
        // Predicated region
        $region37: #{net_forward.1} parent=11 // pred_check
          %p359 = pneg %p195
        $region38: #{net_forward.1} parent=11 // pred_check_branch
          %361 = sbr.rel (%p359) target = $region40
        $region39: #{net_forward.1} parent=11 // pred_region
          _
        $region40: #{net_forward.1} parent=11 // pred_fallthru
          _
        // Predicated region
        $region41: #{net_forward.1} parent=11 // pred_check
          %p362 = pneg %p216
        $region42: #{net_forward.1} parent=11 // pred_check_branch
          %364 = sbr.rel (%p362) target = $region44
        $region43: #{net_forward.1} parent=11 // pred_region
          _
        $region44: #{net_forward.1} parent=11 // pred_fallthru
          _
        // Predicated region
        $region45: #{net_forward.1} parent=11 // pred_check
          %p365 = pneg %p237
        $region46: #{net_forward.1} parent=11 // pred_check_branch
          %367 = sbr.rel (%p365) target = $region48
        $region47: #{net_forward.1} parent=11 // pred_region
          _
        $region48: #{net_forward.1} parent=11 // pred_fallthru
          _
        // Predicated region
        $region49: #{net_forward.1} parent=11 // pred_check
          %p368 = pneg %p258
        $region50: #{net_forward.1} parent=11 // pred_check_branch
          %370 = sbr.rel (%p368) target = $region52
        $region51: #{net_forward.1} parent=11 // pred_region
          _
        $region52: #{net_forward.1} parent=11 // pred_fallthru
          _
        // Predicated region
        $region53: #{net_forward.1} parent=11 // pred_check
          %p371 = pneg %p279
        $region54: #{net_forward.1} parent=11 // pred_check_branch
          %373 = sbr.rel (%p371) target = $region56
        $region55: #{net_forward.1} parent=11 // pred_region
          _
        $region56: #{net_forward.1} parent=11 // pred_fallthru
          _
        // Predicated region
        $region57: #{net_forward.1} parent=11 // pred_check
          %p374 = pneg %p300
        $region58: #{net_forward.1} parent=11 // pred_check_branch
          %376 = sbr.rel (%p374) target = $region60
        $region59: #{net_forward.1} parent=11 // pred_region
          _
        $region60: #{net_forward.1} parent=11 // pred_fallthru
          _
      $region12: #{net_forward.1} parent=5 // pred_fallthru
        _
      %p377 = scmp.lt.s32.totalorder %s22, 2
      // Predicated region
      $region61: #{net_forward.1} parent=5 // pred_check
        %p378 = pneg %p377
      $region62: #{net_forward.1} parent=5 // pred_check_branch
        %380 = sbr.rel (%p378) target = $region64
      $region63: #{net_forward.1} parent=5 // pred_region
        // Predicated region
        $region65: #{net_forward.1} parent=63 // pred_check
          %p381 = pneg %p42
        $region66: #{net_forward.1} parent=63 // pred_check_branch
          %383 = sbr.rel (%p381) target = $region68
        $region67: #{net_forward.1} parent=63 // pred_region
          %p384 = scmp.lt.s32.totalorder %s22, 1
          %s385 = scalar_select %p384, %s22, 1
          %s386 = smul.addr %s385, 128
          %s387 = smul.addr %s386, 4
          %s388 = scalar_lea.vmem %s0, %s387
        $region68: #{net_forward.1} parent=63 // pred_fallthru
          _
      $region64: #{net_forward.1} parent=5 // pred_fallthru
        _
      %p389 = scmp.le.s32.totalorder 1, %s22
      %p390 = scmp.lt.s32.totalorder %s22, 3
      %p391 = pnand %p389, %p390
      %p392 = pneg %p391
      // Predicated region
      $region69: #{net_forward.1} parent=5 // pred_check
        _
      $region70: #{net_forward.1} parent=5 // pred_check_branch
        %394 = sbr.rel (%p391) target = $region72
      $region71: #{net_forward.1} parent=5 // pred_region
        %s395 = ssub.s32 %s22, 1
        %p396 = scmp.lt.s32.totalorder %s27, 1
        %s397 = scalar_select %p396, %s27, 1
        %s398 = smul.addr %s397, 128
        %s399 = smul.addr %s398, 4
        %s400 = scalar_lea.vmem %s0, %s399
        %p401 = pneg %p48
        %p402 = pneg %p45
        %p403 = pneg %p69
        %p404 = pneg %p66
        %p405 = pneg %p90
        %p406 = pneg %p87
        %p407 = pneg %p111
        %p408 = pneg %p108
        %p409 = pneg %p132
        %p410 = pneg %p129
        %p411 = pneg %p153
        %p412 = pneg %p150
        %p413 = pneg %p174
        %p414 = pneg %p171
        %p415 = pneg %p195
        %p416 = pneg %p192
        %p417 = pneg %p216
        %p418 = pneg %p213
        %p419 = pneg %p237
        %p420 = pneg %p234
        %p421 = pneg %p258
        %p422 = pneg %p255
        %p423 = pneg %p279
        %p424 = pneg %p276
        %p425 = pneg %p300
        %p426 = pneg %p297
        %p427 = pneg %p326
        %p428 = pneg %p323
        %s429 = sand.u32 %s313, 1
        %s430 = scalar_lea.sflag [#allocation3], %s429
        %s431 = sand.u32 %s313, 1
        %s432 = scalar_lea.vmem [#allocation2], %s431
        %p433 = scmp.lt.s32.totalorder %s27, 1
        %s434 = scalar_select %p433, %s27, 1
        %s435 = smul.addr %s434, 128
        %s436 = smul.addr %s435, 4
        %s437 = scalar_lea.vmem %s0, %s436
        %v439 = vld [vmem:[%s2] sm:$0x1]
        %v440 = vld [vmem:[%s5] sm:$0x1]
        %v441 = vld [vmem:[%s3] sm:$0xff]
        %v442 = vld [vmem:[%s3 + $0x8] sm:$0xff]
        %v443 = vld [vmem:[%s3 + $0x10] sm:$0xff]
        %v444 = vld [vmem:[%s3 + $0x18] sm:$0xf]
        %v445 = vld [vmem:[%s3 + $0x1c] sm:$0xff]
        %v446 = vld [vmem:[%s3 + $0x24] sm:$0xff]
        %v447 = vld [vmem:[%s3 + $0x2c] sm:$0xff]
        %v448 = vld [vmem:[%s3 + $0x34] sm:$0xf]
        %v449 = vld [vmem:[%s3 + $0x38] sm:$0xff]
        %v450 = vld [vmem:[%s3 + $0x40] sm:$0xff]
        %v451 = vld [vmem:[%s3 + $0x48] sm:$0xff]
        %v452 = vld [vmem:[%s3 + $0x50] sm:$0xf]
        %v453 = vld [vmem:[%s3 + $0x54] sm:$0xff]
        %v454 = vld [vmem:[%s3 + $0x5c] sm:$0xff]
        %v455 = vld [vmem:[%s3 + $0x64] sm:$0xff]
        %v456 = vld [vmem:[%s3 + $0x6c] sm:$0xf]
        %v457 = vld [vmem:[%s3 + $0x70] sm:$0xff]
        %v458 = vld [vmem:[%s3 + $0x78] sm:$0xff]
        %v459 = vld [vmem:[%s3 + $0x80] sm:$0xff]
        %v460 = vld [vmem:[%s3 + $0x88] sm:$0xf]
        %v461 = vld [vmem:[%s3 + $0x8c] sm:$0xff]
        %v462 = vld [vmem:[%s3 + $0x94] sm:$0xff]
        %v463 = vld [vmem:[%s3 + $0x9c] sm:$0xff]
        %v464 = vld [vmem:[%s3 + $0xa4] sm:$0xf]
        %v465 = vld [vmem:[%s3 + $0xa8] sm:$0xff]
        %v466 = vld [vmem:[%s3 + $0xb0] sm:$0xff]
        %v467 = vld [vmem:[%s3 + $0xb8] sm:$0xff]
        %v468 = vld [vmem:[%s3 + $0xc0] sm:$0xf]
        %v469 = vld [vmem:[%s3 + $0xc4] sm:$0xff]
        %v470 = vld [vmem:[%s3 + $0xcc] sm:$0xff]
        %v471 = vld [vmem:[%s3 + $0xd4] sm:$0xff]
        %v472 = vld [vmem:[%s3 + $0xdc] sm:$0xf]
        %v473 = vld [vmem:[%s3 + $0xe0] sm:$0xff]
        %v474 = vld [vmem:[%s3 + $0xe8] sm:$0xff]
        %v475 = vld [vmem:[%s3 + $0xf0] sm:$0xff]
        %v476 = vld [vmem:[%s3 + $0xf8] sm:$0xf]
        %v477 = vld [vmem:[%s3 + $0xfc] sm:$0xff]
        %v478 = vld [vmem:[%s3 + $0x104] sm:$0xff]
        %v479 = vld [vmem:[%s3 + $0x10c] sm:$0xff]
        %v480 = vld [vmem:[%s3 + $0x114] sm:$0xf]
        %v481 = vld [vmem:[%s3 + $0x118] sm:$0xff]
        %v482 = vld [vmem:[%s3 + $0x120] sm:$0xff]
        %v483 = vld [vmem:[%s3 + $0x128] sm:$0xff]
        %v484 = vld [vmem:[%s3 + $0x130] sm:$0xf]
        %v485 = vld [vmem:[%s3 + $0x134] sm:$0xff]
        %v486 = vld [vmem:[%s3 + $0x13c] sm:$0xff]
        %v487 = vld [vmem:[%s3 + $0x144] sm:$0xff]
        %v488 = vld [vmem:[%s3 + $0x14c] sm:$0xf]
        %v489 = vld [vmem:[%s3 + $0x150] sm:$0xff]
        %v490 = vld [vmem:[%s3 + $0x158] sm:$0xff]
        %v491 = vld [vmem:[%s3 + $0x160] sm:$0xff]
        %v492 = vld [vmem:[%s3 + $0x168] sm:$0xf]
        %v493 = vld [vmem:[%s3 + $0x16c] sm:$0xff]
        %v494 = vld [vmem:[%s3 + $0x174] sm:$0xff]
        %v495 = vld [vmem:[%s3 + $0x17c] sm:$0xff]
        %v496 = vld [vmem:[%s3 + $0x184] sm:$0xf]
        %v497 = vld [vmem:[%s3 + $0x188] sm:$0xff]
        %v498 = vld [vmem:[%s3 + $0x190] sm:$0xff]
        %v499 = vld [vmem:[%s3 + $0x198] sm:$0xff]
        %v500 = vld [vmem:[%s3 + $0x1a0] sm:$0xf]
        %v501 = vld [vmem:[%s3 + $0x1a4] sm:$0xff]
        %v502 = vld [vmem:[%s3 + $0x1ac] sm:$0xff]
        %v503 = vld [vmem:[%s3 + $0x1b4] sm:$0xff]
        %v504 = vld [vmem:[%s3 + $0x1bc] sm:$0xf]
        %v505 = vld [vmem:[%s3 + $0x1c0] sm:$0xff]
        %v506 = vld [vmem:[%s3 + $0x1c8] sm:$0xff]
        %v507 = vld [vmem:[%s3 + $0x1d0] sm:$0xff]
        %v508 = vld [vmem:[%s3 + $0x1d8] sm:$0xf]
        %v509 = vld [vmem:[%s3 + $0x1dc] sm:$0xff]
        %v510 = vld [vmem:[%s3 + $0x1e4] sm:$0xff]
        %v511 = vld [vmem:[%s3 + $0x1ec] sm:$0xff]
        %v512 = vld [vmem:[%s3 + $0x1f4] sm:$0xf]
        %v513 = vld [vmem:[%s3 + $0x1f8] sm:$0xff]
        %v514 = vld [vmem:[%s3 + $0x200] sm:$0xff]
        %v515 = vld [vmem:[%s3 + $0x208] sm:$0xff]
        %v516 = vld [vmem:[%s3 + $0x210] sm:$0xf]
        %v517 = vld [vmem:[%s3 + $0x214] sm:$0xff]
        %v518 = vld [vmem:[%s3 + $0x21c] sm:$0xff]
        %v519 = vld [vmem:[%s3 + $0x224] sm:$0xff]
        %v520 = vld [vmem:[%s3 + $0x22c] sm:$0xf]
        %v521 = vld [vmem:[%s3 + $0x230] sm:$0xff]
        %v522 = vld [vmem:[%s3 + $0x238] sm:$0xff]
        %v523 = vld [vmem:[%s3 + $0x240] sm:$0xff]
        %v524 = vld [vmem:[%s3 + $0x248] sm:$0xf]
        %v525 = vld [vmem:[%s3 + $0x24c] sm:$0xff]
        %v526 = vld [vmem:[%s3 + $0x254] sm:$0xff]
        %v527 = vld [vmem:[%s3 + $0x25c] sm:$0xff]
        %v528 = vld [vmem:[%s3 + $0x264] sm:$0xf]
        %v529 = vld [vmem:[%s3 + $0x268] sm:$0xff]
        %v530 = vld [vmem:[%s3 + $0x270] sm:$0xff]
        %v531 = vld [vmem:[%s3 + $0x278] sm:$0xff]
        %v532 = vld [vmem:[%s3 + $0x280] sm:$0xf]
        %v533 = vld [vmem:[%s3 + $0x284] sm:$0xff]
        %v534 = vld [vmem:[%s3 + $0x28c] sm:$0xff]
        %v535 = vld [vmem:[%s3 + $0x294] sm:$0xff]
        %v536 = vld [vmem:[%s3 + $0x29c] sm:$0xf]
        %v537 = vld [vmem:[%s3 + $0x2a0] sm:$0xff]
        %v538 = vld [vmem:[%s3 + $0x2a8] sm:$0xff]
        %v539 = vld [vmem:[%s3 + $0x2b0] sm:$0xff]
        %v540 = vld [vmem:[%s3 + $0x2b8] sm:$0xf]
        %v541 = vld [vmem:[%s3 + $0x2bc] sm:$0xff]
        %v542 = vld [vmem:[%s3 + $0x2c4] sm:$0xff]
        %v543 = vld [vmem:[%s3 + $0x2cc] sm:$0xff]
        %v544 = vld [vmem:[%s3 + $0x2d4] sm:$0xf]
        %v545 = vld [vmem:[%s3 + $0x2d8] sm:$0xff]
        %v546 = vld [vmem:[%s3 + $0x2e0] sm:$0xff]
        %v547 = vld [vmem:[%s3 + $0x2e8] sm:$0xff]
        %v548 = vld [vmem:[%s3 + $0x2f0] sm:$0xf]
        %v549 = vld [vmem:[%s3 + $0x2f4] sm:$0xff]
        %v550 = vld [vmem:[%s3 + $0x2fc] sm:$0xff]
        %v551 = vld [vmem:[%s3 + $0x304] sm:$0xff]
        %v552 = vld [vmem:[%s3 + $0x30c] sm:$0xf]
        %v553 = vld [vmem:[%s3 + $0x310] sm:$0xff]
        %v554 = vld [vmem:[%s3 + $0x318] sm:$0xff]
        %v555 = vld [vmem:[%s3 + $0x320] sm:$0xff]
        %v556 = vld [vmem:[%s3 + $0x328] sm:$0xf]
        %v557 = vld [vmem:[%s6] sm:$0xff]
        %v558 = vld [vmem:[%s6 + $0x8] sm:$0xff]
        %v559 = vld [vmem:[%s6 + $0x10] sm:$0xff]
        %v560 = vld [vmem:[%s6 + $0x18] sm:$0xff]
        %v561 = vld [vmem:[%s8] sm:$0x1]
        %v562 = vld [vmem:[%s10] sm:$0x1]
        %v563 = vld [vmem:[%s12] sm:$0x1]
        %v564 = vld [vmem:[%s9] sm:$0xf]
        %v565 = vld [vmem:[%s9 + $0x4] sm:$0xf]
        %v566 = vld [vmem:[%s9 + $0x8] sm:$0xf]
        %v567 = vld [vmem:[%s9 + $0xc] sm:$0xf]
        %v568 = vld [vmem:[%s9 + $0x10] sm:$0xf]
        %v569 = vld [vmem:[%s9 + $0x14] sm:$0xf]
        %v570 = vld [vmem:[%s9 + $0x18] sm:$0xf]
        %v571 = vld [vmem:[%s9 + $0x1c] sm:$0xf]
        %v572 = vld [vmem:[%s9 + $0x20] sm:$0xf]
        %v573 = vld [vmem:[%s9 + $0x24] sm:$0xf]
        %v574 = vld [vmem:[%s9 + $0x28] sm:$0xf]
        %v575 = vld [vmem:[%s9 + $0x2c] sm:$0xf]
        %v576 = vld [vmem:[%s9 + $0x30] sm:$0xf]
        %v577 = vld [vmem:[%s9 + $0x34] sm:$0xf]
        %v578 = vld [vmem:[%s9 + $0x38] sm:$0xf]
        %v579 = vld [vmem:[%s9 + $0x3c] sm:$0xf]
        %v580 = vld [vmem:[%s11] sm:$0xf]
        %v581 = vld [vmem:[%s11 + $0x4] sm:$0xf]
        %v582 = vld [vmem:[%s11 + $0x8] sm:$0xf]
        %v583 = vld [vmem:[%s11 + $0xc] sm:$0xf]
        %v584 = vld [vmem:[%s11 + $0x10] sm:$0xf]
        %v585 = vld [vmem:[%s11 + $0x14] sm:$0xf]
        %v586 = vld [vmem:[%s11 + $0x18] sm:$0xf]
        %v587 = vld [vmem:[%s11 + $0x1c] sm:$0xf]
        %v588 = vld [vmem:[%s11 + $0x20] sm:$0xf]
        %v589 = vld [vmem:[%s11 + $0x24] sm:$0xf]
        %v590 = vld [vmem:[%s11 + $0x28] sm:$0xf]
        %v591 = vld [vmem:[%s11 + $0x2c] sm:$0xf]
        %v592 = vld [vmem:[%s11 + $0x30] sm:$0xf]
        %v593 = vld [vmem:[%s11 + $0x34] sm:$0xf]
        %v594 = vld [vmem:[%s11 + $0x38] sm:$0xf]
        %v595 = vld [vmem:[%s11 + $0x3c] sm:$0xf]
        %v596 = vld [vmem:[%s437] sm:$0xf]
        %v597 = vld [vmem:[%s437 + $0x4] sm:$0xf]
        %v598 = vld [vmem:[%s437 + $0x8] sm:$0xf]
        %v599 = vld [vmem:[%s437 + $0xc] sm:$0xf]
        %v600 = vld [vmem:[%s437 + $0x10] sm:$0xf]
        %v601 = vld [vmem:[%s437 + $0x14] sm:$0xf]
        %v602 = vld [vmem:[%s437 + $0x18] sm:$0xf]
        %v603 = vld [vmem:[%s437 + $0x1c] sm:$0xf]
        %v604 = vld [vmem:[%s437 + $0x20] sm:$0xf]
        %v605 = vld [vmem:[%s437 + $0x24] sm:$0xf]
        %v606 = vld [vmem:[%s437 + $0x28] sm:$0xf]
        %v607 = vld [vmem:[%s437 + $0x2c] sm:$0xf]
        %v608 = vld [vmem:[%s437 + $0x30] sm:$0xf]
        %v609 = vld [vmem:[%s437 + $0x34] sm:$0xf]
        %v610 = vld [vmem:[%s437 + $0x38] sm:$0xf]
        %v611 = vld [vmem:[%s437 + $0x3c] sm:$0xf]
        %v612 = vld [vmem:[%s437 + $0x40] sm:$0xf]
        %v613 = vld [vmem:[%s437 + $0x44] sm:$0xf]
        %v614 = vld [vmem:[%s437 + $0x48] sm:$0xf]
        %v615 = vld [vmem:[%s437 + $0x4c] sm:$0xf]
        %v616 = vld [vmem:[%s437 + $0x50] sm:$0xf]
        %v617 = vld [vmem:[%s437 + $0x54] sm:$0xf]
        %v618 = vld [vmem:[%s437 + $0x58] sm:$0xf]
        %v619 = vld [vmem:[%s437 + $0x5c] sm:$0xf]
        %v620 = vld [vmem:[%s437 + $0x60] sm:$0xf]
        %v621 = vld [vmem:[%s437 + $0x64] sm:$0xf]
        %v622 = vld [vmem:[%s437 + $0x68] sm:$0xf]
        %v623 = vld [vmem:[%s437 + $0x6c] sm:$0xf]
        %v624 = vld [vmem:[%s437 + $0x70] sm:$0xf]
        %v625 = vld [vmem:[%s437 + $0x74] sm:$0xf]
        %v626 = vld [vmem:[%s437 + $0x78] sm:$0xf]
        %v627 = vld [vmem:[%s437 + $0x7c] sm:$0xf]
        %v628 = vld [vmem:[%s437 + $0x80] sm:$0xf]
        %v629 = vld [vmem:[%s437 + $0x84] sm:$0xf]
        %v630 = vld [vmem:[%s437 + $0x88] sm:$0xf]
        %v631 = vld [vmem:[%s437 + $0x8c] sm:$0xf]
        %v632 = vld [vmem:[%s437 + $0x90] sm:$0xf]
        %v633 = vld [vmem:[%s437 + $0x94] sm:$0xf]
        %v634 = vld [vmem:[%s437 + $0x98] sm:$0xf]
        %v635 = vld [vmem:[%s437 + $0x9c] sm:$0xf]
        %v636 = vld [vmem:[%s437 + $0xa0] sm:$0xf]
        %v637 = vld [vmem:[%s437 + $0xa4] sm:$0xf]
        %v638 = vld [vmem:[%s437 + $0xa8] sm:$0xf]
        %v639 = vld [vmem:[%s437 + $0xac] sm:$0xf]
        %v640 = vld [vmem:[%s437 + $0xb0] sm:$0xf]
        %v641 = vld [vmem:[%s437 + $0xb4] sm:$0xf]
        %v642 = vld [vmem:[%s437 + $0xb8] sm:$0xf]
        %v643 = vld [vmem:[%s437 + $0xbc] sm:$0xf]
        %v644 = vld [vmem:[%s437 + $0xc0] sm:$0xf]
        %v645 = vld [vmem:[%s437 + $0xc4] sm:$0xf]
        %v646 = vld [vmem:[%s437 + $0xc8] sm:$0xf]
        %v647 = vld [vmem:[%s437 + $0xcc] sm:$0xf]
        %v648 = vld [vmem:[%s437 + $0xd0] sm:$0xf]
        %v649 = vld [vmem:[%s437 + $0xd4] sm:$0xf]
        %v650 = vld [vmem:[%s437 + $0xd8] sm:$0xf]
        %v651 = vld [vmem:[%s437 + $0xdc] sm:$0xf]
        %v652 = vld [vmem:[%s437 + $0xe0] sm:$0xf]
        %v653 = vld [vmem:[%s437 + $0xe4] sm:$0xf]
        %v654 = vld [vmem:[%s437 + $0xe8] sm:$0xf]
        %v655 = vld [vmem:[%s437 + $0xec] sm:$0xf]
        %v656 = vld [vmem:[%s437 + $0xf0] sm:$0xf]
        %v657 = vld [vmem:[%s437 + $0xf4] sm:$0xf]
        %v658 = vld [vmem:[%s437 + $0xf8] sm:$0xf]
        %v659 = vld [vmem:[%s437 + $0xfc] sm:$0xf]
        %v660 = vld [vmem:[%s437 + $0x100] sm:$0xf]
        %v661 = vld [vmem:[%s437 + $0x104] sm:$0xf]
        %v662 = vld [vmem:[%s437 + $0x108] sm:$0xf]
        %v663 = vld [vmem:[%s437 + $0x10c] sm:$0xf]
        %v664 = vld [vmem:[%s437 + $0x110] sm:$0xf]
        %v665 = vld [vmem:[%s437 + $0x114] sm:$0xf]
        %v666 = vld [vmem:[%s437 + $0x118] sm:$0xf]
        %v667 = vld [vmem:[%s437 + $0x11c] sm:$0xf]
        %v668 = vld [vmem:[%s437 + $0x120] sm:$0xf]
        %v669 = vld [vmem:[%s437 + $0x124] sm:$0xf]
        %v670 = vld [vmem:[%s437 + $0x128] sm:$0xf]
        %v671 = vld [vmem:[%s437 + $0x12c] sm:$0xf]
        %v672 = vld [vmem:[%s437 + $0x130] sm:$0xf]
        %v673 = vld [vmem:[%s437 + $0x134] sm:$0xf]
        %v674 = vld [vmem:[%s437 + $0x138] sm:$0xf]
        %v675 = vld [vmem:[%s437 + $0x13c] sm:$0xf]
        %v676 = vld [vmem:[%s437 + $0x140] sm:$0xf]
        %v677 = vld [vmem:[%s437 + $0x144] sm:$0xf]
        %v678 = vld [vmem:[%s437 + $0x148] sm:$0xf]
        %v679 = vld [vmem:[%s437 + $0x14c] sm:$0xf]
        %v680 = vld [vmem:[%s437 + $0x150] sm:$0xf]
        %v681 = vld [vmem:[%s437 + $0x154] sm:$0xf]
        %v682 = vld [vmem:[%s437 + $0x158] sm:$0xf]
        %v683 = vld [vmem:[%s437 + $0x15c] sm:$0xf]
        %v684 = vld [vmem:[%s437 + $0x160] sm:$0xf]
        %v685 = vld [vmem:[%s437 + $0x164] sm:$0xf]
        %v686 = vld [vmem:[%s437 + $0x168] sm:$0xf]
        %v687 = vld [vmem:[%s437 + $0x16c] sm:$0xf]
        %v688 = vld [vmem:[%s437 + $0x170] sm:$0xf]
        %v689 = vld [vmem:[%s437 + $0x174] sm:$0xf]
        %v690 = vld [vmem:[%s437 + $0x178] sm:$0xf]
        %v691 = vld [vmem:[%s437 + $0x17c] sm:$0xf]
        %v692 = vld [vmem:[%s437 + $0x180] sm:$0xf]
        %v693 = vld [vmem:[%s437 + $0x184] sm:$0xf]
        %v694 = vld [vmem:[%s437 + $0x188] sm:$0xf]
        %v695 = vld [vmem:[%s437 + $0x18c] sm:$0xf]
        %v696 = vld [vmem:[%s437 + $0x190] sm:$0xf]
        %v697 = vld [vmem:[%s437 + $0x194] sm:$0xf]
        %v698 = vld [vmem:[%s437 + $0x198] sm:$0xf]
        %v699 = vld [vmem:[%s437 + $0x19c] sm:$0xf]
        %v700 = vld [vmem:[%s437 + $0x1a0] sm:$0xf]
        %v701 = vld [vmem:[%s437 + $0x1a4] sm:$0xf]
        %v702 = vld [vmem:[%s437 + $0x1a8] sm:$0xf]
        %v703 = vld [vmem:[%s437 + $0x1ac] sm:$0xf]
        %v704 = vld [vmem:[%s437 + $0x1b0] sm:$0xf]
        %v705 = vld [vmem:[%s437 + $0x1b4] sm:$0xf]
        %v706 = vld [vmem:[%s437 + $0x1b8] sm:$0xf]
        %v707 = vld [vmem:[%s437 + $0x1bc] sm:$0xf]
        %v708 = vld [vmem:[%s1] sm:$0xf]
        %v709 = vld [vmem:[%s1 + $0x4] sm:$0xf]
        %v710 = vld [vmem:[%s1 + $0x8] sm:$0xf]
        %v711 = vld [vmem:[%s1 + $0xc] sm:$0xf]
        %v712 = vld [vmem:[%s1 + $0x10] sm:$0xf]
        %v713 = vld [vmem:[%s437 + $0x1c0] sm:$0xf]
        %v714 = vld [vmem:[%s437 + $0x1c4] sm:$0xf]
        %v715 = vld [vmem:[%s437 + $0x1c8] sm:$0xf]
        %v716 = vld [vmem:[%s437 + $0x1cc] sm:$0xf]
        %v717 = vld [vmem:[%s1 + $0x14] sm:$0xf]
        %v718 = vld [vmem:[%s1 + $0x18] sm:$0xf]
        %v719 = vld [vmem:[%s1 + $0x1c] sm:$0xf]
        %v720 = vld [vmem:[%s1 + $0x20] sm:$0xf]
        %v721 = vld [vmem:[%s1 + $0x24] sm:$0xf]
        %v834 = vunpack.c.l.b16 %v600
        %v835 = vunpack.c.l.b16 %v601
        %v836 = vunpack.c.l.b16 %v602
        %v837 = vunpack.c.l.b16 %v603
        %v838 = vunpack.c.l.b16 %v604
        %v839 = vunpack.c.l.b16 %v605
        %v840 = vunpack.c.l.b16 %v606
        %v841 = vunpack.c.l.b16 %v607
        %v842 = vunpack.c.l.b16 %v608
        %v843 = vunpack.c.l.b16 %v609
        %v844 = vunpack.c.l.b16 %v610
        %v845 = vunpack.c.l.b16 %v611
        %v846 = vunpack.c.l.b16 %v612
        %v847 = vunpack.c.l.b16 %v613
        %v848 = vunpack.c.l.b16 %v614
        %v849 = vunpack.c.l.b16 %v615
        %v850 = vunpack.c.l.b16 %v616
        %v851 = vunpack.c.l.b16 %v617
        %v852 = vunpack.c.l.b16 %v618
        %v853 = vunpack.c.l.b16 %v619
        %v854 = vunpack.c.l.b16 %v620
        %v855 = vunpack.c.l.b16 %v621
        %v856 = vunpack.c.l.b16 %v622
        %v857 = vunpack.c.l.b16 %v623
        %v858 = vunpack.c.l.b16 %v624
        %v859 = vunpack.c.l.b16 %v625
        %v860 = vunpack.c.l.b16 %v626
        %v861 = vunpack.c.l.b16 %v627
        %v862 = vunpack.c.l.b16 %v628
        %v863 = vunpack.c.l.b16 %v629
        %v864 = vunpack.c.l.b16 %v630
        %v865 = vunpack.c.l.b16 %v631
        %v866 = vunpack.c.l.b16 %v632
        %v867 = vunpack.c.l.b16 %v633
        %v868 = vunpack.c.l.b16 %v634
        %v869 = vunpack.c.l.b16 %v635
        %v870 = vunpack.c.l.b16 %v636
        %v871 = vunpack.c.l.b16 %v637
        %v872 = vunpack.c.l.b16 %v638
        %v873 = vunpack.c.l.b16 %v639
        %v874 = vunpack.c.l.b16 %v640
        %v875 = vunpack.c.l.b16 %v641
        %v876 = vunpack.c.l.b16 %v642
        %v877 = vunpack.c.l.b16 %v643
        %v878 = vunpack.c.l.b16 %v644
        %v879 = vunpack.c.l.b16 %v645
        %v880 = vunpack.c.l.b16 %v646
        %v881 = vunpack.c.l.b16 %v647
        %v882 = vunpack.c.l.b16 %v648
        %v883 = vunpack.c.l.b16 %v649
        %v884 = vunpack.c.l.b16 %v650
        %v885 = vunpack.c.l.b16 %v651
        %v886 = vunpack.c.l.b16 %v652
        %v887 = vunpack.c.l.b16 %v653
        %v888 = vunpack.c.l.b16 %v654
        %v889 = vunpack.c.l.b16 %v655
        %v890 = vunpack.c.l.b16 %v656
        %v891 = vunpack.c.l.b16 %v657
        %v892 = vunpack.c.l.b16 %v658
        %v893 = vunpack.c.l.b16 %v659
        %v894 = vunpack.c.l.b16 %v660
        %v895 = vunpack.c.l.b16 %v661
        %v896 = vunpack.c.l.b16 %v662
        %v897 = vunpack.c.l.b16 %v663
        %v898 = vunpack.c.l.b16 %v664
        %v899 = vunpack.c.l.b16 %v665
        %v900 = vunpack.c.l.b16 %v666
        %v901 = vunpack.c.l.b16 %v667
        %v902 = vunpack.c.l.b16 %v668
        %v903 = vunpack.c.l.b16 %v669
        %v904 = vunpack.c.l.b16 %v670
        %v905 = vunpack.c.l.b16 %v671
        %v906 = vunpack.c.l.b16 %v672
        %v907 = vunpack.c.l.b16 %v673
        %v908 = vunpack.c.l.b16 %v674
        %v909 = vunpack.c.l.b16 %v675
        %v910 = vunpack.c.l.b16 %v676
        %v911 = vunpack.c.l.b16 %v677
        %v912 = vunpack.c.l.b16 %v678
        %v913 = vunpack.c.l.b16 %v679
        %v914 = vunpack.c.l.b16 %v680
        %v915 = vunpack.c.l.b16 %v681
        %v916 = vunpack.c.l.b16 %v682
        %v917 = vunpack.c.l.b16 %v683
        %v918 = vunpack.c.l.b16 %v684
        %v919 = vunpack.c.l.b16 %v685
        %v920 = vunpack.c.l.b16 %v686
        %v921 = vunpack.c.l.b16 %v687
        %v922 = vunpack.c.l.b16 %v688
        %v923 = vunpack.c.l.b16 %v689
        %v924 = vunpack.c.l.b16 %v690
        %v925 = vunpack.c.l.b16 %v691
        %v926 = vunpack.c.l.b16 %v692
        %v927 = vunpack.c.l.b16 %v693
        %v928 = vunpack.c.l.b16 %v694
        %v929 = vunpack.c.l.b16 %v695
        %v930 = vunpack.c.l.b16 %v696
        %v931 = vunpack.c.l.b16 %v697
        %v932 = vunpack.c.l.b16 %v698
        %v933 = vunpack.c.l.b16 %v699
        %v934 = vunpack.c.l.b16 %v700
        %v935 = vunpack.c.l.b16 %v701
        %v936 = vunpack.c.l.b16 %v702
        %v937 = vunpack.c.l.b16 %v703
        %v938 = vunpack.c.l.b16 %v704
        %v939 = vunpack.c.l.b16 %v705
        %v940 = vunpack.c.l.b16 %v706
        %v941 = vunpack.c.l.b16 %v707
        %v942 = vunpack.c.l.b16 %v713
        %v943 = vunpack.c.l.b16 %v714
        %v944 = vunpack.c.l.b16 %v715
        %v945 = vunpack.c.l.b16 %v716
        %v946 = vpack.c.b16 %v835, %v834
        %v947 = vpack.c.b16 %v837, %v836
        %v948 = vpack.c.b16 %v839, %v838
        %v949 = vpack.c.b16 %v841, %v840
        %v950 = vpack.c.b16 %v843, %v842
        %v951 = vpack.c.b16 %v845, %v844
        %v952 = vpack.c.b16 %v847, %v846
        %v953 = vpack.c.b16 %v849, %v848
        %v954 = vpack.c.b16 %v851, %v850
        %v955 = vpack.c.b16 %v853, %v852
        %v956 = vpack.c.b16 %v855, %v854
        %v957 = vpack.c.b16 %v857, %v856
        %v958 = vpack.c.b16 %v859, %v858
        %v959 = vpack.c.b16 %v861, %v860
        %v960 = vpack.c.b16 %v863, %v862
        %v961 = vpack.c.b16 %v865, %v864
        %v962 = vpack.c.b16 %v867, %v866
        %v963 = vpack.c.b16 %v869, %v868
        %v964 = vpack.c.b16 %v871, %v870
        %v965 = vpack.c.b16 %v873, %v872
        %v966 = vpack.c.b16 %v875, %v874
        %v967 = vpack.c.b16 %v877, %v876
        %v968 = vpack.c.b16 %v879, %v878
        %v969 = vpack.c.b16 %v881, %v880
        %v970 = vpack.c.b16 %v883, %v882
        %v971 = vpack.c.b16 %v885, %v884
        %v972 = vpack.c.b16 %v887, %v886
        %v973 = vpack.c.b16 %v889, %v888
        %v974 = vpack.c.b16 %v891, %v890
        %v975 = vpack.c.b16 %v893, %v892
        %v976 = vpack.c.b16 %v895, %v894
        %v977 = vpack.c.b16 %v897, %v896
        %v978 = vpack.c.b16 %v899, %v898
        %v979 = vpack.c.b16 %v901, %v900
        %v980 = vpack.c.b16 %v903, %v902
        %v981 = vpack.c.b16 %v905, %v904
        %v982 = vpack.c.b16 %v907, %v906
        %v983 = vpack.c.b16 %v909, %v908
        %v984 = vpack.c.b16 %v911, %v910
        %v985 = vpack.c.b16 %v913, %v912
        %v986 = vpack.c.b16 %v915, %v914
        %v987 = vpack.c.b16 %v917, %v916
        %v988 = vpack.c.b16 %v919, %v918
        %v989 = vpack.c.b16 %v921, %v920
        %v990 = vpack.c.b16 %v923, %v922
        %v991 = vpack.c.b16 %v925, %v924
        %v992 = vpack.c.b16 %v927, %v926
        %v993 = vpack.c.b16 %v929, %v928
        %v994 = vpack.c.b16 %v931, %v930
        %v995 = vpack.c.b16 %v933, %v932
        %v996 = vpack.c.b16 %v935, %v934
        %v997 = vpack.c.b16 %v937, %v936
        %v998 = vpack.c.b16 %v939, %v938
        %v999 = vpack.c.b16 %v941, %v940
        %v1000 = vpack.c.b16 %v943, %v942
        %v1001 = vpack.c.b16 %v945, %v944
        %v1007 = vunpack.c.l.b16 %v717
        %v1008 = vunpack.c.l.b16 %v718
        %v1009 = vunpack.c.l.b16 %v719
        %v1010 = vunpack.c.l.b16 %v720
        %v1011 = vunpack.c.l.b16 %v721
        %v1012 = vpack.c.b16 %v1008, %v1007
        %v1013 = vpack.c.b16 %v1010, %v1009
        %v1014 = vpack.c.b16 %v1011, %v1011
        %vm1017 = vcmask 326656
        %v1019 = vsel %vm1017, %v946, 0
        %v1022 = vsel %vm1017, %v947, 0
        %v1025 = vsel %vm1017, %v948, 0
        %v1028 = vsel %vm1017, %v949, 0
        %v1031 = vsel %vm1017, %v950, 0
        %v1034 = vsel %vm1017, %v951, 0
        %v1037 = vsel %vm1017, %v952, 0
        %v1040 = vsel %vm1017, %v953, 0
        %v1043 = vsel %vm1017, %v954, 0
        %v1046 = vsel %vm1017, %v955, 0
        %v1049 = vsel %vm1017, %v956, 0
        %v1052 = vsel %vm1017, %v957, 0
        %v1055 = vsel %vm1017, %v958, 0
        %v1058 = vsel %vm1017, %v959, 0
        %v1061 = vsel %vm1017, %v960, 0
        %v1064 = vsel %vm1017, %v961, 0
        %v1067 = vsel %vm1017, %v962, 0
        %v1070 = vsel %vm1017, %v963, 0
        %v1073 = vsel %vm1017, %v964, 0
        %v1076 = vsel %vm1017, %v965, 0
        %v1079 = vsel %vm1017, %v966, 0
        %v1082 = vsel %vm1017, %v967, 0
        %v1085 = vsel %vm1017, %v968, 0
        %v1088 = vsel %vm1017, %v969, 0
        %v1091 = vsel %vm1017, %v970, 0
        %v1094 = vsel %vm1017, %v971, 0
        %v1097 = vsel %vm1017, %v972, 0
        %v1100 = vsel %vm1017, %v973, 0
        %v1103 = vsel %vm1017, %v974, 0
        %v1106 = vsel %vm1017, %v975, 0
        %v1109 = vsel %vm1017, %v976, 0
        %v1112 = vsel %vm1017, %v977, 0
        %v1115 = vsel %vm1017, %v978, 0
        %v1118 = vsel %vm1017, %v979, 0
        %v1121 = vsel %vm1017, %v980, 0
        %v1124 = vsel %vm1017, %v981, 0
        %v1127 = vsel %vm1017, %v982, 0
        %v1130 = vsel %vm1017, %v983, 0
        %v1133 = vsel %vm1017, %v984, 0
        %v1136 = vsel %vm1017, %v985, 0
        %v1139 = vsel %vm1017, %v986, 0
        %v1142 = vsel %vm1017, %v987, 0
        %v1145 = vsel %vm1017, %v988, 0
        %v1148 = vsel %vm1017, %v989, 0
        %v1151 = vsel %vm1017, %v990, 0
        %v1154 = vsel %vm1017, %v991, 0
        %v1157 = vsel %vm1017, %v992, 0
        %v1160 = vsel %vm1017, %v993, 0
        %v1163 = vsel %vm1017, %v994, 0
        %v1166 = vsel %vm1017, %v995, 0
        %v1169 = vsel %vm1017, %v996, 0
        %v1172 = vsel %vm1017, %v997, 0
        %v1175 = vsel %vm1017, %v998, 0
        %v1178 = vsel %vm1017, %v999, 0
        %v1181 = vsel %vm1017, %v1000, 0
        %v1184 = vsel %vm1017, %v1001, 0
        %vm1186 = vcmask 1043456
        %v1188 = vsel %vm1186, %v1014, 0
        %1190 = vmatprep.subr.bf16.mxu0 0
        %1191 = vmatpush1.bf16.msra.mxu0 %v1012
        %1192 = vmatprep.subr.bf16.mxu0 0
        %1193 = vmatpush1.bf16.msra.mxu0 %v1013
        %1194 = vmatprep.subr.bf16.mxu0 0
        %1195 = vmatpush1.bf16.msra.mxu0 %v1188
        %1196 = vmatprep.subr.bf16.mxu0 0
        %1197 = vmatpush1.bf16.msra.mxu0 0
        %1198 = vmatprep.subr.bf16.mxu0 0
        %1199 = vmatpush1.bf16.msra.mxu0 0
        %1200 = vmatprep.subr.bf16.mxu0 0
        %1201 = vmatpush1.bf16.msra.mxu0 0
        %1202 = vmatprep.subr.bf16.mxu0 0
        %1203 = vmatpush1.bf16.msra.mxu0 0
        %1204 = vmatprep.subr.bf16.mxu0 0
        %1205 = vmatpush1.bf16.msra.mxu0 0
        %1206 = vmatprep.subr.bf16.mxu0 0
        %1207 = vmatpush1.bf16.msra.mxu0 0
        %1208 = vmatprep.subr.bf16.mxu0 0
        %1209 = vmatpush1.bf16.msra.mxu0 0
        %1210 = vmatprep.subr.bf16.mxu0 0
        %1211 = vmatpush1.bf16.msra.mxu0 0
        %1212 = vmatprep.subr.bf16.mxu0 0
        %1213 = vmatpush1.bf16.msra.mxu0 0
        %1214 = vmatprep.subr.bf16.mxu0 0
        %1215 = vmatpush1.bf16.msra.mxu0 0
        %1216 = vmatprep.subr.bf16.mxu0 0
        %1217 = vmatpush1.bf16.msra.mxu0 0
        %1218 = vmatprep.subr.bf16.mxu0 0
        %1219 = vmatpush1.bf16.msra.mxu0 0
        %1220 = vmatprep.subr.bf16.mxu0 0
        %1221 = vmatpush1.bf16.msra.mxu0 0
        %1222 = vmatprep.mubr.bf16.mxu0 0
        %1223 = vmatmul.mubr.bf16.gmra.mrb[0].mxu0 %v1019
        %v1224 = vpop.f32.mrb[0].mxu0
        %v1225 = vadd.f32 0.0, %v1224
        %v1226 = vpop.f32.mrb[0].mxu0
        %v1227 = vpop.f32.mrb[0].mxu0
        %v1228 = vadd.f32 0.0, %v1227
        %v1229 = vpop.f32.mrb[0].mxu0
        %1230 = vmatprep.mubr.bf16.mxu0 0
        %1231 = vmatmul.mubr.bf16.gmra.mrb[0].mxu0 %v1022
        %v1232 = vpop.f32.mrb[0].mxu0
        %v1233 = vadd.f32 0.0, %v1232
        %v1234 = vpop.f32.mrb[0].mxu0
        %v1235 = vpop.f32.mrb[0].mxu0
        %v1236 = vadd.f32 0.0, %v1235
        %v1237 = vpop.f32.mrb[0].mxu0
        %1238 = vmatprep.mubr.bf16.mxu0 0
        %1239 = vmatmul.mubr.bf16.gmra.mrb[0].mxu0 %v1025
        %v1240 = vpop.f32.mrb[0].mxu0
        %v1241 = vadd.f32 0.0, %v1240
        %v1242 = vpop.f32.mrb[0].mxu0
        %v1243 = vpop.f32.mrb[0].mxu0
        %v1244 = vadd.f32 0.0, %v1243
        %v1245 = vpop.f32.mrb[0].mxu0
        %1246 = vmatprep.mubr.bf16.mxu0 0
        %1247 = vmatmul.mubr.bf16.gmra.mrb[0].mxu0 %v1028
        %v1248 = vpop.f32.mrb[0].mxu0
        %v1249 = vadd.f32 0.0, %v1248
        %v1250 = vpop.f32.mrb[0].mxu0
        %v1251 = vpop.f32.mrb[0].mxu0
        %v1252 = vadd.f32 0.0, %v1251
        %v1253 = vpop.f32.mrb[0].mxu0
        %1254 = vmatprep.mubr.bf16.mxu0 0
        %1255 = vmatmul.mubr.bf16.gmra.mrb[0].mxu0 %v1031
        %v1256 = vpop.f32.mrb[0].mxu0
        %v1257 = vadd.f32 0.0, %v1256
        %v1258 = vpop.f32.mrb[0].mxu0
        %v1259 = vpop.f32.mrb[0].mxu0
        %v1260 = vadd.f32 0.0, %v1259
        %v1261 = vpop.f32.mrb[0].mxu0
        %1262 = vmatprep.mubr.bf16.mxu0 0
        %1263 = vmatmul.mubr.bf16.gmra.mrb[0].mxu0 %v1034
        %v1264 = vpop.f32.mrb[0].mxu0
        %v1265 = vadd.f32 0.0, %v1264
        %v1266 = vpop.f32.mrb[0].mxu0
        %v1267 = vpop.f32.mrb[0].mxu0
        %v1268 = vadd.f32 0.0, %v1267
        %v1269 = vpop.f32.mrb[0].mxu0
        %1270 = vmatprep.mubr.bf16.mxu0 0
        %1271 = vmatmul.mubr.bf16.gmra.mrb[0].mxu0 %v1037
        %v1272 = vpop.f32.mrb[0].mxu0
        %v1273 = vadd.f32 0.0, %v1272
        %v1274 = vpop.f32.mrb[0].mxu0
        %v1275 = vpop.f32.mrb[0].mxu0
        %v1276 = vadd.f32 0.0, %v1275
        %v1277 = vpop.f32.mrb[0].mxu0
        %1278 = vmatprep.mubr.bf16.mxu0 0
        %1279 = vmatmul.mubr.bf16.gmra.mrb[0].mxu0 %v1040
        %v1280 = vpop.f32.mrb[0].mxu0
        %v1281 = vadd.f32 0.0, %v1280
        %v1282 = vpop.f32.mrb[0].mxu0
        %v1283 = vpop.f32.mrb[0].mxu0
        %v1284 = vadd.f32 0.0, %v1283
        %v1285 = vpop.f32.mrb[0].mxu0
        %1286 = vmatprep.mubr.bf16.mxu0 0
        %1287 = vmatmul.mubr.bf16.gmra.mrb[0].mxu0 %v1043
        %v1288 = vpop.f32.mrb[0].mxu0
        %v1289 = vadd.f32 0.0, %v1288
        %v1290 = vpop.f32.mrb[0].mxu0
        %v1291 = vpop.f32.mrb[0].mxu0
        %v1292 = vadd.f32 0.0, %v1291
        %v1293 = vpop.f32.mrb[0].mxu0
        %1294 = vmatprep.mubr.bf16.mxu0 0
        %1295 = vmatmul.mubr.bf16.gmra.mrb[0].mxu0 %v1046
        %v1296 = vpop.f32.mrb[0].mxu0
        %v1297 = vadd.f32 0.0, %v1296
        %v1298 = vpop.f32.mrb[0].mxu0
        %v1299 = vpop.f32.mrb[0].mxu0
        %v1300 = vadd.f32 0.0, %v1299
        %v1301 = vpop.f32.mrb[0].mxu0
        %1302 = vmatprep.mubr.bf16.mxu0 0
        %1303 = vmatmul.mubr.bf16.gmra.mrb[0].mxu0 %v1049
        %v1304 = vpop.f32.mrb[0].mxu0
        %v1305 = vadd.f32 0.0, %v1304
        %v1306 = vpop.f32.mrb[0].mxu0
        %v1307 = vpop.f32.mrb[0].mxu0
        %v1308 = vadd.f32 0.0, %v1307
        %v1309 = vpop.f32.mrb[0].mxu0
        %1310 = vmatprep.mubr.bf16.mxu0 0
        %1311 = vmatmul.mubr.bf16.gmra.mrb[0].mxu0 %v1052
        %v1312 = vpop.f32.mrb[0].mxu0
        %v1313 = vadd.f32 0.0, %v1312
        %v1314 = vpop.f32.mrb[0].mxu0
        %v1315 = vpop.f32.mrb[0].mxu0
        %v1316 = vadd.f32 0.0, %v1315
        %v1317 = vpop.f32.mrb[0].mxu0
        %1318 = vmatprep.mubr.bf16.mxu0 0
        %1319 = vmatmul.mubr.bf16.gmra.mrb[0].mxu0 %v1055
        %v1320 = vpop.f32.mrb[0].mxu0
        %v1321 = vadd.f32 0.0, %v1320
        %v1322 = vpop.f32.mrb[0].mxu0
        %v1323 = vpop.f32.mrb[0].mxu0
        %v1324 = vadd.f32 0.0, %v1323
        %v1325 = vpop.f32.mrb[0].mxu0
        %1326 = vmatprep.mubr.bf16.mxu0 0
        %1327 = vmatmul.mubr.bf16.gmra.mrb[0].mxu0 %v1058
        %v1328 = vpop.f32.mrb[0].mxu0
        %v1329 = vadd.f32 0.0, %v1328
        %v1330 = vpop.f32.mrb[0].mxu0
        %v1331 = vpop.f32.mrb[0].mxu0
        %v1332 = vadd.f32 0.0, %v1331
        %v1333 = vpop.f32.mrb[0].mxu0
        %1334 = vmatprep.mubr.bf16.mxu0 0
        %1335 = vmatmul.mubr.bf16.gmra.mrb[0].mxu0 %v1061
        %v1336 = vpop.f32.mrb[0].mxu0
        %v1337 = vadd.f32 0.0, %v1336
        %v1338 = vpop.f32.mrb[0].mxu0
        %v1339 = vpop.f32.mrb[0].mxu0
        %v1340 = vadd.f32 0.0, %v1339
        %v1341 = vpop.f32.mrb[0].mxu0
        %1342 = vmatprep.mubr.bf16.mxu0 0
        %1343 = vmatmul.mubr.bf16.gmra.mrb[0].mxu0 %v1064
        %v1344 = vpop.f32.mrb[0].mxu0
        %v1345 = vadd.f32 0.0, %v1344
        %v1346 = vpop.f32.mrb[0].mxu0
        %v1347 = vpop.f32.mrb[0].mxu0
        %v1348 = vadd.f32 0.0, %v1347
        %v1349 = vpop.f32.mrb[0].mxu0
        %1350 = vmatprep.mubr.bf16.mxu0 0
        %1351 = vmatmul.mubr.bf16.gmra.mrb[0].mxu0 %v1067
        %v1352 = vpop.f32.mrb[0].mxu0
        %v1353 = vadd.f32 0.0, %v1352
        %v1354 = vpop.f32.mrb[0].mxu0
        %v1355 = vpop.f32.mrb[0].mxu0
        %v1356 = vadd.f32 0.0, %v1355
        %v1357 = vpop.f32.mrb[0].mxu0
        %1358 = vmatprep.mubr.bf16.mxu0 0
        %1359 = vmatmul.mubr.bf16.gmra.mrb[0].mxu0 %v1070
        %v1360 = vpop.f32.mrb[0].mxu0
        %v1361 = vadd.f32 0.0, %v1360
        %v1362 = vpop.f32.mrb[0].mxu0
        %v1363 = vpop.f32.mrb[0].mxu0
        %v1364 = vadd.f32 0.0, %v1363
        %v1365 = vpop.f32.mrb[0].mxu0
        %1366 = vmatprep.mubr.bf16.mxu0 0
        %1367 = vmatmul.mubr.bf16.gmra.mrb[0].mxu0 %v1073
        %v1368 = vpop.f32.mrb[0].mxu0
        %v1369 = vadd.f32 0.0, %v1368
        %v1370 = vpop.f32.mrb[0].mxu0
        %v1371 = vpop.f32.mrb[0].mxu0
        %v1372 = vadd.f32 0.0, %v1371
        %v1373 = vpop.f32.mrb[0].mxu0
        %1374 = vmatprep.mubr.bf16.mxu0 0
        %1375 = vmatmul.mubr.bf16.gmra.mrb[0].mxu0 %v1076
        %v1376 = vpop.f32.mrb[0].mxu0
        %v1377 = vadd.f32 0.0, %v1376
        %v1378 = vpop.f32.mrb[0].mxu0
        %v1379 = vpop.f32.mrb[0].mxu0
        %v1380 = vadd.f32 0.0, %v1379
        %v1381 = vpop.f32.mrb[0].mxu0
        %1382 = vmatprep.mubr.bf16.mxu0 0
        %1383 = vmatmul.mubr.bf16.gmra.mrb[0].mxu0 %v1079
        %v1384 = vpop.f32.mrb[0].mxu0
        %v1385 = vadd.f32 0.0, %v1384
        %v1386 = vpop.f32.mrb[0].mxu0
        %v1387 = vpop.f32.mrb[0].mxu0
        %v1388 = vadd.f32 0.0, %v1387
        %v1389 = vpop.f32.mrb[0].mxu0
        %1390 = vmatprep.mubr.bf16.mxu0 0
        %1391 = vmatmul.mubr.bf16.gmra.mrb[0].mxu0 %v1082
        %v1392 = vpop.f32.mrb[0].mxu0
        %v1393 = vadd.f32 0.0, %v1392
        %v1394 = vpop.f32.mrb[0].mxu0
        %v1395 = vpop.f32.mrb[0].mxu0
        %v1396 = vadd.f32 0.0, %v1395
        %v1397 = vpop.f32.mrb[0].mxu0
        %1398 = vmatprep.mubr.bf16.mxu0 0
        %1399 = vmatmul.mubr.bf16.gmra.mrb[0].mxu0 %v1085
        %v1400 = vpop.f32.mrb[0].mxu0
        %v1401 = vadd.f32 0.0, %v1400
        %v1402 = vpop.f32.mrb[0].mxu0
        %v1403 = vpop.f32.mrb[0].mxu0
        %v1404 = vadd.f32 0.0, %v1403
        %v1405 = vpop.f32.mrb[0].mxu0
        %1406 = vmatprep.mubr.bf16.mxu0 0
        %1407 = vmatmul.mubr.bf16.gmra.mrb[0].mxu0 %v1088
        %v1408 = vpop.f32.mrb[0].mxu0
        %v1409 = vadd.f32 0.0, %v1408
        %v1410 = vpop.f32.mrb[0].mxu0
        %v1411 = vpop.f32.mrb[0].mxu0
        %v1412 = vadd.f32 0.0, %v1411
        %v1413 = vpop.f32.mrb[0].mxu0
        %1414 = vmatprep.mubr.bf16.mxu0 0
        %1415 = vmatmul.mubr.bf16.gmra.mrb[0].mxu0 %v1091
        %v1416 = vpop.f32.mrb[0].mxu0
        %v1417 = vadd.f32 0.0, %v1416
        %v1418 = vpop.f32.mrb[0].mxu0
        %v1419 = vpop.f32.mrb[0].mxu0
        %v1420 = vadd.f32 0.0, %v1419
        %v1421 = vpop.f32.mrb[0].mxu0
        %1422 = vmatprep.mubr.bf16.mxu0 0
        %1423 = vmatmul.mubr.bf16.gmra.mrb[0].mxu0 %v1094
        %v1424 = vpop.f32.mrb[0].mxu0
        %v1425 = vadd.f32 0.0, %v1424
        %v1426 = vpop.f32.mrb[0].mxu0
        %v1427 = vpop.f32.mrb[0].mxu0
        %v1428 = vadd.f32 0.0, %v1427
        %v1429 = vpop.f32.mrb[0].mxu0
        %1430 = vmatprep.mubr.bf16.mxu0 0
        %1431 = vmatmul.mubr.bf16.gmra.mrb[0].mxu0 %v1097
        %v1432 = vpop.f32.mrb[0].mxu0
        %v1433 = vadd.f32 0.0, %v1432
        %v1434 = vpop.f32.mrb[0].mxu0
        %v1435 = vpop.f32.mrb[0].mxu0
        %v1436 = vadd.f32 0.0, %v1435
        %v1437 = vpop.f32.mrb[0].mxu0
        %1438 = vmatprep.mubr.bf16.mxu0 0
        %1439 = vmatmul.mubr.bf16.gmra.mrb[0].mxu0 %v1100
        %v1440 = vpop.f32.mrb[0].mxu0
        %v1441 = vadd.f32 0.0, %v1440
        %v1442 = vpop.f32.mrb[0].mxu0
        %v1443 = vpop.f32.mrb[0].mxu0
        %v1444 = vadd.f32 0.0, %v1443
        %v1445 = vpop.f32.mrb[0].mxu0
        %1446 = vmatprep.mubr.bf16.mxu0 0
        %1447 = vmatmul.mubr.bf16.gmra.mrb[0].mxu0 %v1103
        %v1448 = vpop.f32.mrb[0].mxu0
        %v1449 = vadd.f32 0.0, %v1448
        %v1450 = vpop.f32.mrb[0].mxu0
        %v1451 = vpop.f32.mrb[0].mxu0
        %v1452 = vadd.f32 0.0, %v1451
        %v1453 = vpop.f32.mrb[0].mxu0
        %1454 = vmatprep.mubr.bf16.mxu0 0
        %1455 = vmatmul.mubr.bf16.gmra.mrb[0].mxu0 %v1106
        %v1456 = vpop.f32.mrb[0].mxu0
        %v1457 = vadd.f32 0.0, %v1456
        %v1458 = vpop.f32.mrb[0].mxu0
        %v1459 = vpop.f32.mrb[0].mxu0
        %v1460 = vadd.f32 0.0, %v1459
        %v1461 = vpop.f32.mrb[0].mxu0
        %1462 = vmatprep.mubr.bf16.mxu0 0
        %1463 = vmatmul.mubr.bf16.gmra.mrb[0].mxu0 %v1109
        %v1464 = vpop.f32.mrb[0].mxu0
        %v1465 = vadd.f32 0.0, %v1464
        %v1466 = vpop.f32.mrb[0].mxu0
        %v1467 = vpop.f32.mrb[0].mxu0
        %v1468 = vadd.f32 0.0, %v1467
        %v1469 = vpop.f32.mrb[0].mxu0
        %1470 = vmatprep.mubr.bf16.mxu0 0
        %1471 = vmatmul.mubr.bf16.gmra.mrb[0].mxu0 %v1112
        %v1472 = vpop.f32.mrb[0].mxu0
        %v1473 = vadd.f32 0.0, %v1472
        %v1474 = vpop.f32.mrb[0].mxu0
        %v1475 = vpop.f32.mrb[0].mxu0
        %v1476 = vadd.f32 0.0, %v1475
        %v1477 = vpop.f32.mrb[0].mxu0
        %1478 = vmatprep.mubr.bf16.mxu0 0
        %1479 = vmatmul.mubr.bf16.gmra.mrb[0].mxu0 %v1115
        %v1480 = vpop.f32.mrb[0].mxu0
        %v1481 = vadd.f32 0.0, %v1480
        %v1482 = vpop.f32.mrb[0].mxu0
        %v1483 = vpop.f32.mrb[0].mxu0
        %v1484 = vadd.f32 0.0, %v1483
        %v1485 = vpop.f32.mrb[0].mxu0
        %1486 = vmatprep.mubr.bf16.mxu0 0
        %1487 = vmatmul.mubr.bf16.gmra.mrb[0].mxu0 %v1118
        %v1488 = vpop.f32.mrb[0].mxu0
        %v1489 = vadd.f32 0.0, %v1488
        %v1490 = vpop.f32.mrb[0].mxu0
        %v1491 = vpop.f32.mrb[0].mxu0
        %v1492 = vadd.f32 0.0, %v1491
        %v1493 = vpop.f32.mrb[0].mxu0
        %1494 = vmatprep.mubr.bf16.mxu0 0
        %1495 = vmatmul.mubr.bf16.gmra.mrb[0].mxu0 %v1121
        %v1496 = vpop.f32.mrb[0].mxu0
        %v1497 = vadd.f32 0.0, %v1496
        %v1498 = vpop.f32.mrb[0].mxu0
        %v1499 = vpop.f32.mrb[0].mxu0
        %v1500 = vadd.f32 0.0, %v1499
        %v1501 = vpop.f32.mrb[0].mxu0
        %1502 = vmatprep.mubr.bf16.mxu0 0
        %1503 = vmatmul.mubr.bf16.gmra.mrb[0].mxu0 %v1124
        %v1504 = vpop.f32.mrb[0].mxu0
        %v1505 = vadd.f32 0.0, %v1504
        %v1506 = vpop.f32.mrb[0].mxu0
        %v1507 = vpop.f32.mrb[0].mxu0
        %v1508 = vadd.f32 0.0, %v1507
        %v1509 = vpop.f32.mrb[0].mxu0
        %1510 = vmatprep.mubr.bf16.mxu0 0
        %1511 = vmatmul.mubr.bf16.gmra.mrb[0].mxu0 %v1127
        %v1512 = vpop.f32.mrb[0].mxu0
        %v1513 = vadd.f32 0.0, %v1512
        %v1514 = vpop.f32.mrb[0].mxu0
        %v1515 = vpop.f32.mrb[0].mxu0
        %v1516 = vadd.f32 0.0, %v1515
        %v1517 = vpop.f32.mrb[0].mxu0
        %1518 = vmatprep.mubr.bf16.mxu0 0
        %1519 = vmatmul.mubr.bf16.gmra.mrb[0].mxu0 %v1130
        %v1520 = vpop.f32.mrb[0].mxu0
        %v1521 = vadd.f32 0.0, %v1520
        %v1522 = vpop.f32.mrb[0].mxu0
        %v1523 = vpop.f32.mrb[0].mxu0
        %v1524 = vadd.f32 0.0, %v1523
        %v1525 = vpop.f32.mrb[0].mxu0
        %1526 = vmatprep.mubr.bf16.mxu0 0
        %1527 = vmatmul.mubr.bf16.gmra.mrb[0].mxu0 %v1133
        %v1528 = vpop.f32.mrb[0].mxu0
        %v1529 = vadd.f32 0.0, %v1528
        %v1530 = vpop.f32.mrb[0].mxu0
        %v1531 = vpop.f32.mrb[0].mxu0
        %v1532 = vadd.f32 0.0, %v1531
        %v1533 = vpop.f32.mrb[0].mxu0
        %1534 = vmatprep.mubr.bf16.mxu0 0
        %1535 = vmatmul.mubr.bf16.gmra.mrb[0].mxu0 %v1136
        %v1536 = vpop.f32.mrb[0].mxu0
        %v1537 = vadd.f32 0.0, %v1536
        %v1538 = vpop.f32.mrb[0].mxu0
        %v1539 = vpop.f32.mrb[0].mxu0
        %v1540 = vadd.f32 0.0, %v1539
        %v1541 = vpop.f32.mrb[0].mxu0
        %1542 = vmatprep.mubr.bf16.mxu0 0
        %1543 = vmatmul.mubr.bf16.gmra.mrb[0].mxu0 %v1139
        %v1544 = vpop.f32.mrb[0].mxu0
        %v1545 = vadd.f32 0.0, %v1544
        %v1546 = vpop.f32.mrb[0].mxu0
        %v1547 = vpop.f32.mrb[0].mxu0
        %v1548 = vadd.f32 0.0, %v1547
        %v1549 = vpop.f32.mrb[0].mxu0
        %1550 = vmatprep.mubr.bf16.mxu0 0
        %1551 = vmatmul.mubr.bf16.gmra.mrb[0].mxu0 %v1142
        %v1552 = vpop.f32.mrb[0].mxu0
        %v1553 = vadd.f32 0.0, %v1552
        %v1554 = vpop.f32.mrb[0].mxu0
        %v1555 = vpop.f32.mrb[0].mxu0
        %v1556 = vadd.f32 0.0, %v1555
        %v1557 = vpop.f32.mrb[0].mxu0
        %1558 = vmatprep.mubr.bf16.mxu0 0
        %1559 = vmatmul.mubr.bf16.gmra.mrb[0].mxu0 %v1145
        %v1560 = vpop.f32.mrb[0].mxu0
        %v1561 = vadd.f32 0.0, %v1560
        %v1562 = vpop.f32.mrb[0].mxu0
        %v1563 = vpop.f32.mrb[0].mxu0
        %v1564 = vadd.f32 0.0, %v1563
        %v1565 = vpop.f32.mrb[0].mxu0
        %1566 = vmatprep.mubr.bf16.mxu0 0
        %1567 = vmatmul.mubr.bf16.gmra.mrb[0].mxu0 %v1148
        %v1568 = vpop.f32.mrb[0].mxu0
        %v1569 = vadd.f32 0.0, %v1568
        %v1570 = vpop.f32.mrb[0].mxu0
        %v1571 = vpop.f32.mrb[0].mxu0
        %v1572 = vadd.f32 0.0, %v1571
        %v1573 = vpop.f32.mrb[0].mxu0
        %1574 = vmatprep.mubr.bf16.mxu0 0
        %1575 = vmatmul.mubr.bf16.gmra.mrb[0].mxu0 %v1151
        %v1576 = vpop.f32.mrb[0].mxu0
        %v1577 = vadd.f32 0.0, %v1576
        %v1578 = vpop.f32.mrb[0].mxu0
        %v1579 = vpop.f32.mrb[0].mxu0
        %v1580 = vadd.f32 0.0, %v1579
        %v1581 = vpop.f32.mrb[0].mxu0
        %1582 = vmatprep.mubr.bf16.mxu0 0
        %1583 = vmatmul.mubr.bf16.gmra.mrb[0].mxu0 %v1154
        %v1584 = vpop.f32.mrb[0].mxu0
        %v1585 = vadd.f32 0.0, %v1584
        %v1586 = vpop.f32.mrb[0].mxu0
        %v1587 = vpop.f32.mrb[0].mxu0
        %v1588 = vadd.f32 0.0, %v1587
        %v1589 = vpop.f32.mrb[0].mxu0
        %1590 = vmatprep.mubr.bf16.mxu0 0
        %1591 = vmatmul.mubr.bf16.gmra.mrb[0].mxu0 %v1157
        %v1592 = vpop.f32.mrb[0].mxu0
        %v1593 = vadd.f32 0.0, %v1592
        %v1594 = vpop.f32.mrb[0].mxu0
        %v1595 = vpop.f32.mrb[0].mxu0
        %v1596 = vadd.f32 0.0, %v1595
        %v1597 = vpop.f32.mrb[0].mxu0
        %1598 = vmatprep.mubr.bf16.mxu0 0
        %1599 = vmatmul.mubr.bf16.gmra.mrb[0].mxu0 %v1160
        %v1600 = vpop.f32.mrb[0].mxu0
        %v1601 = vadd.f32 0.0, %v1600
        %v1602 = vpop.f32.mrb[0].mxu0
        %v1603 = vpop.f32.mrb[0].mxu0
        %v1604 = vadd.f32 0.0, %v1603
        %v1605 = vpop.f32.mrb[0].mxu0
        %1606 = vmatprep.mubr.bf16.mxu0 0
        %1607 = vmatmul.mubr.bf16.gmra.mrb[0].mxu0 %v1163
        %v1608 = vpop.f32.mrb[0].mxu0
        %v1609 = vadd.f32 0.0, %v1608
        %v1610 = vpop.f32.mrb[0].mxu0
        %v1611 = vpop.f32.mrb[0].mxu0
        %v1612 = vadd.f32 0.0, %v1611
        %v1613 = vpop.f32.mrb[0].mxu0
        %1614 = vmatprep.mubr.bf16.mxu0 0
        %1615 = vmatmul.mubr.bf16.gmra.mrb[0].mxu0 %v1166
        %v1616 = vpop.f32.mrb[0].mxu0
        %v1617 = vadd.f32 0.0, %v1616
        %v1618 = vpop.f32.mrb[0].mxu0
        %v1619 = vpop.f32.mrb[0].mxu0
        %v1620 = vadd.f32 0.0, %v1619
        %v1621 = vpop.f32.mrb[0].mxu0
        %1622 = vmatprep.mubr.bf16.mxu0 0
        %1623 = vmatmul.mubr.bf16.gmra.mrb[0].mxu0 %v1169
        %v1624 = vpop.f32.mrb[0].mxu0
        %v1625 = vadd.f32 0.0, %v1624
        %v1626 = vpop.f32.mrb[0].mxu0
        %v1627 = vpop.f32.mrb[0].mxu0
        %v1628 = vadd.f32 0.0, %v1627
        %v1629 = vpop.f32.mrb[0].mxu0
        %1630 = vmatprep.mubr.bf16.mxu0 0
        %1631 = vmatmul.mubr.bf16.gmra.mrb[0].mxu0 %v1172
        %v1632 = vpop.f32.mrb[0].mxu0
        %v1633 = vadd.f32 0.0, %v1632
        %v1634 = vpop.f32.mrb[0].mxu0
        %v1635 = vpop.f32.mrb[0].mxu0
        %v1636 = vadd.f32 0.0, %v1635
        %v1637 = vpop.f32.mrb[0].mxu0
        %1638 = vmatprep.mubr.bf16.mxu0 0
        %1639 = vmatmul.mubr.bf16.gmra.mrb[0].mxu0 %v1175
        %v1640 = vpop.f32.mrb[0].mxu0
        %v1641 = vadd.f32 0.0, %v1640
        %v1642 = vpop.f32.mrb[0].mxu0
        %v1643 = vpop.f32.mrb[0].mxu0
        %v1644 = vadd.f32 0.0, %v1643
        %v1645 = vpop.f32.mrb[0].mxu0
        %1646 = vmatprep.mubr.bf16.mxu0 0
        %1647 = vmatmul.mubr.bf16.gmra.mrb[0].mxu0 %v1178
        %v1648 = vpop.f32.mrb[0].mxu0
        %v1649 = vadd.f32 0.0, %v1648
        %v1650 = vpop.f32.mrb[0].mxu0
        %v1651 = vpop.f32.mrb[0].mxu0
        %v1652 = vadd.f32 0.0, %v1651
        %v1653 = vpop.f32.mrb[0].mxu0
        %1654 = vmatprep.mubr.bf16.mxu0 0
        %1655 = vmatmul.mubr.bf16.gmra.mrb[0].mxu0 %v1181
        %v1656 = vpop.f32.mrb[0].mxu0
        %v1657 = vadd.f32 0.0, %v1656
        %v1658 = vpop.f32.mrb[0].mxu0
        %v1659 = vpop.f32.mrb[0].mxu0
        %v1660 = vadd.f32 0.0, %v1659
        %v1661 = vpop.f32.mrb[0].mxu0
        %1662 = vmatprep.mubr.bf16.mxu0 0
        %1663 = vmatmul.mubr.bf16.gmra.mrb[0].mxu0 %v1184
        %v1664 = vpop.f32.mrb[0].mxu0
        %v1665 = vadd.f32 0.0, %v1664
        %v1666 = vpop.f32.mrb[0].mxu0
        %v1667 = vpop.f32.mrb[0].mxu0
        %v1668 = vadd.f32 0.0, %v1667
        %v1669 = vpop.f32.mrb[0].mxu0
        %1670 = vdwg.mxu0
        %v1675 = vunpack.c.l.b16 %v596
        %v1676 = vunpack.c.l.b16 %v597
        %v1677 = vunpack.c.l.b16 %v598
        %v1678 = vunpack.c.l.b16 %v599
        %v1679 = vpack.c.b16 %v1676, %v1675
        %v1680 = vpack.c.b16 %v1678, %v1677
        %v1686 = vunpack.c.l.b16 %v708
        %v1687 = vunpack.c.l.b16 %v709
        %v1688 = vunpack.c.l.b16 %v710
        %v1689 = vunpack.c.l.b16 %v711
        %v1690 = vunpack.c.l.b16 %v712
        %v1691 = vpack.c.b16 %v1687, %v1686
        %v1692 = vpack.c.b16 %v1689, %v1688
        %v1693 = vpack.c.b16 %v1690, %v1690
        %v1697 = vsel %vm1017, %v1679, 0
        %v1700 = vsel %vm1017, %v1680, 0
        %v1703 = vsel %vm1186, %v1693, 0
        %1705 = vmatprep.subr.bf16.mxu0 0
        %1706 = vmatpush1.bf16.msra.mxu0 %v1691
        %1707 = vmatprep.subr.bf16.mxu0 0
        %1708 = vmatpush1.bf16.msra.mxu0 %v1692
        %1709 = vmatprep.subr.bf16.mxu0 0
        %1710 = vmatpush1.bf16.msra.mxu0 %v1703
        %1711 = vmatprep.subr.bf16.mxu0 0
        %1712 = vmatpush1.bf16.msra.mxu0 0
        %1713 = vmatprep.subr.bf16.mxu0 0
        %1714 = vmatpush1.bf16.msra.mxu0 0
        %1715 = vmatprep.subr.bf16.mxu0 0
        %1716 = vmatpush1.bf16.msra.mxu0 0
        %1717 = vmatprep.subr.bf16.mxu0 0
        %1718 = vmatpush1.bf16.msra.mxu0 0
        %1719 = vmatprep.subr.bf16.mxu0 0
        %1720 = vmatpush1.bf16.msra.mxu0 0
        %1721 = vmatprep.subr.bf16.mxu0 0
        %1722 = vmatpush1.bf16.msra.mxu0 0
        %1723 = vmatprep.subr.bf16.mxu0 0
        %1724 = vmatpush1.bf16.msra.mxu0 0
        %1725 = vmatprep.subr.bf16.mxu0 0
        %1726 = vmatpush1.bf16.msra.mxu0 0
        %1727 = vmatprep.subr.bf16.mxu0 0
        %1728 = vmatpush1.bf16.msra.mxu0 0
        %1729 = vmatprep.subr.bf16.mxu0 0
        %1730 = vmatpush1.bf16.msra.mxu0 0
        %1731 = vmatprep.subr.bf16.mxu0 0
        %1732 = vmatpush1.bf16.msra.mxu0 0
        %1733 = vmatprep.subr.bf16.mxu0 0
        %1734 = vmatpush1.bf16.msra.mxu0 0
        %1735 = vmatprep.subr.bf16.mxu0 0
        %1736 = vmatpush1.bf16.msra.mxu0 0
        %1737 = vmatprep.mubr.bf16.mxu0 0
        %1738 = vmatmul.mubr.bf16.gmra.mrb[0].mxu0 %v1697
        %v1739 = vpop.f32.mrb[0].mxu0
        %v1740 = vadd.f32 %v1225, %v1739
        %v1741 = vpop.f32.mrb[0].mxu0
        %v1742 = vpop.f32.mrb[0].mxu0
        %v1743 = vadd.f32 %v1228, %v1742
        %v1744 = vpop.f32.mrb[0].mxu0
        %1745 = vmatprep.mubr.bf16.mxu0 0
        %1746 = vmatmul.mubr.bf16.gmra.mrb[0].mxu0 %v1700
        %v1747 = vpop.f32.mrb[0].mxu0
        %v1748 = vadd.f32 %v1233, %v1747
        %v1749 = vpop.f32.mrb[0].mxu0
        %v1750 = vpop.f32.mrb[0].mxu0
        %v1751 = vadd.f32 %v1236, %v1750
        %v1752 = vpop.f32.mrb[0].mxu0
        %1753 = vmatprep.mubr.bf16.mxu0 0
        %1754 = vmatmul.mubr.bf16.gmra.mrb[0].mxu0 %v1019
        %v1755 = vpop.f32.mrb[0].mxu0
        %v1756 = vadd.f32 %v1241, %v1755
        %v1757 = vpop.f32.mrb[0].mxu0
        %v1758 = vpop.f32.mrb[0].mxu0
        %v1759 = vadd.f32 %v1244, %v1758
        %v1760 = vpop.f32.mrb[0].mxu0
        %1761 = vmatprep.mubr.bf16.mxu0 0
        %1762 = vmatmul.mubr.bf16.gmra.mrb[0].mxu0 %v1022
        %v1763 = vpop.f32.mrb[0].mxu0
        %v1764 = vadd.f32 %v1249, %v1763
        %v1765 = vpop.f32.mrb[0].mxu0
        %v1766 = vpop.f32.mrb[0].mxu0
        %v1767 = vadd.f32 %v1252, %v1766
        %v1768 = vpop.f32.mrb[0].mxu0
        %1769 = vmatprep.mubr.bf16.mxu0 0
        %1770 = vmatmul.mubr.bf16.gmra.mrb[0].mxu0 %v1025
        %v1771 = vpop.f32.mrb[0].mxu0
        %v1772 = vadd.f32 %v1257, %v1771
        %v1773 = vpop.f32.mrb[0].mxu0
        %v1774 = vpop.f32.mrb[0].mxu0
        %v1775 = vadd.f32 %v1260, %v1774
        %v1776 = vpop.f32.mrb[0].mxu0
        %1777 = vmatprep.mubr.bf16.mxu0 0
        %1778 = vmatmul.mubr.bf16.gmra.mrb[0].mxu0 %v1028
        %v1779 = vpop.f32.mrb[0].mxu0
        %v1780 = vadd.f32 %v1265, %v1779
        %v1781 = vpop.f32.mrb[0].mxu0
        %v1782 = vpop.f32.mrb[0].mxu0
        %v1783 = vadd.f32 %v1268, %v1782
        %v1784 = vpop.f32.mrb[0].mxu0
        %1785 = vmatprep.mubr.bf16.mxu0 0
        %1786 = vmatmul.mubr.bf16.gmra.mrb[0].mxu0 %v1031
        %v1787 = vpop.f32.mrb[0].mxu0
        %v1788 = vadd.f32 %v1273, %v1787
        %v1789 = vpop.f32.mrb[0].mxu0
        %v1790 = vpop.f32.mrb[0].mxu0
        %v1791 = vadd.f32 %v1276, %v1790
        %v1792 = vpop.f32.mrb[0].mxu0
        %1793 = vmatprep.mubr.bf16.mxu0 0
        %1794 = vmatmul.mubr.bf16.gmra.mrb[0].mxu0 %v1034
        %v1795 = vpop.f32.mrb[0].mxu0
        %v1796 = vadd.f32 %v1281, %v1795
        %v1797 = vpop.f32.mrb[0].mxu0
        %v1798 = vpop.f32.mrb[0].mxu0
        %v1799 = vadd.f32 %v1284, %v1798
        %v1800 = vpop.f32.mrb[0].mxu0
        %1801 = vmatprep.mubr.bf16.mxu0 0
        %1802 = vmatmul.mubr.bf16.gmra.mrb[0].mxu0 %v1037
        %v1803 = vpop.f32.mrb[0].mxu0
        %v1804 = vadd.f32 %v1289, %v1803
        %v1805 = vpop.f32.mrb[0].mxu0
        %v1806 = vpop.f32.mrb[0].mxu0
        %v1807 = vadd.f32 %v1292, %v1806
        %v1808 = vpop.f32.mrb[0].mxu0
        %1809 = vmatprep.mubr.bf16.mxu0 0
        %1810 = vmatmul.mubr.bf16.gmra.mrb[0].mxu0 %v1040
        %v1811 = vpop.f32.mrb[0].mxu0
        %v1812 = vadd.f32 %v1297, %v1811
        %v1813 = vpop.f32.mrb[0].mxu0
        %v1814 = vpop.f32.mrb[0].mxu0
        %v1815 = vadd.f32 %v1300, %v1814
        %v1816 = vpop.f32.mrb[0].mxu0
        %1817 = vmatprep.mubr.bf16.mxu0 0
        %1818 = vmatmul.mubr.bf16.gmra.mrb[0].mxu0 %v1043
        %v1819 = vpop.f32.mrb[0].mxu0
        %v1820 = vadd.f32 %v1305, %v1819
        %v1821 = vpop.f32.mrb[0].mxu0
        %v1822 = vpop.f32.mrb[0].mxu0
        %v1823 = vadd.f32 %v1308, %v1822
        %v1824 = vpop.f32.mrb[0].mxu0
        %1825 = vmatprep.mubr.bf16.mxu0 0
        %1826 = vmatmul.mubr.bf16.gmra.mrb[0].mxu0 %v1046
        %v1827 = vpop.f32.mrb[0].mxu0
        %v1828 = vadd.f32 %v1313, %v1827
        %v1829 = vpop.f32.mrb[0].mxu0
        %v1830 = vpop.f32.mrb[0].mxu0
        %v1831 = vadd.f32 %v1316, %v1830
        %v1832 = vpop.f32.mrb[0].mxu0
        %1833 = vmatprep.mubr.bf16.mxu0 0
        %1834 = vmatmul.mubr.bf16.gmra.mrb[0].mxu0 %v1049
        %v1835 = vpop.f32.mrb[0].mxu0
        %v1836 = vadd.f32 %v1321, %v1835
        %v1837 = vpop.f32.mrb[0].mxu0
        %v1838 = vpop.f32.mrb[0].mxu0
        %v1839 = vadd.f32 %v1324, %v1838
        %v1840 = vpop.f32.mrb[0].mxu0
        %1841 = vmatprep.mubr.bf16.mxu0 0
        %1842 = vmatmul.mubr.bf16.gmra.mrb[0].mxu0 %v1052
        %v1843 = vpop.f32.mrb[0].mxu0
        %v1844 = vadd.f32 %v1329, %v1843
        %v1845 = vpop.f32.mrb[0].mxu0
        %v1846 = vpop.f32.mrb[0].mxu0
        %v1847 = vadd.f32 %v1332, %v1846
        %v1848 = vpop.f32.mrb[0].mxu0
        %1849 = vmatprep.mubr.bf16.mxu0 0
        %1850 = vmatmul.mubr.bf16.gmra.mrb[0].mxu0 %v1055
        %v1851 = vpop.f32.mrb[0].mxu0
        %v1852 = vadd.f32 %v1337, %v1851
        %v1853 = vpop.f32.mrb[0].mxu0
        %v1854 = vpop.f32.mrb[0].mxu0
        %v1855 = vadd.f32 %v1340, %v1854
        %v1856 = vpop.f32.mrb[0].mxu0
        %1857 = vmatprep.mubr.bf16.mxu0 0
        %1858 = vmatmul.mubr.bf16.gmra.mrb[0].mxu0 %v1058
        %v1859 = vpop.f32.mrb[0].mxu0
        %v1860 = vadd.f32 %v1345, %v1859
        %v1861 = vpop.f32.mrb[0].mxu0
        %v1862 = vpop.f32.mrb[0].mxu0
        %v1863 = vadd.f32 %v1348, %v1862
        %v1864 = vpop.f32.mrb[0].mxu0
        %1865 = vmatprep.mubr.bf16.mxu0 0
        %1866 = vmatmul.mubr.bf16.gmra.mrb[0].mxu0 %v1061
        %v1867 = vpop.f32.mrb[0].mxu0
        %v1868 = vadd.f32 %v1353, %v1867
        %v1869 = vpop.f32.mrb[0].mxu0
        %v1870 = vpop.f32.mrb[0].mxu0
        %v1871 = vadd.f32 %v1356, %v1870
        %v1872 = vpop.f32.mrb[0].mxu0
        %1873 = vmatprep.mubr.bf16.mxu0 0
        %1874 = vmatmul.mubr.bf16.gmra.mrb[0].mxu0 %v1064
        %v1875 = vpop.f32.mrb[0].mxu0
        %v1876 = vadd.f32 %v1361, %v1875
        %v1877 = vpop.f32.mrb[0].mxu0
        %v1878 = vpop.f32.mrb[0].mxu0
        %v1879 = vadd.f32 %v1364, %v1878
        %v1880 = vpop.f32.mrb[0].mxu0
        %1881 = vmatprep.mubr.bf16.mxu0 0
        %1882 = vmatmul.mubr.bf16.gmra.mrb[0].mxu0 %v1067
        %v1883 = vpop.f32.mrb[0].mxu0
        %v1884 = vadd.f32 %v1369, %v1883
        %v1885 = vpop.f32.mrb[0].mxu0
        %v1886 = vpop.f32.mrb[0].mxu0
        %v1887 = vadd.f32 %v1372, %v1886
        %v1888 = vpop.f32.mrb[0].mxu0
        %1889 = vmatprep.mubr.bf16.mxu0 0
        %1890 = vmatmul.mubr.bf16.gmra.mrb[0].mxu0 %v1070
        %v1891 = vpop.f32.mrb[0].mxu0
        %v1892 = vadd.f32 %v1377, %v1891
        %v1893 = vpop.f32.mrb[0].mxu0
        %v1894 = vpop.f32.mrb[0].mxu0
        %v1895 = vadd.f32 %v1380, %v1894
        %v1896 = vpop.f32.mrb[0].mxu0
        %1897 = vmatprep.mubr.bf16.mxu0 0
        %1898 = vmatmul.mubr.bf16.gmra.mrb[0].mxu0 %v1073
        %v1899 = vpop.f32.mrb[0].mxu0
        %v1900 = vadd.f32 %v1385, %v1899
        %v1901 = vpop.f32.mrb[0].mxu0
        %v1902 = vpop.f32.mrb[0].mxu0
        %v1903 = vadd.f32 %v1388, %v1902
        %v1904 = vpop.f32.mrb[0].mxu0
        %1905 = vmatprep.mubr.bf16.mxu0 0
        %1906 = vmatmul.mubr.bf16.gmra.mrb[0].mxu0 %v1076
        %v1907 = vpop.f32.mrb[0].mxu0
        %v1908 = vadd.f32 %v1393, %v1907
        %v1909 = vpop.f32.mrb[0].mxu0
        %v1910 = vpop.f32.mrb[0].mxu0
        %v1911 = vadd.f32 %v1396, %v1910
        %v1912 = vpop.f32.mrb[0].mxu0
        %1913 = vmatprep.mubr.bf16.mxu0 0
        %1914 = vmatmul.mubr.bf16.gmra.mrb[0].mxu0 %v1079
        %v1915 = vpop.f32.mrb[0].mxu0
        %v1916 = vadd.f32 %v1401, %v1915
        %v1917 = vpop.f32.mrb[0].mxu0
        %v1918 = vpop.f32.mrb[0].mxu0
        %v1919 = vadd.f32 %v1404, %v1918
        %v1920 = vpop.f32.mrb[0].mxu0
        %1921 = vmatprep.mubr.bf16.mxu0 0
        %1922 = vmatmul.mubr.bf16.gmra.mrb[0].mxu0 %v1082
        %v1923 = vpop.f32.mrb[0].mxu0
        %v1924 = vadd.f32 %v1409, %v1923
        %v1925 = vpop.f32.mrb[0].mxu0
        %v1926 = vpop.f32.mrb[0].mxu0
        %v1927 = vadd.f32 %v1412, %v1926
        %v1928 = vpop.f32.mrb[0].mxu0
        %1929 = vmatprep.mubr.bf16.mxu0 0
        %1930 = vmatmul.mubr.bf16.gmra.mrb[0].mxu0 %v1085
        %v1931 = vpop.f32.mrb[0].mxu0
        %v1932 = vadd.f32 %v1417, %v1931
        %v1933 = vpop.f32.mrb[0].mxu0
        %v1934 = vpop.f32.mrb[0].mxu0
        %v1935 = vadd.f32 %v1420, %v1934
        %v1936 = vpop.f32.mrb[0].mxu0
        %1937 = vmatprep.mubr.bf16.mxu0 0
        %1938 = vmatmul.mubr.bf16.gmra.mrb[0].mxu0 %v1088
        %v1939 = vpop.f32.mrb[0].mxu0
        %v1940 = vadd.f32 %v1425, %v1939
        %v1941 = vpop.f32.mrb[0].mxu0
        %v1942 = vpop.f32.mrb[0].mxu0
        %v1943 = vadd.f32 %v1428, %v1942
        %v1944 = vpop.f32.mrb[0].mxu0
        %1945 = vmatprep.mubr.bf16.mxu0 0
        %1946 = vmatmul.mubr.bf16.gmra.mrb[0].mxu0 %v1091
        %v1947 = vpop.f32.mrb[0].mxu0
        %v1948 = vadd.f32 %v1433, %v1947
        %v1949 = vpop.f32.mrb[0].mxu0
        %v1950 = vpop.f32.mrb[0].mxu0
        %v1951 = vadd.f32 %v1436, %v1950
        %v1952 = vpop.f32.mrb[0].mxu0
        %1953 = vmatprep.mubr.bf16.mxu0 0
        %1954 = vmatmul.mubr.bf16.gmra.mrb[0].mxu0 %v1094
        %v1955 = vpop.f32.mrb[0].mxu0
        %v1956 = vadd.f32 %v1441, %v1955
        %v1957 = vpop.f32.mrb[0].mxu0
        %v1958 = vpop.f32.mrb[0].mxu0
        %v1959 = vadd.f32 %v1444, %v1958
        %v1960 = vpop.f32.mrb[0].mxu0
        %1961 = vmatprep.mubr.bf16.mxu0 0
        %1962 = vmatmul.mubr.bf16.gmra.mrb[0].mxu0 %v1097
        %v1963 = vpop.f32.mrb[0].mxu0
        %v1964 = vadd.f32 %v1449, %v1963
        %v1965 = vpop.f32.mrb[0].mxu0
        %v1966 = vpop.f32.mrb[0].mxu0
        %v1967 = vadd.f32 %v1452, %v1966
        %v1968 = vpop.f32.mrb[0].mxu0
        %1969 = vmatprep.mubr.bf16.mxu0 0
        %1970 = vmatmul.mubr.bf16.gmra.mrb[0].mxu0 %v1100
        %v1971 = vpop.f32.mrb[0].mxu0
        %v1972 = vadd.f32 %v1457, %v1971
        %v1973 = vpop.f32.mrb[0].mxu0
        %v1974 = vpop.f32.mrb[0].mxu0
        %v1975 = vadd.f32 %v1460, %v1974
        %v1976 = vpop.f32.mrb[0].mxu0
        %1977 = vmatprep.mubr.bf16.mxu0 0
        %1978 = vmatmul.mubr.bf16.gmra.mrb[0].mxu0 %v1103
        %v1979 = vpop.f32.mrb[0].mxu0
        %v1980 = vadd.f32 %v1465, %v1979
        %v1981 = vpop.f32.mrb[0].mxu0
        %v1982 = vpop.f32.mrb[0].mxu0
        %v1983 = vadd.f32 %v1468, %v1982
        %v1984 = vpop.f32.mrb[0].mxu0
        %1985 = vmatprep.mubr.bf16.mxu0 0
        %1986 = vmatmul.mubr.bf16.gmra.mrb[0].mxu0 %v1106
        %v1987 = vpop.f32.mrb[0].mxu0
        %v1988 = vadd.f32 %v1473, %v1987
        %v1989 = vpop.f32.mrb[0].mxu0
        %v1990 = vpop.f32.mrb[0].mxu0
        %v1991 = vadd.f32 %v1476, %v1990
        %v1992 = vpop.f32.mrb[0].mxu0
        %1993 = vmatprep.mubr.bf16.mxu0 0
        %1994 = vmatmul.mubr.bf16.gmra.mrb[0].mxu0 %v1109
        %v1995 = vpop.f32.mrb[0].mxu0
        %v1996 = vadd.f32 %v1481, %v1995
        %v1997 = vpop.f32.mrb[0].mxu0
        %v1998 = vpop.f32.mrb[0].mxu0
        %v1999 = vadd.f32 %v1484, %v1998
        %v2000 = vpop.f32.mrb[0].mxu0
        %2001 = vmatprep.mubr.bf16.mxu0 0
        %2002 = vmatmul.mubr.bf16.gmra.mrb[0].mxu0 %v1112
        %v2003 = vpop.f32.mrb[0].mxu0
        %v2004 = vadd.f32 %v1489, %v2003
        %v2005 = vpop.f32.mrb[0].mxu0
        %v2006 = vpop.f32.mrb[0].mxu0
        %v2007 = vadd.f32 %v1492, %v2006
        %v2008 = vpop.f32.mrb[0].mxu0
        %2009 = vmatprep.mubr.bf16.mxu0 0
        %2010 = vmatmul.mubr.bf16.gmra.mrb[0].mxu0 %v1115
        %v2011 = vpop.f32.mrb[0].mxu0
        %v2012 = vadd.f32 %v1497, %v2011
        %v2013 = vpop.f32.mrb[0].mxu0
        %v2014 = vpop.f32.mrb[0].mxu0
        %v2015 = vadd.f32 %v1500, %v2014
        %v2016 = vpop.f32.mrb[0].mxu0
        %2017 = vmatprep.mubr.bf16.mxu0 0
        %2018 = vmatmul.mubr.bf16.gmra.mrb[0].mxu0 %v1118
        %v2019 = vpop.f32.mrb[0].mxu0
        %v2020 = vadd.f32 %v1505, %v2019
        %v2021 = vpop.f32.mrb[0].mxu0
        %v2022 = vpop.f32.mrb[0].mxu0
        %v2023 = vadd.f32 %v1508, %v2022
        %v2024 = vpop.f32.mrb[0].mxu0
        %2025 = vmatprep.mubr.bf16.mxu0 0
        %2026 = vmatmul.mubr.bf16.gmra.mrb[0].mxu0 %v1121
        %v2027 = vpop.f32.mrb[0].mxu0
        %v2028 = vadd.f32 %v1513, %v2027
        %v2029 = vpop.f32.mrb[0].mxu0
        %v2030 = vpop.f32.mrb[0].mxu0
        %v2031 = vadd.f32 %v1516, %v2030
        %v2032 = vpop.f32.mrb[0].mxu0
        %2033 = vmatprep.mubr.bf16.mxu0 0
        %2034 = vmatmul.mubr.bf16.gmra.mrb[0].mxu0 %v1124
        %v2035 = vpop.f32.mrb[0].mxu0
        %v2036 = vadd.f32 %v1521, %v2035
        %v2037 = vpop.f32.mrb[0].mxu0
        %v2038 = vpop.f32.mrb[0].mxu0
        %v2039 = vadd.f32 %v1524, %v2038
        %v2040 = vpop.f32.mrb[0].mxu0
        %2041 = vmatprep.mubr.bf16.mxu0 0
        %2042 = vmatmul.mubr.bf16.gmra.mrb[0].mxu0 %v1127
        %v2043 = vpop.f32.mrb[0].mxu0
        %v2044 = vadd.f32 %v1529, %v2043
        %v2045 = vpop.f32.mrb[0].mxu0
        %v2046 = vpop.f32.mrb[0].mxu0
        %v2047 = vadd.f32 %v1532, %v2046
        %v2048 = vpop.f32.mrb[0].mxu0
        %2049 = vmatprep.mubr.bf16.mxu0 0
        %2050 = vmatmul.mubr.bf16.gmra.mrb[0].mxu0 %v1130
        %v2051 = vpop.f32.mrb[0].mxu0
        %v2052 = vadd.f32 %v1537, %v2051
        %v2053 = vpop.f32.mrb[0].mxu0
        %v2054 = vpop.f32.mrb[0].mxu0
        %v2055 = vadd.f32 %v1540, %v2054
        %v2056 = vpop.f32.mrb[0].mxu0
        %2057 = vmatprep.mubr.bf16.mxu0 0
        %2058 = vmatmul.mubr.bf16.gmra.mrb[0].mxu0 %v1133
        %v2059 = vpop.f32.mrb[0].mxu0
        %v2060 = vadd.f32 %v1545, %v2059
        %v2061 = vpop.f32.mrb[0].mxu0
        %v2062 = vpop.f32.mrb[0].mxu0
        %v2063 = vadd.f32 %v1548, %v2062
        %v2064 = vpop.f32.mrb[0].mxu0
        %2065 = vmatprep.mubr.bf16.mxu0 0
        %2066 = vmatmul.mubr.bf16.gmra.mrb[0].mxu0 %v1136
        %v2067 = vpop.f32.mrb[0].mxu0
        %v2068 = vadd.f32 %v1553, %v2067
        %v2069 = vpop.f32.mrb[0].mxu0
        %v2070 = vpop.f32.mrb[0].mxu0
        %v2071 = vadd.f32 %v1556, %v2070
        %v2072 = vpop.f32.mrb[0].mxu0
        %2073 = vmatprep.mubr.bf16.mxu0 0
        %2074 = vmatmul.mubr.bf16.gmra.mrb[0].mxu0 %v1139
        %v2075 = vpop.f32.mrb[0].mxu0
        %v2076 = vadd.f32 %v1561, %v2075
        %v2077 = vpop.f32.mrb[0].mxu0
        %v2078 = vpop.f32.mrb[0].mxu0
        %v2079 = vadd.f32 %v1564, %v2078
        %v2080 = vpop.f32.mrb[0].mxu0
        %2081 = vmatprep.mubr.bf16.mxu0 0
        %2082 = vmatmul.mubr.bf16.gmra.mrb[0].mxu0 %v1142
        %v2083 = vpop.f32.mrb[0].mxu0
        %v2084 = vadd.f32 %v1569, %v2083
        %v2085 = vpop.f32.mrb[0].mxu0
        %v2086 = vpop.f32.mrb[0].mxu0
        %v2087 = vadd.f32 %v1572, %v2086
        %v2088 = vpop.f32.mrb[0].mxu0
        %2089 = vmatprep.mubr.bf16.mxu0 0
        %2090 = vmatmul.mubr.bf16.gmra.mrb[0].mxu0 %v1145
        %v2091 = vpop.f32.mrb[0].mxu0
        %v2092 = vadd.f32 %v1577, %v2091
        %v2093 = vpop.f32.mrb[0].mxu0
        %v2094 = vpop.f32.mrb[0].mxu0
        %v2095 = vadd.f32 %v1580, %v2094
        %v2096 = vpop.f32.mrb[0].mxu0
        %2097 = vmatprep.mubr.bf16.mxu0 0
        %2098 = vmatmul.mubr.bf16.gmra.mrb[0].mxu0 %v1148
        %v2099 = vpop.f32.mrb[0].mxu0
        %v2100 = vadd.f32 %v1585, %v2099
        %v2101 = vpop.f32.mrb[0].mxu0
        %v2102 = vpop.f32.mrb[0].mxu0
        %v2103 = vadd.f32 %v1588, %v2102
        %v2104 = vpop.f32.mrb[0].mxu0
        %2105 = vmatprep.mubr.bf16.mxu0 0
        %2106 = vmatmul.mubr.bf16.gmra.mrb[0].mxu0 %v1151
        %v2107 = vpop.f32.mrb[0].mxu0
        %v2108 = vadd.f32 %v1593, %v2107
        %v2109 = vpop.f32.mrb[0].mxu0
        %v2110 = vpop.f32.mrb[0].mxu0
        %v2111 = vadd.f32 %v1596, %v2110
        %v2112 = vpop.f32.mrb[0].mxu0
        %2113 = vmatprep.mubr.bf16.mxu0 0
        %2114 = vmatmul.mubr.bf16.gmra.mrb[0].mxu0 %v1154
        %v2115 = vpop.f32.mrb[0].mxu0
        %v2116 = vadd.f32 %v1601, %v2115
        %v2117 = vpop.f32.mrb[0].mxu0
        %v2118 = vpop.f32.mrb[0].mxu0
        %v2119 = vadd.f32 %v1604, %v2118
        %v2120 = vpop.f32.mrb[0].mxu0
        %2121 = vmatprep.mubr.bf16.mxu0 0
        %2122 = vmatmul.mubr.bf16.gmra.mrb[0].mxu0 %v1157
        %v2123 = vpop.f32.mrb[0].mxu0
        %v2124 = vadd.f32 %v1609, %v2123
        %v2125 = vpop.f32.mrb[0].mxu0
        %v2126 = vpop.f32.mrb[0].mxu0
        %v2127 = vadd.f32 %v1612, %v2126
        %v2128 = vpop.f32.mrb[0].mxu0
        %2129 = vmatprep.mubr.bf16.mxu0 0
        %2130 = vmatmul.mubr.bf16.gmra.mrb[0].mxu0 %v1160
        %v2131 = vpop.f32.mrb[0].mxu0
        %v2132 = vadd.f32 %v1617, %v2131
        %v2133 = vpop.f32.mrb[0].mxu0
        %v2134 = vpop.f32.mrb[0].mxu0
        %v2135 = vadd.f32 %v1620, %v2134
        %v2136 = vpop.f32.mrb[0].mxu0
        %2137 = vmatprep.mubr.bf16.mxu0 0
        %2138 = vmatmul.mubr.bf16.gmra.mrb[0].mxu0 %v1163
        %v2139 = vpop.f32.mrb[0].mxu0
        %v2140 = vadd.f32 %v1625, %v2139
        %v2141 = vpop.f32.mrb[0].mxu0
        %v2142 = vpop.f32.mrb[0].mxu0
        %v2143 = vadd.f32 %v1628, %v2142
        %v2144 = vpop.f32.mrb[0].mxu0
        %2145 = vmatprep.mubr.bf16.mxu0 0
        %2146 = vmatmul.mubr.bf16.gmra.mrb[0].mxu0 %v1166
        %v2147 = vpop.f32.mrb[0].mxu0
        %v2148 = vadd.f32 %v1633, %v2147
        %v2149 = vpop.f32.mrb[0].mxu0
        %v2150 = vpop.f32.mrb[0].mxu0
        %v2151 = vadd.f32 %v1636, %v2150
        %v2152 = vpop.f32.mrb[0].mxu0
        %2153 = vmatprep.mubr.bf16.mxu0 0
        %2154 = vmatmul.mubr.bf16.gmra.mrb[0].mxu0 %v1169
        %v2155 = vpop.f32.mrb[0].mxu0
        %v2156 = vadd.f32 %v1641, %v2155
        %v2157 = vpop.f32.mrb[0].mxu0
        %v2158 = vpop.f32.mrb[0].mxu0
        %v2159 = vadd.f32 %v1644, %v2158
        %v2160 = vpop.f32.mrb[0].mxu0
        %2161 = vmatprep.mubr.bf16.mxu0 0
        %2162 = vmatmul.mubr.bf16.gmra.mrb[0].mxu0 %v1172
        %v2163 = vpop.f32.mrb[0].mxu0
        %v2164 = vadd.f32 %v1649, %v2163
        %v2165 = vpop.f32.mrb[0].mxu0
        %v2166 = vpop.f32.mrb[0].mxu0
        %v2167 = vadd.f32 %v1652, %v2166
        %v2168 = vpop.f32.mrb[0].mxu0
        %2169 = vmatprep.mubr.bf16.mxu0 0
        %2170 = vmatmul.mubr.bf16.gmra.mrb[0].mxu0 %v1175
        %v2171 = vpop.f32.mrb[0].mxu0
        %v2172 = vadd.f32 %v1657, %v2171
        %v2173 = vpop.f32.mrb[0].mxu0
        %v2174 = vpop.f32.mrb[0].mxu0
        %v2175 = vadd.f32 %v1660, %v2174
        %v2176 = vpop.f32.mrb[0].mxu0
        %2177 = vmatprep.mubr.bf16.mxu0 0
        %2178 = vmatmul.mubr.bf16.gmra.mrb[0].mxu0 %v1178
        %v2179 = vpop.f32.mrb[0].mxu0
        %v2180 = vadd.f32 %v1665, %v2179
        %v2181 = vpop.f32.mrb[0].mxu0
        %v2182 = vpop.f32.mrb[0].mxu0
        %v2183 = vadd.f32 %v1668, %v2182
        %v2184 = vpop.f32.mrb[0].mxu0
        %2185 = vdwg.mxu0
        %v2186 = vld [vmem:[%s437 + $0x20] sm:$0xf]
        %v2187 = vld [vmem:[%s437 + $0x24] sm:$0xf]
        %v2188 = vld [vmem:[%s437 + $0x28] sm:$0xf]
        %v2189 = vld [vmem:[%s437 + $0x2c] sm:$0xf]
        %v2190 = vld [vmem:[%s437 + $0x30] sm:$0xf]
        %v2191 = vld [vmem:[%s437 + $0x34] sm:$0xf]
        %v2192 = vld [vmem:[%s437 + $0x38] sm:$0xf]
        %v2193 = vld [vmem:[%s437 + $0x3c] sm:$0xf]
        %v2194 = vld [vmem:[%s437 + $0x40] sm:$0xf]
        %v2195 = vld [vmem:[%s437 + $0x44] sm:$0xf]
        %v2196 = vld [vmem:[%s437 + $0x48] sm:$0xf]
        %v2197 = vld [vmem:[%s437 + $0x4c] sm:$0xf]
        %v2198 = vld [vmem:[%s437 + $0x50] sm:$0xf]
        %v2199 = vld [vmem:[%s437 + $0x54] sm:$0xf]
        %v2200 = vld [vmem:[%s437 + $0x58] sm:$0xf]
        %v2201 = vld [vmem:[%s437 + $0x5c] sm:$0xf]
        %v2202 = vld [vmem:[%s437 + $0x60] sm:$0xf]
        %v2203 = vld [vmem:[%s437 + $0x64] sm:$0xf]
        %v2204 = vld [vmem:[%s437 + $0x68] sm:$0xf]
        %v2205 = vld [vmem:[%s437 + $0x6c] sm:$0xf]
        %v2206 = vld [vmem:[%s437 + $0x70] sm:$0xf]
        %v2207 = vld [vmem:[%s437 + $0x74] sm:$0xf]
        %v2208 = vld [vmem:[%s437 + $0x78] sm:$0xf]
        %v2209 = vld [vmem:[%s437 + $0x7c] sm:$0xf]
        %v2210 = vld [vmem:[%s437 + $0x80] sm:$0xf]
        %v2211 = vld [vmem:[%s437 + $0x84] sm:$0xf]
        %v2212 = vld [vmem:[%s437 + $0x88] sm:$0xf]
        %v2213 = vld [vmem:[%s437 + $0x8c] sm:$0xf]
        %v2214 = vld [vmem:[%s437 + $0x90] sm:$0xf]
        %v2215 = vld [vmem:[%s437 + $0x94] sm:$0xf]
        %v2216 = vld [vmem:[%s437 + $0x98] sm:$0xf]
        %v2217 = vld [vmem:[%s437 + $0x9c] sm:$0xf]
        %v2218 = vld [vmem:[%s437 + $0xa0] sm:$0xf]
        %v2219 = vld [vmem:[%s437 + $0xa4] sm:$0xf]
        %v2220 = vld [vmem:[%s437 + $0xa8] sm:$0xf]
        %v2221 = vld [vmem:[%s437 + $0xac] sm:$0xf]
        %v2222 = vld [vmem:[%s437 + $0xb0] sm:$0xf]
        %v2223 = vld [vmem:[%s437 + $0xb4] sm:$0xf]
        %v2224 = vld [vmem:[%s437 + $0xb8] sm:$0xf]
        %v2225 = vld [vmem:[%s437 + $0xbc] sm:$0xf]
        %v2226 = vld [vmem:[%s437 + $0xc0] sm:$0xf]
        %v2227 = vld [vmem:[%s437 + $0xc4] sm:$0xf]
        %v2228 = vld [vmem:[%s437 + $0xc8] sm:$0xf]
        %v2229 = vld [vmem:[%s437 + $0xcc] sm:$0xf]
        %v2230 = vld [vmem:[%s437 + $0xd0] sm:$0xf]
        %v2231 = vld [vmem:[%s437 + $0xd4] sm:$0xf]
        %v2232 = vld [vmem:[%s437 + $0xd8] sm:$0xf]
        %v2233 = vld [vmem:[%s437 + $0xdc] sm:$0xf]
        %v2234 = vld [vmem:[%s437 + $0xe0] sm:$0xf]
        %v2235 = vld [vmem:[%s437 + $0xe4] sm:$0xf]
        %v2236 = vld [vmem:[%s437 + $0xe8] sm:$0xf]
        %v2237 = vld [vmem:[%s437 + $0xec] sm:$0xf]
        %v2238 = vld [vmem:[%s437 + $0xf0] sm:$0xf]
        %v2239 = vld [vmem:[%s437 + $0xf4] sm:$0xf]
        %v2240 = vld [vmem:[%s437 + $0xf8] sm:$0xf]
        %v2241 = vld [vmem:[%s437 + $0xfc] sm:$0xf]
        %v2242 = vld [vmem:[%s437 + $0x100] sm:$0xf]
        %v2243 = vld [vmem:[%s437 + $0x104] sm:$0xf]
        %v2244 = vld [vmem:[%s437 + $0x108] sm:$0xf]
        %v2245 = vld [vmem:[%s437 + $0x10c] sm:$0xf]
        %v2246 = vld [vmem:[%s437 + $0x110] sm:$0xf]
        %v2247 = vld [vmem:[%s437 + $0x114] sm:$0xf]
        %v2248 = vld [vmem:[%s437 + $0x118] sm:$0xf]
        %v2249 = vld [vmem:[%s437 + $0x11c] sm:$0xf]
        %v2250 = vld [vmem:[%s437 + $0x120] sm:$0xf]
        %v2251 = vld [vmem:[%s437 + $0x124] sm:$0xf]
        %v2252 = vld [vmem:[%s437 + $0x128] sm:$0xf]
        %v2253 = vld [vmem:[%s437 + $0x12c] sm:$0xf]
        %v2254 = vld [vmem:[%s437 + $0x130] sm:$0xf]
        %v2255 = vld [vmem:[%s437 + $0x134] sm:$0xf]
        %v2256 = vld [vmem:[%s437 + $0x138] sm:$0xf]
        %v2257 = vld [vmem:[%s437 + $0x13c] sm:$0xf]
        %v2258 = vld [vmem:[%s437 + $0x140] sm:$0xf]
        %v2259 = vld [vmem:[%s437 + $0x144] sm:$0xf]
        %v2260 = vld [vmem:[%s437 + $0x148] sm:$0xf]
        %v2261 = vld [vmem:[%s437 + $0x14c] sm:$0xf]
        %v2262 = vld [vmem:[%s437 + $0x150] sm:$0xf]
        %v2263 = vld [vmem:[%s437 + $0x154] sm:$0xf]
        %v2264 = vld [vmem:[%s437 + $0x158] sm:$0xf]
        %v2265 = vld [vmem:[%s437 + $0x15c] sm:$0xf]
        %v2266 = vld [vmem:[%s437 + $0x160] sm:$0xf]
        %v2267 = vld [vmem:[%s437 + $0x164] sm:$0xf]
        %v2268 = vld [vmem:[%s437 + $0x168] sm:$0xf]
        %v2269 = vld [vmem:[%s437 + $0x16c] sm:$0xf]
        %v2270 = vld [vmem:[%s437 + $0x170] sm:$0xf]
        %v2271 = vld [vmem:[%s437 + $0x174] sm:$0xf]
        %v2272 = vld [vmem:[%s437 + $0x178] sm:$0xf]
        %v2273 = vld [vmem:[%s437 + $0x17c] sm:$0xf]
        %v2274 = vld [vmem:[%s437 + $0x180] sm:$0xf]
        %v2275 = vld [vmem:[%s437 + $0x184] sm:$0xf]
        %v2276 = vld [vmem:[%s437 + $0x188] sm:$0xf]
        %v2277 = vld [vmem:[%s437 + $0x18c] sm:$0xf]
        %v2278 = vld [vmem:[%s437 + $0x190] sm:$0xf]
        %v2279 = vld [vmem:[%s437 + $0x194] sm:$0xf]
        %v2280 = vld [vmem:[%s437 + $0x198] sm:$0xf]
        %v2281 = vld [vmem:[%s437 + $0x19c] sm:$0xf]
        %v2282 = vld [vmem:[%s437 + $0x1a0] sm:$0xf]
        %v2283 = vld [vmem:[%s437 + $0x1a4] sm:$0xf]
        %v2284 = vld [vmem:[%s437 + $0x1a8] sm:$0xf]
        %v2285 = vld [vmem:[%s437 + $0x1ac] sm:$0xf]
        %v2286 = vld [vmem:[%s437 + $0x1b0] sm:$0xf]
        %v2287 = vld [vmem:[%s437 + $0x1b4] sm:$0xf]
        %v2288 = vld [vmem:[%s437 + $0x1b8] sm:$0xf]
        %v2289 = vld [vmem:[%s437 + $0x1bc] sm:$0xf]
        %v2290 = vld [vmem:[%s437 + $0x1c0] sm:$0xf]
        %v2291 = vld [vmem:[%s437 + $0x1c4] sm:$0xf]
        %v2292 = vld [vmem:[%s437 + $0x1c8] sm:$0xf]
        %v2293 = vld [vmem:[%s437 + $0x1cc] sm:$0xf]
        %v2294 = vld [vmem:[%s437 + $0x1d0] sm:$0xf]
        %v2295 = vld [vmem:[%s437 + $0x1d4] sm:$0xf]
        %v2296 = vld [vmem:[%s437 + $0x1d8] sm:$0xf]
        %v2297 = vld [vmem:[%s437 + $0x1dc] sm:$0xf]
        %v2298 = vld [vmem:[%s1 + $0x28] sm:$0xf]
        %v2299 = vld [vmem:[%s1 + $0x2c] sm:$0xf]
        %v2300 = vld [vmem:[%s1 + $0x30] sm:$0xf]
        %v2301 = vld [vmem:[%s1 + $0x34] sm:$0xf]
        %v2302 = vld [vmem:[%s1 + $0x38] sm:$0xf]
        %v2415 = vunpack.c.l.b16 %v2186
        %v2416 = vunpack.c.l.b16 %v2187
        %v2417 = vunpack.c.l.b16 %v2188
        %v2418 = vunpack.c.l.b16 %v2189
        %v2419 = vunpack.c.l.b16 %v2190
        %v2420 = vunpack.c.l.b16 %v2191
        %v2421 = vunpack.c.l.b16 %v2192
        %v2422 = vunpack.c.l.b16 %v2193
        %v2423 = vunpack.c.l.b16 %v2194
        %v2424 = vunpack.c.l.b16 %v2195
        %v2425 = vunpack.c.l.b16 %v2196
        %v2426 = vunpack.c.l.b16 %v2197
        %v2427 = vunpack.c.l.b16 %v2198
        %v2428 = vunpack.c.l.b16 %v2199
        %v2429 = vunpack.c.l.b16 %v2200
        %v2430 = vunpack.c.l.b16 %v2201
        %v2431 = vunpack.c.l.b16 %v2202
        %v2432 = vunpack.c.l.b16 %v2203
        %v2433 = vunpack.c.l.b16 %v2204
        %v2434 = vunpack.c.l.b16 %v2205
        %v2435 = vunpack.c.l.b16 %v2206
        %v2436 = vunpack.c.l.b16 %v2207
        %v2437 = vunpack.c.l.b16 %v2208
        %v2438 = vunpack.c.l.b16 %v2209
        %v2439 = vunpack.c.l.b16 %v2210
        %v2440 = vunpack.c.l.b16 %v2211
        %v2441 = vunpack.c.l.b16 %v2212
        %v2442 = vunpack.c.l.b16 %v2213
        %v2443 = vunpack.c.l.b16 %v2214
        %v2444 = vunpack.c.l.b16 %v2215
        %v2445 = vunpack.c.l.b16 %v2216
        %v2446 = vunpack.c.l.b16 %v2217
        %v2447 = vunpack.c.l.b16 %v2218
        %v2448 = vunpack.c.l.b16 %v2219
        %v2449 = vunpack.c.l.b16 %v2220
        %v2450 = vunpack.c.l.b16 %v2221
        %v2451 = vunpack.c.l.b16 %v2222
        %v2452 = vunpack.c.l.b16 %v2223
        %v2453 = vunpack.c.l.b16 %v2224
        %v2454 = vunpack.c.l.b16 %v2225
        %v2455 = vunpack.c.l.b16 %v2226
        %v2456 = vunpack.c.l.b16 %v2227
        %v2457 = vunpack.c.l.b16 %v2228
        %v2458 = vunpack.c.l.b16 %v2229
        %v2459 = vunpack.c.l.b16 %v2230
        %v2460 = vunpack.c.l.b16 %v2231
        %v2461 = vunpack.c.l.b16 %v2232
        %v2462 = vunpack.c.l.b16 %v2233
        %v2463 = vunpack.c.l.b16 %v2234
        %v2464 = vunpack.c.l.b16 %v2235
        %v2465 = vunpack.c.l.b16 %v2236
        %v2466 = vunpack.c.l.b16 %v2237
        %v2467 = vunpack.c.l.b16 %v2238
        %v2468 = vunpack.c.l.b16 %v2239
        %v2469 = vunpack.c.l.b16 %v2240
        %v2470 = vunpack.c.l.b16 %v2241
        %v2471 = vunpack.c.l.b16 %v2242
        %v2472 = vunpack.c.l.b16 %v2243
        %v2473 = vunpack.c.l.b16 %v2244
        %v2474 = vunpack.c.l.b16 %v2245
        %v2475 = vunpack.c.l.b16 %v2246
        %v2476 = vunpack.c.l.b16 %v2247
        %v2477 = vunpack.c.l.b16 %v2248
        %v2478 = vunpack.c.l.b16 %v2249
        %v2479 = vunpack.c.l.b16 %v2250
        %v2480 = vunpack.c.l.b16 %v2251
        %v2481 = vunpack.c.l.b16 %v2252
        %v2482 = vunpack.c.l.b16 %v2253
        %v2483 = vunpack.c.l.b16 %v2254
        %v2484 = vunpack.c.l.b16 %v2255
        %v2485 = vunpack.c.l.b16 %v2256
        %v2486 = vunpack.c.l.b16 %v2257
        %v2487 = vunpack.c.l.b16 %v2258
        %v2488 = vunpack.c.l.b16 %v2259
        %v2489 = vunpack.c.l.b16 %v2260
        %v2490 = vunpack.c.l.b16 %v2261
        %v2491 = vunpack.c.l.b16 %v2262
        %v2492 = vunpack.c.l.b16 %v2263
        %v2493 = vunpack.c.l.b16 %v2264
        %v2494 = vunpack.c.l.b16 %v2265
        %v2495 = vunpack.c.l.b16 %v2266
        %v2496 = vunpack.c.l.b16 %v2267
        %v2497 = vunpack.c.l.b16 %v2268
        %v2498 = vunpack.c.l.b16 %v2269
        %v2499 = vunpack.c.l.b16 %v2270
        %v2500 = vunpack.c.l.b16 %v2271
        %v2501 = vunpack.c.l.b16 %v2272
        %v2502 = vunpack.c.l.b16 %v2273
        %v2503 = vunpack.c.l.b16 %v2274
        %v2504 = vunpack.c.l.b16 %v2275
        %v2505 = vunpack.c.l.b16 %v2276
        %v2506 = vunpack.c.l.b16 %v2277
        %v2507 = vunpack.c.l.b16 %v2278
        %v2508 = vunpack.c.l.b16 %v2279
        %v2509 = vunpack.c.l.b16 %v2280
        %v2510 = vunpack.c.l.b16 %v2281
        %v2511 = vunpack.c.l.b16 %v2282
        %v2512 = vunpack.c.l.b16 %v2283
        %v2513 = vunpack.c.l.b16 %v2284
        %v2514 = vunpack.c.l.b16 %v2285
        %v2515 = vunpack.c.l.b16 %v2286
        %v2516 = vunpack.c.l.b16 %v2287
        %v2517 = vunpack.c.l.b16 %v2288
        %v2518 = vunpack.c.l.b16 %v2289
        %v2519 = vunpack.c.l.b16 %v2290
        %v2520 = vunpack.c.l.b16 %v2291
        %v2521 = vunpack.c.l.b16 %v2292
        %v2522 = vunpack.c.l.b16 %v2293
        %v2523 = vunpack.c.l.b16 %v2294
        %v2524 = vunpack.c.l.b16 %v2295
        %v2525 = vunpack.c.l.b16 %v2296
        %v2526 = vunpack.c.l.b16 %v2297
        %v2527 = vpack.c.b16 %v2416, %v2415
        %v2528 = vpack.c.b16 %v2418, %v2417
        %v2529 = vpack.c.b16 %v2420, %v2419
        %v2530 = vpack.c.b16 %v2422, %v2421
        %v2531 = vpack.c.b16 %v2424, %v2423
        %v2532 = vpack.c.b16 %v2426, %v2425
        %v2533 = vpack.c.b16 %v2428, %v2427
        %v2534 = vpack.c.b16 %v2430, %v2429
        %v2535 = vpack.c.b16 %v2432, %v2431
        %v2536 = vpack.c.b16 %v2434, %v2433
        %v2537 = vpack.c.b16 %v2436, %v2435
        %v2538 = vpack.c.b16 %v2438, %v2437
        %v2539 = vpack.c.b16 %v2440, %v2439
        %v2540 = vpack.c.b16 %v2442, %v2441
        %v2541 = vpack.c.b16 %v2444, %v2443
        %v2542 = vpack.c.b16 %v2446, %v2445
        %v2543 = vpack.c.b16 %v2448, %v2447
        %v2544 = vpack.c.b16 %v2450, %v2449
        %v2545 = vpack.c.b16 %v2452, %v2451
        %v2546 = vpack.c.b16 %v2454, %v2453
        %v2547 = vpack.c.b16 %v2456, %v2455
        %v2548 = vpack.c.b16 %v2458, %v2457
        %v2549 = vpack.c.b16 %v2460, %v2459
        %v2550 = vpack.c.b16 %v2462, %v2461
        %v2551 = vpack.c.b16 %v2464, %v2463
        %v2552 = vpack.c.b16 %v2466, %v2465
        %v2553 = vpack.c.b16 %v2468, %v2467
        %v2554 = vpack.c.b16 %v2470, %v2469
        %v2555 = vpack.c.b16 %v2472, %v2471
        %v2556 = vpack.c.b16 %v2474, %v2473
        %v2557 = vpack.c.b16 %v2476, %v2475
        %v2558 = vpack.c.b16 %v2478, %v2477
        %v2559 = vpack.c.b16 %v2480, %v2479
        %v2560 = vpack.c.b16 %v2482, %v2481
        %v2561 = vpack.c.b16 %v2484, %v2483
        %v2562 = vpack.c.b16 %v2486, %v2485
        %v2563 = vpack.c.b16 %v2488, %v2487
        %v2564 = vpack.c.b16 %v2490, %v2489
        %v2565 = vpack.c.b16 %v2492, %v2491
        %v2566 = vpack.c.b16 %v2494, %v2493
        %v2567 = vpack.c.b16 %v2496, %v2495
        %v2568 = vpack.c.b16 %v2498, %v2497
        %v2569 = vpack.c.b16 %v2500, %v2499
        %v2570 = vpack.c.b16 %v2502, %v2501
        %v2571 = vpack.c.b16 %v2504, %v2503
        %v2572 = vpack.c.b16 %v2506, %v2505
        %v2573 = vpack.c.b16 %v2508, %v2507
        %v2574 = vpack.c.b16 %v2510, %v2509
        %v2575 = vpack.c.b16 %v2512, %v2511
        %v2576 = vpack.c.b16 %v2514, %v2513
        %v2577 = vpack.c.b16 %v2516, %v2515
        %v2578 = vpack.c.b16 %v2518, %v2517
        %v2579 = vpack.c.b16 %v2520, %v2519
        %v2580 = vpack.c.b16 %v2522, %v2521
        %v2581 = vpack.c.b16 %v2524, %v2523
        %v2582 = vpack.c.b16 %v2526, %v2525
        %v2588 = vunpack.c.l.b16 %v2298
        %v2589 = vunpack.c.l.b16 %v2299
        %v2590 = vunpack.c.l.b16 %v2300
        %v2591 = vunpack.c.l.b16 %v2301
        %v2592 = vunpack.c.l.b16 %v2302
        %v2593 = vpack.c.b16 %v2589, %v2588
        %v2594 = vpack.c.b16 %v2591, %v2590
        %v2595 = vpack.c.b16 %v2592, %v2592
        %v2599 = vsel %vm1017, %v2527, 0
        %v2602 = vsel %vm1017, %v2528, 0
        %v2605 = vsel %vm1017, %v2529, 0
        %v2608 = vsel %vm1017, %v2530, 0
        %v2611 = vsel %vm1017, %v2531, 0
        %v2614 = vsel %vm1017, %v2532, 0
        %v2617 = vsel %vm1017, %v2533, 0
        %v2620 = vsel %vm1017, %v2534, 0
        %v2623 = vsel %vm1017, %v2535, 0
        %v2626 = vsel %vm1017, %v2536, 0
        %v2629 = vsel %vm1017, %v2537, 0
        %v2632 = vsel %vm1017, %v2538, 0
        %v2635 = vsel %vm1017, %v2539, 0
        %v2638 = vsel %vm1017, %v2540, 0
        %v2641 = vsel %vm1017, %v2541, 0
        %v2644 = vsel %vm1017, %v2542, 0
        %v2647 = vsel %vm1017, %v2543, 0
        %v2650 = vsel %vm1017, %v2544, 0
        %v2653 = vsel %vm1017, %v2545, 0
        %v2656 = vsel %vm1017, %v2546, 0
        %v2659 = vsel %vm1017, %v2547, 0
        %v2662 = vsel %vm1017, %v2548, 0
        %v2665 = vsel %vm1017, %v2549, 0
        %v2668 = vsel %vm1017, %v2550, 0
        %v2671 = vsel %vm1017, %v2551, 0
        %v2674 = vsel %vm1017, %v2552, 0
        %v2677 = vsel %vm1017, %v2553, 0
        %v2680 = vsel %vm1017, %v2554, 0
        %v2683 = vsel %vm1017, %v2555, 0
        %v2686 = vsel %vm1017, %v2556, 0
        %v2689 = vsel %vm1017, %v2557, 0
        %v2692 = vsel %vm1017, %v2558, 0
        %v2695 = vsel %vm1017, %v2559, 0
        %v2698 = vsel %vm1017, %v2560, 0
        %v2701 = vsel %vm1017, %v2561, 0
        %v2704 = vsel %vm1017, %v2562, 0
        %v2707 = vsel %vm1017, %v2563, 0
        %v2710 = vsel %vm1017, %v2564, 0
        %v2713 = vsel %vm1017, %v2565, 0
        %v2716 = vsel %vm1017, %v2566, 0
        %v2719 = vsel %vm1017, %v2567, 0
        %v2722 = vsel %vm1017, %v2568, 0
        %v2725 = vsel %vm1017, %v2569, 0
        %v2728 = vsel %vm1017, %v2570, 0
        %v2731 = vsel %vm1017, %v2571, 0
        %v2734 = vsel %vm1017, %v2572, 0
        %v2737 = vsel %vm1017, %v2573, 0
        %v2740 = vsel %vm1017, %v2574, 0
        %v2743 = vsel %vm1017, %v2575, 0
        %v2746 = vsel %vm1017, %v2576, 0
        %v2749 = vsel %vm1017, %v2577, 0
        %v2752 = vsel %vm1017, %v2578, 0
        %v2755 = vsel %vm1017, %v2579, 0
        %v2758 = vsel %vm1017, %v2580, 0
        %v2761 = vsel %vm1017, %v2581, 0
        %v2764 = vsel %vm1017, %v2582, 0
        %v2767 = vsel %vm1186, %v2595, 0
        %2769 = vmatprep.subr.bf16.mxu0 0
        %2770 = vmatpush1.bf16.msra.mxu0 %v2593
        %2771 = vmatprep.subr.bf16.mxu0 0
        %2772 = vmatpush1.bf16.msra.mxu0 %v2594
        %2773 = vmatprep.subr.bf16.mxu0 0
        %2774 = vmatpush1.bf16.msra.mxu0 %v2767
        %2775 = vmatprep.subr.bf16.mxu0 0
        %2776 = vmatpush1.bf16.msra.mxu0 0
        %2777 = vmatprep.subr.bf16.mxu0 0
        %2778 = vmatpush1.bf16.msra.mxu0 0
        %2779 = vmatprep.subr.bf16.mxu0 0
        %2780 = vmatpush1.bf16.msra.mxu0 0
        %2781 = vmatprep.subr.bf16.mxu0 0
        %2782 = vmatpush1.bf16.msra.mxu0 0
        %2783 = vmatprep.subr.bf16.mxu0 0
        %2784 = vmatpush1.bf16.msra.mxu0 0
        %2785 = vmatprep.subr.bf16.mxu0 0
        %2786 = vmatpush1.bf16.msra.mxu0 0
        %2787 = vmatprep.subr.bf16.mxu0 0
        %2788 = vmatpush1.bf16.msra.mxu0 0
        %2789 = vmatprep.subr.bf16.mxu0 0
        %2790 = vmatpush1.bf16.msra.mxu0 0
        %2791 = vmatprep.subr.bf16.mxu0 0
        %2792 = vmatpush1.bf16.msra.mxu0 0
        %2793 = vmatprep.subr.bf16.mxu0 0
        %2794 = vmatpush1.bf16.msra.mxu0 0
        %2795 = vmatprep.subr.bf16.mxu0 0
        %2796 = vmatpush1.bf16.msra.mxu0 0
        %2797 = vmatprep.subr.bf16.mxu0 0
        %2798 = vmatpush1.bf16.msra.mxu0 0
        %2799 = vmatprep.subr.bf16.mxu0 0
        %2800 = vmatpush1.bf16.msra.mxu0 0
        %2801 = vmatprep.mubr.bf16.mxu0 0
        %2802 = vmatmul.mubr.bf16.gmra.mrb[0].mxu0 %v2599
        %v2803 = vpop.f32.mrb[0].mxu0
        %v2804 = vadd.f32 0.0, %v2803
        %v2805 = vpop.f32.mrb[0].mxu0
        %v2806 = vpop.f32.mrb[0].mxu0
        %v2807 = vadd.f32 0.0, %v2806
        %v2808 = vpop.f32.mrb[0].mxu0
        %2809 = vmatprep.mubr.bf16.mxu0 0
        %2810 = vmatmul.mubr.bf16.gmra.mrb[0].mxu0 %v2602
        %v2811 = vpop.f32.mrb[0].mxu0
        %v2812 = vadd.f32 0.0, %v2811
        %v2813 = vpop.f32.mrb[0].mxu0
        %v2814 = vpop.f32.mrb[0].mxu0
        %v2815 = vadd.f32 0.0, %v2814
        %v2816 = vpop.f32.mrb[0].mxu0
        %2817 = vmatprep.mubr.bf16.mxu0 0
        %2818 = vmatmul.mubr.bf16.gmra.mrb[0].mxu0 %v2605
        %v2819 = vpop.f32.mrb[0].mxu0
        %v2820 = vadd.f32 0.0, %v2819
        %v2821 = vpop.f32.mrb[0].mxu0
        %v2822 = vpop.f32.mrb[0].mxu0
        %v2823 = vadd.f32 0.0, %v2822
        %v2824 = vpop.f32.mrb[0].mxu0
        %2825 = vmatprep.mubr.bf16.mxu0 0
        %2826 = vmatmul.mubr.bf16.gmra.mrb[0].mxu0 %v2608
        %v2827 = vpop.f32.mrb[0].mxu0
        %v2828 = vadd.f32 0.0, %v2827
        %v2829 = vpop.f32.mrb[0].mxu0
        %v2830 = vpop.f32.mrb[0].mxu0
        %v2831 = vadd.f32 0.0, %v2830
        %v2832 = vpop.f32.mrb[0].mxu0
        %2833 = vmatprep.mubr.bf16.mxu0 0
        %2834 = vmatmul.mubr.bf16.gmra.mrb[0].mxu0 %v2611
        %v2835 = vpop.f32.mrb[0].mxu0
        %v2836 = vadd.f32 0.0, %v2835
        %v2837 = vpop.f32.mrb[0].mxu0
        %v2838 = vpop.f32.mrb[0].mxu0
        %v2839 = vadd.f32 0.0, %v2838
        %v2840 = vpop.f32.mrb[0].mxu0
        %2841 = vmatprep.mubr.bf16.mxu0 0
        %2842 = vmatmul.mubr.bf16.gmra.mrb[0].mxu0 %v2614
        %v2843 = vpop.f32.mrb[0].mxu0
        %v2844 = vadd.f32 0.0, %v2843
        %v2845 = vpop.f32.mrb[0].mxu0
        %v2846 = vpop.f32.mrb[0].mxu0
        %v2847 = vadd.f32 0.0, %v2846
        %v2848 = vpop.f32.mrb[0].mxu0
        %2849 = vmatprep.mubr.bf16.mxu0 0
        %2850 = vmatmul.mubr.bf16.gmra.mrb[0].mxu0 %v2617
        %v2851 = vpop.f32.mrb[0].mxu0
        %v2852 = vadd.f32 0.0, %v2851
        %v2853 = vpop.f32.mrb[0].mxu0
        %v2854 = vpop.f32.mrb[0].mxu0
        %v2855 = vadd.f32 0.0, %v2854
        %v2856 = vpop.f32.mrb[0].mxu0
        %2857 = vmatprep.mubr.bf16.mxu0 0
        %2858 = vmatmul.mubr.bf16.gmra.mrb[0].mxu0 %v2620
        %v2859 = vpop.f32.mrb[0].mxu0
        %v2860 = vadd.f32 0.0, %v2859
        %v2861 = vpop.f32.mrb[0].mxu0
        %v2862 = vpop.f32.mrb[0].mxu0
        %v2863 = vadd.f32 0.0, %v2862
        %v2864 = vpop.f32.mrb[0].mxu0
        %2865 = vmatprep.mubr.bf16.mxu0 0
        %2866 = vmatmul.mubr.bf16.gmra.mrb[0].mxu0 %v2623
        %v2867 = vpop.f32.mrb[0].mxu0
        %v2868 = vadd.f32 0.0, %v2867
        %v2869 = vpop.f32.mrb[0].mxu0
        %v2870 = vpop.f32.mrb[0].mxu0
        %v2871 = vadd.f32 0.0, %v2870
        %v2872 = vpop.f32.mrb[0].mxu0
        %2873 = vmatprep.mubr.bf16.mxu0 0
        %2874 = vmatmul.mubr.bf16.gmra.mrb[0].mxu0 %v2626
        %v2875 = vpop.f32.mrb[0].mxu0
        %v2876 = vadd.f32 0.0, %v2875
        %v2877 = vpop.f32.mrb[0].mxu0
        %v2878 = vpop.f32.mrb[0].mxu0
        %v2879 = vadd.f32 0.0, %v2878
        %v2880 = vpop.f32.mrb[0].mxu0
        %2881 = vmatprep.mubr.bf16.mxu0 0
        %2882 = vmatmul.mubr.bf16.gmra.mrb[0].mxu0 %v2629
        %v2883 = vpop.f32.mrb[0].mxu0
        %v2884 = vadd.f32 0.0, %v2883
        %v2885 = vpop.f32.mrb[0].mxu0
        %v2886 = vpop.f32.mrb[0].mxu0
        %v2887 = vadd.f32 0.0, %v2886
        %v2888 = vpop.f32.mrb[0].mxu0
        %2889 = vmatprep.mubr.bf16.mxu0 0
        %2890 = vmatmul.mubr.bf16.gmra.mrb[0].mxu0 %v2632
        %v2891 = vpop.f32.mrb[0].mxu0
        %v2892 = vadd.f32 0.0, %v2891
        %v2893 = vpop.f32.mrb[0].mxu0
        %v2894 = vpop.f32.mrb[0].mxu0
        %v2895 = vadd.f32 0.0, %v2894
        %v2896 = vpop.f32.mrb[0].mxu0
        %2897 = vmatprep.mubr.bf16.mxu0 0
        %2898 = vmatmul.mubr.bf16.gmra.mrb[0].mxu0 %v2635
        %v2899 = vpop.f32.mrb[0].mxu0
        %v2900 = vadd.f32 0.0, %v2899
        %v2901 = vpop.f32.mrb[0].mxu0
        %v2902 = vpop.f32.mrb[0].mxu0
        %v2903 = vadd.f32 0.0, %v2902
        %v2904 = vpop.f32.mrb[0].mxu0
        %2905 = vmatprep.mubr.bf16.mxu0 0
        %2906 = vmatmul.mubr.bf16.gmra.mrb[0].mxu0 %v2638
        %v2907 = vpop.f32.mrb[0].mxu0
        %v2908 = vadd.f32 0.0, %v2907
        %v2909 = vpop.f32.mrb[0].mxu0
        %v2910 = vpop.f32.mrb[0].mxu0
        %v2911 = vadd.f32 0.0, %v2910
        %v2912 = vpop.f32.mrb[0].mxu0
        %2913 = vmatprep.mubr.bf16.mxu0 0
        %2914 = vmatmul.mubr.bf16.gmra.mrb[0].mxu0 %v2641
        %v2915 = vpop.f32.mrb[0].mxu0
        %v2916 = vadd.f32 0.0, %v2915
        %v2917 = vpop.f32.mrb[0].mxu0
        %v2918 = vpop.f32.mrb[0].mxu0
        %v2919 = vadd.f32 0.0, %v2918
        %v2920 = vpop.f32.mrb[0].mxu0
        %2921 = vmatprep.mubr.bf16.mxu0 0
        %2922 = vmatmul.mubr.bf16.gmra.mrb[0].mxu0 %v2644
        %v2923 = vpop.f32.mrb[0].mxu0
        %v2924 = vadd.f32 0.0, %v2923
        %v2925 = vpop.f32.mrb[0].mxu0
        %v2926 = vpop.f32.mrb[0].mxu0
        %v2927 = vadd.f32 0.0, %v2926
        %v2928 = vpop.f32.mrb[0].mxu0
        %2929 = vmatprep.mubr.bf16.mxu0 0
        %2930 = vmatmul.mubr.bf16.gmra.mrb[0].mxu0 %v2647
        %v2931 = vpop.f32.mrb[0].mxu0
        %v2932 = vadd.f32 0.0, %v2931
        %v2933 = vpop.f32.mrb[0].mxu0
        %v2934 = vpop.f32.mrb[0].mxu0
        %v2935 = vadd.f32 0.0, %v2934
        %v2936 = vpop.f32.mrb[0].mxu0
        %2937 = vmatprep.mubr.bf16.mxu0 0
        %2938 = vmatmul.mubr.bf16.gmra.mrb[0].mxu0 %v2650
        %v2939 = vpop.f32.mrb[0].mxu0
        %v2940 = vadd.f32 0.0, %v2939
        %v2941 = vpop.f32.mrb[0].mxu0
        %v2942 = vpop.f32.mrb[0].mxu0
        %v2943 = vadd.f32 0.0, %v2942
        %v2944 = vpop.f32.mrb[0].mxu0
        %2945 = vmatprep.mubr.bf16.mxu0 0
        %2946 = vmatmul.mubr.bf16.gmra.mrb[0].mxu0 %v2653
        %v2947 = vpop.f32.mrb[0].mxu0
        %v2948 = vadd.f32 0.0, %v2947
        %v2949 = vpop.f32.mrb[0].mxu0
        %v2950 = vpop.f32.mrb[0].mxu0
        %v2951 = vadd.f32 0.0, %v2950
        %v2952 = vpop.f32.mrb[0].mxu0
        %2953 = vmatprep.mubr.bf16.mxu0 0
        %2954 = vmatmul.mubr.bf16.gmra.mrb[0].mxu0 %v2656
        %v2955 = vpop.f32.mrb[0].mxu0
        %v2956 = vadd.f32 0.0, %v2955
        %v2957 = vpop.f32.mrb[0].mxu0
        %v2958 = vpop.f32.mrb[0].mxu0
        %v2959 = vadd.f32 0.0, %v2958
        %v2960 = vpop.f32.mrb[0].mxu0
        %2961 = vmatprep.mubr.bf16.mxu0 0
        %2962 = vmatmul.mubr.bf16.gmra.mrb[0].mxu0 %v2659
        %v2963 = vpop.f32.mrb[0].mxu0
        %v2964 = vadd.f32 0.0, %v2963
        %v2965 = vpop.f32.mrb[0].mxu0
        %v2966 = vpop.f32.mrb[0].mxu0
        %v2967 = vadd.f32 0.0, %v2966
        %v2968 = vpop.f32.mrb[0].mxu0
        %2969 = vmatprep.mubr.bf16.mxu0 0
        %2970 = vmatmul.mubr.bf16.gmra.mrb[0].mxu0 %v2662
        %v2971 = vpop.f32.mrb[0].mxu0
        %v2972 = vadd.f32 0.0, %v2971
        %v2973 = vpop.f32.mrb[0].mxu0
        %v2974 = vpop.f32.mrb[0].mxu0
        %v2975 = vadd.f32 0.0, %v2974
        %v2976 = vpop.f32.mrb[0].mxu0
        %2977 = vmatprep.mubr.bf16.mxu0 0
        %2978 = vmatmul.mubr.bf16.gmra.mrb[0].mxu0 %v2665
        %v2979 = vpop.f32.mrb[0].mxu0
        %v2980 = vadd.f32 0.0, %v2979
        %v2981 = vpop.f32.mrb[0].mxu0
        %v2982 = vpop.f32.mrb[0].mxu0
        %v2983 = vadd.f32 0.0, %v2982
        %v2984 = vpop.f32.mrb[0].mxu0
        %2985 = vmatprep.mubr.bf16.mxu0 0
        %2986 = vmatmul.mubr.bf16.gmra.mrb[0].mxu0 %v2668
        %v2987 = vpop.f32.mrb[0].mxu0
        %v2988 = vadd.f32 0.0, %v2987
        %v2989 = vpop.f32.mrb[0].mxu0
        %v2990 = vpop.f32.mrb[0].mxu0
        %v2991 = vadd.f32 0.0, %v2990
        %v2992 = vpop.f32.mrb[0].mxu0
        %2993 = vmatprep.mubr.bf16.mxu0 0
        %2994 = vmatmul.mubr.bf16.gmra.mrb[0].mxu0 %v2671
        %v2995 = vpop.f32.mrb[0].mxu0
        %v2996 = vadd.f32 0.0, %v2995
        %v2997 = vpop.f32.mrb[0].mxu0
        %v2998 = vpop.f32.mrb[0].mxu0
        %v2999 = vadd.f32 0.0, %v2998
        %v3000 = vpop.f32.mrb[0].mxu0
        %3001 = vmatprep.mubr.bf16.mxu0 0
        %3002 = vmatmul.mubr.bf16.gmra.mrb[0].mxu0 %v2674
        %v3003 = vpop.f32.mrb[0].mxu0
        %v3004 = vadd.f32 0.0, %v3003
        %v3005 = vpop.f32.mrb[0].mxu0
        %v3006 = vpop.f32.mrb[0].mxu0
        %v3007 = vadd.f32 0.0, %v3006
        %v3008 = vpop.f32.mrb[0].mxu0
        %3009 = vmatprep.mubr.bf16.mxu0 0
        %3010 = vmatmul.mubr.bf16.gmra.mrb[0].mxu0 %v2677
        %v3011 = vpop.f32.mrb[0].mxu0
        %v3012 = vadd.f32 0.0, %v3011
        %v3013 = vpop.f32.mrb[0].mxu0
        %v3014 = vpop.f32.mrb[0].mxu0
        %v3015 = vadd.f32 0.0, %v3014
        %v3016 = vpop.f32.mrb[0].mxu0
        %3017 = vmatprep.mubr.bf16.mxu0 0
        %3018 = vmatmul.mubr.bf16.gmra.mrb[0].mxu0 %v2680
        %v3019 = vpop.f32.mrb[0].mxu0
        %v3020 = vadd.f32 0.0, %v3019
        %v3021 = vpop.f32.mrb[0].mxu0
        %v3022 = vpop.f32.mrb[0].mxu0
        %v3023 = vadd.f32 0.0, %v3022
        %v3024 = vpop.f32.mrb[0].mxu0
        %3025 = vmatprep.mubr.bf16.mxu0 0
        %3026 = vmatmul.mubr.bf16.gmra.mrb[0].mxu0 %v2683
        %v3027 = vpop.f32.mrb[0].mxu0
        %v3028 = vadd.f32 0.0, %v3027
        %v3029 = vpop.f32.mrb[0].mxu0
        %v3030 = vpop.f32.mrb[0].mxu0
        %v3031 = vadd.f32 0.0, %v3030
        %v3032 = vpop.f32.mrb[0].mxu0
        %3033 = vmatprep.mubr.bf16.mxu0 0
        %3034 = vmatmul.mubr.bf16.gmra.mrb[0].mxu0 %v2686
        %v3035 = vpop.f32.mrb[0].mxu0
        %v3036 = vadd.f32 0.0, %v3035
        %v3037 = vpop.f32.mrb[0].mxu0
        %v3038 = vpop.f32.mrb[0].mxu0
        %v3039 = vadd.f32 0.0, %v3038
        %v3040 = vpop.f32.mrb[0].mxu0
        %3041 = vmatprep.mubr.bf16.mxu0 0
        %3042 = vmatmul.mubr.bf16.gmra.mrb[0].mxu0 %v2689
        %v3043 = vpop.f32.mrb[0].mxu0
        %v3044 = vadd.f32 0.0, %v3043
        %v3045 = vpop.f32.mrb[0].mxu0
        %v3046 = vpop.f32.mrb[0].mxu0
        %v3047 = vadd.f32 0.0, %v3046
        %v3048 = vpop.f32.mrb[0].mxu0
        %3049 = vmatprep.mubr.bf16.mxu0 0
        %3050 = vmatmul.mubr.bf16.gmra.mrb[0].mxu0 %v2692
        %v3051 = vpop.f32.mrb[0].mxu0
        %v3052 = vadd.f32 0.0, %v3051
        %v3053 = vpop.f32.mrb[0].mxu0
        %v3054 = vpop.f32.mrb[0].mxu0
        %v3055 = vadd.f32 0.0, %v3054
        %v3056 = vpop.f32.mrb[0].mxu0
        %3057 = vmatprep.mubr.bf16.mxu0 0
        %3058 = vmatmul.mubr.bf16.gmra.mrb[0].mxu0 %v2695
        %v3059 = vpop.f32.mrb[0].mxu0
        %v3060 = vadd.f32 0.0, %v3059
        %v3061 = vpop.f32.mrb[0].mxu0
        %v3062 = vpop.f32.mrb[0].mxu0
        %v3063 = vadd.f32 0.0, %v3062
        %v3064 = vpop.f32.mrb[0].mxu0
        %3065 = vmatprep.mubr.bf16.mxu0 0
        %3066 = vmatmul.mubr.bf16.gmra.mrb[0].mxu0 %v2698
        %v3067 = vpop.f32.mrb[0].mxu0
        %v3068 = vadd.f32 0.0, %v3067
        %v3069 = vpop.f32.mrb[0].mxu0
        %v3070 = vpop.f32.mrb[0].mxu0
        %v3071 = vadd.f32 0.0, %v3070
        %v3072 = vpop.f32.mrb[0].mxu0
        %3073 = vmatprep.mubr.bf16.mxu0 0
        %3074 = vmatmul.mubr.bf16.gmra.mrb[0].mxu0 %v2701
        %v3075 = vpop.f32.mrb[0].mxu0
        %v3076 = vadd.f32 0.0, %v3075
        %v3077 = vpop.f32.mrb[0].mxu0
        %v3078 = vpop.f32.mrb[0].mxu0
        %v3079 = vadd.f32 0.0, %v3078
        %v3080 = vpop.f32.mrb[0].mxu0
        %3081 = vmatprep.mubr.bf16.mxu0 0
        %3082 = vmatmul.mubr.bf16.gmra.mrb[0].mxu0 %v2704
        %v3083 = vpop.f32.mrb[0].mxu0
        %v3084 = vadd.f32 0.0, %v3083
        %v3085 = vpop.f32.mrb[0].mxu0
        %v3086 = vpop.f32.mrb[0].mxu0
        %v3087 = vadd.f32 0.0, %v3086
        %v3088 = vpop.f32.mrb[0].mxu0
        %3089 = vmatprep.mubr.bf16.mxu0 0
        %3090 = vmatmul.mubr.bf16.gmra.mrb[0].mxu0 %v2707
        %v3091 = vpop.f32.mrb[0].mxu0
        %v3092 = vadd.f32 0.0, %v3091
        %v3093 = vpop.f32.mrb[0].mxu0
        %v3094 = vpop.f32.mrb[0].mxu0
        %v3095 = vadd.f32 0.0, %v3094
        %v3096 = vpop.f32.mrb[0].mxu0
        %3097 = vmatprep.mubr.bf16.mxu0 0
        %3098 = vmatmul.mubr.bf16.gmra.mrb[0].mxu0 %v2710
        %v3099 = vpop.f32.mrb[0].mxu0
        %v3100 = vadd.f32 0.0, %v3099
        %v3101 = vpop.f32.mrb[0].mxu0
        %v3102 = vpop.f32.mrb[0].mxu0
        %v3103 = vadd.f32 0.0, %v3102
        %v3104 = vpop.f32.mrb[0].mxu0
        %3105 = vmatprep.mubr.bf16.mxu0 0
        %3106 = vmatmul.mubr.bf16.gmra.mrb[0].mxu0 %v2713
        %v3107 = vpop.f32.mrb[0].mxu0
        %v3108 = vadd.f32 0.0, %v3107
        %v3109 = vpop.f32.mrb[0].mxu0
        %v3110 = vpop.f32.mrb[0].mxu0
        %v3111 = vadd.f32 0.0, %v3110
        %v3112 = vpop.f32.mrb[0].mxu0
        %3113 = vmatprep.mubr.bf16.mxu0 0
        %3114 = vmatmul.mubr.bf16.gmra.mrb[0].mxu0 %v2716
        %v3115 = vpop.f32.mrb[0].mxu0
        %v3116 = vadd.f32 0.0, %v3115
        %v3117 = vpop.f32.mrb[0].mxu0
        %v3118 = vpop.f32.mrb[0].mxu0
        %v3119 = vadd.f32 0.0, %v3118
        %v3120 = vpop.f32.mrb[0].mxu0
        %3121 = vmatprep.mubr.bf16.mxu0 0
        %3122 = vmatmul.mubr.bf16.gmra.mrb[0].mxu0 %v2719
        %v3123 = vpop.f32.mrb[0].mxu0
        %v3124 = vadd.f32 0.0, %v3123
        %v3125 = vpop.f32.mrb[0].mxu0
        %v3126 = vpop.f32.mrb[0].mxu0
        %v3127 = vadd.f32 0.0, %v3126
        %v3128 = vpop.f32.mrb[0].mxu0
        %3129 = vmatprep.mubr.bf16.mxu0 0
        %3130 = vmatmul.mubr.bf16.gmra.mrb[0].mxu0 %v2722
        %v3131 = vpop.f32.mrb[0].mxu0
        %v3132 = vadd.f32 0.0, %v3131
        %v3133 = vpop.f32.mrb[0].mxu0
        %v3134 = vpop.f32.mrb[0].mxu0
        %v3135 = vadd.f32 0.0, %v3134
        %v3136 = vpop.f32.mrb[0].mxu0
        %3137 = vmatprep.mubr.bf16.mxu0 0
        %3138 = vmatmul.mubr.bf16.gmra.mrb[0].mxu0 %v2725
        %v3139 = vpop.f32.mrb[0].mxu0
        %v3140 = vadd.f32 0.0, %v3139
        %v3141 = vpop.f32.mrb[0].mxu0
        %v3142 = vpop.f32.mrb[0].mxu0
        %v3143 = vadd.f32 0.0, %v3142
        %v3144 = vpop.f32.mrb[0].mxu0
        %3145 = vmatprep.mubr.bf16.mxu0 0
        %3146 = vmatmul.mubr.bf16.gmra.mrb[0].mxu0 %v2728
        %v3147 = vpop.f32.mrb[0].mxu0
        %v3148 = vadd.f32 0.0, %v3147
        %v3149 = vpop.f32.mrb[0].mxu0
        %v3150 = vpop.f32.mrb[0].mxu0
        %v3151 = vadd.f32 0.0, %v3150
        %v3152 = vpop.f32.mrb[0].mxu0
        %3153 = vmatprep.mubr.bf16.mxu0 0
        %3154 = vmatmul.mubr.bf16.gmra.mrb[0].mxu0 %v2731
        %v3155 = vpop.f32.mrb[0].mxu0
        %v3156 = vadd.f32 0.0, %v3155
        %v3157 = vpop.f32.mrb[0].mxu0
        %v3158 = vpop.f32.mrb[0].mxu0
        %v3159 = vadd.f32 0.0, %v3158
        %v3160 = vpop.f32.mrb[0].mxu0
        %3161 = vmatprep.mubr.bf16.mxu0 0
        %3162 = vmatmul.mubr.bf16.gmra.mrb[0].mxu0 %v2734
        %v3163 = vpop.f32.mrb[0].mxu0
        %v3164 = vadd.f32 0.0, %v3163
        %v3165 = vpop.f32.mrb[0].mxu0
        %v3166 = vpop.f32.mrb[0].mxu0
        %v3167 = vadd.f32 0.0, %v3166
        %v3168 = vpop.f32.mrb[0].mxu0
        %3169 = vmatprep.mubr.bf16.mxu0 0
        %3170 = vmatmul.mubr.bf16.gmra.mrb[0].mxu0 %v2737
        %v3171 = vpop.f32.mrb[0].mxu0
        %v3172 = vadd.f32 0.0, %v3171
        %v3173 = vpop.f32.mrb[0].mxu0
        %v3174 = vpop.f32.mrb[0].mxu0
        %v3175 = vadd.f32 0.0, %v3174
        %v3176 = vpop.f32.mrb[0].mxu0
        %3177 = vmatprep.mubr.bf16.mxu0 0
        %3178 = vmatmul.mubr.bf16.gmra.mrb[0].mxu0 %v2740
        %v3179 = vpop.f32.mrb[0].mxu0
        %v3180 = vadd.f32 0.0, %v3179
        %v3181 = vpop.f32.mrb[0].mxu0
        %v3182 = vpop.f32.mrb[0].mxu0
        %v3183 = vadd.f32 0.0, %v3182
        %v3184 = vpop.f32.mrb[0].mxu0
        %3185 = vmatprep.mubr.bf16.mxu0 0
        %3186 = vmatmul.mubr.bf16.gmra.mrb[0].mxu0 %v2743
        %v3187 = vpop.f32.mrb[0].mxu0
        %v3188 = vadd.f32 0.0, %v3187
        %v3189 = vpop.f32.mrb[0].mxu0
        %v3190 = vpop.f32.mrb[0].mxu0
        %v3191 = vadd.f32 0.0, %v3190
        %v3192 = vpop.f32.mrb[0].mxu0
        %3193 = vmatprep.mubr.bf16.mxu0 0
        %3194 = vmatmul.mubr.bf16.gmra.mrb[0].mxu0 %v2746
        %v3195 = vpop.f32.mrb[0].mxu0
        %v3196 = vadd.f32 0.0, %v3195
        %v3197 = vpop.f32.mrb[0].mxu0
        %v3198 = vpop.f32.mrb[0].mxu0
        %v3199 = vadd.f32 0.0, %v3198
        %v3200 = vpop.f32.mrb[0].mxu0
        %3201 = vmatprep.mubr.bf16.mxu0 0
        %3202 = vmatmul.mubr.bf16.gmra.mrb[0].mxu0 %v2749
        %v3203 = vpop.f32.mrb[0].mxu0
        %v3204 = vadd.f32 0.0, %v3203
        %v3205 = vpop.f32.mrb[0].mxu0
        %v3206 = vpop.f32.mrb[0].mxu0
        %v3207 = vadd.f32 0.0, %v3206
        %v3208 = vpop.f32.mrb[0].mxu0
        %3209 = vmatprep.mubr.bf16.mxu0 0
        %3210 = vmatmul.mubr.bf16.gmra.mrb[0].mxu0 %v2752
        %v3211 = vpop.f32.mrb[0].mxu0
        %v3212 = vadd.f32 0.0, %v3211
        %v3213 = vpop.f32.mrb[0].mxu0
        %v3214 = vpop.f32.mrb[0].mxu0
        %v3215 = vadd.f32 0.0, %v3214
        %v3216 = vpop.f32.mrb[0].mxu0
        %3217 = vmatprep.mubr.bf16.mxu0 0
        %3218 = vmatmul.mubr.bf16.gmra.mrb[0].mxu0 %v2755
        %v3219 = vpop.f32.mrb[0].mxu0
        %v3220 = vadd.f32 0.0, %v3219
        %v3221 = vpop.f32.mrb[0].mxu0
        %v3222 = vpop.f32.mrb[0].mxu0
        %v3223 = vadd.f32 0.0, %v3222
        %v3224 = vpop.f32.mrb[0].mxu0
        %3225 = vmatprep.mubr.bf16.mxu0 0
        %3226 = vmatmul.mubr.bf16.gmra.mrb[0].mxu0 %v2758
        %v3227 = vpop.f32.mrb[0].mxu0
        %v3228 = vadd.f32 0.0, %v3227
        %v3229 = vpop.f32.mrb[0].mxu0
        %v3230 = vpop.f32.mrb[0].mxu0
        %v3231 = vadd.f32 0.0, %v3230
        %v3232 = vpop.f32.mrb[0].mxu0
        %3233 = vmatprep.mubr.bf16.mxu0 0
        %3234 = vmatmul.mubr.bf16.gmra.mrb[0].mxu0 %v2761
        %v3235 = vpop.f32.mrb[0].mxu0
        %v3236 = vadd.f32 0.0, %v3235
        %v3237 = vpop.f32.mrb[0].mxu0
        %v3238 = vpop.f32.mrb[0].mxu0
        %v3239 = vadd.f32 0.0, %v3238
        %v3240 = vpop.f32.mrb[0].mxu0
        %3241 = vmatprep.mubr.bf16.mxu0 0
        %3242 = vmatmul.mubr.bf16.gmra.mrb[0].mxu0 %v2764
        %v3243 = vpop.f32.mrb[0].mxu0
        %v3244 = vadd.f32 0.0, %v3243
        %v3245 = vpop.f32.mrb[0].mxu0
        %v3246 = vpop.f32.mrb[0].mxu0
        %v3247 = vadd.f32 0.0, %v3246
        %v3248 = vpop.f32.mrb[0].mxu0
        %3249 = vdwg.mxu0
        %v3250 = vadd.f32 %v1740, %v2804
        %v3251 = vadd.f32 %v1743, %v2807
        %v3252 = vadd.f32 %v1748, %v2812
        %v3253 = vadd.f32 %v1751, %v2815
        %v3254 = vadd.f32 %v1756, %v2820
        %v3255 = vadd.f32 %v1759, %v2823
        %v3256 = vadd.f32 %v1764, %v2828
        %v3257 = vadd.f32 %v1767, %v2831
        %v3258 = vadd.f32 %v1772, %v2836
        %v3259 = vadd.f32 %v1775, %v2839
        %v3260 = vadd.f32 %v1780, %v2844
        %v3261 = vadd.f32 %v1783, %v2847
        %v3262 = vadd.f32 %v1788, %v2852
        %v3263 = vadd.f32 %v1791, %v2855
        %v3264 = vadd.f32 %v1796, %v2860
        %v3265 = vadd.f32 %v1799, %v2863
        %v3266 = vadd.f32 %v1804, %v2868
        %v3267 = vadd.f32 %v1807, %v2871
        %v3268 = vadd.f32 %v1812, %v2876
        %v3269 = vadd.f32 %v1815, %v2879
        %v3270 = vadd.f32 %v1820, %v2884
        %v3271 = vadd.f32 %v1823, %v2887
        %v3272 = vadd.f32 %v1828, %v2892
        %v3273 = vadd.f32 %v1831, %v2895
        %v3274 = vadd.f32 %v1836, %v2900
        %v3275 = vadd.f32 %v1839, %v2903
        %v3276 = vadd.f32 %v1844, %v2908
        %v3277 = vadd.f32 %v1847, %v2911
        %v3278 = vadd.f32 %v1852, %v2916
        %v3279 = vadd.f32 %v1855, %v2919
        %v3280 = vadd.f32 %v1860, %v2924
        %v3281 = vadd.f32 %v1863, %v2927
        %v3282 = vadd.f32 %v1868, %v2932
        %v3283 = vadd.f32 %v1871, %v2935
        %v3284 = vadd.f32 %v1876, %v2940
        %v3285 = vadd.f32 %v1879, %v2943
        %v3286 = vadd.f32 %v1884, %v2948
        %v3287 = vadd.f32 %v1887, %v2951
        %v3288 = vadd.f32 %v1892, %v2956
        %v3289 = vadd.f32 %v1895, %v2959
        %v3290 = vadd.f32 %v1900, %v2964
        %v3291 = vadd.f32 %v1903, %v2967
        %v3292 = vadd.f32 %v1908, %v2972
        %v3293 = vadd.f32 %v1911, %v2975
        %v3294 = vadd.f32 %v1916, %v2980
        %v3295 = vadd.f32 %v1919, %v2983
        %v3296 = vadd.f32 %v1924, %v2988
        %v3297 = vadd.f32 %v1927, %v2991
        %v3298 = vadd.f32 %v1932, %v2996
        %v3299 = vadd.f32 %v1935, %v2999
        %v3300 = vadd.f32 %v1940, %v3004
        %v3301 = vadd.f32 %v1943, %v3007
        %v3302 = vadd.f32 %v1948, %v3012
        %v3303 = vadd.f32 %v1951, %v3015
        %v3304 = vadd.f32 %v1956, %v3020
        %v3305 = vadd.f32 %v1959, %v3023
        %v3306 = vadd.f32 %v1964, %v3028
        %v3307 = vadd.f32 %v1967, %v3031
        %v3308 = vadd.f32 %v1972, %v3036
        %v3309 = vadd.f32 %v1975, %v3039
        %v3310 = vadd.f32 %v1980, %v3044
        %v3311 = vadd.f32 %v1983, %v3047
        %v3312 = vadd.f32 %v1988, %v3052
        %v3313 = vadd.f32 %v1991, %v3055
        %v3314 = vadd.f32 %v1996, %v3060
        %v3315 = vadd.f32 %v1999, %v3063
        %v3316 = vadd.f32 %v2004, %v3068
        %v3317 = vadd.f32 %v2007, %v3071
        %v3318 = vadd.f32 %v2012, %v3076
        %v3319 = vadd.f32 %v2015, %v3079
        %v3320 = vadd.f32 %v2020, %v3084
        %v3321 = vadd.f32 %v2023, %v3087
        %v3322 = vadd.f32 %v2028, %v3092
        %v3323 = vadd.f32 %v2031, %v3095
        %v3324 = vadd.f32 %v2036, %v3100
        %v3325 = vadd.f32 %v2039, %v3103
        %v3326 = vadd.f32 %v2044, %v3108
        %v3327 = vadd.f32 %v2047, %v3111
        %v3328 = vadd.f32 %v2052, %v3116
        %v3329 = vadd.f32 %v2055, %v3119
        %v3330 = vadd.f32 %v2060, %v3124
        %v3331 = vadd.f32 %v2063, %v3127
        %v3332 = vadd.f32 %v2068, %v3132
        %v3333 = vadd.f32 %v2071, %v3135
        %v3334 = vadd.f32 %v2076, %v3140
        %v3335 = vadd.f32 %v2079, %v3143
        %v3336 = vadd.f32 %v2084, %v3148
        %v3337 = vadd.f32 %v2087, %v3151
        %v3338 = vadd.f32 %v2092, %v3156
        %v3339 = vadd.f32 %v2095, %v3159
        %v3340 = vadd.f32 %v2100, %v3164
        %v3341 = vadd.f32 %v2103, %v3167
        %v3342 = vadd.f32 %v2108, %v3172
        %v3343 = vadd.f32 %v2111, %v3175
        %v3344 = vadd.f32 %v2116, %v3180
        %v3345 = vadd.f32 %v2119, %v3183
        %v3346 = vadd.f32 %v2124, %v3188
        %v3347 = vadd.f32 %v2127, %v3191
        %v3348 = vadd.f32 %v2132, %v3196
        %v3349 = vadd.f32 %v2135, %v3199
        %v3350 = vadd.f32 %v2140, %v3204
        %v3351 = vadd.f32 %v2143, %v3207
        %v3352 = vadd.f32 %v2148, %v3212
        %v3353 = vadd.f32 %v2151, %v3215
        %v3354 = vadd.f32 %v2156, %v3220
        %v3355 = vadd.f32 %v2159, %v3223
        %v3356 = vadd.f32 %v2164, %v3228
        %v3357 = vadd.f32 %v2167, %v3231
        %v3358 = vadd.f32 %v2172, %v3236
        %v3359 = vadd.f32 %v2175, %v3239
        %v3360 = vadd.f32 %v2180, %v3244
        %v3361 = vadd.f32 %v2183, %v3247
        %v3362 = vld [vmem:[%s437 + $0x30] sm:$0xf]
        %v3363 = vld [vmem:[%s437 + $0x34] sm:$0xf]
        %v3364 = vld [vmem:[%s437 + $0x38] sm:$0xf]
        %v3365 = vld [vmem:[%s437 + $0x3c] sm:$0xf]
        %v3366 = vld [vmem:[%s437 + $0x40] sm:$0xf]
        %v3367 = vld [vmem:[%s437 + $0x44] sm:$0xf]
        %v3368 = vld [vmem:[%s437 + $0x48] sm:$0xf]
        %v3369 = vld [vmem:[%s437 + $0x4c] sm:$0xf]
        %v3370 = vld [vmem:[%s437 + $0x50] sm:$0xf]
        %v3371 = vld [vmem:[%s437 + $0x54] sm:$0xf]
        %v3372 = vld [vmem:[%s437 + $0x58] sm:$0xf]
        %v3373 = vld [vmem:[%s437 + $0x5c] sm:$0xf]
        %v3374 = vld [vmem:[%s437 + $0x60] sm:$0xf]
        %v3375 = vld [vmem:[%s437 + $0x64] sm:$0xf]
        %v3376 = vld [vmem:[%s437 + $0x68] sm:$0xf]
        %v3377 = vld [vmem:[%s437 + $0x6c] sm:$0xf]
        %v3378 = vld [vmem:[%s437 + $0x70] sm:$0xf]
        %v3379 = vld [vmem:[%s437 + $0x74] sm:$0xf]
        %v3380 = vld [vmem:[%s437 + $0x78] sm:$0xf]
        %v3381 = vld [vmem:[%s437 + $0x7c] sm:$0xf]
        %v3382 = vld [vmem:[%s437 + $0x80] sm:$0xf]
        %v3383 = vld [vmem:[%s437 + $0x84] sm:$0xf]
        %v3384 = vld [vmem:[%s437 + $0x88] sm:$0xf]
        %v3385 = vld [vmem:[%s437 + $0x8c] sm:$0xf]
        %v3386 = vld [vmem:[%s437 + $0x90] sm:$0xf]
        %v3387 = vld [vmem:[%s437 + $0x94] sm:$0xf]
        %v3388 = vld [vmem:[%s437 + $0x98] sm:$0xf]
        %v3389 = vld [vmem:[%s437 + $0x9c] sm:$0xf]
        %v3390 = vld [vmem:[%s437 + $0xa0] sm:$0xf]
        %v3391 = vld [vmem:[%s437 + $0xa4] sm:$0xf]
        %v3392 = vld [vmem:[%s437 + $0xa8] sm:$0xf]
        %v3393 = vld [vmem:[%s437 + $0xac] sm:$0xf]
        %v3394 = vld [vmem:[%s437 + $0xb0] sm:$0xf]
        %v3395 = vld [vmem:[%s437 + $0xb4] sm:$0xf]
        %v3396 = vld [vmem:[%s437 + $0xb8] sm:$0xf]
        %v3397 = vld [vmem:[%s437 + $0xbc] sm:$0xf]
        %v3398 = vld [vmem:[%s437 + $0xc0] sm:$0xf]
        %v3399 = vld [vmem:[%s437 + $0xc4] sm:$0xf]
        %v3400 = vld [vmem:[%s437 + $0xc8] sm:$0xf]
        %v3401 = vld [vmem:[%s437 + $0xcc] sm:$0xf]
        %v3402 = vld [vmem:[%s437 + $0xd0] sm:$0xf]
        %v3403 = vld [vmem:[%s437 + $0xd4] sm:$0xf]
        %v3404 = vld [vmem:[%s437 + $0xd8] sm:$0xf]
        %v3405 = vld [vmem:[%s437 + $0xdc] sm:$0xf]
        %v3406 = vld [vmem:[%s437 + $0xe0] sm:$0xf]
        %v3407 = vld [vmem:[%s437 + $0xe4] sm:$0xf]
        %v3408 = vld [vmem:[%s437 + $0xe8] sm:$0xf]
        %v3409 = vld [vmem:[%s437 + $0xec] sm:$0xf]
        %v3410 = vld [vmem:[%s437 + $0xf0] sm:$0xf]
        %v3411 = vld [vmem:[%s437 + $0xf4] sm:$0xf]
        %v3412 = vld [vmem:[%s437 + $0xf8] sm:$0xf]
        %v3413 = vld [vmem:[%s437 + $0xfc] sm:$0xf]
        %v3414 = vld [vmem:[%s437 + $0x100] sm:$0xf]
        %v3415 = vld [vmem:[%s437 + $0x104] sm:$0xf]
        %v3416 = vld [vmem:[%s437 + $0x108] sm:$0xf]
        %v3417 = vld [vmem:[%s437 + $0x10c] sm:$0xf]
        %v3418 = vld [vmem:[%s437 + $0x110] sm:$0xf]
        %v3419 = vld [vmem:[%s437 + $0x114] sm:$0xf]
        %v3420 = vld [vmem:[%s437 + $0x118] sm:$0xf]
        %v3421 = vld [vmem:[%s437 + $0x11c] sm:$0xf]
        %v3422 = vld [vmem:[%s437 + $0x120] sm:$0xf]
        %v3423 = vld [vmem:[%s437 + $0x124] sm:$0xf]
        %v3424 = vld [vmem:[%s437 + $0x128] sm:$0xf]
        %v3425 = vld [vmem:[%s437 + $0x12c] sm:$0xf]
        %v3426 = vld [vmem:[%s437 + $0x130] sm:$0xf]
        %v3427 = vld [vmem:[%s437 + $0x134] sm:$0xf]
        %v3428 = vld [vmem:[%s437 + $0x138] sm:$0xf]
        %v3429 = vld [vmem:[%s437 + $0x13c] sm:$0xf]
        %v3430 = vld [vmem:[%s437 + $0x140] sm:$0xf]
        %v3431 = vld [vmem:[%s437 + $0x144] sm:$0xf]
        %v3432 = vld [vmem:[%s437 + $0x148] sm:$0xf]
        %v3433 = vld [vmem:[%s437 + $0x14c] sm:$0xf]
        %v3434 = vld [vmem:[%s437 + $0x150] sm:$0xf]
        %v3435 = vld [vmem:[%s437 + $0x154] sm:$0xf]
        %v3436 = vld [vmem:[%s437 + $0x158] sm:$0xf]
        %v3437 = vld [vmem:[%s437 + $0x15c] sm:$0xf]
        %v3438 = vld [vmem:[%s437 + $0x160] sm:$0xf]
        %v3439 = vld [vmem:[%s437 + $0x164] sm:$0xf]
        %v3440 = vld [vmem:[%s437 + $0x168] sm:$0xf]
        %v3441 = vld [vmem:[%s437 + $0x16c] sm:$0xf]
        %v3442 = vld [vmem:[%s437 + $0x170] sm:$0xf]
        %v3443 = vld [vmem:[%s437 + $0x174] sm:$0xf]
        %v3444 = vld [vmem:[%s437 + $0x178] sm:$0xf]
        %v3445 = vld [vmem:[%s437 + $0x17c] sm:$0xf]
        %v3446 = vld [vmem:[%s437 + $0x180] sm:$0xf]
        %v3447 = vld [vmem:[%s437 + $0x184] sm:$0xf]
        %v3448 = vld [vmem:[%s437 + $0x188] sm:$0xf]
        %v3449 = vld [vmem:[%s437 + $0x18c] sm:$0xf]
        %v3450 = vld [vmem:[%s437 + $0x190] sm:$0xf]
        %v3451 = vld [vmem:[%s437 + $0x194] sm:$0xf]
        %v3452 = vld [vmem:[%s437 + $0x198] sm:$0xf]
        %v3453 = vld [vmem:[%s437 + $0x19c] sm:$0xf]
        %v3454 = vld [vmem:[%s437 + $0x1a0] sm:$0xf]
        %v3455 = vld [vmem:[%s437 + $0x1a4] sm:$0xf]
        %v3456 = vld [vmem:[%s437 + $0x1a8] sm:$0xf]
        %v3457 = vld [vmem:[%s437 + $0x1ac] sm:$0xf]
        %v3458 = vld [vmem:[%s437 + $0x1b0] sm:$0xf]
        %v3459 = vld [vmem:[%s437 + $0x1b4] sm:$0xf]
        %v3460 = vld [vmem:[%s437 + $0x1b8] sm:$0xf]
        %v3461 = vld [vmem:[%s437 + $0x1bc] sm:$0xf]
        %v3462 = vld [vmem:[%s437 + $0x1c0] sm:$0xf]
        %v3463 = vld [vmem:[%s437 + $0x1c4] sm:$0xf]
        %v3464 = vld [vmem:[%s437 + $0x1c8] sm:$0xf]
        %v3465 = vld [vmem:[%s437 + $0x1cc] sm:$0xf]
        %v3466 = vld [vmem:[%s437 + $0x1d0] sm:$0xf]
        %v3467 = vld [vmem:[%s437 + $0x1d4] sm:$0xf]
        %v3468 = vld [vmem:[%s437 + $0x1d8] sm:$0xf]
        %v3469 = vld [vmem:[%s437 + $0x1dc] sm:$0xf]
        %v3470 = vld [vmem:[%s437 + $0x1e0] sm:$0xf]
        %v3471 = vld [vmem:[%s437 + $0x1e4] sm:$0xf]
        %v3472 = vld [vmem:[%s437 + $0x1e8] sm:$0xf]
        %v3473 = vld [vmem:[%s437 + $0x1ec] sm:$0xf]
        %v3474 = vld [vmem:[%s1 + $0x3c] sm:$0xf]
        %v3475 = vld [vmem:[%s1 + $0x40] sm:$0xf]
        %v3476 = vld [vmem:[%s1 + $0x44] sm:$0xf]
        %v3477 = vld [vmem:[%s1 + $0x48] sm:$0xf]
        %v3478 = vld [vmem:[%s1 + $0x4c] sm:$0xf]
        %v3591 = vunpack.c.l.b16 %v3362
        %v3592 = vunpack.c.l.b16 %v3363
        %v3593 = vunpack.c.l.b16 %v3364
        %v3594 = vunpack.c.l.b16 %v3365
        %v3595 = vunpack.c.l.b16 %v3366
        %v3596 = vunpack.c.l.b16 %v3367
        %v3597 = vunpack.c.l.b16 %v3368
        %v3598 = vunpack.c.l.b16 %v3369
        %v3599 = vunpack.c.l.b16 %v3370
        %v3600 = vunpack.c.l.b16 %v3371
        %v3601 = vunpack.c.l.b16 %v3372
        %v3602 = vunpack.c.l.b16 %v3373
        %v3603 = vunpack.c.l.b16 %v3374
        %v3604 = vunpack.c.l.b16 %v3375
        %v3605 = vunpack.c.l.b16 %v3376
        %v3606 = vunpack.c.l.b16 %v3377
        %v3607 = vunpack.c.l.b16 %v3378
        %v3608 = vunpack.c.l.b16 %v3379
        %v3609 = vunpack.c.l.b16 %v3380
        %v3610 = vunpack.c.l.b16 %v3381
        %v3611 = vunpack.c.l.b16 %v3382
        %v3612 = vunpack.c.l.b16 %v3383
        %v3613 = vunpack.c.l.b16 %v3384
        %v3614 = vunpack.c.l.b16 %v3385
        %v3615 = vunpack.c.l.b16 %v3386
        %v3616 = vunpack.c.l.b16 %v3387
        %v3617 = vunpack.c.l.b16 %v3388
        %v3618 = vunpack.c.l.b16 %v3389
        %v3619 = vunpack.c.l.b16 %v3390
        %v3620 = vunpack.c.l.b16 %v3391
        %v3621 = vunpack.c.l.b16 %v3392
        %v3622 = vunpack.c.l.b16 %v3393
        %v3623 = vunpack.c.l.b16 %v3394
        %v3624 = vunpack.c.l.b16 %v3395
        %v3625 = vunpack.c.l.b16 %v3396
        %v3626 = vunpack.c.l.b16 %v3397
        %v3627 = vunpack.c.l.b16 %v3398
        %v3628 = vunpack.c.l.b16 %v3399
        %v3629 = vunpack.c.l.b16 %v3400
        %v3630 = vunpack.c.l.b16 %v3401
        %v3631 = vunpack.c.l.b16 %v3402
        %v3632 = vunpack.c.l.b16 %v3403
        %v3633 = vunpack.c.l.b16 %v3404
        %v3634 = vunpack.c.l.b16 %v3405
        %v3635 = vunpack.c.l.b16 %v3406
        %v3636 = vunpack.c.l.b16 %v3407
        %v3637 = vunpack.c.l.b16 %v3408
        %v3638 = vunpack.c.l.b16 %v3409
        %v3639 = vunpack.c.l.b16 %v3410
        %v3640 = vunpack.c.l.b16 %v3411
        %v3641 = vunpack.c.l.b16 %v3412
        %v3642 = vunpack.c.l.b16 %v3413
        %v3643 = vunpack.c.l.b16 %v3414
        %v3644 = vunpack.c.l.b16 %v3415
        %v3645 = vunpack.c.l.b16 %v3416
        %v3646 = vunpack.c.l.b16 %v3417
        %v3647 = vunpack.c.l.b16 %v3418
        %v3648 = vunpack.c.l.b16 %v3419
        %v3649 = vunpack.c.l.b16 %v3420
        %v3650 = vunpack.c.l.b16 %v3421
        %v3651 = vunpack.c.l.b16 %v3422
        %v3652 = vunpack.c.l.b16 %v3423
        %v3653 = vunpack.c.l.b16 %v3424
        %v3654 = vunpack.c.l.b16 %v3425
        %v3655 = vunpack.c.l.b16 %v3426
        %v3656 = vunpack.c.l.b16 %v3427
        %v3657 = vunpack.c.l.b16 %v3428
        %v3658 = vunpack.c.l.b16 %v3429
        %v3659 = vunpack.c.l.b16 %v3430
        %v3660 = vunpack.c.l.b16 %v3431
        %v3661 = vunpack.c.l.b16 %v3432
        %v3662 = vunpack.c.l.b16 %v3433
        %v3663 = vunpack.c.l.b16 %v3434
        %v3664 = vunpack.c.l.b16 %v3435
        %v3665 = vunpack.c.l.b16 %v3436
        %v3666 = vunpack.c.l.b16 %v3437
        %v3667 = vunpack.c.l.b16 %v3438
        %v3668 = vunpack.c.l.b16 %v3439
        %v3669 = vunpack.c.l.b16 %v3440
        %v3670 = vunpack.c.l.b16 %v3441
        %v3671 = vunpack.c.l.b16 %v3442
        %v3672 = vunpack.c.l.b16 %v3443
        %v3673 = vunpack.c.l.b16 %v3444
        %v3674 = vunpack.c.l.b16 %v3445
        %v3675 = vunpack.c.l.b16 %v3446
        %v3676 = vunpack.c.l.b16 %v3447
        %v3677 = vunpack.c.l.b16 %v3448
        %v3678 = vunpack.c.l.b16 %v3449
        %v3679 = vunpack.c.l.b16 %v3450
        %v3680 = vunpack.c.l.b16 %v3451
        %v3681 = vunpack.c.l.b16 %v3452
        %v3682 = vunpack.c.l.b16 %v3453
        %v3683 = vunpack.c.l.b16 %v3454
        %v3684 = vunpack.c.l.b16 %v3455
        %v3685 = vunpack.c.l.b16 %v3456
        %v3686 = vunpack.c.l.b16 %v3457
        %v3687 = vunpack.c.l.b16 %v3458
        %v3688 = vunpack.c.l.b16 %v3459
        %v3689 = vunpack.c.l.b16 %v3460
        %v3690 = vunpack.c.l.b16 %v3461
        %v3691 = vunpack.c.l.b16 %v3462
        %v3692 = vunpack.c.l.b16 %v3463
        %v3693 = vunpack.c.l.b16 %v3464
        %v3694 = vunpack.c.l.b16 %v3465
        %v3695 = vunpack.c.l.b16 %v3466
        %v3696 = vunpack.c.l.b16 %v3467
        %v3697 = vunpack.c.l.b16 %v3468
        %v3698 = vunpack.c.l.b16 %v3469
        %v3699 = vunpack.c.l.b16 %v3470
        %v3700 = vunpack.c.l.b16 %v3471
        %v3701 = vunpack.c.l.b16 %v3472
        %v3702 = vunpack.c.l.b16 %v3473
        %v3703 = vpack.c.b16 %v3592, %v3591
        %v3704 = vpack.c.b16 %v3594, %v3593
        %v3705 = vpack.c.b16 %v3596, %v3595
        %v3706 = vpack.c.b16 %v3598, %v3597
        %v3707 = vpack.c.b16 %v3600, %v3599
        %v3708 = vpack.c.b16 %v3602, %v3601
        %v3709 = vpack.c.b16 %v3604, %v3603
        %v3710 = vpack.c.b16 %v3606, %v3605
        %v3711 = vpack.c.b16 %v3608, %v3607
        %v3712 = vpack.c.b16 %v3610, %v3609
        %v3713 = vpack.c.b16 %v3612, %v3611
        %v3714 = vpack.c.b16 %v3614, %v3613
        %v3715 = vpack.c.b16 %v3616, %v3615
        %v3716 = vpack.c.b16 %v3618, %v3617
        %v3717 = vpack.c.b16 %v3620, %v3619
        %v3718 = vpack.c.b16 %v3622, %v3621
        %v3719 = vpack.c.b16 %v3624, %v3623
        %v3720 = vpack.c.b16 %v3626, %v3625
        %v3721 = vpack.c.b16 %v3628, %v3627
        %v3722 = vpack.c.b16 %v3630, %v3629
        %v3723 = vpack.c.b16 %v3632, %v3631
        %v3724 = vpack.c.b16 %v3634, %v3633
        %v3725 = vpack.c.b16 %v3636, %v3635
        %v3726 = vpack.c.b16 %v3638, %v3637
        %v3727 = vpack.c.b16 %v3640, %v3639
        %v3728 = vpack.c.b16 %v3642, %v3641
        %v3729 = vpack.c.b16 %v3644, %v3643
        %v3730 = vpack.c.b16 %v3646, %v3645
        %v3731 = vpack.c.b16 %v3648, %v3647
        %v3732 = vpack.c.b16 %v3650, %v3649
        %v3733 = vpack.c.b16 %v3652, %v3651
        %v3734 = vpack.c.b16 %v3654, %v3653
        %v3735 = vpack.c.b16 %v3656, %v3655
        %v3736 = vpack.c.b16 %v3658, %v3657
        %v3737 = vpack.c.b16 %v3660, %v3659
        %v3738 = vpack.c.b16 %v3662, %v3661
        %v3739 = vpack.c.b16 %v3664, %v3663
        %v3740 = vpack.c.b16 %v3666, %v3665
        %v3741 = vpack.c.b16 %v3668, %v3667
        %v3742 = vpack.c.b16 %v3670, %v3669
        %v3743 = vpack.c.b16 %v3672, %v3671
        %v3744 = vpack.c.b16 %v3674, %v3673
        %v3745 = vpack.c.b16 %v3676, %v3675
        %v3746 = vpack.c.b16 %v3678, %v3677
        %v3747 = vpack.c.b16 %v3680, %v3679
        %v3748 = vpack.c.b16 %v3682, %v3681
        %v3749 = vpack.c.b16 %v3684, %v3683
        %v3750 = vpack.c.b16 %v3686, %v3685
        %v3751 = vpack.c.b16 %v3688, %v3687
        %v3752 = vpack.c.b16 %v3690, %v3689
        %v3753 = vpack.c.b16 %v3692, %v3691
        %v3754 = vpack.c.b16 %v3694, %v3693
        %v3755 = vpack.c.b16 %v3696, %v3695
        %v3756 = vpack.c.b16 %v3698, %v3697
        %v3757 = vpack.c.b16 %v3700, %v3699
        %v3758 = vpack.c.b16 %v3702, %v3701
        %v3764 = vunpack.c.l.b16 %v3474
        %v3765 = vunpack.c.l.b16 %v3475
        %v3766 = vunpack.c.l.b16 %v3476
        %v3767 = vunpack.c.l.b16 %v3477
        %v3768 = vunpack.c.l.b16 %v3478
        %v3769 = vpack.c.b16 %v3765, %v3764
        %v3770 = vpack.c.b16 %v3767, %v3766
        %v3771 = vpack.c.b16 %v3768, %v3768
        %v3775 = vsel %vm1017, %v3703, 0
        %v3778 = vsel %vm1017, %v3704, 0
        %v3781 = vsel %vm1017, %v3705, 0
        %v3784 = vsel %vm1017, %v3706, 0
        %v3787 = vsel %vm1017, %v3707, 0
        %v3790 = vsel %vm1017, %v3708, 0
        %v3793 = vsel %vm1017, %v3709, 0
        %v3796 = vsel %vm1017, %v3710, 0
        %v3799 = vsel %vm1017, %v3711, 0
        %v3802 = vsel %vm1017, %v3712, 0
        %v3805 = vsel %vm1017, %v3713, 0
        %v3808 = vsel %vm1017, %v3714, 0
        %v3811 = vsel %vm1017, %v3715, 0
        %v3814 = vsel %vm1017, %v3716, 0
        %v3817 = vsel %vm1017, %v3717, 0
        %v3820 = vsel %vm1017, %v3718, 0
        %v3823 = vsel %vm1017, %v3719, 0
        %v3826 = vsel %vm1017, %v3720, 0
        %v3829 = vsel %vm1017, %v3721, 0
        %v3832 = vsel %vm1017, %v3722, 0
        %v3835 = vsel %vm1017, %v3723, 0
        %v3838 = vsel %vm1017, %v3724, 0
        %v3841 = vsel %vm1017, %v3725, 0
        %v3844 = vsel %vm1017, %v3726, 0
        %v3847 = vsel %vm1017, %v3727, 0
        %v3850 = vsel %vm1017, %v3728, 0
        %v3853 = vsel %vm1017, %v3729, 0
        %v3856 = vsel %vm1017, %v3730, 0
        %v3859 = vsel %vm1017, %v3731, 0
        %v3862 = vsel %vm1017, %v3732, 0
        %v3865 = vsel %vm1017, %v3733, 0
        %v3868 = vsel %vm1017, %v3734, 0
        %v3871 = vsel %vm1017, %v3735, 0
        %v3874 = vsel %vm1017, %v3736, 0
        %v3877 = vsel %vm1017, %v3737, 0
        %v3880 = vsel %vm1017, %v3738, 0
        %v3883 = vsel %vm1017, %v3739, 0
        %v3886 = vsel %vm1017, %v3740, 0
        %v3889 = vsel %vm1017, %v3741, 0
        %v3892 = vsel %vm1017, %v3742, 0
        %v3895 = vsel %vm1017, %v3743, 0
        %v3898 = vsel %vm1017, %v3744, 0
        %v3901 = vsel %vm1017, %v3745, 0
        %v3904 = vsel %vm1017, %v3746, 0
        %v3907 = vsel %vm1017, %v3747, 0
        %v3910 = vsel %vm1017, %v3748, 0
        %v3913 = vsel %vm1017, %v3749, 0
        %v3916 = vsel %vm1017, %v3750, 0
        %v3919 = vsel %vm1017, %v3751, 0
        %v3922 = vsel %vm1017, %v3752, 0
        %v3925 = vsel %vm1017, %v3753, 0
        %v3928 = vsel %vm1017, %v3754, 0
        %v3931 = vsel %vm1017, %v3755, 0
        %v3934 = vsel %vm1017, %v3756, 0
        %v3937 = vsel %vm1017, %v3757, 0
        %v3940 = vsel %vm1017, %v3758, 0
        %v3943 = vsel %vm1186, %v3771, 0
        %3945 = vmatprep.subr.bf16.mxu0 0
        %3946 = vmatpush1.bf16.msra.mxu0 %v3769
        %3947 = vmatprep.subr.bf16.mxu0 0
        %3948 = vmatpush1.bf16.msra.mxu0 %v3770
        %3949 = vmatprep.subr.bf16.mxu0 0
        %3950 = vmatpush1.bf16.msra.mxu0 %v3943
        %3951 = vmatprep.subr.bf16.mxu0 0
        %3952 = vmatpush1.bf16.msra.mxu0 0
        %3953 = vmatprep.subr.bf16.mxu0 0
        %3954 = vmatpush1.bf16.msra.mxu0 0
        %3955 = vmatprep.subr.bf16.mxu0 0
        %3956 = vmatpush1.bf16.msra.mxu0 0
        %3957 = vmatprep.subr.bf16.mxu0 0
        %3958 = vmatpush1.bf16.msra.mxu0 0
        %3959 = vmatprep.subr.bf16.mxu0 0
        %3960 = vmatpush1.bf16.msra.mxu0 0
        %3961 = vmatprep.subr.bf16.mxu0 0
        %3962 = vmatpush1.bf16.msra.mxu0 0
        %3963 = vmatprep.subr.bf16.mxu0 0
        %3964 = vmatpush1.bf16.msra.mxu0 0
        %3965 = vmatprep.subr.bf16.mxu0 0
        %3966 = vmatpush1.bf16.msra.mxu0 0
        %3967 = vmatprep.subr.bf16.mxu0 0
        %3968 = vmatpush1.bf16.msra.mxu0 0
        %3969 = vmatprep.subr.bf16.mxu0 0
        %3970 = vmatpush1.bf16.msra.mxu0 0
        %3971 = vmatprep.subr.bf16.mxu0 0
        %3972 = vmatpush1.bf16.msra.mxu0 0
        %3973 = vmatprep.subr.bf16.mxu0 0
        %3974 = vmatpush1.bf16.msra.mxu0 0
        %3975 = vmatprep.subr.bf16.mxu0 0
        %3976 = vmatpush1.bf16.msra.mxu0 0
        %3977 = vmatprep.mubr.bf16.mxu0 0
        %3978 = vmatmul.mubr.bf16.gmra.mrb[0].mxu0 %v3775
        %v3979 = vpop.f32.mrb[0].mxu0
        %v3980 = vadd.f32 0.0, %v3979
        %v3981 = vpop.f32.mrb[0].mxu0
        %v3982 = vpop.f32.mrb[0].mxu0
        %v3983 = vadd.f32 0.0, %v3982
        %v3984 = vpop.f32.mrb[0].mxu0
        %3985 = vmatprep.mubr.bf16.mxu0 0
        %3986 = vmatmul.mubr.bf16.gmra.mrb[0].mxu0 %v3778
        %v3987 = vpop.f32.mrb[0].mxu0
        %v3988 = vadd.f32 0.0, %v3987
        %v3989 = vpop.f32.mrb[0].mxu0
        %v3990 = vpop.f32.mrb[0].mxu0
        %v3991 = vadd.f32 0.0, %v3990
        %v3992 = vpop.f32.mrb[0].mxu0
        %3993 = vmatprep.mubr.bf16.mxu0 0
        %3994 = vmatmul.mubr.bf16.gmra.mrb[0].mxu0 %v3781
        %v3995 = vpop.f32.mrb[0].mxu0
        %v3996 = vadd.f32 0.0, %v3995
        %v3997 = vpop.f32.mrb[0].mxu0
        %v3998 = vpop.f32.mrb[0].mxu0
        %v3999 = vadd.f32 0.0, %v3998
        %v4000 = vpop.f32.mrb[0].mxu0
        %4001 = vmatprep.mubr.bf16.mxu0 0
        %4002 = vmatmul.mubr.bf16.gmra.mrb[0].mxu0 %v3784
        %v4003 = vpop.f32.mrb[0].mxu0
        %v4004 = vadd.f32 0.0, %v4003
        %v4005 = vpop.f32.mrb[0].mxu0
        %v4006 = vpop.f32.mrb[0].mxu0
        %v4007 = vadd.f32 0.0, %v4006
        %v4008 = vpop.f32.mrb[0].mxu0
        %4009 = vmatprep.mubr.bf16.mxu0 0
        %4010 = vmatmul.mubr.bf16.gmra.mrb[0].mxu0 %v3787
        %v4011 = vpop.f32.mrb[0].mxu0
        %v4012 = vadd.f32 0.0, %v4011
        %v4013 = vpop.f32.mrb[0].mxu0
        %v4014 = vpop.f32.mrb[0].mxu0
        %v4015 = vadd.f32 0.0, %v4014
        %v4016 = vpop.f32.mrb[0].mxu0
        %4017 = vmatprep.mubr.bf16.mxu0 0
        %4018 = vmatmul.mubr.bf16.gmra.mrb[0].mxu0 %v3790
        %v4019 = vpop.f32.mrb[0].mxu0
        %v4020 = vadd.f32 0.0, %v4019
        %v4021 = vpop.f32.mrb[0].mxu0
        %v4022 = vpop.f32.mrb[0].mxu0
        %v4023 = vadd.f32 0.0, %v4022
        %v4024 = vpop.f32.mrb[0].mxu0
        %4025 = vmatprep.mubr.bf16.mxu0 0
        %4026 = vmatmul.mubr.bf16.gmra.mrb[0].mxu0 %v3793
        %v4027 = vpop.f32.mrb[0].mxu0
        %v4028 = vadd.f32 0.0, %v4027
        %v4029 = vpop.f32.mrb[0].mxu0
        %v4030 = vpop.f32.mrb[0].mxu0
        %v4031 = vadd.f32 0.0, %v4030
        %v4032 = vpop.f32.mrb[0].mxu0
        %4033 = vmatprep.mubr.bf16.mxu0 0
        %4034 = vmatmul.mubr.bf16.gmra.mrb[0].mxu0 %v3796
        %v4035 = vpop.f32.mrb[0].mxu0
        %v4036 = vadd.f32 0.0, %v4035
        %v4037 = vpop.f32.mrb[0].mxu0
        %v4038 = vpop.f32.mrb[0].mxu0
        %v4039 = vadd.f32 0.0, %v4038
        %v4040 = vpop.f32.mrb[0].mxu0
        %4041 = vmatprep.mubr.bf16.mxu0 0
        %4042 = vmatmul.mubr.bf16.gmra.mrb[0].mxu0 %v3799
        %v4043 = vpop.f32.mrb[0].mxu0
        %v4044 = vadd.f32 0.0, %v4043
        %v4045 = vpop.f32.mrb[0].mxu0
        %v4046 = vpop.f32.mrb[0].mxu0
        %v4047 = vadd.f32 0.0, %v4046
        %v4048 = vpop.f32.mrb[0].mxu0
        %4049 = vmatprep.mubr.bf16.mxu0 0
        %4050 = vmatmul.mubr.bf16.gmra.mrb[0].mxu0 %v3802
        %v4051 = vpop.f32.mrb[0].mxu0
        %v4052 = vadd.f32 0.0, %v4051
        %v4053 = vpop.f32.mrb[0].mxu0
        %v4054 = vpop.f32.mrb[0].mxu0
        %v4055 = vadd.f32 0.0, %v4054
        %v4056 = vpop.f32.mrb[0].mxu0
        %4057 = vmatprep.mubr.bf16.mxu0 0
        %4058 = vmatmul.mubr.bf16.gmra.mrb[0].mxu0 %v3805
        %v4059 = vpop.f32.mrb[0].mxu0
        %v4060 = vadd.f32 0.0, %v4059
        %v4061 = vpop.f32.mrb[0].mxu0
        %v4062 = vpop.f32.mrb[0].mxu0
        %v4063 = vadd.f32 0.0, %v4062
        %v4064 = vpop.f32.mrb[0].mxu0
        %4065 = vmatprep.mubr.bf16.mxu0 0
        %4066 = vmatmul.mubr.bf16.gmra.mrb[0].mxu0 %v3808
        %v4067 = vpop.f32.mrb[0].mxu0
        %v4068 = vadd.f32 0.0, %v4067
        %v4069 = vpop.f32.mrb[0].mxu0
        %v4070 = vpop.f32.mrb[0].mxu0
        %v4071 = vadd.f32 0.0, %v4070
        %v4072 = vpop.f32.mrb[0].mxu0
        %4073 = vmatprep.mubr.bf16.mxu0 0
        %4074 = vmatmul.mubr.bf16.gmra.mrb[0].mxu0 %v3811
        %v4075 = vpop.f32.mrb[0].mxu0
        %v4076 = vadd.f32 0.0, %v4075
        %v4077 = vpop.f32.mrb[0].mxu0
        %v4078 = vpop.f32.mrb[0].mxu0
        %v4079 = vadd.f32 0.0, %v4078
        %v4080 = vpop.f32.mrb[0].mxu0
        %4081 = vmatprep.mubr.bf16.mxu0 0
        %4082 = vmatmul.mubr.bf16.gmra.mrb[0].mxu0 %v3814
        %v4083 = vpop.f32.mrb[0].mxu0
        %v4084 = vadd.f32 0.0, %v4083
        %v4085 = vpop.f32.mrb[0].mxu0
        %v4086 = vpop.f32.mrb[0].mxu0
        %v4087 = vadd.f32 0.0, %v4086
        %v4088 = vpop.f32.mrb[0].mxu0
        %4089 = vmatprep.mubr.bf16.mxu0 0
        %4090 = vmatmul.mubr.bf16.gmra.mrb[0].mxu0 %v3817
        %v4091 = vpop.f32.mrb[0].mxu0
        %v4092 = vadd.f32 0.0, %v4091
        %v4093 = vpop.f32.mrb[0].mxu0
        %v4094 = vpop.f32.mrb[0].mxu0
        %v4095 = vadd.f32 0.0, %v4094
        %v4096 = vpop.f32.mrb[0].mxu0
        %4097 = vmatprep.mubr.bf16.mxu0 0
        %4098 = vmatmul.mubr.bf16.gmra.mrb[0].mxu0 %v3820
        %v4099 = vpop.f32.mrb[0].mxu0
        %v4100 = vadd.f32 0.0, %v4099
        %v4101 = vpop.f32.mrb[0].mxu0
        %v4102 = vpop.f32.mrb[0].mxu0
        %v4103 = vadd.f32 0.0, %v4102
        %v4104 = vpop.f32.mrb[0].mxu0
        %4105 = vmatprep.mubr.bf16.mxu0 0
        %4106 = vmatmul.mubr.bf16.gmra.mrb[0].mxu0 %v3823
        %v4107 = vpop.f32.mrb[0].mxu0
        %v4108 = vadd.f32 0.0, %v4107
        %v4109 = vpop.f32.mrb[0].mxu0
        %v4110 = vpop.f32.mrb[0].mxu0
        %v4111 = vadd.f32 0.0, %v4110
        %v4112 = vpop.f32.mrb[0].mxu0
        %4113 = vmatprep.mubr.bf16.mxu0 0
        %4114 = vmatmul.mubr.bf16.gmra.mrb[0].mxu0 %v3826
        %v4115 = vpop.f32.mrb[0].mxu0
        %v4116 = vadd.f32 0.0, %v4115
        %v4117 = vpop.f32.mrb[0].mxu0
        %v4118 = vpop.f32.mrb[0].mxu0
        %v4119 = vadd.f32 0.0, %v4118
        %v4120 = vpop.f32.mrb[0].mxu0
        %4121 = vmatprep.mubr.bf16.mxu0 0
        %4122 = vmatmul.mubr.bf16.gmra.mrb[0].mxu0 %v3829
        %v4123 = vpop.f32.mrb[0].mxu0
        %v4124 = vadd.f32 0.0, %v4123
        %v4125 = vpop.f32.mrb[0].mxu0
        %v4126 = vpop.f32.mrb[0].mxu0
        %v4127 = vadd.f32 0.0, %v4126
        %v4128 = vpop.f32.mrb[0].mxu0
        %4129 = vmatprep.mubr.bf16.mxu0 0
        %4130 = vmatmul.mubr.bf16.gmra.mrb[0].mxu0 %v3832
        %v4131 = vpop.f32.mrb[0].mxu0
        %v4132 = vadd.f32 0.0, %v4131
        %v4133 = vpop.f32.mrb[0].mxu0
        %v4134 = vpop.f32.mrb[0].mxu0
        %v4135 = vadd.f32 0.0, %v4134
        %v4136 = vpop.f32.mrb[0].mxu0
        %4137 = vmatprep.mubr.bf16.mxu0 0
        %4138 = vmatmul.mubr.bf16.gmra.mrb[0].mxu0 %v3835
        %v4139 = vpop.f32.mrb[0].mxu0
        %v4140 = vadd.f32 0.0, %v4139
        %v4141 = vpop.f32.mrb[0].mxu0
        %v4142 = vpop.f32.mrb[0].mxu0
        %v4143 = vadd.f32 0.0, %v4142
        %v4144 = vpop.f32.mrb[0].mxu0
        %4145 = vmatprep.mubr.bf16.mxu0 0
        %4146 = vmatmul.mubr.bf16.gmra.mrb[0].mxu0 %v3838
        %v4147 = vpop.f32.mrb[0].mxu0
        %v4148 = vadd.f32 0.0, %v4147
        %v4149 = vpop.f32.mrb[0].mxu0
        %v4150 = vpop.f32.mrb[0].mxu0
        %v4151 = vadd.f32 0.0, %v4150
        %v4152 = vpop.f32.mrb[0].mxu0
        %4153 = vmatprep.mubr.bf16.mxu0 0
        %4154 = vmatmul.mubr.bf16.gmra.mrb[0].mxu0 %v3841
        %v4155 = vpop.f32.mrb[0].mxu0
        %v4156 = vadd.f32 0.0, %v4155
        %v4157 = vpop.f32.mrb[0].mxu0
        %v4158 = vpop.f32.mrb[0].mxu0
        %v4159 = vadd.f32 0.0, %v4158
        %v4160 = vpop.f32.mrb[0].mxu0
        %4161 = vmatprep.mubr.bf16.mxu0 0
        %4162 = vmatmul.mubr.bf16.gmra.mrb[0].mxu0 %v3844
        %v4163 = vpop.f32.mrb[0].mxu0
        %v4164 = vadd.f32 0.0, %v4163
        %v4165 = vpop.f32.mrb[0].mxu0
        %v4166 = vpop.f32.mrb[0].mxu0
        %v4167 = vadd.f32 0.0, %v4166
        %v4168 = vpop.f32.mrb[0].mxu0
        %4169 = vmatprep.mubr.bf16.mxu0 0
        %4170 = vmatmul.mubr.bf16.gmra.mrb[0].mxu0 %v3847
        %v4171 = vpop.f32.mrb[0].mxu0
        %v4172 = vadd.f32 0.0, %v4171
        %v4173 = vpop.f32.mrb[0].mxu0
        %v4174 = vpop.f32.mrb[0].mxu0
        %v4175 = vadd.f32 0.0, %v4174
        %v4176 = vpop.f32.mrb[0].mxu0
        %4177 = vmatprep.mubr.bf16.mxu0 0
        %4178 = vmatmul.mubr.bf16.gmra.mrb[0].mxu0 %v3850
        %v4179 = vpop.f32.mrb[0].mxu0
        %v4180 = vadd.f32 0.0, %v4179
        %v4181 = vpop.f32.mrb[0].mxu0
        %v4182 = vpop.f32.mrb[0].mxu0
        %v4183 = vadd.f32 0.0, %v4182
        %v4184 = vpop.f32.mrb[0].mxu0
        %4185 = vmatprep.mubr.bf16.mxu0 0
        %4186 = vmatmul.mubr.bf16.gmra.mrb[0].mxu0 %v3853
        %v4187 = vpop.f32.mrb[0].mxu0
        %v4188 = vadd.f32 0.0, %v4187
        %v4189 = vpop.f32.mrb[0].mxu0
        %v4190 = vpop.f32.mrb[0].mxu0
        %v4191 = vadd.f32 0.0, %v4190
        %v4192 = vpop.f32.mrb[0].mxu0
        %4193 = vmatprep.mubr.bf16.mxu0 0
        %4194 = vmatmul.mubr.bf16.gmra.mrb[0].mxu0 %v3856
        %v4195 = vpop.f32.mrb[0].mxu0
        %v4196 = vadd.f32 0.0, %v4195
        %v4197 = vpop.f32.mrb[0].mxu0
        %v4198 = vpop.f32.mrb[0].mxu0
        %v4199 = vadd.f32 0.0, %v4198
        %v4200 = vpop.f32.mrb[0].mxu0
        %4201 = vmatprep.mubr.bf16.mxu0 0
        %4202 = vmatmul.mubr.bf16.gmra.mrb[0].mxu0 %v3859
        %v4203 = vpop.f32.mrb[0].mxu0
        %v4204 = vadd.f32 0.0, %v4203
        %v4205 = vpop.f32.mrb[0].mxu0
        %v4206 = vpop.f32.mrb[0].mxu0
        %v4207 = vadd.f32 0.0, %v4206
        %v4208 = vpop.f32.mrb[0].mxu0
        %4209 = vmatprep.mubr.bf16.mxu0 0
        %4210 = vmatmul.mubr.bf16.gmra.mrb[0].mxu0 %v3862
        %v4211 = vpop.f32.mrb[0].mxu0
        %v4212 = vadd.f32 0.0, %v4211
        %v4213 = vpop.f32.mrb[0].mxu0
        %v4214 = vpop.f32.mrb[0].mxu0
        %v4215 = vadd.f32 0.0, %v4214
        %v4216 = vpop.f32.mrb[0].mxu0
        %4217 = vmatprep.mubr.bf16.mxu0 0
        %4218 = vmatmul.mubr.bf16.gmra.mrb[0].mxu0 %v3865
        %v4219 = vpop.f32.mrb[0].mxu0
        %v4220 = vadd.f32 0.0, %v4219
        %v4221 = vpop.f32.mrb[0].mxu0
        %v4222 = vpop.f32.mrb[0].mxu0
        %v4223 = vadd.f32 0.0, %v4222
        %v4224 = vpop.f32.mrb[0].mxu0
        %4225 = vmatprep.mubr.bf16.mxu0 0
        %4226 = vmatmul.mubr.bf16.gmra.mrb[0].mxu0 %v3868
        %v4227 = vpop.f32.mrb[0].mxu0
        %v4228 = vadd.f32 0.0, %v4227
        %v4229 = vpop.f32.mrb[0].mxu0
        %v4230 = vpop.f32.mrb[0].mxu0
        %v4231 = vadd.f32 0.0, %v4230
        %v4232 = vpop.f32.mrb[0].mxu0
        %4233 = vmatprep.mubr.bf16.mxu0 0
        %4234 = vmatmul.mubr.bf16.gmra.mrb[0].mxu0 %v3871
        %v4235 = vpop.f32.mrb[0].mxu0
        %v4236 = vadd.f32 0.0, %v4235
        %v4237 = vpop.f32.mrb[0].mxu0
        %v4238 = vpop.f32.mrb[0].mxu0
        %v4239 = vadd.f32 0.0, %v4238
        %v4240 = vpop.f32.mrb[0].mxu0
        %4241 = vmatprep.mubr.bf16.mxu0 0
        %4242 = vmatmul.mubr.bf16.gmra.mrb[0].mxu0 %v3874
        %v4243 = vpop.f32.mrb[0].mxu0
        %v4244 = vadd.f32 0.0, %v4243
        %v4245 = vpop.f32.mrb[0].mxu0
        %v4246 = vpop.f32.mrb[0].mxu0
        %v4247 = vadd.f32 0.0, %v4246
        %v4248 = vpop.f32.mrb[0].mxu0
        %4249 = vmatprep.mubr.bf16.mxu0 0
        %4250 = vmatmul.mubr.bf16.gmra.mrb[0].mxu0 %v3877
        %v4251 = vpop.f32.mrb[0].mxu0
        %v4252 = vadd.f32 0.0, %v4251
        %v4253 = vpop.f32.mrb[0].mxu0
        %v4254 = vpop.f32.mrb[0].mxu0
        %v4255 = vadd.f32 0.0, %v4254
        %v4256 = vpop.f32.mrb[0].mxu0
        %4257 = vmatprep.mubr.bf16.mxu0 0
        %4258 = vmatmul.mubr.bf16.gmra.mrb[0].mxu0 %v3880
        %v4259 = vpop.f32.mrb[0].mxu0
        %v4260 = vadd.f32 0.0, %v4259
        %v4261 = vpop.f32.mrb[0].mxu0
        %v4262 = vpop.f32.mrb[0].mxu0
        %v4263 = vadd.f32 0.0, %v4262
        %v4264 = vpop.f32.mrb[0].mxu0
        %4265 = vmatprep.mubr.bf16.mxu0 0
        %4266 = vmatmul.mubr.bf16.gmra.mrb[0].mxu0 %v3883
        %v4267 = vpop.f32.mrb[0].mxu0
        %v4268 = vadd.f32 0.0, %v4267
        %v4269 = vpop.f32.mrb[0].mxu0
        %v4270 = vpop.f32.mrb[0].mxu0
        %v4271 = vadd.f32 0.0, %v4270
        %v4272 = vpop.f32.mrb[0].mxu0
        %4273 = vmatprep.mubr.bf16.mxu0 0
        %4274 = vmatmul.mubr.bf16.gmra.mrb[0].mxu0 %v3886
        %v4275 = vpop.f32.mrb[0].mxu0
        %v4276 = vadd.f32 0.0, %v4275
        %v4277 = vpop.f32.mrb[0].mxu0
        %v4278 = vpop.f32.mrb[0].mxu0
        %v4279 = vadd.f32 0.0, %v4278
        %v4280 = vpop.f32.mrb[0].mxu0
        %4281 = vmatprep.mubr.bf16.mxu0 0
        %4282 = vmatmul.mubr.bf16.gmra.mrb[0].mxu0 %v3889
        %v4283 = vpop.f32.mrb[0].mxu0
        %v4284 = vadd.f32 0.0, %v4283
        %v4285 = vpop.f32.mrb[0].mxu0
        %v4286 = vpop.f32.mrb[0].mxu0
        %v4287 = vadd.f32 0.0, %v4286
        %v4288 = vpop.f32.mrb[0].mxu0
        %4289 = vmatprep.mubr.bf16.mxu0 0
        %4290 = vmatmul.mubr.bf16.gmra.mrb[0].mxu0 %v3892
        %v4291 = vpop.f32.mrb[0].mxu0
        %v4292 = vadd.f32 0.0, %v4291
        %v4293 = vpop.f32.mrb[0].mxu0
        %v4294 = vpop.f32.mrb[0].mxu0
        %v4295 = vadd.f32 0.0, %v4294
        %v4296 = vpop.f32.mrb[0].mxu0
        %4297 = vmatprep.mubr.bf16.mxu0 0
        %4298 = vmatmul.mubr.bf16.gmra.mrb[0].mxu0 %v3895
        %v4299 = vpop.f32.mrb[0].mxu0
        %v4300 = vadd.f32 0.0, %v4299
        %v4301 = vpop.f32.mrb[0].mxu0
        %v4302 = vpop.f32.mrb[0].mxu0
        %v4303 = vadd.f32 0.0, %v4302
        %v4304 = vpop.f32.mrb[0].mxu0
        %4305 = vmatprep.mubr.bf16.mxu0 0
        %4306 = vmatmul.mubr.bf16.gmra.mrb[0].mxu0 %v3898
        %v4307 = vpop.f32.mrb[0].mxu0
        %v4308 = vadd.f32 0.0, %v4307
        %v4309 = vpop.f32.mrb[0].mxu0
        %v4310 = vpop.f32.mrb[0].mxu0
        %v4311 = vadd.f32 0.0, %v4310
        %v4312 = vpop.f32.mrb[0].mxu0
        %4313 = vmatprep.mubr.bf16.mxu0 0
        %4314 = vmatmul.mubr.bf16.gmra.mrb[0].mxu0 %v3901
        %v4315 = vpop.f32.mrb[0].mxu0
        %v4316 = vadd.f32 0.0, %v4315
        %v4317 = vpop.f32.mrb[0].mxu0
        %v4318 = vpop.f32.mrb[0].mxu0
        %v4319 = vadd.f32 0.0, %v4318
        %v4320 = vpop.f32.mrb[0].mxu0
        %4321 = vmatprep.mubr.bf16.mxu0 0
        %4322 = vmatmul.mubr.bf16.gmra.mrb[0].mxu0 %v3904
        %v4323 = vpop.f32.mrb[0].mxu0
        %v4324 = vadd.f32 0.0, %v4323
        %v4325 = vpop.f32.mrb[0].mxu0
        %v4326 = vpop.f32.mrb[0].mxu0
        %v4327 = vadd.f32 0.0, %v4326
        %v4328 = vpop.f32.mrb[0].mxu0
        %4329 = vmatprep.mubr.bf16.mxu0 0
        %4330 = vmatmul.mubr.bf16.gmra.mrb[0].mxu0 %v3907
        %v4331 = vpop.f32.mrb[0].mxu0
        %v4332 = vadd.f32 0.0, %v4331
        %v4333 = vpop.f32.mrb[0].mxu0
        %v4334 = vpop.f32.mrb[0].mxu0
        %v4335 = vadd.f32 0.0, %v4334
        %v4336 = vpop.f32.mrb[0].mxu0
        %4337 = vmatprep.mubr.bf16.mxu0 0
        %4338 = vmatmul.mubr.bf16.gmra.mrb[0].mxu0 %v3910
        %v4339 = vpop.f32.mrb[0].mxu0
        %v4340 = vadd.f32 0.0, %v4339
        %v4341 = vpop.f32.mrb[0].mxu0
        %v4342 = vpop.f32.mrb[0].mxu0
        %v4343 = vadd.f32 0.0, %v4342
        %v4344 = vpop.f32.mrb[0].mxu0
        %4345 = vmatprep.mubr.bf16.mxu0 0
        %4346 = vmatmul.mubr.bf16.gmra.mrb[0].mxu0 %v3913
        %v4347 = vpop.f32.mrb[0].mxu0
        %v4348 = vadd.f32 0.0, %v4347
        %v4349 = vpop.f32.mrb[0].mxu0
        %v4350 = vpop.f32.mrb[0].mxu0
        %v4351 = vadd.f32 0.0, %v4350
        %v4352 = vpop.f32.mrb[0].mxu0
        %4353 = vmatprep.mubr.bf16.mxu0 0
        %4354 = vmatmul.mubr.bf16.gmra.mrb[0].mxu0 %v3916
        %v4355 = vpop.f32.mrb[0].mxu0
        %v4356 = vadd.f32 0.0, %v4355
        %v4357 = vpop.f32.mrb[0].mxu0
        %v4358 = vpop.f32.mrb[0].mxu0
        %v4359 = vadd.f32 0.0, %v4358
        %v4360 = vpop.f32.mrb[0].mxu0
        %4361 = vmatprep.mubr.bf16.mxu0 0
        %4362 = vmatmul.mubr.bf16.gmra.mrb[0].mxu0 %v3919
        %v4363 = vpop.f32.mrb[0].mxu0
        %v4364 = vadd.f32 0.0, %v4363
        %v4365 = vpop.f32.mrb[0].mxu0
        %v4366 = vpop.f32.mrb[0].mxu0
        %v4367 = vadd.f32 0.0, %v4366
        %v4368 = vpop.f32.mrb[0].mxu0
        %4369 = vmatprep.mubr.bf16.mxu0 0
        %4370 = vmatmul.mubr.bf16.gmra.mrb[0].mxu0 %v3922
        %v4371 = vpop.f32.mrb[0].mxu0
        %v4372 = vadd.f32 0.0, %v4371
        %v4373 = vpop.f32.mrb[0].mxu0
        %v4374 = vpop.f32.mrb[0].mxu0
        %v4375 = vadd.f32 0.0, %v4374
        %v4376 = vpop.f32.mrb[0].mxu0
        %4377 = vmatprep.mubr.bf16.mxu0 0
        %4378 = vmatmul.mubr.bf16.gmra.mrb[0].mxu0 %v3925
        %v4379 = vpop.f32.mrb[0].mxu0
        %v4380 = vadd.f32 0.0, %v4379
        %v4381 = vpop.f32.mrb[0].mxu0
        %v4382 = vpop.f32.mrb[0].mxu0
        %v4383 = vadd.f32 0.0, %v4382
        %v4384 = vpop.f32.mrb[0].mxu0
        %4385 = vmatprep.mubr.bf16.mxu0 0
        %4386 = vmatmul.mubr.bf16.gmra.mrb[0].mxu0 %v3928
        %v4387 = vpop.f32.mrb[0].mxu0
        %v4388 = vadd.f32 0.0, %v4387
        %v4389 = vpop.f32.mrb[0].mxu0
        %v4390 = vpop.f32.mrb[0].mxu0
        %v4391 = vadd.f32 0.0, %v4390
        %v4392 = vpop.f32.mrb[0].mxu0
        %4393 = vmatprep.mubr.bf16.mxu0 0
        %4394 = vmatmul.mubr.bf16.gmra.mrb[0].mxu0 %v3931
        %v4395 = vpop.f32.mrb[0].mxu0
        %v4396 = vadd.f32 0.0, %v4395
        %v4397 = vpop.f32.mrb[0].mxu0
        %v4398 = vpop.f32.mrb[0].mxu0
        %v4399 = vadd.f32 0.0, %v4398
        %v4400 = vpop.f32.mrb[0].mxu0
        %4401 = vmatprep.mubr.bf16.mxu0 0
        %4402 = vmatmul.mubr.bf16.gmra.mrb[0].mxu0 %v3934
        %v4403 = vpop.f32.mrb[0].mxu0
        %v4404 = vadd.f32 0.0, %v4403
        %v4405 = vpop.f32.mrb[0].mxu0
        %v4406 = vpop.f32.mrb[0].mxu0
        %v4407 = vadd.f32 0.0, %v4406
        %v4408 = vpop.f32.mrb[0].mxu0
        %4409 = vmatprep.mubr.bf16.mxu0 0
        %4410 = vmatmul.mubr.bf16.gmra.mrb[0].mxu0 %v3937
        %v4411 = vpop.f32.mrb[0].mxu0
        %v4412 = vadd.f32 0.0, %v4411
        %v4413 = vpop.f32.mrb[0].mxu0
        %v4414 = vpop.f32.mrb[0].mxu0
        %v4415 = vadd.f32 0.0, %v4414
        %v4416 = vpop.f32.mrb[0].mxu0
        %4417 = vmatprep.mubr.bf16.mxu0 0
        %4418 = vmatmul.mubr.bf16.gmra.mrb[0].mxu0 %v3940
        %v4419 = vpop.f32.mrb[0].mxu0
        %v4420 = vadd.f32 0.0, %v4419
        %v4421 = vpop.f32.mrb[0].mxu0
        %v4422 = vpop.f32.mrb[0].mxu0
        %v4423 = vadd.f32 0.0, %v4422
        %v4424 = vpop.f32.mrb[0].mxu0
        %4425 = vdwg.mxu0
        %v4426 = vadd.f32 %v3250, %v3980
        %v4427 = vadd.f32 %v3251, %v3983
        %v4428 = vadd.f32 %v3252, %v3988
        %v4429 = vadd.f32 %v3253, %v3991
        %v4430 = vadd.f32 %v3254, %v3996
        %v4431 = vadd.f32 %v3255, %v3999
        %v4432 = vadd.f32 %v3256, %v4004
        %v4433 = vadd.f32 %v3257, %v4007
        %v4434 = vadd.f32 %v3258, %v4012
        %v4435 = vadd.f32 %v3259, %v4015
        %v4436 = vadd.f32 %v3260, %v4020
        %v4437 = vadd.f32 %v3261, %v4023
        %v4438 = vadd.f32 %v3262, %v4028
        %v4439 = vadd.f32 %v3263, %v4031
        %v4440 = vadd.f32 %v3264, %v4036
        %v4441 = vadd.f32 %v3265, %v4039
        %v4442 = vadd.f32 %v3266, %v4044
        %v4443 = vadd.f32 %v3267, %v4047
        %v4444 = vadd.f32 %v3268, %v4052
        %v4445 = vadd.f32 %v3269, %v4055
        %v4446 = vadd.f32 %v3270, %v4060
        %v4447 = vadd.f32 %v3271, %v4063
        %v4448 = vadd.f32 %v3272, %v4068
        %v4449 = vadd.f32 %v3273, %v4071
        %v4450 = vadd.f32 %v3274, %v4076
        %v4451 = vadd.f32 %v3275, %v4079
        %v4452 = vadd.f32 %v3276, %v4084
        %v4453 = vadd.f32 %v3277, %v4087
        %v4454 = vadd.f32 %v3278, %v4092
        %v4455 = vadd.f32 %v3279, %v4095
        %v4456 = vadd.f32 %v3280, %v4100
        %v4457 = vadd.f32 %v3281, %v4103
        %v4458 = vadd.f32 %v3282, %v4108
        %v4459 = vadd.f32 %v3283, %v4111
        %v4460 = vadd.f32 %v3284, %v4116
        %v4461 = vadd.f32 %v3285, %v4119
        %v4462 = vadd.f32 %v3286, %v4124
        %v4463 = vadd.f32 %v3287, %v4127
        %v4464 = vadd.f32 %v3288, %v4132
        %v4465 = vadd.f32 %v3289, %v4135
        %v4466 = vadd.f32 %v3290, %v4140
        %v4467 = vadd.f32 %v3291, %v4143
        %v4468 = vadd.f32 %v3292, %v4148
        %v4469 = vadd.f32 %v3293, %v4151
        %v4470 = vadd.f32 %v3294, %v4156
        %v4471 = vadd.f32 %v3295, %v4159
        %v4472 = vadd.f32 %v3296, %v4164
        %v4473 = vadd.f32 %v3297, %v4167
        %v4474 = vadd.f32 %v3298, %v4172
        %v4475 = vadd.f32 %v3299, %v4175
        %v4476 = vadd.f32 %v3300, %v4180
        %v4477 = vadd.f32 %v3301, %v4183
        %v4478 = vadd.f32 %v3302, %v4188
        %v4479 = vadd.f32 %v3303, %v4191
        %v4480 = vadd.f32 %v3304, %v4196
        %v4481 = vadd.f32 %v3305, %v4199
        %v4482 = vadd.f32 %v3306, %v4204
        %v4483 = vadd.f32 %v3307, %v4207
        %v4484 = vadd.f32 %v3308, %v4212
        %v4485 = vadd.f32 %v3309, %v4215
        %v4486 = vadd.f32 %v3310, %v4220
        %v4487 = vadd.f32 %v3311, %v4223
        %v4488 = vadd.f32 %v3312, %v4228
        %v4489 = vadd.f32 %v3313, %v4231
        %v4490 = vadd.f32 %v3314, %v4236
        %v4491 = vadd.f32 %v3315, %v4239
        %v4492 = vadd.f32 %v3316, %v4244
        %v4493 = vadd.f32 %v3317, %v4247
        %v4494 = vadd.f32 %v3318, %v4252
        %v4495 = vadd.f32 %v3319, %v4255
        %v4496 = vadd.f32 %v3320, %v4260
        %v4497 = vadd.f32 %v3321, %v4263
        %v4498 = vadd.f32 %v3322, %v4268
        %v4499 = vadd.f32 %v3323, %v4271
        %v4500 = vadd.f32 %v3324, %v4276
        %v4501 = vadd.f32 %v3325, %v4279
        %v4502 = vadd.f32 %v3326, %v4284
        %v4503 = vadd.f32 %v3327, %v4287
        %v4504 = vadd.f32 %v3328, %v4292
        %v4505 = vadd.f32 %v3329, %v4295
        %v4506 = vadd.f32 %v3330, %v4300
        %v4507 = vadd.f32 %v3331, %v4303
        %v4508 = vadd.f32 %v3332, %v4308
        %v4509 = vadd.f32 %v3333, %v4311
        %v4510 = vadd.f32 %v3334, %v4316
        %v4511 = vadd.f32 %v3335, %v4319
        %v4512 = vadd.f32 %v3336, %v4324
        %v4513 = vadd.f32 %v3337, %v4327
        %v4514 = vadd.f32 %v3338, %v4332
        %v4515 = vadd.f32 %v3339, %v4335
        %v4516 = vadd.f32 %v3340, %v4340
        %v4517 = vadd.f32 %v3341, %v4343
        %v4518 = vadd.f32 %v3342, %v4348
        %v4519 = vadd.f32 %v3343, %v4351
        %v4520 = vadd.f32 %v3344, %v4356
        %v4521 = vadd.f32 %v3345, %v4359
        %v4522 = vadd.f32 %v3346, %v4364
        %v4523 = vadd.f32 %v3347, %v4367
        %v4524 = vadd.f32 %v3348, %v4372
        %v4525 = vadd.f32 %v3349, %v4375
        %v4526 = vadd.f32 %v3350, %v4380
        %v4527 = vadd.f32 %v3351, %v4383
        %v4528 = vadd.f32 %v3352, %v4388
        %v4529 = vadd.f32 %v3353, %v4391
        %v4530 = vadd.f32 %v3354, %v4396
        %v4531 = vadd.f32 %v3355, %v4399
        %v4532 = vadd.f32 %v3356, %v4404
        %v4533 = vadd.f32 %v3357, %v4407
        %v4534 = vadd.f32 %v3358, %v4412
        %v4535 = vadd.f32 %v3359, %v4415
        %v4536 = vadd.f32 %v3360, %v4420
        %v4537 = vadd.f32 %v3361, %v4423
        %v4538 = vld [vmem:[%s437 + $0x40] sm:$0xf]
        %v4539 = vld [vmem:[%s437 + $0x44] sm:$0xf]
        %v4540 = vld [vmem:[%s437 + $0x48] sm:$0xf]
        %v4541 = vld [vmem:[%s437 + $0x4c] sm:$0xf]
        %v4542 = vld [vmem:[%s437 + $0x50] sm:$0xf]
        %v4543 = vld [vmem:[%s437 + $0x54] sm:$0xf]
        %v4544 = vld [vmem:[%s437 + $0x58] sm:$0xf]
        %v4545 = vld [vmem:[%s437 + $0x5c] sm:$0xf]
        %v4546 = vld [vmem:[%s437 + $0x60] sm:$0xf]
        %v4547 = vld [vmem:[%s437 + $0x64] sm:$0xf]
        %v4548 = vld [vmem:[%s437 + $0x68] sm:$0xf]
        %v4549 = vld [vmem:[%s437 + $0x6c] sm:$0xf]
        %v4550 = vld [vmem:[%s437 + $0x70] sm:$0xf]
        %v4551 = vld [vmem:[%s437 + $0x74] sm:$0xf]
        %v4552 = vld [vmem:[%s437 + $0x78] sm:$0xf]
        %v4553 = vld [vmem:[%s437 + $0x7c] sm:$0xf]
        %v4554 = vld [vmem:[%s437 + $0x80] sm:$0xf]
        %v4555 = vld [vmem:[%s437 + $0x84] sm:$0xf]
        %v4556 = vld [vmem:[%s437 + $0x88] sm:$0xf]
        %v4557 = vld [vmem:[%s437 + $0x8c] sm:$0xf]
        %v4558 = vld [vmem:[%s437 + $0x90] sm:$0xf]
        %v4559 = vld [vmem:[%s437 + $0x94] sm:$0xf]
        %v4560 = vld [vmem:[%s437 + $0x98] sm:$0xf]
        %v4561 = vld [vmem:[%s437 + $0x9c] sm:$0xf]
        %v4562 = vld [vmem:[%s437 + $0xa0] sm:$0xf]
        %v4563 = vld [vmem:[%s437 + $0xa4] sm:$0xf]
        %v4564 = vld [vmem:[%s437 + $0xa8] sm:$0xf]
        %v4565 = vld [vmem:[%s437 + $0xac] sm:$0xf]
        %v4566 = vld [vmem:[%s437 + $0xb0] sm:$0xf]
        %v4567 = vld [vmem:[%s437 + $0xb4] sm:$0xf]
        %v4568 = vld [vmem:[%s437 + $0xb8] sm:$0xf]
        %v4569 = vld [vmem:[%s437 + $0xbc] sm:$0xf]
        %v4570 = vld [vmem:[%s437 + $0xc0] sm:$0xf]
        %v4571 = vld [vmem:[%s437 + $0xc4] sm:$0xf]
        %v4572 = vld [vmem:[%s437 + $0xc8] sm:$0xf]
        %v4573 = vld [vmem:[%s437 + $0xcc] sm:$0xf]
        %v4574 = vld [vmem:[%s437 + $0xd0] sm:$0xf]
        %v4575 = vld [vmem:[%s437 + $0xd4] sm:$0xf]
        %v4576 = vld [vmem:[%s437 + $0xd8] sm:$0xf]
        %v4577 = vld [vmem:[%s437 + $0xdc] sm:$0xf]
        %v4578 = vld [vmem:[%s437 + $0xe0] sm:$0xf]
        %v4579 = vld [vmem:[%s437 + $0xe4] sm:$0xf]
        %v4580 = vld [vmem:[%s437 + $0xe8] sm:$0xf]
        %v4581 = vld [vmem:[%s437 + $0xec] sm:$0xf]
        %v4582 = vld [vmem:[%s437 + $0xf0] sm:$0xf]
        %v4583 = vld [vmem:[%s437 + $0xf4] sm:$0xf]
        %v4584 = vld [vmem:[%s437 + $0xf8] sm:$0xf]
        %v4585 = vld [vmem:[%s437 + $0xfc] sm:$0xf]
        %v4586 = vld [vmem:[%s437 + $0x100] sm:$0xf]
        %v4587 = vld [vmem:[%s437 + $0x104] sm:$0xf]
        %v4588 = vld [vmem:[%s437 + $0x108] sm:$0xf]
        %v4589 = vld [vmem:[%s437 + $0x10c] sm:$0xf]
        %v4590 = vld [vmem:[%s437 + $0x110] sm:$0xf]
        %v4591 = vld [vmem:[%s437 + $0x114] sm:$0xf]
        %v4592 = vld [vmem:[%s437 + $0x118] sm:$0xf]
        %v4593 = vld [vmem:[%s437 + $0x11c] sm:$0xf]
        %v4594 = vld [vmem:[%s437 + $0x120] sm:$0xf]
        %v4595 = vld [vmem:[%s437 + $0x124] sm:$0xf]
        %v4596 = vld [vmem:[%s437 + $0x128] sm:$0xf]
        %v4597 = vld [vmem:[%s437 + $0x12c] sm:$0xf]
        %v4598 = vld [vmem:[%s437 + $0x130] sm:$0xf]
        %v4599 = vld [vmem:[%s437 + $0x134] sm:$0xf]
        %v4600 = vld [vmem:[%s437 + $0x138] sm:$0xf]
        %v4601 = vld [vmem:[%s437 + $0x13c] sm:$0xf]
        %v4602 = vld [vmem:[%s437 + $0x140] sm:$0xf]
        %v4603 = vld [vmem:[%s437 + $0x144] sm:$0xf]
        %v4604 = vld [vmem:[%s437 + $0x148] sm:$0xf]
        %v4605 = vld [vmem:[%s437 + $0x14c] sm:$0xf]
        %v4606 = vld [vmem:[%s437 + $0x150] sm:$0xf]
        %v4607 = vld [vmem:[%s437 + $0x154] sm:$0xf]
        %v4608 = vld [vmem:[%s437 + $0x158] sm:$0xf]
        %v4609 = vld [vmem:[%s437 + $0x15c] sm:$0xf]
        %v4610 = vld [vmem:[%s437 + $0x160] sm:$0xf]
        %v4611 = vld [vmem:[%s437 + $0x164] sm:$0xf]
        %v4612 = vld [vmem:[%s437 + $0x168] sm:$0xf]
        %v4613 = vld [vmem:[%s437 + $0x16c] sm:$0xf]
        %v4614 = vld [vmem:[%s437 + $0x170] sm:$0xf]
        %v4615 = vld [vmem:[%s437 + $0x174] sm:$0xf]
        %v4616 = vld [vmem:[%s437 + $0x178] sm:$0xf]
        %v4617 = vld [vmem:[%s437 + $0x17c] sm:$0xf]
        %v4618 = vld [vmem:[%s437 + $0x180] sm:$0xf]
        %v4619 = vld [vmem:[%s437 + $0x184] sm:$0xf]
        %v4620 = vld [vmem:[%s437 + $0x188] sm:$0xf]
        %v4621 = vld [vmem:[%s437 + $0x18c] sm:$0xf]
        %v4622 = vld [vmem:[%s437 + $0x190] sm:$0xf]
        %v4623 = vld [vmem:[%s437 + $0x194] sm:$0xf]
        %v4624 = vld [vmem:[%s437 + $0x198] sm:$0xf]
        %v4625 = vld [vmem:[%s437 + $0x19c] sm:$0xf]
        %v4626 = vld [vmem:[%s437 + $0x1a0] sm:$0xf]
        %v4627 = vld [vmem:[%s437 + $0x1a4] sm:$0xf]
        %v4628 = vld [vmem:[%s437 + $0x1a8] sm:$0xf]
        %v4629 = vld [vmem:[%s437 + $0x1ac] sm:$0xf]
        %v4630 = vld [vmem:[%s437 + $0x1b0] sm:$0xf]
        %v4631 = vld [vmem:[%s437 + $0x1b4] sm:$0xf]
        %v4632 = vld [vmem:[%s437 + $0x1b8] sm:$0xf]
        %v4633 = vld [vmem:[%s437 + $0x1bc] sm:$0xf]
        %v4634 = vld [vmem:[%s437 + $0x1c0] sm:$0xf]
        %v4635 = vld [vmem:[%s437 + $0x1c4] sm:$0xf]
        %v4636 = vld [vmem:[%s437 + $0x1c8] sm:$0xf]
        %v4637 = vld [vmem:[%s437 + $0x1cc] sm:$0xf]
        %v4638 = vld [vmem:[%s437 + $0x1d0] sm:$0xf]
        %v4639 = vld [vmem:[%s437 + $0x1d4] sm:$0xf]
        %v4640 = vld [vmem:[%s437 + $0x1d8] sm:$0xf]
        %v4641 = vld [vmem:[%s437 + $0x1dc] sm:$0xf]
        %v4642 = vld [vmem:[%s437 + $0x1e0] sm:$0xf]
        %v4643 = vld [vmem:[%s437 + $0x1e4] sm:$0xf]
        %v4644 = vld [vmem:[%s437 + $0x1e8] sm:$0xf]
        %v4645 = vld [vmem:[%s437 + $0x1ec] sm:$0xf]
        %v4646 = vld [vmem:[%s437 + $0x1f0] sm:$0xf]
        %v4647 = vld [vmem:[%s437 + $0x1f4] sm:$0xf]
        %v4648 = vld [vmem:[%s437 + $0x1f8] sm:$0xf]
        %v4649 = vld [vmem:[%s437 + $0x1fc] sm:$0xf]
        %v4650 = vld [vmem:[%s1 + $0x50] sm:$0xf]
        %v4651 = vld [vmem:[%s1 + $0x54] sm:$0xf]
        %v4652 = vld [vmem:[%s1 + $0x58] sm:$0xf]
        %v4653 = vld [vmem:[%s1 + $0x5c] sm:$0xf]
        %v4654 = vld [vmem:[%s1 + $0x60] sm:$0xf]
        %v4767 = vunpack.c.l.b16 %v4538
        %v4768 = vunpack.c.l.b16 %v4539
        %v4769 = vunpack.c.l.b16 %v4540
        %v4770 = vunpack.c.l.b16 %v4541
        %v4771 = vunpack.c.l.b16 %v4542
        %v4772 = vunpack.c.l.b16 %v4543
        %v4773 = vunpack.c.l.b16 %v4544
        %v4774 = vunpack.c.l.b16 %v4545
        %v4775 = vunpack.c.l.b16 %v4546
        %v4776 = vunpack.c.l.b16 %v4547
        %v4777 = vunpack.c.l.b16 %v4548
        %v4778 = vunpack.c.l.b16 %v4549
        %v4779 = vunpack.c.l.b16 %v4550
        %v4780 = vunpack.c.l.b16 %v4551
        %v4781 = vunpack.c.l.b16 %v4552
        %v4782 = vunpack.c.l.b16 %v4553
        %v4783 = vunpack.c.l.b16 %v4554
        %v4784 = vunpack.c.l.b16 %v4555
        %v4785 = vunpack.c.l.b16 %v4556
        %v4786 = vunpack.c.l.b16 %v4557
        %v4787 = vunpack.c.l.b16 %v4558
        %v4788 = vunpack.c.l.b16 %v4559
        %v4789 = vunpack.c.l.b16 %v4560
        %v4790 = vunpack.c.l.b16 %v4561
        %v4791 = vunpack.c.l.b16 %v4562
        %v4792 = vunpack.c.l.b16 %v4563
        %v4793 = vunpack.c.l.b16 %v4564
        %v4794 = vunpack.c.l.b16 %v4565
        %v4795 = vunpack.c.l.b16 %v4566
        %v4796 = vunpack.c.l.b16 %v4567
        %v4797 = vunpack.c.l.b16 %v4568
        %v4798 = vunpack.c.l.b16 %v4569
        %v4799 = vunpack.c.l.b16 %v4570
        %v4800 = vunpack.c.l.b16 %v4571
        %v4801 = vunpack.c.l.b16 %v4572
        %v4802 = vunpack.c.l.b16 %v4573
        %v4803 = vunpack.c.l.b16 %v4574
        %v4804 = vunpack.c.l.b16 %v4575
        %v4805 = vunpack.c.l.b16 %v4576
        %v4806 = vunpack.c.l.b16 %v4577
        %v4807 = vunpack.c.l.b16 %v4578
        %v4808 = vunpack.c.l.b16 %v4579
        %v4809 = vunpack.c.l.b16 %v4580
        %v4810 = vunpack.c.l.b16 %v4581
        %v4811 = vunpack.c.l.b16 %v4582
        %v4812 = vunpack.c.l.b16 %v4583
        %v4813 = vunpack.c.l.b16 %v4584
        %v4814 = vunpack.c.l.b16 %v4585
        %v4815 = vunpack.c.l.b16 %v4586
        %v4816 = vunpack.c.l.b16 %v4587
        %v4817 = vunpack.c.l.b16 %v4588
        %v4818 = vunpack.c.l.b16 %v4589
        %v4819 = vunpack.c.l.b16 %v4590
        %v4820 = vunpack.c.l.b16 %v4591
        %v4821 = vunpack.c.l.b16 %v4592
        %v4822 = vunpack.c.l.b16 %v4593
        %v4823 = vunpack.c.l.b16 %v4594
        %v4824 = vunpack.c.l.b16 %v4595
        %v4825 = vunpack.c.l.b16 %v4596
        %v4826 = vunpack.c.l.b16 %v4597
        %v4827 = vunpack.c.l.b16 %v4598
        %v4828 = vunpack.c.l.b16 %v4599
        %v4829 = vunpack.c.l.b16 %v4600
        %v4830 = vunpack.c.l.b16 %v4601
        %v4831 = vunpack.c.l.b16 %v4602
        %v4832 = vunpack.c.l.b16 %v4603
        %v4833 = vunpack.c.l.b16 %v4604
        %v4834 = vunpack.c.l.b16 %v4605
        %v4835 = vunpack.c.l.b16 %v4606
        %v4836 = vunpack.c.l.b16 %v4607
        %v4837 = vunpack.c.l.b16 %v4608
        %v4838 = vunpack.c.l.b16 %v4609
        %v4839 = vunpack.c.l.b16 %v4610
        %v4840 = vunpack.c.l.b16 %v4611
        %v4841 = vunpack.c.l.b16 %v4612
        %v4842 = vunpack.c.l.b16 %v4613
        %v4843 = vunpack.c.l.b16 %v4614
        %v4844 = vunpack.c.l.b16 %v4615
        %v4845 = vunpack.c.l.b16 %v4616
        %v4846 = vunpack.c.l.b16 %v4617
        %v4847 = vunpack.c.l.b16 %v4618
        %v4848 = vunpack.c.l.b16 %v4619
        %v4849 = vunpack.c.l.b16 %v4620
        %v4850 = vunpack.c.l.b16 %v4621
        %v4851 = vunpack.c.l.b16 %v4622
        %v4852 = vunpack.c.l.b16 %v4623
        %v4853 = vunpack.c.l.b16 %v4624
        %v4854 = vunpack.c.l.b16 %v4625
        %v4855 = vunpack.c.l.b16 %v4626
        %v4856 = vunpack.c.l.b16 %v4627
        %v4857 = vunpack.c.l.b16 %v4628
        %v4858 = vunpack.c.l.b16 %v4629
        %v4859 = vunpack.c.l.b16 %v4630
        %v4860 = vunpack.c.l.b16 %v4631
        %v4861 = vunpack.c.l.b16 %v4632
        %v4862 = vunpack.c.l.b16 %v4633
        %v4863 = vunpack.c.l.b16 %v4634
        %v4864 = vunpack.c.l.b16 %v4635
        %v4865 = vunpack.c.l.b16 %v4636
        %v4866 = vunpack.c.l.b16 %v4637
        %v4867 = vunpack.c.l.b16 %v4638
        %v4868 = vunpack.c.l.b16 %v4639
        %v4869 = vunpack.c.l.b16 %v4640
        %v4870 = vunpack.c.l.b16 %v4641
        %v4871 = vunpack.c.l.b16 %v4642
        %v4872 = vunpack.c.l.b16 %v4643
        %v4873 = vunpack.c.l.b16 %v4644
        %v4874 = vunpack.c.l.b16 %v4645
        %v4875 = vunpack.c.l.b16 %v4646
        %v4876 = vunpack.c.l.b16 %v4647
        %v4877 = vunpack.c.l.b16 %v4648
        %v4878 = vunpack.c.l.b16 %v4649
        %v4879 = vpack.c.b16 %v4768, %v4767
        %v4880 = vpack.c.b16 %v4770, %v4769
        %v4881 = vpack.c.b16 %v4772, %v4771
        %v4882 = vpack.c.b16 %v4774, %v4773
        %v4883 = vpack.c.b16 %v4776, %v4775
        %v4884 = vpack.c.b16 %v4778, %v4777
        %v4885 = vpack.c.b16 %v4780, %v4779
        %v4886 = vpack.c.b16 %v4782, %v4781
        %v4887 = vpack.c.b16 %v4784, %v4783
        %v4888 = vpack.c.b16 %v4786, %v4785
        %v4889 = vpack.c.b16 %v4788, %v4787
        %v4890 = vpack.c.b16 %v4790, %v4789
        %v4891 = vpack.c.b16 %v4792, %v4791
        %v4892 = vpack.c.b16 %v4794, %v4793
        %v4893 = vpack.c.b16 %v4796, %v4795
        %v4894 = vpack.c.b16 %v4798, %v4797
        %v4895 = vpack.c.b16 %v4800, %v4799
        %v4896 = vpack.c.b16 %v4802, %v4801
        %v4897 = vpack.c.b16 %v4804, %v4803
        %v4898 = vpack.c.b16 %v4806, %v4805
        %v4899 = vpack.c.b16 %v4808, %v4807
        %v4900 = vpack.c.b16 %v4810, %v4809
        %v4901 = vpack.c.b16 %v4812, %v4811
        %v4902 = vpack.c.b16 %v4814, %v4813
        %v4903 = vpack.c.b16 %v4816, %v4815
        %v4904 = vpack.c.b16 %v4818, %v4817
        %v4905 = vpack.c.b16 %v4820, %v4819
        %v4906 = vpack.c.b16 %v4822, %v4821
        %v4907 = vpack.c.b16 %v4824, %v4823
        %v4908 = vpack.c.b16 %v4826, %v4825
        %v4909 = vpack.c.b16 %v4828, %v4827
        %v4910 = vpack.c.b16 %v4830, %v4829
        %v4911 = vpack.c.b16 %v4832, %v4831
        %v4912 = vpack.c.b16 %v4834, %v4833
        %v4913 = vpack.c.b16 %v4836, %v4835
        %v4914 = vpack.c.b16 %v4838, %v4837
        %v4915 = vpack.c.b16 %v4840, %v4839
        %v4916 = vpack.c.b16 %v4842, %v4841
        %v4917 = vpack.c.b16 %v4844, %v4843
        %v4918 = vpack.c.b16 %v4846, %v4845
        %v4919 = vpack.c.b16 %v4848, %v4847
        %v4920 = vpack.c.b16 %v4850, %v4849
        %v4921 = vpack.c.b16 %v4852, %v4851
        %v4922 = vpack.c.b16 %v4854, %v4853
        %v4923 = vpack.c.b16 %v4856, %v4855
        %v4924 = vpack.c.b16 %v4858, %v4857
        %v4925 = vpack.c.b16 %v4860, %v4859
        %v4926 = vpack.c.b16 %v4862, %v4861
        %v4927 = vpack.c.b16 %v4864, %v4863
        %v4928 = vpack.c.b16 %v4866, %v4865
        %v4929 = vpack.c.b16 %v4868, %v4867
        %v4930 = vpack.c.b16 %v4870, %v4869
        %v4931 = vpack.c.b16 %v4872, %v4871
        %v4932 = vpack.c.b16 %v4874, %v4873
        %v4933 = vpack.c.b16 %v4876, %v4875
        %v4934 = vpack.c.b16 %v4878, %v4877
        %v4940 = vunpack.c.l.b16 %v4650
        %v4941 = vunpack.c.l.b16 %v4651
        %v4942 = vunpack.c.l.b16 %v4652
        %v4943 = vunpack.c.l.b16 %v4653
        %v4944 = vunpack.c.l.b16 %v4654
        %v4945 = vpack.c.b16 %v4941, %v4940
        %v4946 = vpack.c.b16 %v4943, %v4942
        %v4947 = vpack.c.b16 %v4944, %v4944
        %v4951 = vsel %vm1017, %v4879, 0
        %v4954 = vsel %vm1017, %v4880, 0
        %v4957 = vsel %vm1017, %v4881, 0
        %v4960 = vsel %vm1017, %v4882, 0
        %v4963 = vsel %vm1017, %v4883, 0
        %v4966 = vsel %vm1017, %v4884, 0
        %v4969 = vsel %vm1017, %v4885, 0
        %v4972 = vsel %vm1017, %v4886, 0
        %v4975 = vsel %vm1017, %v4887, 0
        %v4978 = vsel %vm1017, %v4888, 0
        %v4981 = vsel %vm1017, %v4889, 0
        %v4984 = vsel %vm1017, %v4890, 0
        %v4987 = vsel %vm1017, %v4891, 0
        %v4990 = vsel %vm1017, %v4892, 0
        %v4993 = vsel %vm1017, %v4893, 0
        %v4996 = vsel %vm1017, %v4894, 0
        %v4999 = vsel %vm1017, %v4895, 0
        %v5002 = vsel %vm1017, %v4896, 0
        %v5005 = vsel %vm1017, %v4897, 0
        %v5008 = vsel %vm1017, %v4898, 0
        %v5011 = vsel %vm1017, %v4899, 0
        %v5014 = vsel %vm1017, %v4900, 0
        %v5017 = vsel %vm1017, %v4901, 0
        %v5020 = vsel %vm1017, %v4902, 0
        %v5023 = vsel %vm1017, %v4903, 0
        %v5026 = vsel %vm1017, %v4904, 0
        %v5029 = vsel %vm1017, %v4905, 0
        %v5032 = vsel %vm1017, %v4906, 0
        %v5035 = vsel %vm1017, %v4907, 0
        %v5038 = vsel %vm1017, %v4908, 0
        %v5041 = vsel %vm1017, %v4909, 0
        %v5044 = vsel %vm1017, %v4910, 0
        %v5047 = vsel %vm1017, %v4911, 0
        %v5050 = vsel %vm1017, %v4912, 0
        %v5053 = vsel %vm1017, %v4913, 0
        %v5056 = vsel %vm1017, %v4914, 0
        %v5059 = vsel %vm1017, %v4915, 0
        %v5062 = vsel %vm1017, %v4916, 0
        %v5065 = vsel %vm1017, %v4917, 0
        %v5068 = vsel %vm1017, %v4918, 0
        %v5071 = vsel %vm1017, %v4919, 0
        %v5074 = vsel %vm1017, %v4920, 0
        %v5077 = vsel %vm1017, %v4921, 0
        %v5080 = vsel %vm1017, %v4922, 0
        %v5083 = vsel %vm1017, %v4923, 0
        %v5086 = vsel %vm1017, %v4924, 0
        %v5089 = vsel %vm1017, %v4925, 0
        %v5092 = vsel %vm1017, %v4926, 0
        %v5095 = vsel %vm1017, %v4927, 0
        %v5098 = vsel %vm1017, %v4928, 0
        %v5101 = vsel %vm1017, %v4929, 0
        %v5104 = vsel %vm1017, %v4930, 0
        %v5107 = vsel %vm1017, %v4931, 0
        %v5110 = vsel %vm1017, %v4932, 0
        %v5113 = vsel %vm1017, %v4933, 0
        %v5116 = vsel %vm1017, %v4934, 0
        %v5119 = vsel %vm1186, %v4947, 0
        %5121 = vmatprep.subr.bf16.mxu0 0
        %5122 = vmatpush1.bf16.msra.mxu0 %v4945
        %5123 = vmatprep.subr.bf16.mxu0 0
        %5124 = vmatpush1.bf16.msra.mxu0 %v4946
        %5125 = vmatprep.subr.bf16.mxu0 0
        %5126 = vmatpush1.bf16.msra.mxu0 %v5119
        %5127 = vmatprep.subr.bf16.mxu0 0
        %5128 = vmatpush1.bf16.msra.mxu0 0
        %5129 = vmatprep.subr.bf16.mxu0 0
        %5130 = vmatpush1.bf16.msra.mxu0 0
        %5131 = vmatprep.subr.bf16.mxu0 0
        %5132 = vmatpush1.bf16.msra.mxu0 0
        %5133 = vmatprep.subr.bf16.mxu0 0
        %5134 = vmatpush1.bf16.msra.mxu0 0
        %5135 = vmatprep.subr.bf16.mxu0 0
        %5136 = vmatpush1.bf16.msra.mxu0 0
        %5137 = vmatprep.subr.bf16.mxu0 0
        %5138 = vmatpush1.bf16.msra.mxu0 0
        %5139 = vmatprep.subr.bf16.mxu0 0
        %5140 = vmatpush1.bf16.msra.mxu0 0
        %5141 = vmatprep.subr.bf16.mxu0 0
        %5142 = vmatpush1.bf16.msra.mxu0 0
        %5143 = vmatprep.subr.bf16.mxu0 0
        %5144 = vmatpush1.bf16.msra.mxu0 0
        %5145 = vmatprep.subr.bf16.mxu0 0
        %5146 = vmatpush1.bf16.msra.mxu0 0
        %5147 = vmatprep.subr.bf16.mxu0 0
        %5148 = vmatpush1.bf16.msra.mxu0 0
        %5149 = vmatprep.subr.bf16.mxu0 0
        %5150 = vmatpush1.bf16.msra.mxu0 0
        %5151 = vmatprep.subr.bf16.mxu0 0
        %5152 = vmatpush1.bf16.msra.mxu0 0
        %5153 = vmatprep.mubr.bf16.mxu0 0
        %5154 = vmatmul.mubr.bf16.gmra.mrb[0].mxu0 %v4951
        %v5155 = vpop.f32.mrb[0].mxu0
        %v5156 = vadd.f32 0.0, %v5155
        %v5157 = vpop.f32.mrb[0].mxu0
        %v5158 = vpop.f32.mrb[0].mxu0
        %v5159 = vadd.f32 0.0, %v5158
        %v5160 = vpop.f32.mrb[0].mxu0
        %5161 = vmatprep.mubr.bf16.mxu0 0
        %5162 = vmatmul.mubr.bf16.gmra.mrb[0].mxu0 %v4954
        %v5163 = vpop.f32.mrb[0].mxu0
        %v5164 = vadd.f32 0.0, %v5163
        %v5165 = vpop.f32.mrb[0].mxu0
        %v5166 = vpop.f32.mrb[0].mxu0
        %v5167 = vadd.f32 0.0, %v5166
        %v5168 = vpop.f32.mrb[0].mxu0
        %5169 = vmatprep.mubr.bf16.mxu0 0
        %5170 = vmatmul.mubr.bf16.gmra.mrb[0].mxu0 %v4957
        %v5171 = vpop.f32.mrb[0].mxu0
        %v5172 = vadd.f32 0.0, %v5171
        %v5173 = vpop.f32.mrb[0].mxu0
        %v5174 = vpop.f32.mrb[0].mxu0
        %v5175 = vadd.f32 0.0, %v5174
        %v5176 = vpop.f32.mrb[0].mxu0
        %5177 = vmatprep.mubr.bf16.mxu0 0
        %5178 = vmatmul.mubr.bf16.gmra.mrb[0].mxu0 %v4960
        %v5179 = vpop.f32.mrb[0].mxu0
        %v5180 = vadd.f32 0.0, %v5179
        %v5181 = vpop.f32.mrb[0].mxu0
        %v5182 = vpop.f32.mrb[0].mxu0
        %v5183 = vadd.f32 0.0, %v5182
        %v5184 = vpop.f32.mrb[0].mxu0
        %5185 = vmatprep.mubr.bf16.mxu0 0
        %5186 = vmatmul.mubr.bf16.gmra.mrb[0].mxu0 %v4963
        %v5187 = vpop.f32.mrb[0].mxu0
        %v5188 = vadd.f32 0.0, %v5187
        %v5189 = vpop.f32.mrb[0].mxu0
        %v5190 = vpop.f32.mrb[0].mxu0
        %v5191 = vadd.f32 0.0, %v5190
        %v5192 = vpop.f32.mrb[0].mxu0
        %5193 = vmatprep.mubr.bf16.mxu0 0
        %5194 = vmatmul.mubr.bf16.gmra.mrb[0].mxu0 %v4966
        %v5195 = vpop.f32.mrb[0].mxu0
        %v5196 = vadd.f32 0.0, %v5195
        %v5197 = vpop.f32.mrb[0].mxu0
        %v5198 = vpop.f32.mrb[0].mxu0
        %v5199 = vadd.f32 0.0, %v5198
        %v5200 = vpop.f32.mrb[0].mxu0
        %5201 = vmatprep.mubr.bf16.mxu0 0
        %5202 = vmatmul.mubr.bf16.gmra.mrb[0].mxu0 %v4969
        %v5203 = vpop.f32.mrb[0].mxu0
        %v5204 = vadd.f32 0.0, %v5203
        %v5205 = vpop.f32.mrb[0].mxu0
        %v5206 = vpop.f32.mrb[0].mxu0
        %v5207 = vadd.f32 0.0, %v5206
        %v5208 = vpop.f32.mrb[0].mxu0
        %5209 = vmatprep.mubr.bf16.mxu0 0
        %5210 = vmatmul.mubr.bf16.gmra.mrb[0].mxu0 %v4972
        %v5211 = vpop.f32.mrb[0].mxu0
        %v5212 = vadd.f32 0.0, %v5211
        %v5213 = vpop.f32.mrb[0].mxu0
        %v5214 = vpop.f32.mrb[0].mxu0
        %v5215 = vadd.f32 0.0, %v5214
        %v5216 = vpop.f32.mrb[0].mxu0
        %5217 = vmatprep.mubr.bf16.mxu0 0
        %5218 = vmatmul.mubr.bf16.gmra.mrb[0].mxu0 %v4975
        %v5219 = vpop.f32.mrb[0].mxu0
        %v5220 = vadd.f32 0.0, %v5219
        %v5221 = vpop.f32.mrb[0].mxu0
        %v5222 = vpop.f32.mrb[0].mxu0
        %v5223 = vadd.f32 0.0, %v5222
        %v5224 = vpop.f32.mrb[0].mxu0
        %5225 = vmatprep.mubr.bf16.mxu0 0
        %5226 = vmatmul.mubr.bf16.gmra.mrb[0].mxu0 %v4978
        %v5227 = vpop.f32.mrb[0].mxu0
        %v5228 = vadd.f32 0.0, %v5227
        %v5229 = vpop.f32.mrb[0].mxu0
        %v5230 = vpop.f32.mrb[0].mxu0
        %v5231 = vadd.f32 0.0, %v5230
        %v5232 = vpop.f32.mrb[0].mxu0
        %5233 = vmatprep.mubr.bf16.mxu0 0
        %5234 = vmatmul.mubr.bf16.gmra.mrb[0].mxu0 %v4981
        %v5235 = vpop.f32.mrb[0].mxu0
        %v5236 = vadd.f32 0.0, %v5235
        %v5237 = vpop.f32.mrb[0].mxu0
        %v5238 = vpop.f32.mrb[0].mxu0
        %v5239 = vadd.f32 0.0, %v5238
        %v5240 = vpop.f32.mrb[0].mxu0
        %5241 = vmatprep.mubr.bf16.mxu0 0
        %5242 = vmatmul.mubr.bf16.gmra.mrb[0].mxu0 %v4984
        %v5243 = vpop.f32.mrb[0].mxu0
        %v5244 = vadd.f32 0.0, %v5243
        %v5245 = vpop.f32.mrb[0].mxu0
        %v5246 = vpop.f32.mrb[0].mxu0
        %v5247 = vadd.f32 0.0, %v5246
        %v5248 = vpop.f32.mrb[0].mxu0
        %5249 = vmatprep.mubr.bf16.mxu0 0
        %5250 = vmatmul.mubr.bf16.gmra.mrb[0].mxu0 %v4987
        %v5251 = vpop.f32.mrb[0].mxu0
        %v5252 = vadd.f32 0.0, %v5251
        %v5253 = vpop.f32.mrb[0].mxu0
        %v5254 = vpop.f32.mrb[0].mxu0
        %v5255 = vadd.f32 0.0, %v5254
        %v5256 = vpop.f32.mrb[0].mxu0
        %5257 = vmatprep.mubr.bf16.mxu0 0
        %5258 = vmatmul.mubr.bf16.gmra.mrb[0].mxu0 %v4990
        %v5259 = vpop.f32.mrb[0].mxu0
        %v5260 = vadd.f32 0.0, %v5259
        %v5261 = vpop.f32.mrb[0].mxu0
        %v5262 = vpop.f32.mrb[0].mxu0
        %v5263 = vadd.f32 0.0, %v5262
        %v5264 = vpop.f32.mrb[0].mxu0
        %5265 = vmatprep.mubr.bf16.mxu0 0
        %5266 = vmatmul.mubr.bf16.gmra.mrb[0].mxu0 %v4993
        %v5267 = vpop.f32.mrb[0].mxu0
        %v5268 = vadd.f32 0.0, %v5267
        %v5269 = vpop.f32.mrb[0].mxu0
        %v5270 = vpop.f32.mrb[0].mxu0
        %v5271 = vadd.f32 0.0, %v5270
        %v5272 = vpop.f32.mrb[0].mxu0
        %5273 = vmatprep.mubr.bf16.mxu0 0
        %5274 = vmatmul.mubr.bf16.gmra.mrb[0].mxu0 %v4996
        %v5275 = vpop.f32.mrb[0].mxu0
        %v5276 = vadd.f32 0.0, %v5275
        %v5277 = vpop.f32.mrb[0].mxu0
        %v5278 = vpop.f32.mrb[0].mxu0
        %v5279 = vadd.f32 0.0, %v5278
        %v5280 = vpop.f32.mrb[0].mxu0
        %5281 = vmatprep.mubr.bf16.mxu0 0
        %5282 = vmatmul.mubr.bf16.gmra.mrb[0].mxu0 %v4999
        %v5283 = vpop.f32.mrb[0].mxu0
        %v5284 = vadd.f32 0.0, %v5283
        %v5285 = vpop.f32.mrb[0].mxu0
        %v5286 = vpop.f32.mrb[0].mxu0
        %v5287 = vadd.f32 0.0, %v5286
        %v5288 = vpop.f32.mrb[0].mxu0
        %5289 = vmatprep.mubr.bf16.mxu0 0
        %5290 = vmatmul.mubr.bf16.gmra.mrb[0].mxu0 %v5002
        %v5291 = vpop.f32.mrb[0].mxu0
        %v5292 = vadd.f32 0.0, %v5291
        %v5293 = vpop.f32.mrb[0].mxu0
        %v5294 = vpop.f32.mrb[0].mxu0
        %v5295 = vadd.f32 0.0, %v5294
        %v5296 = vpop.f32.mrb[0].mxu0
        %5297 = vmatprep.mubr.bf16.mxu0 0
        %5298 = vmatmul.mubr.bf16.gmra.mrb[0].mxu0 %v5005
        %v5299 = vpop.f32.mrb[0].mxu0
        %v5300 = vadd.f32 0.0, %v5299
        %v5301 = vpop.f32.mrb[0].mxu0
        %v5302 = vpop.f32.mrb[0].mxu0
        %v5303 = vadd.f32 0.0, %v5302
        %v5304 = vpop.f32.mrb[0].mxu0
        %5305 = vmatprep.mubr.bf16.mxu0 0
        %5306 = vmatmul.mubr.bf16.gmra.mrb[0].mxu0 %v5008
        %v5307 = vpop.f32.mrb[0].mxu0
        %v5308 = vadd.f32 0.0, %v5307
        %v5309 = vpop.f32.mrb[0].mxu0
        %v5310 = vpop.f32.mrb[0].mxu0
        %v5311 = vadd.f32 0.0, %v5310
        %v5312 = vpop.f32.mrb[0].mxu0
        %5313 = vmatprep.mubr.bf16.mxu0 0
        %5314 = vmatmul.mubr.bf16.gmra.mrb[0].mxu0 %v5011
        %v5315 = vpop.f32.mrb[0].mxu0
        %v5316 = vadd.f32 0.0, %v5315
        %v5317 = vpop.f32.mrb[0].mxu0
        %v5318 = vpop.f32.mrb[0].mxu0
        %v5319 = vadd.f32 0.0, %v5318
        %v5320 = vpop.f32.mrb[0].mxu0
        %5321 = vmatprep.mubr.bf16.mxu0 0
        %5322 = vmatmul.mubr.bf16.gmra.mrb[0].mxu0 %v5014
        %v5323 = vpop.f32.mrb[0].mxu0
        %v5324 = vadd.f32 0.0, %v5323
        %v5325 = vpop.f32.mrb[0].mxu0
        %v5326 = vpop.f32.mrb[0].mxu0
        %v5327 = vadd.f32 0.0, %v5326
        %v5328 = vpop.f32.mrb[0].mxu0
        %5329 = vmatprep.mubr.bf16.mxu0 0
        %5330 = vmatmul.mubr.bf16.gmra.mrb[0].mxu0 %v5017
        %v5331 = vpop.f32.mrb[0].mxu0
        %v5332 = vadd.f32 0.0, %v5331
        %v5333 = vpop.f32.mrb[0].mxu0
        %v5334 = vpop.f32.mrb[0].mxu0
        %v5335 = vadd.f32 0.0, %v5334
        %v5336 = vpop.f32.mrb[0].mxu0
        %5337 = vmatprep.mubr.bf16.mxu0 0
        %5338 = vmatmul.mubr.bf16.gmra.mrb[0].mxu0 %v5020
        %v5339 = vpop.f32.mrb[0].mxu0
        %v5340 = vadd.f32 0.0, %v5339
        %v5341 = vpop.f32.mrb[0].mxu0
        %v5342 = vpop.f32.mrb[0].mxu0
        %v5343 = vadd.f32 0.0, %v5342
        %v5344 = vpop.f32.mrb[0].mxu0
        %5345 = vmatprep.mubr.bf16.mxu0 0
        %5346 = vmatmul.mubr.bf16.gmra.mrb[0].mxu0 %v5023
        %v5347 = vpop.f32.mrb[0].mxu0
        %v5348 = vadd.f32 0.0, %v5347
        %v5349 = vpop.f32.mrb[0].mxu0
        %v5350 = vpop.f32.mrb[0].mxu0
        %v5351 = vadd.f32 0.0, %v5350
        %v5352 = vpop.f32.mrb[0].mxu0
        %5353 = vmatprep.mubr.bf16.mxu0 0
        %5354 = vmatmul.mubr.bf16.gmra.mrb[0].mxu0 %v5026
        %v5355 = vpop.f32.mrb[0].mxu0
        %v5356 = vadd.f32 0.0, %v5355
        %v5357 = vpop.f32.mrb[0].mxu0
        %v5358 = vpop.f32.mrb[0].mxu0
        %v5359 = vadd.f32 0.0, %v5358
        %v5360 = vpop.f32.mrb[0].mxu0
        %5361 = vmatprep.mubr.bf16.mxu0 0
        %5362 = vmatmul.mubr.bf16.gmra.mrb[0].mxu0 %v5029
        %v5363 = vpop.f32.mrb[0].mxu0
        %v5364 = vadd.f32 0.0, %v5363
        %v5365 = vpop.f32.mrb[0].mxu0
        %v5366 = vpop.f32.mrb[0].mxu0
        %v5367 = vadd.f32 0.0, %v5366
        %v5368 = vpop.f32.mrb[0].mxu0
        %5369 = vmatprep.mubr.bf16.mxu0 0
        %5370 = vmatmul.mubr.bf16.gmra.mrb[0].mxu0 %v5032
        %v5371 = vpop.f32.mrb[0].mxu0
        %v5372 = vadd.f32 0.0, %v5371
        %v5373 = vpop.f32.mrb[0].mxu0
        %v5374 = vpop.f32.mrb[0].mxu0
        %v5375 = vadd.f32 0.0, %v5374
        %v5376 = vpop.f32.mrb[0].mxu0
        %5377 = vmatprep.mubr.bf16.mxu0 0
        %5378 = vmatmul.mubr.bf16.gmra.mrb[0].mxu0 %v5035
        %v5379 = vpop.f32.mrb[0].mxu0
        %v5380 = vadd.f32 0.0, %v5379
        %v5381 = vpop.f32.mrb[0].mxu0
        %v5382 = vpop.f32.mrb[0].mxu0
        %v5383 = vadd.f32 0.0, %v5382
        %v5384 = vpop.f32.mrb[0].mxu0
        %5385 = vmatprep.mubr.bf16.mxu0 0
        %5386 = vmatmul.mubr.bf16.gmra.mrb[0].mxu0 %v5038
        %v5387 = vpop.f32.mrb[0].mxu0
        %v5388 = vadd.f32 0.0, %v5387
        %v5389 = vpop.f32.mrb[0].mxu0
        %v5390 = vpop.f32.mrb[0].mxu0
        %v5391 = vadd.f32 0.0, %v5390
        %v5392 = vpop.f32.mrb[0].mxu0
        %5393 = vmatprep.mubr.bf16.mxu0 0
        %5394 = vmatmul.mubr.bf16.gmra.mrb[0].mxu0 %v5041
        %v5395 = vpop.f32.mrb[0].mxu0
        %v5396 = vadd.f32 0.0, %v5395
        %v5397 = vpop.f32.mrb[0].mxu0
        %v5398 = vpop.f32.mrb[0].mxu0
        %v5399 = vadd.f32 0.0, %v5398
        %v5400 = vpop.f32.mrb[0].mxu0
        %5401 = vmatprep.mubr.bf16.mxu0 0
        %5402 = vmatmul.mubr.bf16.gmra.mrb[0].mxu0 %v5044
        %v5403 = vpop.f32.mrb[0].mxu0
        %v5404 = vadd.f32 0.0, %v5403
        %v5405 = vpop.f32.mrb[0].mxu0
        %v5406 = vpop.f32.mrb[0].mxu0
        %v5407 = vadd.f32 0.0, %v5406
        %v5408 = vpop.f32.mrb[0].mxu0
        %5409 = vmatprep.mubr.bf16.mxu0 0
        %5410 = vmatmul.mubr.bf16.gmra.mrb[0].mxu0 %v5047
        %v5411 = vpop.f32.mrb[0].mxu0
        %v5412 = vadd.f32 0.0, %v5411
        %v5413 = vpop.f32.mrb[0].mxu0
        %v5414 = vpop.f32.mrb[0].mxu0
        %v5415 = vadd.f32 0.0, %v5414
        %v5416 = vpop.f32.mrb[0].mxu0
        %5417 = vmatprep.mubr.bf16.mxu0 0
        %5418 = vmatmul.mubr.bf16.gmra.mrb[0].mxu0 %v5050
        %v5419 = vpop.f32.mrb[0].mxu0
        %v5420 = vadd.f32 0.0, %v5419
        %v5421 = vpop.f32.mrb[0].mxu0
        %v5422 = vpop.f32.mrb[0].mxu0
        %v5423 = vadd.f32 0.0, %v5422
        %v5424 = vpop.f32.mrb[0].mxu0
        %5425 = vmatprep.mubr.bf16.mxu0 0
        %5426 = vmatmul.mubr.bf16.gmra.mrb[0].mxu0 %v5053
        %v5427 = vpop.f32.mrb[0].mxu0
        %v5428 = vadd.f32 0.0, %v5427
        %v5429 = vpop.f32.mrb[0].mxu0
        %v5430 = vpop.f32.mrb[0].mxu0
        %v5431 = vadd.f32 0.0, %v5430
        %v5432 = vpop.f32.mrb[0].mxu0
        %5433 = vmatprep.mubr.bf16.mxu0 0
        %5434 = vmatmul.mubr.bf16.gmra.mrb[0].mxu0 %v5056
        %v5435 = vpop.f32.mrb[0].mxu0
        %v5436 = vadd.f32 0.0, %v5435
        %v5437 = vpop.f32.mrb[0].mxu0
        %v5438 = vpop.f32.mrb[0].mxu0
        %v5439 = vadd.f32 0.0, %v5438
        %v5440 = vpop.f32.mrb[0].mxu0
        %5441 = vmatprep.mubr.bf16.mxu0 0
        %5442 = vmatmul.mubr.bf16.gmra.mrb[0].mxu0 %v5059
        %v5443 = vpop.f32.mrb[0].mxu0
        %v5444 = vadd.f32 0.0, %v5443
        %v5445 = vpop.f32.mrb[0].mxu0
        %v5446 = vpop.f32.mrb[0].mxu0
        %v5447 = vadd.f32 0.0, %v5446
        %v5448 = vpop.f32.mrb[0].mxu0
        %5449 = vmatprep.mubr.bf16.mxu0 0
        %5450 = vmatmul.mubr.bf16.gmra.mrb[0].mxu0 %v5062
        %v5451 = vpop.f32.mrb[0].mxu0
        %v5452 = vadd.f32 0.0, %v5451
        %v5453 = vpop.f32.mrb[0].mxu0
        %v5454 = vpop.f32.mrb[0].mxu0
        %v5455 = vadd.f32 0.0, %v5454
        %v5456 = vpop.f32.mrb[0].mxu0
        %5457 = vmatprep.mubr.bf16.mxu0 0
        %5458 = vmatmul.mubr.bf16.gmra.mrb[0].mxu0 %v5065
        %v5459 = vpop.f32.mrb[0].mxu0
        %v5460 = vadd.f32 0.0, %v5459
        %v5461 = vpop.f32.mrb[0].mxu0
        %v5462 = vpop.f32.mrb[0].mxu0
        %v5463 = vadd.f32 0.0, %v5462
        %v5464 = vpop.f32.mrb[0].mxu0
        %5465 = vmatprep.mubr.bf16.mxu0 0
        %5466 = vmatmul.mubr.bf16.gmra.mrb[0].mxu0 %v5068
        %v5467 = vpop.f32.mrb[0].mxu0
        %v5468 = vadd.f32 0.0, %v5467
        %v5469 = vpop.f32.mrb[0].mxu0
        %v5470 = vpop.f32.mrb[0].mxu0
        %v5471 = vadd.f32 0.0, %v5470
        %v5472 = vpop.f32.mrb[0].mxu0
        %5473 = vmatprep.mubr.bf16.mxu0 0
        %5474 = vmatmul.mubr.bf16.gmra.mrb[0].mxu0 %v5071
        %v5475 = vpop.f32.mrb[0].mxu0
        %v5476 = vadd.f32 0.0, %v5475
        %v5477 = vpop.f32.mrb[0].mxu0
        %v5478 = vpop.f32.mrb[0].mxu0
        %v5479 = vadd.f32 0.0, %v5478
        %v5480 = vpop.f32.mrb[0].mxu0
        %5481 = vmatprep.mubr.bf16.mxu0 0
        %5482 = vmatmul.mubr.bf16.gmra.mrb[0].mxu0 %v5074
        %v5483 = vpop.f32.mrb[0].mxu0
        %v5484 = vadd.f32 0.0, %v5483
        %v5485 = vpop.f32.mrb[0].mxu0
        %v5486 = vpop.f32.mrb[0].mxu0
        %v5487 = vadd.f32 0.0, %v5486
        %v5488 = vpop.f32.mrb[0].mxu0
        %5489 = vmatprep.mubr.bf16.mxu0 0
        %5490 = vmatmul.mubr.bf16.gmra.mrb[0].mxu0 %v5077
        %v5491 = vpop.f32.mrb[0].mxu0
        %v5492 = vadd.f32 0.0, %v5491
        %v5493 = vpop.f32.mrb[0].mxu0
        %v5494 = vpop.f32.mrb[0].mxu0
        %v5495 = vadd.f32 0.0, %v5494
        %v5496 = vpop.f32.mrb[0].mxu0
        %5497 = vmatprep.mubr.bf16.mxu0 0
        %5498 = vmatmul.mubr.bf16.gmra.mrb[0].mxu0 %v5080
        %v5499 = vpop.f32.mrb[0].mxu0
        %v5500 = vadd.f32 0.0, %v5499
        %v5501 = vpop.f32.mrb[0].mxu0
        %v5502 = vpop.f32.mrb[0].mxu0
        %v5503 = vadd.f32 0.0, %v5502
        %v5504 = vpop.f32.mrb[0].mxu0
        %5505 = vmatprep.mubr.bf16.mxu0 0
        %5506 = vmatmul.mubr.bf16.gmra.mrb[0].mxu0 %v5083
        %v5507 = vpop.f32.mrb[0].mxu0
        %v5508 = vadd.f32 0.0, %v5507
        %v5509 = vpop.f32.mrb[0].mxu0
        %v5510 = vpop.f32.mrb[0].mxu0
        %v5511 = vadd.f32 0.0, %v5510
        %v5512 = vpop.f32.mrb[0].mxu0
        %5513 = vmatprep.mubr.bf16.mxu0 0
        %5514 = vmatmul.mubr.bf16.gmra.mrb[0].mxu0 %v5086
        %v5515 = vpop.f32.mrb[0].mxu0
        %v5516 = vadd.f32 0.0, %v5515
        %v5517 = vpop.f32.mrb[0].mxu0
        %v5518 = vpop.f32.mrb[0].mxu0
        %v5519 = vadd.f32 0.0, %v5518
        %v5520 = vpop.f32.mrb[0].mxu0
        %5521 = vmatprep.mubr.bf16.mxu0 0
        %5522 = vmatmul.mubr.bf16.gmra.mrb[0].mxu0 %v5089
        %v5523 = vpop.f32.mrb[0].mxu0
        %v5524 = vadd.f32 0.0, %v5523
        %v5525 = vpop.f32.mrb[0].mxu0
        %v5526 = vpop.f32.mrb[0].mxu0
        %v5527 = vadd.f32 0.0, %v5526
        %v5528 = vpop.f32.mrb[0].mxu0
        %5529 = vmatprep.mubr.bf16.mxu0 0
        %5530 = vmatmul.mubr.bf16.gmra.mrb[0].mxu0 %v5092
        %v5531 = vpop.f32.mrb[0].mxu0
        %v5532 = vadd.f32 0.0, %v5531
        %v5533 = vpop.f32.mrb[0].mxu0
        %v5534 = vpop.f32.mrb[0].mxu0
        %v5535 = vadd.f32 0.0, %v5534
        %v5536 = vpop.f32.mrb[0].mxu0
        %5537 = vmatprep.mubr.bf16.mxu0 0
        %5538 = vmatmul.mubr.bf16.gmra.mrb[0].mxu0 %v5095
        %v5539 = vpop.f32.mrb[0].mxu0
        %v5540 = vadd.f32 0.0, %v5539
        %v5541 = vpop.f32.mrb[0].mxu0
        %v5542 = vpop.f32.mrb[0].mxu0
        %v5543 = vadd.f32 0.0, %v5542
        %v5544 = vpop.f32.mrb[0].mxu0
        %5545 = vmatprep.mubr.bf16.mxu0 0
        %5546 = vmatmul.mubr.bf16.gmra.mrb[0].mxu0 %v5098
        %v5547 = vpop.f32.mrb[0].mxu0
        %v5548 = vadd.f32 0.0, %v5547
        %v5549 = vpop.f32.mrb[0].mxu0
        %v5550 = vpop.f32.mrb[0].mxu0
        %v5551 = vadd.f32 0.0, %v5550
        %v5552 = vpop.f32.mrb[0].mxu0
        %5553 = vmatprep.mubr.bf16.mxu0 0
        %5554 = vmatmul.mubr.bf16.gmra.mrb[0].mxu0 %v5101
        %v5555 = vpop.f32.mrb[0].mxu0
        %v5556 = vadd.f32 0.0, %v5555
        %v5557 = vpop.f32.mrb[0].mxu0
        %v5558 = vpop.f32.mrb[0].mxu0
        %v5559 = vadd.f32 0.0, %v5558
        %v5560 = vpop.f32.mrb[0].mxu0
        %5561 = vmatprep.mubr.bf16.mxu0 0
        %5562 = vmatmul.mubr.bf16.gmra.mrb[0].mxu0 %v5104
        %v5563 = vpop.f32.mrb[0].mxu0
        %v5564 = vadd.f32 0.0, %v5563
        %v5565 = vpop.f32.mrb[0].mxu0
        %v5566 = vpop.f32.mrb[0].mxu0
        %v5567 = vadd.f32 0.0, %v5566
        %v5568 = vpop.f32.mrb[0].mxu0
        %5569 = vmatprep.mubr.bf16.mxu0 0
        %5570 = vmatmul.mubr.bf16.gmra.mrb[0].mxu0 %v5107
        %v5571 = vpop.f32.mrb[0].mxu0
        %v5572 = vadd.f32 0.0, %v5571
        %v5573 = vpop.f32.mrb[0].mxu0
        %v5574 = vpop.f32.mrb[0].mxu0
        %v5575 = vadd.f32 0.0, %v5574
        %v5576 = vpop.f32.mrb[0].mxu0
        %5577 = vmatprep.mubr.bf16.mxu0 0
        %5578 = vmatmul.mubr.bf16.gmra.mrb[0].mxu0 %v5110
        %v5579 = vpop.f32.mrb[0].mxu0
        %v5580 = vadd.f32 0.0, %v5579
        %v5581 = vpop.f32.mrb[0].mxu0
        %v5582 = vpop.f32.mrb[0].mxu0
        %v5583 = vadd.f32 0.0, %v5582
        %v5584 = vpop.f32.mrb[0].mxu0
        %5585 = vmatprep.mubr.bf16.mxu0 0
        %5586 = vmatmul.mubr.bf16.gmra.mrb[0].mxu0 %v5113
        %v5587 = vpop.f32.mrb[0].mxu0
        %v5588 = vadd.f32 0.0, %v5587
        %v5589 = vpop.f32.mrb[0].mxu0
        %v5590 = vpop.f32.mrb[0].mxu0
        %v5591 = vadd.f32 0.0, %v5590
        %v5592 = vpop.f32.mrb[0].mxu0
        %5593 = vmatprep.mubr.bf16.mxu0 0
        %5594 = vmatmul.mubr.bf16.gmra.mrb[0].mxu0 %v5116
        %v5595 = vpop.f32.mrb[0].mxu0
        %v5596 = vadd.f32 0.0, %v5595
        %v5597 = vpop.f32.mrb[0].mxu0
        %v5598 = vpop.f32.mrb[0].mxu0
        %v5599 = vadd.f32 0.0, %v5598
        %v5600 = vpop.f32.mrb[0].mxu0
        %5601 = vdwg.mxu0
        %v5602 = vadd.f32 %v4426, %v5156
        %v5603 = vadd.f32 %v4427, %v5159
        %v5604 = vadd.f32 %v4428, %v5164
        %v5605 = vadd.f32 %v4429, %v5167
        %v5606 = vadd.f32 %v4430, %v5172
        %v5607 = vadd.f32 %v4431, %v5175
        %v5608 = vadd.f32 %v4432, %v5180
        %v5609 = vadd.f32 %v4433, %v5183
        %v5610 = vadd.f32 %v4434, %v5188
        %v5611 = vadd.f32 %v4435, %v5191
        %v5612 = vadd.f32 %v4436, %v5196
        %v5613 = vadd.f32 %v4437, %v5199
        %v5614 = vadd.f32 %v4438, %v5204
        %v5615 = vadd.f32 %v4439, %v5207
        %v5616 = vadd.f32 %v4440, %v5212
        %v5617 = vadd.f32 %v4441, %v5215
        %v5618 = vadd.f32 %v4442, %v5220
        %v5619 = vadd.f32 %v4443, %v5223
        %v5620 = vadd.f32 %v4444, %v5228
        %v5621 = vadd.f32 %v4445, %v5231
        %v5622 = vadd.f32 %v4446, %v5236
        %v5623 = vadd.f32 %v4447, %v5239
        %v5624 = vadd.f32 %v4448, %v5244
        %v5625 = vadd.f32 %v4449, %v5247
        %v5626 = vadd.f32 %v4450, %v5252
        %v5627 = vadd.f32 %v4451, %v5255
        %v5628 = vadd.f32 %v4452, %v5260
        %v5629 = vadd.f32 %v4453, %v5263
        %v5630 = vadd.f32 %v4454, %v5268
        %v5631 = vadd.f32 %v4455, %v5271
        %v5632 = vadd.f32 %v4456, %v5276
        %v5633 = vadd.f32 %v4457, %v5279
        %v5634 = vadd.f32 %v4458, %v5284
        %v5635 = vadd.f32 %v4459, %v5287
        %v5636 = vadd.f32 %v4460, %v5292
        %v5637 = vadd.f32 %v4461, %v5295
        %v5638 = vadd.f32 %v4462, %v5300
        %v5639 = vadd.f32 %v4463, %v5303
        %v5640 = vadd.f32 %v4464, %v5308
        %v5641 = vadd.f32 %v4465, %v5311
        %v5642 = vadd.f32 %v4466, %v5316
        %v5643 = vadd.f32 %v4467, %v5319
        %v5644 = vadd.f32 %v4468, %v5324
        %v5645 = vadd.f32 %v4469, %v5327
        %v5646 = vadd.f32 %v4470, %v5332
        %v5647 = vadd.f32 %v4471, %v5335
        %v5648 = vadd.f32 %v4472, %v5340
        %v5649 = vadd.f32 %v4473, %v5343
        %v5650 = vadd.f32 %v4474, %v5348
        %v5651 = vadd.f32 %v4475, %v5351
        %v5652 = vadd.f32 %v4476, %v5356
        %v5653 = vadd.f32 %v4477, %v5359
        %v5654 = vadd.f32 %v4478, %v5364
        %v5655 = vadd.f32 %v4479, %v5367
        %v5656 = vadd.f32 %v4480, %v5372
        %v5657 = vadd.f32 %v4481, %v5375
        %v5658 = vadd.f32 %v4482, %v5380
        %v5659 = vadd.f32 %v4483, %v5383
        %v5660 = vadd.f32 %v4484, %v5388
        %v5661 = vadd.f32 %v4485, %v5391
        %v5662 = vadd.f32 %v4486, %v5396
        %v5663 = vadd.f32 %v4487, %v5399
        %v5664 = vadd.f32 %v4488, %v5404
        %v5665 = vadd.f32 %v4489, %v5407
        %v5666 = vadd.f32 %v4490, %v5412
        %v5667 = vadd.f32 %v4491, %v5415
        %v5668 = vadd.f32 %v4492, %v5420
        %v5669 = vadd.f32 %v4493, %v5423
        %v5670 = vadd.f32 %v4494, %v5428
        %v5671 = vadd.f32 %v4495, %v5431
        %v5672 = vadd.f32 %v4496, %v5436
        %v5673 = vadd.f32 %v4497, %v5439
        %v5674 = vadd.f32 %v4498, %v5444
        %v5675 = vadd.f32 %v4499, %v5447
        %v5676 = vadd.f32 %v4500, %v5452
        %v5677 = vadd.f32 %v4501, %v5455
        %v5678 = vadd.f32 %v4502, %v5460
        %v5679 = vadd.f32 %v4503, %v5463
        %v5680 = vadd.f32 %v4504, %v5468
        %v5681 = vadd.f32 %v4505, %v5471
        %v5682 = vadd.f32 %v4506, %v5476
        %v5683 = vadd.f32 %v4507, %v5479
        %v5684 = vadd.f32 %v4508, %v5484
        %v5685 = vadd.f32 %v4509, %v5487
        %v5686 = vadd.f32 %v4510, %v5492
        %v5687 = vadd.f32 %v4511, %v5495
        %v5688 = vadd.f32 %v4512, %v5500
        %v5689 = vadd.f32 %v4513, %v5503
        %v5690 = vadd.f32 %v4514, %v5508
        %v5691 = vadd.f32 %v4515, %v5511
        %v5692 = vadd.f32 %v4516, %v5516
        %v5693 = vadd.f32 %v4517, %v5519
        %v5694 = vadd.f32 %v4518, %v5524
        %v5695 = vadd.f32 %v4519, %v5527
        %v5696 = vadd.f32 %v4520, %v5532
        %v5697 = vadd.f32 %v4521, %v5535
        %v5698 = vadd.f32 %v4522, %v5540
        %v5699 = vadd.f32 %v4523, %v5543
        %v5700 = vadd.f32 %v4524, %v5548
        %v5701 = vadd.f32 %v4525, %v5551
        %v5702 = vadd.f32 %v4526, %v5556
        %v5703 = vadd.f32 %v4527, %v5559
        %v5704 = vadd.f32 %v4528, %v5564
        %v5705 = vadd.f32 %v4529, %v5567
        %v5706 = vadd.f32 %v4530, %v5572
        %v5707 = vadd.f32 %v4531, %v5575
        %v5708 = vadd.f32 %v4532, %v5580
        %v5709 = vadd.f32 %v4533, %v5583
        %v5710 = vadd.f32 %v4534, %v5588
        %v5711 = vadd.f32 %v4535, %v5591
        %v5712 = vadd.f32 %v4536, %v5596
        %v5713 = vadd.f32 %v4537, %v5599
        %v5715 = vlaneseq
        %v5716 = vshrl.u32 %v5715, 7
        %v5717 = vsub.s32 0, %v5716
        %v5718 = vrot.slane %v439, %v5717
        %v5720 = vadd.f32 %v5602, %v5718
        %v5721 = vadd.f32 %v5603, %v5718
        %v5722 = vadd.f32 %v5604, %v5718
        %v5723 = vadd.f32 %v5605, %v5718
        %v5724 = vadd.f32 %v5606, %v5718
        %v5725 = vadd.f32 %v5607, %v5718
        %v5726 = vadd.f32 %v5608, %v5718
        %v5727 = vadd.f32 %v5609, %v5718
        %v5728 = vadd.f32 %v5610, %v5718
        %v5729 = vadd.f32 %v5611, %v5718
        %v5730 = vadd.f32 %v5612, %v5718
        %v5731 = vadd.f32 %v5613, %v5718
        %v5732 = vadd.f32 %v5614, %v5718
        %v5733 = vadd.f32 %v5615, %v5718
        %v5734 = vadd.f32 %v5616, %v5718
        %v5735 = vadd.f32 %v5617, %v5718
        %v5736 = vadd.f32 %v5618, %v5718
        %v5737 = vadd.f32 %v5619, %v5718
        %v5738 = vadd.f32 %v5620, %v5718
        %v5739 = vadd.f32 %v5621, %v5718
        %v5740 = vadd.f32 %v5622, %v5718
        %v5741 = vadd.f32 %v5623, %v5718
        %v5742 = vadd.f32 %v5624, %v5718
        %v5743 = vadd.f32 %v5625, %v5718
        %v5744 = vadd.f32 %v5626, %v5718
        %v5745 = vadd.f32 %v5627, %v5718
        %v5746 = vadd.f32 %v5628, %v5718
        %v5747 = vadd.f32 %v5629, %v5718
        %v5748 = vadd.f32 %v5630, %v5718
        %v5749 = vadd.f32 %v5631, %v5718
        %v5750 = vadd.f32 %v5632, %v5718
        %v5751 = vadd.f32 %v5633, %v5718
        %v5752 = vadd.f32 %v5634, %v5718
        %v5753 = vadd.f32 %v5635, %v5718
        %v5754 = vadd.f32 %v5636, %v5718
        %v5755 = vadd.f32 %v5637, %v5718
        %v5756 = vadd.f32 %v5638, %v5718
        %v5757 = vadd.f32 %v5639, %v5718
        %v5758 = vadd.f32 %v5640, %v5718
        %v5759 = vadd.f32 %v5641, %v5718
        %v5760 = vadd.f32 %v5642, %v5718
        %v5761 = vadd.f32 %v5643, %v5718
        %v5762 = vadd.f32 %v5644, %v5718
        %v5763 = vadd.f32 %v5645, %v5718
        %v5764 = vadd.f32 %v5646, %v5718
        %v5765 = vadd.f32 %v5647, %v5718
        %v5766 = vadd.f32 %v5648, %v5718
        %v5767 = vadd.f32 %v5649, %v5718
        %v5768 = vadd.f32 %v5650, %v5718
        %v5769 = vadd.f32 %v5651, %v5718
        %v5770 = vadd.f32 %v5652, %v5718
        %v5771 = vadd.f32 %v5653, %v5718
        %v5772 = vadd.f32 %v5654, %v5718
        %v5773 = vadd.f32 %v5655, %v5718
        %v5774 = vadd.f32 %v5656, %v5718
        %v5775 = vadd.f32 %v5657, %v5718
        %v5776 = vadd.f32 %v5658, %v5718
        %v5777 = vadd.f32 %v5659, %v5718
        %v5778 = vadd.f32 %v5660, %v5718
        %v5779 = vadd.f32 %v5661, %v5718
        %v5780 = vadd.f32 %v5662, %v5718
        %v5781 = vadd.f32 %v5663, %v5718
        %v5782 = vadd.f32 %v5664, %v5718
        %v5783 = vadd.f32 %v5665, %v5718
        %v5784 = vadd.f32 %v5666, %v5718
        %v5785 = vadd.f32 %v5667, %v5718
        %v5786 = vadd.f32 %v5668, %v5718
        %v5787 = vadd.f32 %v5669, %v5718
        %v5788 = vadd.f32 %v5670, %v5718
        %v5789 = vadd.f32 %v5671, %v5718
        %v5790 = vadd.f32 %v5672, %v5718
        %v5791 = vadd.f32 %v5673, %v5718
        %v5792 = vadd.f32 %v5674, %v5718
        %v5793 = vadd.f32 %v5675, %v5718
        %v5794 = vadd.f32 %v5676, %v5718
        %v5795 = vadd.f32 %v5677, %v5718
        %v5796 = vadd.f32 %v5678, %v5718
        %v5797 = vadd.f32 %v5679, %v5718
        %v5798 = vadd.f32 %v5680, %v5718
        %v5799 = vadd.f32 %v5681, %v5718
        %v5800 = vadd.f32 %v5682, %v5718
        %v5801 = vadd.f32 %v5683, %v5718
        %v5802 = vadd.f32 %v5684, %v5718
        %v5803 = vadd.f32 %v5685, %v5718
        %v5804 = vadd.f32 %v5686, %v5718
        %v5805 = vadd.f32 %v5687, %v5718
        %v5806 = vadd.f32 %v5688, %v5718
        %v5807 = vadd.f32 %v5689, %v5718
        %v5808 = vadd.f32 %v5690, %v5718
        %v5809 = vadd.f32 %v5691, %v5718
        %v5810 = vadd.f32 %v5692, %v5718
        %v5811 = vadd.f32 %v5693, %v5718
        %v5812 = vadd.f32 %v5694, %v5718
        %v5813 = vadd.f32 %v5695, %v5718
        %v5814 = vadd.f32 %v5696, %v5718
        %v5815 = vadd.f32 %v5697, %v5718
        %v5816 = vadd.f32 %v5698, %v5718
        %v5817 = vadd.f32 %v5699, %v5718
        %v5818 = vadd.f32 %v5700, %v5718
        %v5819 = vadd.f32 %v5701, %v5718
        %v5820 = vadd.f32 %v5702, %v5718
        %v5821 = vadd.f32 %v5703, %v5718
        %v5822 = vadd.f32 %v5704, %v5718
        %v5823 = vadd.f32 %v5705, %v5718
        %v5824 = vadd.f32 %v5706, %v5718
        %v5825 = vadd.f32 %v5707, %v5718
        %v5826 = vadd.f32 %v5708, %v5718
        %v5827 = vadd.f32 %v5709, %v5718
        %v5828 = vadd.f32 %v5710, %v5718
        %v5829 = vadd.f32 %v5711, %v5718
        %v5830 = vadd.f32 %v5712, %v5718
        %v5831 = vadd.f32 %v5713, %v5718
        %v5832 = vtanh.pop %v5720
        %v5833 = vtanh.pop %v5721
        %v5834 = vtanh.pop %v5722
        %v5835 = vtanh.pop %v5723
        %v5836 = vtanh.pop %v5724
        %v5837 = vtanh.pop %v5725
        %v5838 = vtanh.pop %v5726
        %v5839 = vtanh.pop %v5727
        %v5840 = vtanh.pop %v5728
        %v5841 = vtanh.pop %v5729
        %v5842 = vtanh.pop %v5730
        %v5843 = vtanh.pop %v5731
        %v5844 = vtanh.pop %v5732
        %v5845 = vtanh.pop %v5733
        %v5846 = vtanh.pop %v5734
        %v5847 = vtanh.pop %v5735
        %v5848 = vtanh.pop %v5736
        %v5849 = vtanh.pop %v5737
        %v5850 = vtanh.pop %v5738
        %v5851 = vtanh.pop %v5739
        %v5852 = vtanh.pop %v5740
        %v5853 = vtanh.pop %v5741
        %v5854 = vtanh.pop %v5742
        %v5855 = vtanh.pop %v5743
        %v5856 = vtanh.pop %v5744
        %v5857 = vtanh.pop %v5745
        %v5858 = vtanh.pop %v5746
        %v5859 = vtanh.pop %v5747
        %v5860 = vtanh.pop %v5748
        %v5861 = vtanh.pop %v5749
        %v5862 = vtanh.pop %v5750
        %v5863 = vtanh.pop %v5751
        %v5864 = vtanh.pop %v5752
        %v5865 = vtanh.pop %v5753
        %v5866 = vtanh.pop %v5754
        %v5867 = vtanh.pop %v5755
        %v5868 = vtanh.pop %v5756
        %v5869 = vtanh.pop %v5757
        %v5870 = vtanh.pop %v5758
        %v5871 = vtanh.pop %v5759
        %v5872 = vtanh.pop %v5760
        %v5873 = vtanh.pop %v5761
        %v5874 = vtanh.pop %v5762
        %v5875 = vtanh.pop %v5763
        %v5876 = vtanh.pop %v5764
        %v5877 = vtanh.pop %v5765
        %v5878 = vtanh.pop %v5766
        %v5879 = vtanh.pop %v5767
        %v5880 = vtanh.pop %v5768
        %v5881 = vtanh.pop %v5769
        %v5882 = vtanh.pop %v5770
        %v5883 = vtanh.pop %v5771
        %v5884 = vtanh.pop %v5772
        %v5885 = vtanh.pop %v5773
        %v5886 = vtanh.pop %v5774
        %v5887 = vtanh.pop %v5775
        %v5888 = vtanh.pop %v5776
        %v5889 = vtanh.pop %v5777
        %v5890 = vtanh.pop %v5778
        %v5891 = vtanh.pop %v5779
        %v5892 = vtanh.pop %v5780
        %v5893 = vtanh.pop %v5781
        %v5894 = vtanh.pop %v5782
        %v5895 = vtanh.pop %v5783
        %v5896 = vtanh.pop %v5784
        %v5897 = vtanh.pop %v5785
        %v5898 = vtanh.pop %v5786
        %v5899 = vtanh.pop %v5787
        %v5900 = vtanh.pop %v5788
        %v5901 = vtanh.pop %v5789
        %v5902 = vtanh.pop %v5790
        %v5903 = vtanh.pop %v5791
        %v5904 = vtanh.pop %v5792
        %v5905 = vtanh.pop %v5793
        %v5906 = vtanh.pop %v5794
        %v5907 = vtanh.pop %v5795
        %v5908 = vtanh.pop %v5796
        %v5909 = vtanh.pop %v5797
        %v5910 = vtanh.pop %v5798
        %v5911 = vtanh.pop %v5799
        %v5912 = vtanh.pop %v5800
        %v5913 = vtanh.pop %v5801
        %v5914 = vtanh.pop %v5802
        %v5915 = vtanh.pop %v5803
        %v5916 = vtanh.pop %v5804
        %v5917 = vtanh.pop %v5805
        %v5918 = vtanh.pop %v5806
        %v5919 = vtanh.pop %v5807
        %v5920 = vtanh.pop %v5808
        %v5921 = vtanh.pop %v5809
        %v5922 = vtanh.pop %v5810
        %v5923 = vtanh.pop %v5811
        %v5924 = vtanh.pop %v5812
        %v5925 = vtanh.pop %v5813
        %v5926 = vtanh.pop %v5814
        %v5927 = vtanh.pop %v5815
        %v5928 = vtanh.pop %v5816
        %v5929 = vtanh.pop %v5817
        %v5930 = vtanh.pop %v5818
        %v5931 = vtanh.pop %v5819
        %v5932 = vtanh.pop %v5820
        %v5933 = vtanh.pop %v5821
        %v5934 = vtanh.pop %v5822
        %v5935 = vtanh.pop %v5823
        %v5936 = vtanh.pop %v5824
        %v5937 = vtanh.pop %v5825
        %v5938 = vtanh.pop %v5826
        %v5939 = vtanh.pop %v5827
        %v5940 = vtanh.pop %v5828
        %v5941 = vtanh.pop %v5829
        %v5942 = vtanh.pop %v5830
        %v5943 = vtanh.pop %v5831
        %v5944 = vpack.c.bf16 %v5833, %v5832
        %v5945 = vpack.c.bf16 %v5835, %v5834
        %v5946 = vpack.c.bf16 %v5837, %v5836
        %v5947 = vpack.c.bf16 %v5839, %v5838
        %v5948 = vpack.c.bf16 %v5841, %v5840
        %v5949 = vpack.c.bf16 %v5843, %v5842
        %v5950 = vpack.c.bf16 %v5845, %v5844
        %v5951 = vpack.c.bf16 %v5847, %v5846
        %v5952 = vpack.c.bf16 %v5849, %v5848
        %v5953 = vpack.c.bf16 %v5851, %v5850
        %v5954 = vpack.c.bf16 %v5853, %v5852
        %v5955 = vpack.c.bf16 %v5855, %v5854
        %v5956 = vpack.c.bf16 %v5857, %v5856
        %v5957 = vpack.c.bf16 %v5859, %v5858
        %v5958 = vpack.c.bf16 %v5861, %v5860
        %v5959 = vpack.c.bf16 %v5863, %v5862
        %v5960 = vpack.c.bf16 %v5865, %v5864
        %v5961 = vpack.c.bf16 %v5867, %v5866
        %v5962 = vpack.c.bf16 %v5869, %v5868
        %v5963 = vpack.c.bf16 %v5871, %v5870
        %v5964 = vpack.c.bf16 %v5873, %v5872
        %v5965 = vpack.c.bf16 %v5875, %v5874
        %v5966 = vpack.c.bf16 %v5877, %v5876
        %v5967 = vpack.c.bf16 %v5879, %v5878
        %v5968 = vpack.c.bf16 %v5881, %v5880
        %v5969 = vpack.c.bf16 %v5883, %v5882
        %v5970 = vpack.c.bf16 %v5885, %v5884
        %v5971 = vpack.c.bf16 %v5887, %v5886
        %v5972 = vpack.c.bf16 %v5889, %v5888
        %v5973 = vpack.c.bf16 %v5891, %v5890
        %v5974 = vpack.c.bf16 %v5893, %v5892
        %v5975 = vpack.c.bf16 %v5895, %v5894
        %v5976 = vpack.c.bf16 %v5897, %v5896
        %v5977 = vpack.c.bf16 %v5899, %v5898
        %v5978 = vpack.c.bf16 %v5901, %v5900
        %v5979 = vpack.c.bf16 %v5903, %v5902
        %v5980 = vpack.c.bf16 %v5905, %v5904
        %v5981 = vpack.c.bf16 %v5907, %v5906
        %v5982 = vpack.c.bf16 %v5909, %v5908
        %v5983 = vpack.c.bf16 %v5911, %v5910
        %v5984 = vpack.c.bf16 %v5913, %v5912
        %v5985 = vpack.c.bf16 %v5915, %v5914
        %v5986 = vpack.c.bf16 %v5917, %v5916
        %v5987 = vpack.c.bf16 %v5919, %v5918
        %v5988 = vpack.c.bf16 %v5921, %v5920
        %v5989 = vpack.c.bf16 %v5923, %v5922
        %v5990 = vpack.c.bf16 %v5925, %v5924
        %v5991 = vpack.c.bf16 %v5927, %v5926
        %v5992 = vpack.c.bf16 %v5929, %v5928
        %v5993 = vpack.c.bf16 %v5931, %v5930
        %v5994 = vpack.c.bf16 %v5933, %v5932
        %v5995 = vpack.c.bf16 %v5935, %v5934
        %v5996 = vpack.c.bf16 %v5937, %v5936
        %v5997 = vpack.c.bf16 %v5939, %v5938
        %v5998 = vpack.c.bf16 %v5941, %v5940
        %v5999 = vpack.c.bf16 %v5943, %v5942
        %v6116 = vunpack.c.l.b16 %v441
        %v6117 = vunpack.c.h.b16 %v441
        %v6118 = vunpack.c.l.b16 %v442
        %v6119 = vunpack.c.h.b16 %v442
        %v6120 = vunpack.c.l.b16 %v443
        %v6121 = vunpack.c.h.b16 %v443
        %v6122 = vunpack.c.l.b16 %v444
        %v6123 = vunpack.c.l.b16 %v445
        %v6124 = vunpack.c.h.b16 %v445
        %v6125 = vunpack.c.l.b16 %v446
        %v6126 = vunpack.c.h.b16 %v446
        %v6127 = vunpack.c.l.b16 %v447
        %v6128 = vunpack.c.h.b16 %v447
        %v6129 = vunpack.c.l.b16 %v448
        %v6130 = vunpack.c.l.b16 %v449
        %v6131 = vunpack.c.h.b16 %v449
        %v6132 = vunpack.c.l.b16 %v450
        %v6133 = vunpack.c.h.b16 %v450
        %v6134 = vunpack.c.l.b16 %v451
        %v6135 = vunpack.c.h.b16 %v451
        %v6136 = vunpack.c.l.b16 %v452
        %v6137 = vunpack.c.l.b16 %v453
        %v6138 = vunpack.c.h.b16 %v453
        %v6139 = vunpack.c.l.b16 %v454
        %v6140 = vunpack.c.h.b16 %v454
        %v6141 = vunpack.c.l.b16 %v455
        %v6142 = vunpack.c.h.b16 %v455
        %v6143 = vunpack.c.l.b16 %v456
        %v6144 = vunpack.c.l.b16 %v457
        %v6145 = vunpack.c.h.b16 %v457
        %v6146 = vunpack.c.l.b16 %v458
        %v6147 = vunpack.c.h.b16 %v458
        %v6148 = vunpack.c.l.b16 %v459
        %v6149 = vunpack.c.h.b16 %v459
        %v6150 = vunpack.c.l.b16 %v460
        %v6151 = vunpack.c.l.b16 %v461
        %v6152 = vunpack.c.h.b16 %v461
        %v6153 = vunpack.c.l.b16 %v462
        %v6154 = vunpack.c.h.b16 %v462
        %v6155 = vunpack.c.l.b16 %v463
        %v6156 = vunpack.c.h.b16 %v463
        %v6157 = vunpack.c.l.b16 %v464
        %v6158 = vunpack.c.l.b16 %v465
        %v6159 = vunpack.c.h.b16 %v465
        %v6160 = vunpack.c.l.b16 %v466
        %v6161 = vunpack.c.h.b16 %v466
        %v6162 = vunpack.c.l.b16 %v467
        %v6163 = vunpack.c.h.b16 %v467
        %v6164 = vunpack.c.l.b16 %v468
        %v6165 = vunpack.c.l.b16 %v469
        %v6166 = vunpack.c.h.b16 %v469
        %v6167 = vunpack.c.l.b16 %v470
        %v6168 = vunpack.c.h.b16 %v470
        %v6169 = vunpack.c.l.b16 %v471
        %v6170 = vunpack.c.h.b16 %v471
        %v6171 = vunpack.c.l.b16 %v472
        %v6172 = vunpack.c.l.b16 %v473
        %v6173 = vunpack.c.h.b16 %v473
        %v6174 = vunpack.c.l.b16 %v474
        %v6175 = vunpack.c.h.b16 %v474
        %v6176 = vunpack.c.l.b16 %v475
        %v6177 = vunpack.c.h.b16 %v475
        %v6178 = vunpack.c.l.b16 %v476
        %v6179 = vunpack.c.l.b16 %v477
        %v6180 = vunpack.c.h.b16 %v477
        %v6181 = vunpack.c.l.b16 %v478
        %v6182 = vunpack.c.h.b16 %v478
        %v6183 = vunpack.c.l.b16 %v479
        %v6184 = vunpack.c.h.b16 %v479
        %v6185 = vunpack.c.l.b16 %v480
        %v6186 = vunpack.c.l.b16 %v481
        %v6187 = vunpack.c.h.b16 %v481
        %v6188 = vunpack.c.l.b16 %v482
        %v6189 = vunpack.c.h.b16 %v482
        %v6190 = vunpack.c.l.b16 %v483
        %v6191 = vunpack.c.h.b16 %v483
        %v6192 = vunpack.c.l.b16 %v484
        %v6193 = vunpack.c.l.b16 %v485
        %v6194 = vunpack.c.h.b16 %v485
        %v6195 = vunpack.c.l.b16 %v486
        %v6196 = vunpack.c.h.b16 %v486
        %v6197 = vunpack.c.l.b16 %v487
        %v6198 = vunpack.c.h.b16 %v487
        %v6199 = vunpack.c.l.b16 %v488
        %v6200 = vunpack.c.l.b16 %v489
        %v6201 = vunpack.c.h.b16 %v489
        %v6202 = vunpack.c.l.b16 %v490
        %v6203 = vunpack.c.h.b16 %v490
        %v6204 = vunpack.c.l.b16 %v491
        %v6205 = vunpack.c.h.b16 %v491
        %v6206 = vunpack.c.l.b16 %v492
        %v6207 = vunpack.c.l.b16 %v493
        %v6208 = vunpack.c.h.b16 %v493
        %v6209 = vunpack.c.l.b16 %v494
        %v6210 = vunpack.c.h.b16 %v494
        %v6211 = vunpack.c.l.b16 %v495
        %v6212 = vunpack.c.h.b16 %v495
        %v6213 = vunpack.c.l.b16 %v496
        %v6214 = vunpack.c.l.b16 %v497
        %v6215 = vunpack.c.h.b16 %v497
        %v6216 = vunpack.c.l.b16 %v498
        %v6217 = vunpack.c.h.b16 %v498
        %v6218 = vunpack.c.l.b16 %v499
        %v6219 = vunpack.c.h.b16 %v499
        %v6220 = vunpack.c.l.b16 %v500
        %v6221 = vunpack.c.l.b16 %v501
        %v6222 = vunpack.c.h.b16 %v501
        %v6223 = vunpack.c.l.b16 %v502
        %v6224 = vunpack.c.h.b16 %v502
        %v6225 = vunpack.c.l.b16 %v503
        %v6226 = vunpack.c.h.b16 %v503
        %v6227 = vunpack.c.l.b16 %v504
        %v6228 = vunpack.c.l.b16 %v505
        %v6229 = vunpack.c.h.b16 %v505
        %v6230 = vunpack.c.l.b16 %v506
        %v6231 = vunpack.c.h.b16 %v506
        %v6232 = vunpack.c.l.b16 %v507
        %v6233 = vunpack.c.h.b16 %v507
        %v6234 = vunpack.c.l.b16 %v508
        %v6235 = vunpack.c.l.b16 %v509
        %v6236 = vunpack.c.h.b16 %v509
        %v6237 = vunpack.c.l.b16 %v510
        %v6238 = vunpack.c.h.b16 %v510
        %v6239 = vunpack.c.l.b16 %v511
        %v6240 = vunpack.c.h.b16 %v511
        %v6241 = vunpack.c.l.b16 %v512
        %v6242 = vunpack.c.l.b16 %v513
        %v6243 = vunpack.c.h.b16 %v513
        %v6244 = vunpack.c.l.b16 %v514
        %v6245 = vunpack.c.h.b16 %v514
        %v6246 = vunpack.c.l.b16 %v515
        %v6247 = vunpack.c.h.b16 %v515
        %v6248 = vunpack.c.l.b16 %v516
        %v6249 = vunpack.c.l.b16 %v517
        %v6250 = vunpack.c.h.b16 %v517
        %v6251 = vunpack.c.l.b16 %v518
        %v6252 = vunpack.c.h.b16 %v518
        %v6253 = vunpack.c.l.b16 %v519
        %v6254 = vunpack.c.h.b16 %v519
        %v6255 = vunpack.c.l.b16 %v520
        %v6256 = vunpack.c.l.b16 %v521
        %v6257 = vunpack.c.h.b16 %v521
        %v6258 = vunpack.c.l.b16 %v522
        %v6259 = vunpack.c.h.b16 %v522
        %v6260 = vunpack.c.l.b16 %v523
        %v6261 = vunpack.c.h.b16 %v523
        %v6262 = vunpack.c.l.b16 %v524
        %v6263 = vunpack.c.l.b16 %v525
        %v6264 = vunpack.c.h.b16 %v525
        %v6265 = vunpack.c.l.b16 %v526
        %v6266 = vunpack.c.h.b16 %v526
        %v6267 = vunpack.c.l.b16 %v527
        %v6268 = vunpack.c.h.b16 %v527
        %v6269 = vunpack.c.l.b16 %v528
        %v6270 = vunpack.c.l.b16 %v529
        %v6271 = vunpack.c.h.b16 %v529
        %v6272 = vunpack.c.l.b16 %v530
        %v6273 = vunpack.c.h.b16 %v530
        %v6274 = vunpack.c.l.b16 %v531
        %v6275 = vunpack.c.h.b16 %v531
        %v6276 = vunpack.c.l.b16 %v532
        %v6277 = vunpack.c.l.b16 %v533
        %v6278 = vunpack.c.h.b16 %v533
        %v6279 = vunpack.c.l.b16 %v534
        %v6280 = vunpack.c.h.b16 %v534
        %v6281 = vunpack.c.l.b16 %v535
        %v6282 = vunpack.c.h.b16 %v535
        %v6283 = vunpack.c.l.b16 %v536
        %v6284 = vunpack.c.l.b16 %v537
        %v6285 = vunpack.c.h.b16 %v537
        %v6286 = vunpack.c.l.b16 %v538
        %v6287 = vunpack.c.h.b16 %v538
        %v6288 = vunpack.c.l.b16 %v539
        %v6289 = vunpack.c.h.b16 %v539
        %v6290 = vunpack.c.l.b16 %v540
        %v6291 = vunpack.c.l.b16 %v541
        %v6292 = vunpack.c.h.b16 %v541
        %v6293 = vunpack.c.l.b16 %v542
        %v6294 = vunpack.c.h.b16 %v542
        %v6295 = vunpack.c.l.b16 %v543
        %v6296 = vunpack.c.h.b16 %v543
        %v6297 = vunpack.c.l.b16 %v544
        %v6298 = vunpack.c.l.b16 %v545
        %v6299 = vunpack.c.h.b16 %v545
        %v6300 = vunpack.c.l.b16 %v546
        %v6301 = vunpack.c.h.b16 %v546
        %v6302 = vunpack.c.l.b16 %v547
        %v6303 = vunpack.c.h.b16 %v547
        %v6304 = vunpack.c.l.b16 %v548
        %v6305 = vunpack.c.l.b16 %v549
        %v6306 = vunpack.c.h.b16 %v549
        %v6307 = vunpack.c.l.b16 %v550
        %v6308 = vunpack.c.h.b16 %v550
        %v6309 = vunpack.c.l.b16 %v551
        %v6310 = vunpack.c.h.b16 %v551
        %v6311 = vunpack.c.l.b16 %v552
        %v6312 = vunpack.c.l.b16 %v553
        %v6313 = vunpack.c.h.b16 %v553
        %v6314 = vunpack.c.l.b16 %v554
        %v6315 = vunpack.c.h.b16 %v554
        %v6316 = vunpack.c.l.b16 %v555
        %v6317 = vunpack.c.h.b16 %v555
        %v6318 = vunpack.c.l.b16 %v556
        %v6319 = vpack.c.b16 %v6123, %v6116
        %v6320 = vpack.c.b16 %v6124, %v6117
        %v6321 = vpack.c.b16 %v6125, %v6118
        %v6322 = vpack.c.b16 %v6126, %v6119
        %v6323 = vpack.c.b16 %v6127, %v6120
        %v6324 = vpack.c.b16 %v6128, %v6121
        %v6325 = vpack.c.b16 %v6129, %v6122
        %v6326 = vpack.c.b16 %v6137, %v6130
        %v6327 = vpack.c.b16 %v6138, %v6131
        %v6328 = vpack.c.b16 %v6139, %v6132
        %v6329 = vpack.c.b16 %v6140, %v6133
        %v6330 = vpack.c.b16 %v6141, %v6134
        %v6331 = vpack.c.b16 %v6142, %v6135
        %v6332 = vpack.c.b16 %v6143, %v6136
        %v6333 = vpack.c.b16 %v6151, %v6144
        %v6334 = vpack.c.b16 %v6152, %v6145
        %v6335 = vpack.c.b16 %v6153, %v6146
        %v6336 = vpack.c.b16 %v6154, %v6147
        %v6337 = vpack.c.b16 %v6155, %v6148
        %v6338 = vpack.c.b16 %v6156, %v6149
        %v6339 = vpack.c.b16 %v6157, %v6150
        %v6340 = vpack.c.b16 %v6165, %v6158
        %v6341 = vpack.c.b16 %v6166, %v6159
        %v6342 = vpack.c.b16 %v6167, %v6160
        %v6343 = vpack.c.b16 %v6168, %v6161
        %v6344 = vpack.c.b16 %v6169, %v6162
        %v6345 = vpack.c.b16 %v6170, %v6163
        %v6346 = vpack.c.b16 %v6171, %v6164
        %v6347 = vpack.c.b16 %v6179, %v6172
        %v6348 = vpack.c.b16 %v6180, %v6173
        %v6349 = vpack.c.b16 %v6181, %v6174
        %v6350 = vpack.c.b16 %v6182, %v6175
        %v6351 = vpack.c.b16 %v6183, %v6176
        %v6352 = vpack.c.b16 %v6184, %v6177
        %v6353 = vpack.c.b16 %v6185, %v6178
        %v6354 = vpack.c.b16 %v6193, %v6186
        %v6355 = vpack.c.b16 %v6194, %v6187
        %v6356 = vpack.c.b16 %v6195, %v6188
        %v6357 = vpack.c.b16 %v6196, %v6189
        %v6358 = vpack.c.b16 %v6197, %v6190
        %v6359 = vpack.c.b16 %v6198, %v6191
        %v6360 = vpack.c.b16 %v6199, %v6192
        %v6361 = vpack.c.b16 %v6207, %v6200
        %v6362 = vpack.c.b16 %v6208, %v6201
        %v6363 = vpack.c.b16 %v6209, %v6202
        %v6364 = vpack.c.b16 %v6210, %v6203
        %v6365 = vpack.c.b16 %v6211, %v6204
        %v6366 = vpack.c.b16 %v6212, %v6205
        %v6367 = vpack.c.b16 %v6213, %v6206
        %v6368 = vpack.c.b16 %v6221, %v6214
        %v6369 = vpack.c.b16 %v6222, %v6215
        %v6370 = vpack.c.b16 %v6223, %v6216
        %v6371 = vpack.c.b16 %v6224, %v6217
        %v6372 = vpack.c.b16 %v6225, %v6218
        %v6373 = vpack.c.b16 %v6226, %v6219
        %v6374 = vpack.c.b16 %v6227, %v6220
        %v6375 = vpack.c.b16 %v6235, %v6228
        %v6376 = vpack.c.b16 %v6236, %v6229
        %v6377 = vpack.c.b16 %v6237, %v6230
        %v6378 = vpack.c.b16 %v6238, %v6231
        %v6379 = vpack.c.b16 %v6239, %v6232
        %v6380 = vpack.c.b16 %v6240, %v6233
        %v6381 = vpack.c.b16 %v6241, %v6234
        %v6382 = vpack.c.b16 %v6249, %v6242
        %v6383 = vpack.c.b16 %v6250, %v6243
        %v6384 = vpack.c.b16 %v6251, %v6244
        %v6385 = vpack.c.b16 %v6252, %v6245
        %v6386 = vpack.c.b16 %v6253, %v6246
        %v6387 = vpack.c.b16 %v6254, %v6247
        %v6388 = vpack.c.b16 %v6255, %v6248
        %v6389 = vpack.c.b16 %v6263, %v6256
        %v6390 = vpack.c.b16 %v6264, %v6257
        %v6391 = vpack.c.b16 %v6265, %v6258
        %v6392 = vpack.c.b16 %v6266, %v6259
        %v6393 = vpack.c.b16 %v6267, %v6260
        %v6394 = vpack.c.b16 %v6268, %v6261
        %v6395 = vpack.c.b16 %v6269, %v6262
        %v6396 = vpack.c.b16 %v6277, %v6270
        %v6397 = vpack.c.b16 %v6278, %v6271
        %v6398 = vpack.c.b16 %v6279, %v6272
        %v6399 = vpack.c.b16 %v6280, %v6273
        %v6400 = vpack.c.b16 %v6281, %v6274
        %v6401 = vpack.c.b16 %v6282, %v6275
        %v6402 = vpack.c.b16 %v6283, %v6276
        %v6403 = vpack.c.b16 %v6291, %v6284
        %v6404 = vpack.c.b16 %v6292, %v6285
        %v6405 = vpack.c.b16 %v6293, %v6286
        %v6406 = vpack.c.b16 %v6294, %v6287
        %v6407 = vpack.c.b16 %v6295, %v6288
        %v6408 = vpack.c.b16 %v6296, %v6289
        %v6409 = vpack.c.b16 %v6297, %v6290
        %v6410 = vpack.c.b16 %v6305, %v6298
        %v6411 = vpack.c.b16 %v6306, %v6299
        %v6412 = vpack.c.b16 %v6307, %v6300
        %v6413 = vpack.c.b16 %v6308, %v6301
        %v6414 = vpack.c.b16 %v6309, %v6302
        %v6415 = vpack.c.b16 %v6310, %v6303
        %v6416 = vpack.c.b16 %v6311, %v6304
        %v6417 = vpack.c.b16 %v6312, %v6312
        %v6418 = vpack.c.b16 %v6313, %v6313
        %v6419 = vpack.c.b16 %v6314, %v6314
        %v6420 = vpack.c.b16 %v6315, %v6315
        %v6421 = vpack.c.b16 %v6316, %v6316
        %v6422 = vpack.c.b16 %v6317, %v6317
        %v6423 = vpack.c.b16 %v6318, %v6318
        %6529 = vmatprep.subr.bf16.mxu0 0
        %6530 = vmatpush1.bf16.msra.mxu0 %v5944
        %6531 = vmatprep.subr.bf16.mxu0 0
        %6532 = vmatpush1.bf16.msra.mxu0 %v5945
        %6533 = vmatprep.subr.bf16.mxu0 0
        %6534 = vmatpush1.bf16.msra.mxu0 %v5946
        %6535 = vmatprep.subr.bf16.mxu0 0
        %6536 = vmatpush1.bf16.msra.mxu0 %v5947
        %6537 = vmatprep.subr.bf16.mxu0 0
        %6538 = vmatpush1.bf16.msra.mxu0 %v5948
        %6539 = vmatprep.subr.bf16.mxu0 0
        %6540 = vmatpush1.bf16.msra.mxu0 %v5949
        %6541 = vmatprep.subr.bf16.mxu0 0
        %6542 = vmatpush1.bf16.msra.mxu0 %v5950
        %6543 = vmatprep.subr.bf16.mxu0 0
        %6544 = vmatpush1.bf16.msra.mxu0 %v5951
        %6545 = vmatprep.subr.bf16.mxu0 0
        %6546 = vmatpush1.bf16.msra.mxu0 %v5952
        %6547 = vmatprep.subr.bf16.mxu0 0
        %6548 = vmatpush1.bf16.msra.mxu0 %v5953
        %6549 = vmatprep.subr.bf16.mxu0 0
        %6550 = vmatpush1.bf16.msra.mxu0 %v5954
        %6551 = vmatprep.subr.bf16.mxu0 0
        %6552 = vmatpush1.bf16.msra.mxu0 %v5955
        %6553 = vmatprep.subr.bf16.mxu0 0
        %6554 = vmatpush1.bf16.msra.mxu0 %v5956
        %6555 = vmatprep.subr.bf16.mxu0 0
        %6556 = vmatpush1.bf16.msra.mxu0 %v5957
        %6557 = vmatprep.subr.bf16.mxu0 0
        %6558 = vmatpush1.bf16.msra.mxu0 %v5958
        %6559 = vmatprep.subr.bf16.mxu0 0
        %6560 = vmatpush1.bf16.msra.mxu0 %v5959
        %6561 = vmatprep.mubr.bf16.mxu0 %v6320
        %6562 = vmatmul.mubr.bf16.gmra.mrb[0].mxu0 %v6319
        %v6563 = vpop.f32.mrb[0].mxu0
        %v6564 = vadd.f32 0.0, %v6563
        %v6565 = vpop.f32.mrb[0].mxu0
        %v6566 = vpop.f32.mrb[0].mxu0
        %v6567 = vadd.f32 0.0, %v6566
        %v6568 = vpop.f32.mrb[0].mxu0
        %6569 = vmatprep.mubr.bf16.mxu0 %v6327
        %6570 = vmatmul.mubr.bf16.gmra.mrb[0].mxu0 %v6326
        %v6571 = vpop.f32.mrb[0].mxu0
        %v6572 = vadd.f32 0.0, %v6571
        %v6573 = vpop.f32.mrb[0].mxu0
        %v6574 = vpop.f32.mrb[0].mxu0
        %v6575 = vadd.f32 0.0, %v6574
        %v6576 = vpop.f32.mrb[0].mxu0
        %6577 = vmatprep.mubr.bf16.mxu0 %v6334
        %6578 = vmatmul.mubr.bf16.gmra.mrb[0].mxu0 %v6333
        %v6579 = vpop.f32.mrb[0].mxu0
        %v6580 = vadd.f32 0.0, %v6579
        %v6581 = vpop.f32.mrb[0].mxu0
        %v6582 = vpop.f32.mrb[0].mxu0
        %v6583 = vadd.f32 0.0, %v6582
        %v6584 = vpop.f32.mrb[0].mxu0
        %6585 = vmatprep.mubr.bf16.mxu0 %v6341
        %6586 = vmatmul.mubr.bf16.gmra.mrb[0].mxu0 %v6340
        %v6587 = vpop.f32.mrb[0].mxu0
        %v6588 = vadd.f32 0.0, %v6587
        %v6589 = vpop.f32.mrb[0].mxu0
        %v6590 = vpop.f32.mrb[0].mxu0
        %v6591 = vadd.f32 0.0, %v6590
        %v6592 = vpop.f32.mrb[0].mxu0
        %6593 = vmatprep.mubr.bf16.mxu0 %v6348
        %6594 = vmatmul.mubr.bf16.gmra.mrb[0].mxu0 %v6347
        %v6595 = vpop.f32.mrb[0].mxu0
        %v6596 = vadd.f32 0.0, %v6595
        %v6597 = vpop.f32.mrb[0].mxu0
        %v6598 = vpop.f32.mrb[0].mxu0
        %v6599 = vadd.f32 0.0, %v6598
        %v6600 = vpop.f32.mrb[0].mxu0
        %6601 = vmatprep.mubr.bf16.mxu0 %v6355
        %6602 = vmatmul.mubr.bf16.gmra.mrb[0].mxu0 %v6354
        %v6603 = vpop.f32.mrb[0].mxu0
        %v6604 = vadd.f32 0.0, %v6603
        %v6605 = vpop.f32.mrb[0].mxu0
        %v6606 = vpop.f32.mrb[0].mxu0
        %v6607 = vadd.f32 0.0, %v6606
        %v6608 = vpop.f32.mrb[0].mxu0
        %6609 = vmatprep.mubr.bf16.mxu0 %v6362
        %6610 = vmatmul.mubr.bf16.gmra.mrb[0].mxu0 %v6361
        %v6611 = vpop.f32.mrb[0].mxu0
        %v6612 = vadd.f32 0.0, %v6611
        %v6613 = vpop.f32.mrb[0].mxu0
        %v6614 = vpop.f32.mrb[0].mxu0
        %v6615 = vadd.f32 0.0, %v6614
        %v6616 = vpop.f32.mrb[0].mxu0
        %6617 = vmatprep.mubr.bf16.mxu0 %v6369
        %6618 = vmatmul.mubr.bf16.gmra.mrb[0].mxu0 %v6368
        %v6619 = vpop.f32.mrb[0].mxu0
        %v6620 = vadd.f32 0.0, %v6619
        %v6621 = vpop.f32.mrb[0].mxu0
        %v6622 = vpop.f32.mrb[0].mxu0
        %v6623 = vadd.f32 0.0, %v6622
        %v6624 = vpop.f32.mrb[0].mxu0
        %6625 = vmatprep.mubr.bf16.mxu0 %v6376
        %6626 = vmatmul.mubr.bf16.gmra.mrb[0].mxu0 %v6375
        %v6627 = vpop.f32.mrb[0].mxu0
        %v6628 = vadd.f32 0.0, %v6627
        %v6629 = vpop.f32.mrb[0].mxu0
        %v6630 = vpop.f32.mrb[0].mxu0
        %v6631 = vadd.f32 0.0, %v6630
        %v6632 = vpop.f32.mrb[0].mxu0
        %6633 = vmatprep.mubr.bf16.mxu0 %v6383
        %6634 = vmatmul.mubr.bf16.gmra.mrb[0].mxu0 %v6382
        %v6635 = vpop.f32.mrb[0].mxu0
        %v6636 = vadd.f32 0.0, %v6635
        %v6637 = vpop.f32.mrb[0].mxu0
        %v6638 = vpop.f32.mrb[0].mxu0
        %v6639 = vadd.f32 0.0, %v6638
        %v6640 = vpop.f32.mrb[0].mxu0
        %6641 = vmatprep.mubr.bf16.mxu0 %v6390
        %6642 = vmatmul.mubr.bf16.gmra.mrb[0].mxu0 %v6389
        %v6643 = vpop.f32.mrb[0].mxu0
        %v6644 = vadd.f32 0.0, %v6643
        %v6645 = vpop.f32.mrb[0].mxu0
        %v6646 = vpop.f32.mrb[0].mxu0
        %v6647 = vadd.f32 0.0, %v6646
        %v6648 = vpop.f32.mrb[0].mxu0
        %6649 = vmatprep.mubr.bf16.mxu0 %v6397
        %6650 = vmatmul.mubr.bf16.gmra.mrb[0].mxu0 %v6396
        %v6651 = vpop.f32.mrb[0].mxu0
        %v6652 = vadd.f32 0.0, %v6651
        %v6653 = vpop.f32.mrb[0].mxu0
        %v6654 = vpop.f32.mrb[0].mxu0
        %v6655 = vadd.f32 0.0, %v6654
        %v6656 = vpop.f32.mrb[0].mxu0
        %6657 = vmatprep.mubr.bf16.mxu0 %v6404
        %6658 = vmatmul.mubr.bf16.gmra.mrb[0].mxu0 %v6403
        %v6659 = vpop.f32.mrb[0].mxu0
        %v6660 = vadd.f32 0.0, %v6659
        %v6661 = vpop.f32.mrb[0].mxu0
        %v6662 = vpop.f32.mrb[0].mxu0
        %v6663 = vadd.f32 0.0, %v6662
        %v6664 = vpop.f32.mrb[0].mxu0
        %6665 = vmatprep.mubr.bf16.mxu0 %v6411
        %6666 = vmatmul.mubr.bf16.gmra.mrb[0].mxu0 %v6410
        %v6667 = vpop.f32.mrb[0].mxu0
        %v6668 = vadd.f32 0.0, %v6667
        %v6669 = vpop.f32.mrb[0].mxu0
        %v6670 = vpop.f32.mrb[0].mxu0
        %v6671 = vadd.f32 0.0, %v6670
        %v6672 = vpop.f32.mrb[0].mxu0
        %6673 = vmatprep.mubr.bf16.mxu0 %v6418
        %6674 = vmatmul.mubr.bf16.gmra.mrb[0].mxu0 %v6417
        %v6675 = vpop.f32.mrb[0].mxu0
        %v6676 = vadd.f32 0.0, %v6675
        %v6677 = vpop.f32.mrb[0].mxu0
        %v6678 = vpop.f32.mrb[0].mxu0
        %v6679 = vpop.f32.mrb[0].mxu0
        %6680 = vdwg.mxu0
        %6681 = vmatprep.subr.bf16.mxu0 0
        %6682 = vmatpush1.bf16.msra.mxu0 %v5960
        %6683 = vmatprep.subr.bf16.mxu0 0
        %6684 = vmatpush1.bf16.msra.mxu0 %v5961
        %6685 = vmatprep.subr.bf16.mxu0 0
        %6686 = vmatpush1.bf16.msra.mxu0 %v5962
        %6687 = vmatprep.subr.bf16.mxu0 0
        %6688 = vmatpush1.bf16.msra.mxu0 %v5963
        %6689 = vmatprep.subr.bf16.mxu0 0
        %6690 = vmatpush1.bf16.msra.mxu0 %v5964
        %6691 = vmatprep.subr.bf16.mxu0 0
        %6692 = vmatpush1.bf16.msra.mxu0 %v5965
        %6693 = vmatprep.subr.bf16.mxu0 0
        %6694 = vmatpush1.bf16.msra.mxu0 %v5966
        %6695 = vmatprep.subr.bf16.mxu0 0
        %6696 = vmatpush1.bf16.msra.mxu0 %v5967
        %6697 = vmatprep.subr.bf16.mxu0 0
        %6698 = vmatpush1.bf16.msra.mxu0 %v5968
        %6699 = vmatprep.subr.bf16.mxu0 0
        %6700 = vmatpush1.bf16.msra.mxu0 %v5969
        %6701 = vmatprep.subr.bf16.mxu0 0
        %6702 = vmatpush1.bf16.msra.mxu0 %v5970
        %6703 = vmatprep.subr.bf16.mxu0 0
        %6704 = vmatpush1.bf16.msra.mxu0 %v5971
        %6705 = vmatprep.subr.bf16.mxu0 0
        %6706 = vmatpush1.bf16.msra.mxu0 %v5972
        %6707 = vmatprep.subr.bf16.mxu0 0
        %6708 = vmatpush1.bf16.msra.mxu0 %v5973
        %6709 = vmatprep.subr.bf16.mxu0 0
        %6710 = vmatpush1.bf16.msra.mxu0 %v5974
        %6711 = vmatprep.subr.bf16.mxu0 0
        %6712 = vmatpush1.bf16.msra.mxu0 %v5975
        %6713 = vmatprep.mubr.bf16.mxu0 %v6322
        %6714 = vmatmul.mubr.bf16.gmra.mrb[0].mxu0 %v6321
        %v6715 = vpop.f32.mrb[0].mxu0
        %v6716 = vadd.f32 %v6564, %v6715
        %v6717 = vpop.f32.mrb[0].mxu0
        %v6718 = vpop.f32.mrb[0].mxu0
        %v6719 = vadd.f32 %v6567, %v6718
        %v6720 = vpop.f32.mrb[0].mxu0
        %6721 = vmatprep.mubr.bf16.mxu0 %v6329
        %6722 = vmatmul.mubr.bf16.gmra.mrb[0].mxu0 %v6328
        %v6723 = vpop.f32.mrb[0].mxu0
        %v6724 = vadd.f32 %v6572, %v6723
        %v6725 = vpop.f32.mrb[0].mxu0
        %v6726 = vpop.f32.mrb[0].mxu0
        %v6727 = vadd.f32 %v6575, %v6726
        %v6728 = vpop.f32.mrb[0].mxu0
        %6729 = vmatprep.mubr.bf16.mxu0 %v6336
        %6730 = vmatmul.mubr.bf16.gmra.mrb[0].mxu0 %v6335
        %v6731 = vpop.f32.mrb[0].mxu0
        %v6732 = vadd.f32 %v6580, %v6731
        %v6733 = vpop.f32.mrb[0].mxu0
        %v6734 = vpop.f32.mrb[0].mxu0
        %v6735 = vadd.f32 %v6583, %v6734
        %v6736 = vpop.f32.mrb[0].mxu0
        %6737 = vmatprep.mubr.bf16.mxu0 %v6343
        %6738 = vmatmul.mubr.bf16.gmra.mrb[0].mxu0 %v6342
        %v6739 = vpop.f32.mrb[0].mxu0
        %v6740 = vadd.f32 %v6588, %v6739
        %v6741 = vpop.f32.mrb[0].mxu0
        %v6742 = vpop.f32.mrb[0].mxu0
        %v6743 = vadd.f32 %v6591, %v6742
        %v6744 = vpop.f32.mrb[0].mxu0
        %6745 = vmatprep.mubr.bf16.mxu0 %v6350
        %6746 = vmatmul.mubr.bf16.gmra.mrb[0].mxu0 %v6349
        %v6747 = vpop.f32.mrb[0].mxu0
        %v6748 = vadd.f32 %v6596, %v6747
        %v6749 = vpop.f32.mrb[0].mxu0
        %v6750 = vpop.f32.mrb[0].mxu0
        %v6751 = vadd.f32 %v6599, %v6750
        %v6752 = vpop.f32.mrb[0].mxu0
        %6753 = vmatprep.mubr.bf16.mxu0 %v6357
        %6754 = vmatmul.mubr.bf16.gmra.mrb[0].mxu0 %v6356
        %v6755 = vpop.f32.mrb[0].mxu0
        %v6756 = vadd.f32 %v6604, %v6755
        %v6757 = vpop.f32.mrb[0].mxu0
        %v6758 = vpop.f32.mrb[0].mxu0
        %v6759 = vadd.f32 %v6607, %v6758
        %v6760 = vpop.f32.mrb[0].mxu0
        %6761 = vmatprep.mubr.bf16.mxu0 %v6364
        %6762 = vmatmul.mubr.bf16.gmra.mrb[0].mxu0 %v6363
        %v6763 = vpop.f32.mrb[0].mxu0
        %v6764 = vadd.f32 %v6612, %v6763
        %v6765 = vpop.f32.mrb[0].mxu0
        %v6766 = vpop.f32.mrb[0].mxu0
        %v6767 = vadd.f32 %v6615, %v6766
        %v6768 = vpop.f32.mrb[0].mxu0
        %6769 = vmatprep.mubr.bf16.mxu0 %v6371
        %6770 = vmatmul.mubr.bf16.gmra.mrb[0].mxu0 %v6370
        %v6771 = vpop.f32.mrb[0].mxu0
        %v6772 = vadd.f32 %v6620, %v6771
        %v6773 = vpop.f32.mrb[0].mxu0
        %v6774 = vpop.f32.mrb[0].mxu0
        %v6775 = vadd.f32 %v6623, %v6774
        %v6776 = vpop.f32.mrb[0].mxu0
        %6777 = vmatprep.mubr.bf16.mxu0 %v6378
        %6778 = vmatmul.mubr.bf16.gmra.mrb[0].mxu0 %v6377
        %v6779 = vpop.f32.mrb[0].mxu0
        %v6780 = vadd.f32 %v6628, %v6779
        %v6781 = vpop.f32.mrb[0].mxu0
        %v6782 = vpop.f32.mrb[0].mxu0
        %v6783 = vadd.f32 %v6631, %v6782
        %v6784 = vpop.f32.mrb[0].mxu0
        %6785 = vmatprep.mubr.bf16.mxu0 %v6385
        %6786 = vmatmul.mubr.bf16.gmra.mrb[0].mxu0 %v6384
        %v6787 = vpop.f32.mrb[0].mxu0
        %v6788 = vadd.f32 %v6636, %v6787
        %v6789 = vpop.f32.mrb[0].mxu0
        %v6790 = vpop.f32.mrb[0].mxu0
        %v6791 = vadd.f32 %v6639, %v6790
        %v6792 = vpop.f32.mrb[0].mxu0
        %6793 = vmatprep.mubr.bf16.mxu0 %v6392
        %6794 = vmatmul.mubr.bf16.gmra.mrb[0].mxu0 %v6391
        %v6795 = vpop.f32.mrb[0].mxu0
        %v6796 = vadd.f32 %v6644, %v6795
        %v6797 = vpop.f32.mrb[0].mxu0
        %v6798 = vpop.f32.mrb[0].mxu0
        %v6799 = vadd.f32 %v6647, %v6798
        %v6800 = vpop.f32.mrb[0].mxu0
        %6801 = vmatprep.mubr.bf16.mxu0 %v6399
        %6802 = vmatmul.mubr.bf16.gmra.mrb[0].mxu0 %v6398
        %v6803 = vpop.f32.mrb[0].mxu0
        %v6804 = vadd.f32 %v6652, %v6803
        %v6805 = vpop.f32.mrb[0].mxu0
        %v6806 = vpop.f32.mrb[0].mxu0
        %v6807 = vadd.f32 %v6655, %v6806
        %v6808 = vpop.f32.mrb[0].mxu0
        %6809 = vmatprep.mubr.bf16.mxu0 %v6406
        %6810 = vmatmul.mubr.bf16.gmra.mrb[0].mxu0 %v6405
        %v6811 = vpop.f32.mrb[0].mxu0
        %v6812 = vadd.f32 %v6660, %v6811
        %v6813 = vpop.f32.mrb[0].mxu0
        %v6814 = vpop.f32.mrb[0].mxu0
        %v6815 = vadd.f32 %v6663, %v6814
        %v6816 = vpop.f32.mrb[0].mxu0
        %6817 = vmatprep.mubr.bf16.mxu0 %v6413
        %6818 = vmatmul.mubr.bf16.gmra.mrb[0].mxu0 %v6412
        %v6819 = vpop.f32.mrb[0].mxu0
        %v6820 = vadd.f32 %v6668, %v6819
        %v6821 = vpop.f32.mrb[0].mxu0
        %v6822 = vpop.f32.mrb[0].mxu0
        %v6823 = vadd.f32 %v6671, %v6822
        %v6824 = vpop.f32.mrb[0].mxu0
        %6825 = vmatprep.mubr.bf16.mxu0 %v6420
        %6826 = vmatmul.mubr.bf16.gmra.mrb[0].mxu0 %v6419
        %v6827 = vpop.f32.mrb[0].mxu0
        %v6828 = vadd.f32 %v6676, %v6827
        %v6829 = vpop.f32.mrb[0].mxu0
        %v6830 = vpop.f32.mrb[0].mxu0
        %v6831 = vpop.f32.mrb[0].mxu0
        %6832 = vdwg.mxu0
        %6833 = vmatprep.subr.bf16.mxu0 0
        %6834 = vmatpush1.bf16.msra.mxu0 %v5976
        %6835 = vmatprep.subr.bf16.mxu0 0
        %6836 = vmatpush1.bf16.msra.mxu0 %v5977
        %6837 = vmatprep.subr.bf16.mxu0 0
        %6838 = vmatpush1.bf16.msra.mxu0 %v5978
        %6839 = vmatprep.subr.bf16.mxu0 0
        %6840 = vmatpush1.bf16.msra.mxu0 %v5979
        %6841 = vmatprep.subr.bf16.mxu0 0
        %6842 = vmatpush1.bf16.msra.mxu0 %v5980
        %6843 = vmatprep.subr.bf16.mxu0 0
        %6844 = vmatpush1.bf16.msra.mxu0 %v5981
        %6845 = vmatprep.subr.bf16.mxu0 0
        %6846 = vmatpush1.bf16.msra.mxu0 %v5982
        %6847 = vmatprep.subr.bf16.mxu0 0
        %6848 = vmatpush1.bf16.msra.mxu0 %v5983
        %6849 = vmatprep.subr.bf16.mxu0 0
        %6850 = vmatpush1.bf16.msra.mxu0 %v5984
        %6851 = vmatprep.subr.bf16.mxu0 0
        %6852 = vmatpush1.bf16.msra.mxu0 %v5985
        %6853 = vmatprep.subr.bf16.mxu0 0
        %6854 = vmatpush1.bf16.msra.mxu0 %v5986
        %6855 = vmatprep.subr.bf16.mxu0 0
        %6856 = vmatpush1.bf16.msra.mxu0 %v5987
        %6857 = vmatprep.subr.bf16.mxu0 0
        %6858 = vmatpush1.bf16.msra.mxu0 %v5988
        %6859 = vmatprep.subr.bf16.mxu0 0
        %6860 = vmatpush1.bf16.msra.mxu0 %v5989
        %6861 = vmatprep.subr.bf16.mxu0 0
        %6862 = vmatpush1.bf16.msra.mxu0 %v5990
        %6863 = vmatprep.subr.bf16.mxu0 0
        %6864 = vmatpush1.bf16.msra.mxu0 %v5991
        %6865 = vmatprep.mubr.bf16.mxu0 %v6324
        %6866 = vmatmul.mubr.bf16.gmra.mrb[0].mxu0 %v6323
        %v6867 = vpop.f32.mrb[0].mxu0
        %v6868 = vadd.f32 %v6716, %v6867
        %v6869 = vpop.f32.mrb[0].mxu0
        %v6870 = vpop.f32.mrb[0].mxu0
        %v6871 = vadd.f32 %v6719, %v6870
        %v6872 = vpop.f32.mrb[0].mxu0
        %6873 = vmatprep.mubr.bf16.mxu0 %v6331
        %6874 = vmatmul.mubr.bf16.gmra.mrb[0].mxu0 %v6330
        %v6875 = vpop.f32.mrb[0].mxu0
        %v6876 = vadd.f32 %v6724, %v6875
        %v6877 = vpop.f32.mrb[0].mxu0
        %v6878 = vpop.f32.mrb[0].mxu0
        %v6879 = vadd.f32 %v6727, %v6878
        %v6880 = vpop.f32.mrb[0].mxu0
        %6881 = vmatprep.mubr.bf16.mxu0 %v6338
        %6882 = vmatmul.mubr.bf16.gmra.mrb[0].mxu0 %v6337
        %v6883 = vpop.f32.mrb[0].mxu0
        %v6884 = vadd.f32 %v6732, %v6883
        %v6885 = vpop.f32.mrb[0].mxu0
        %v6886 = vpop.f32.mrb[0].mxu0
        %v6887 = vadd.f32 %v6735, %v6886
        %v6888 = vpop.f32.mrb[0].mxu0
        %6889 = vmatprep.mubr.bf16.mxu0 %v6345
        %6890 = vmatmul.mubr.bf16.gmra.mrb[0].mxu0 %v6344
        %v6891 = vpop.f32.mrb[0].mxu0
        %v6892 = vadd.f32 %v6740, %v6891
        %v6893 = vpop.f32.mrb[0].mxu0
        %v6894 = vpop.f32.mrb[0].mxu0
        %v6895 = vadd.f32 %v6743, %v6894
        %v6896 = vpop.f32.mrb[0].mxu0
        %6897 = vmatprep.mubr.bf16.mxu0 %v6352
        %6898 = vmatmul.mubr.bf16.gmra.mrb[0].mxu0 %v6351
        %v6899 = vpop.f32.mrb[0].mxu0
        %v6900 = vadd.f32 %v6748, %v6899
        %v6901 = vpop.f32.mrb[0].mxu0
        %v6902 = vpop.f32.mrb[0].mxu0
        %v6903 = vadd.f32 %v6751, %v6902
        %v6904 = vpop.f32.mrb[0].mxu0
        %6905 = vmatprep.mubr.bf16.mxu0 %v6359
        %6906 = vmatmul.mubr.bf16.gmra.mrb[0].mxu0 %v6358
        %v6907 = vpop.f32.mrb[0].mxu0
        %v6908 = vadd.f32 %v6756, %v6907
        %v6909 = vpop.f32.mrb[0].mxu0
        %v6910 = vpop.f32.mrb[0].mxu0
        %v6911 = vadd.f32 %v6759, %v6910
        %v6912 = vpop.f32.mrb[0].mxu0
        %6913 = vmatprep.mubr.bf16.mxu0 %v6366
        %6914 = vmatmul.mubr.bf16.gmra.mrb[0].mxu0 %v6365
        %v6915 = vpop.f32.mrb[0].mxu0
        %v6916 = vadd.f32 %v6764, %v6915
        %v6917 = vpop.f32.mrb[0].mxu0
        %v6918 = vpop.f32.mrb[0].mxu0
        %v6919 = vadd.f32 %v6767, %v6918
        %v6920 = vpop.f32.mrb[0].mxu0
        %6921 = vmatprep.mubr.bf16.mxu0 %v6373
        %6922 = vmatmul.mubr.bf16.gmra.mrb[0].mxu0 %v6372
        %v6923 = vpop.f32.mrb[0].mxu0
        %v6924 = vadd.f32 %v6772, %v6923
        %v6925 = vpop.f32.mrb[0].mxu0
        %v6926 = vpop.f32.mrb[0].mxu0
        %v6927 = vadd.f32 %v6775, %v6926
        %v6928 = vpop.f32.mrb[0].mxu0
        %6929 = vmatprep.mubr.bf16.mxu0 %v6380
        %6930 = vmatmul.mubr.bf16.gmra.mrb[0].mxu0 %v6379
        %v6931 = vpop.f32.mrb[0].mxu0
        %v6932 = vadd.f32 %v6780, %v6931
        %v6933 = vpop.f32.mrb[0].mxu0
        %v6934 = vpop.f32.mrb[0].mxu0
        %v6935 = vadd.f32 %v6783, %v6934
        %v6936 = vpop.f32.mrb[0].mxu0
        %6937 = vmatprep.mubr.bf16.mxu0 %v6387
        %6938 = vmatmul.mubr.bf16.gmra.mrb[0].mxu0 %v6386
        %v6939 = vpop.f32.mrb[0].mxu0
        %v6940 = vadd.f32 %v6788, %v6939
        %v6941 = vpop.f32.mrb[0].mxu0
        %v6942 = vpop.f32.mrb[0].mxu0
        %v6943 = vadd.f32 %v6791, %v6942
        %v6944 = vpop.f32.mrb[0].mxu0
        %6945 = vmatprep.mubr.bf16.mxu0 %v6394
        %6946 = vmatmul.mubr.bf16.gmra.mrb[0].mxu0 %v6393
        %v6947 = vpop.f32.mrb[0].mxu0
        %v6948 = vadd.f32 %v6796, %v6947
        %v6949 = vpop.f32.mrb[0].mxu0
        %v6950 = vpop.f32.mrb[0].mxu0
        %v6951 = vadd.f32 %v6799, %v6950
        %v6952 = vpop.f32.mrb[0].mxu0
        %6953 = vmatprep.mubr.bf16.mxu0 %v6401
        %6954 = vmatmul.mubr.bf16.gmra.mrb[0].mxu0 %v6400
        %v6955 = vpop.f32.mrb[0].mxu0
        %v6956 = vadd.f32 %v6804, %v6955
        %v6957 = vpop.f32.mrb[0].mxu0
        %v6958 = vpop.f32.mrb[0].mxu0
        %v6959 = vadd.f32 %v6807, %v6958
        %v6960 = vpop.f32.mrb[0].mxu0
        %6961 = vmatprep.mubr.bf16.mxu0 %v6408
        %6962 = vmatmul.mubr.bf16.gmra.mrb[0].mxu0 %v6407
        %v6963 = vpop.f32.mrb[0].mxu0
        %v6964 = vadd.f32 %v6812, %v6963
        %v6965 = vpop.f32.mrb[0].mxu0
        %v6966 = vpop.f32.mrb[0].mxu0
        %v6967 = vadd.f32 %v6815, %v6966
        %v6968 = vpop.f32.mrb[0].mxu0
        %6969 = vmatprep.mubr.bf16.mxu0 %v6415
        %6970 = vmatmul.mubr.bf16.gmra.mrb[0].mxu0 %v6414
        %v6971 = vpop.f32.mrb[0].mxu0
        %v6972 = vadd.f32 %v6820, %v6971
        %v6973 = vpop.f32.mrb[0].mxu0
        %v6974 = vpop.f32.mrb[0].mxu0
        %v6975 = vadd.f32 %v6823, %v6974
        %v6976 = vpop.f32.mrb[0].mxu0
        %6977 = vmatprep.mubr.bf16.mxu0 %v6422
        %6978 = vmatmul.mubr.bf16.gmra.mrb[0].mxu0 %v6421
        %v6979 = vpop.f32.mrb[0].mxu0
        %v6980 = vadd.f32 %v6828, %v6979
        %v6981 = vpop.f32.mrb[0].mxu0
        %v6982 = vpop.f32.mrb[0].mxu0
        %v6983 = vpop.f32.mrb[0].mxu0
        %6984 = vdwg.mxu0
        %6985 = vmatprep.subr.bf16.mxu0 0
        %6986 = vmatpush1.bf16.msra.mxu0 %v5992
        %6987 = vmatprep.subr.bf16.mxu0 0
        %6988 = vmatpush1.bf16.msra.mxu0 %v5993
        %6989 = vmatprep.subr.bf16.mxu0 0
        %6990 = vmatpush1.bf16.msra.mxu0 %v5994
        %6991 = vmatprep.subr.bf16.mxu0 0
        %6992 = vmatpush1.bf16.msra.mxu0 %v5995
        %6993 = vmatprep.subr.bf16.mxu0 0
        %6994 = vmatpush1.bf16.msra.mxu0 %v5996
        %6995 = vmatprep.subr.bf16.mxu0 0
        %6996 = vmatpush1.bf16.msra.mxu0 %v5997
        %6997 = vmatprep.subr.bf16.mxu0 0
        %6998 = vmatpush1.bf16.msra.mxu0 %v5998
        %6999 = vmatprep.subr.bf16.mxu0 0
        %7000 = vmatpush1.bf16.msra.mxu0 %v5999
        %7001 = vmatprep.subr.bf16.mxu0 0
        %7002 = vmatpush1.bf16.msra.mxu0 0
        %7003 = vmatprep.subr.bf16.mxu0 0
        %7004 = vmatpush1.bf16.msra.mxu0 0
        %7005 = vmatprep.subr.bf16.mxu0 0
        %7006 = vmatpush1.bf16.msra.mxu0 0
        %7007 = vmatprep.subr.bf16.mxu0 0
        %7008 = vmatpush1.bf16.msra.mxu0 0
        %7009 = vmatprep.subr.bf16.mxu0 0
        %7010 = vmatpush1.bf16.msra.mxu0 0
        %7011 = vmatprep.subr.bf16.mxu0 0
        %7012 = vmatpush1.bf16.msra.mxu0 0
        %7013 = vmatprep.subr.bf16.mxu0 0
        %7014 = vmatpush1.bf16.msra.mxu0 0
        %7015 = vmatprep.subr.bf16.mxu0 0
        %7016 = vmatpush1.bf16.msra.mxu0 0
        %7017 = vmatprep.mubr.bf16.mxu0 0
        %7018 = vmatmul.mubr.bf16.gmra.mrb[0].mxu0 %v6325
        %v7019 = vpop.f32.mrb[0].mxu0
        %v7020 = vadd.f32 %v6868, %v7019
        %v7021 = vpop.f32.mrb[0].mxu0
        %v7022 = vpop.f32.mrb[0].mxu0
        %v7023 = vadd.f32 %v6871, %v7022
        %v7024 = vpop.f32.mrb[0].mxu0
        %7025 = vmatprep.mubr.bf16.mxu0 0
        %7026 = vmatmul.mubr.bf16.gmra.mrb[0].mxu0 %v6332
        %v7027 = vpop.f32.mrb[0].mxu0
        %v7028 = vadd.f32 %v6876, %v7027
        %v7029 = vpop.f32.mrb[0].mxu0
        %v7030 = vpop.f32.mrb[0].mxu0
        %v7031 = vadd.f32 %v6879, %v7030
        %v7032 = vpop.f32.mrb[0].mxu0
        %7033 = vmatprep.mubr.bf16.mxu0 0
        %7034 = vmatmul.mubr.bf16.gmra.mrb[0].mxu0 %v6339
        %v7035 = vpop.f32.mrb[0].mxu0
        %v7036 = vadd.f32 %v6884, %v7035
        %v7037 = vpop.f32.mrb[0].mxu0
        %v7038 = vpop.f32.mrb[0].mxu0
        %v7039 = vadd.f32 %v6887, %v7038
        %v7040 = vpop.f32.mrb[0].mxu0
        %7041 = vmatprep.mubr.bf16.mxu0 0
        %7042 = vmatmul.mubr.bf16.gmra.mrb[0].mxu0 %v6346
        %v7043 = vpop.f32.mrb[0].mxu0
        %v7044 = vadd.f32 %v6892, %v7043
        %v7045 = vpop.f32.mrb[0].mxu0
        %v7046 = vpop.f32.mrb[0].mxu0
        %v7047 = vadd.f32 %v6895, %v7046
        %v7048 = vpop.f32.mrb[0].mxu0
        %7049 = vmatprep.mubr.bf16.mxu0 0
        %7050 = vmatmul.mubr.bf16.gmra.mrb[0].mxu0 %v6353
        %v7051 = vpop.f32.mrb[0].mxu0
        %v7052 = vadd.f32 %v6900, %v7051
        %v7053 = vpop.f32.mrb[0].mxu0
        %v7054 = vpop.f32.mrb[0].mxu0
        %v7055 = vadd.f32 %v6903, %v7054
        %v7056 = vpop.f32.mrb[0].mxu0
        %7057 = vmatprep.mubr.bf16.mxu0 0
        %7058 = vmatmul.mubr.bf16.gmra.mrb[0].mxu0 %v6360
        %v7059 = vpop.f32.mrb[0].mxu0
        %v7060 = vadd.f32 %v6908, %v7059
        %v7061 = vpop.f32.mrb[0].mxu0
        %v7062 = vpop.f32.mrb[0].mxu0
        %v7063 = vadd.f32 %v6911, %v7062
        %v7064 = vpop.f32.mrb[0].mxu0
        %7065 = vmatprep.mubr.bf16.mxu0 0
        %7066 = vmatmul.mubr.bf16.gmra.mrb[0].mxu0 %v6367
        %v7067 = vpop.f32.mrb[0].mxu0
        %v7068 = vadd.f32 %v6916, %v7067
        %v7069 = vpop.f32.mrb[0].mxu0
        %v7070 = vpop.f32.mrb[0].mxu0
        %v7071 = vadd.f32 %v6919, %v7070
        %v7072 = vpop.f32.mrb[0].mxu0
        %7073 = vmatprep.mubr.bf16.mxu0 0
        %7074 = vmatmul.mubr.bf16.gmra.mrb[0].mxu0 %v6374
        %v7075 = vpop.f32.mrb[0].mxu0
        %v7076 = vadd.f32 %v6924, %v7075
        %v7077 = vpop.f32.mrb[0].mxu0
        %v7078 = vpop.f32.mrb[0].mxu0
        %v7079 = vadd.f32 %v6927, %v7078
        %v7080 = vpop.f32.mrb[0].mxu0
        %7081 = vmatprep.mubr.bf16.mxu0 0
        %7082 = vmatmul.mubr.bf16.gmra.mrb[0].mxu0 %v6381
        %v7083 = vpop.f32.mrb[0].mxu0
        %v7084 = vadd.f32 %v6932, %v7083
        %v7085 = vpop.f32.mrb[0].mxu0
        %v7086 = vpop.f32.mrb[0].mxu0
        %v7087 = vadd.f32 %v6935, %v7086
        %v7088 = vpop.f32.mrb[0].mxu0
        %7089 = vmatprep.mubr.bf16.mxu0 0
        %7090 = vmatmul.mubr.bf16.gmra.mrb[0].mxu0 %v6388
        %v7091 = vpop.f32.mrb[0].mxu0
        %v7092 = vadd.f32 %v6940, %v7091
        %v7093 = vpop.f32.mrb[0].mxu0
        %v7094 = vpop.f32.mrb[0].mxu0
        %v7095 = vadd.f32 %v6943, %v7094
        %v7096 = vpop.f32.mrb[0].mxu0
        %7097 = vmatprep.mubr.bf16.mxu0 0
        %7098 = vmatmul.mubr.bf16.gmra.mrb[0].mxu0 %v6395
        %v7099 = vpop.f32.mrb[0].mxu0
        %v7100 = vadd.f32 %v6948, %v7099
        %v7101 = vpop.f32.mrb[0].mxu0
        %v7102 = vpop.f32.mrb[0].mxu0
        %v7103 = vadd.f32 %v6951, %v7102
        %v7104 = vpop.f32.mrb[0].mxu0
        %7105 = vmatprep.mubr.bf16.mxu0 0
        %7106 = vmatmul.mubr.bf16.gmra.mrb[0].mxu0 %v6402
        %v7107 = vpop.f32.mrb[0].mxu0
        %v7108 = vadd.f32 %v6956, %v7107
        %v7109 = vpop.f32.mrb[0].mxu0
        %v7110 = vpop.f32.mrb[0].mxu0
        %v7111 = vadd.f32 %v6959, %v7110
        %v7112 = vpop.f32.mrb[0].mxu0
        %7113 = vmatprep.mubr.bf16.mxu0 0
        %7114 = vmatmul.mubr.bf16.gmra.mrb[0].mxu0 %v6409
        %v7115 = vpop.f32.mrb[0].mxu0
        %v7116 = vadd.f32 %v6964, %v7115
        %v7117 = vpop.f32.mrb[0].mxu0
        %v7118 = vpop.f32.mrb[0].mxu0
        %v7119 = vadd.f32 %v6967, %v7118
        %v7120 = vpop.f32.mrb[0].mxu0
        %7121 = vmatprep.mubr.bf16.mxu0 0
        %7122 = vmatmul.mubr.bf16.gmra.mrb[0].mxu0 %v6416
        %v7123 = vpop.f32.mrb[0].mxu0
        %v7124 = vadd.f32 %v6972, %v7123
        %v7125 = vpop.f32.mrb[0].mxu0
        %v7126 = vpop.f32.mrb[0].mxu0
        %v7127 = vadd.f32 %v6975, %v7126
        %v7128 = vpop.f32.mrb[0].mxu0
        %7129 = vmatprep.mubr.bf16.mxu0 0
        %7130 = vmatmul.mubr.bf16.gmra.mrb[0].mxu0 %v6423
        %v7131 = vpop.f32.mrb[0].mxu0
        %v7132 = vadd.f32 %v6980, %v7131
        %v7133 = vpop.f32.mrb[0].mxu0
        %v7134 = vpop.f32.mrb[0].mxu0
        %v7135 = vpop.f32.mrb[0].mxu0
        %7136 = vdwg.mxu0
        %v7137 = vpack.c.bf16 %v7023, %v7020
        %v7138 = vpack.c.bf16 %v7031, %v7028
        %v7139 = vpack.c.bf16 %v7039, %v7036
        %v7140 = vpack.c.bf16 %v7047, %v7044
        %v7141 = vpack.c.bf16 %v7055, %v7052
        %v7142 = vpack.c.bf16 %v7063, %v7060
        %v7143 = vpack.c.bf16 %v7071, %v7068
        %v7144 = vpack.c.bf16 %v7079, %v7076
        %v7145 = vpack.c.bf16 %v7087, %v7084
        %v7146 = vpack.c.bf16 %v7095, %v7092
        %v7147 = vpack.c.bf16 %v7103, %v7100
        %v7148 = vpack.c.bf16 %v7111, %v7108
        %v7149 = vpack.c.bf16 %v7119, %v7116
        %v7150 = vpack.c.bf16 %v7127, %v7124
        %v7151 = vpack.c.bf16 %v7132, %v7132
        %vm7152 = vsmask.f32 7424
        %v7154 = vshrl.u32 %v7137, 16
        %v7156 = vshll.u32 %v7137, 16
        %v7158 = vrot.slane %v7156, 1
        %v7159 = vor.u32 %v7154, %v7158
        %v7161 = vshll.u32 %v7138, 16
        %v7163 = vrot.slane %v7161, 1
        %v7164 = vsel %vm7152, %v7159, %v7163
        %v7165 = vshrl.u32 %v7138, 16
        %v7167 = vor.u32 %v7165, %v7163
        %v7169 = vshll.u32 %v7139, 16
        %v7171 = vrot.slane %v7169, 1
        %v7172 = vsel %vm7152, %v7167, %v7171
        %v7173 = vshrl.u32 %v7139, 16
        %v7175 = vor.u32 %v7173, %v7171
        %v7177 = vshll.u32 %v7140, 16
        %v7179 = vrot.slane %v7177, 1
        %v7180 = vsel %vm7152, %v7175, %v7179
        %v7181 = vshrl.u32 %v7140, 16
        %v7183 = vor.u32 %v7181, %v7179
        %v7185 = vshll.u32 %v7141, 16
        %v7187 = vrot.slane %v7185, 1
        %v7188 = vsel %vm7152, %v7183, %v7187
        %v7189 = vshrl.u32 %v7141, 16
        %v7191 = vor.u32 %v7189, %v7187
        %v7193 = vshll.u32 %v7142, 16
        %v7195 = vrot.slane %v7193, 1
        %v7196 = vsel %vm7152, %v7191, %v7195
        %v7197 = vshrl.u32 %v7142, 16
        %v7199 = vor.u32 %v7197, %v7195
        %v7201 = vshll.u32 %v7143, 16
        %v7203 = vrot.slane %v7201, 1
        %v7204 = vsel %vm7152, %v7199, %v7203
        %v7205 = vshrl.u32 %v7143, 16
        %v7207 = vor.u32 %v7205, %v7203
        %v7209 = vshll.u32 %v7144, 16
        %v7211 = vrot.slane %v7209, 1
        %v7212 = vsel %vm7152, %v7207, %v7211
        %v7213 = vshrl.u32 %v7144, 16
        %v7215 = vor.u32 %v7213, %v7211
        %v7217 = vshll.u32 %v7145, 16
        %v7219 = vrot.slane %v7217, 1
        %v7220 = vsel %vm7152, %v7215, %v7219
        %v7221 = vshrl.u32 %v7145, 16
        %v7223 = vor.u32 %v7221, %v7219
        %v7225 = vshll.u32 %v7146, 16
        %v7227 = vrot.slane %v7225, 1
        %v7228 = vsel %vm7152, %v7223, %v7227
        %v7229 = vshrl.u32 %v7146, 16
        %v7231 = vor.u32 %v7229, %v7227
        %v7233 = vshll.u32 %v7147, 16
        %v7235 = vrot.slane %v7233, 1
        %v7236 = vsel %vm7152, %v7231, %v7235
        %v7237 = vshrl.u32 %v7147, 16
        %v7239 = vor.u32 %v7237, %v7235
        %v7241 = vshll.u32 %v7148, 16
        %v7243 = vrot.slane %v7241, 1
        %v7244 = vsel %vm7152, %v7239, %v7243
        %v7245 = vshrl.u32 %v7148, 16
        %v7247 = vor.u32 %v7245, %v7243
        %v7249 = vshll.u32 %v7149, 16
        %v7251 = vrot.slane %v7249, 1
        %v7252 = vsel %vm7152, %v7247, %v7251
        %v7253 = vshrl.u32 %v7149, 16
        %v7255 = vor.u32 %v7253, %v7251
        %v7257 = vshll.u32 %v7150, 16
        %v7259 = vrot.slane %v7257, 1
        %v7260 = vsel %vm7152, %v7255, %v7259
        %v7261 = vshrl.u32 %v7150, 16
        %v7263 = vor.u32 %v7261, %v7259
        %v7265 = vshll.u32 %v7151, 16
        %v7267 = vrot.slane %v7265, 1
        %v7268 = vsel %vm7152, %v7263, %v7267
        %7269 = vrot.lane.b32.xlu0 %v7164, 32
        %v7270 = vpop.permute.xlu0 %7269
        %7271 = vrot.lane.b32.xlu0 %v7172, 32
        %v7272 = vpop.permute.xlu0 %7271
        %7273 = vrot.lane.b32.xlu0 %v7180, 32
        %v7274 = vpop.permute.xlu0 %7273
        %7275 = vrot.lane.b32.xlu0 %v7188, 32
        %v7276 = vpop.permute.xlu0 %7275
        %7277 = vrot.lane.b32.xlu0 %v7196, 32
        %v7278 = vpop.permute.xlu0 %7277
        %7279 = vrot.lane.b32.xlu0 %v7204, 32
        %v7280 = vpop.permute.xlu0 %7279
        %7281 = vrot.lane.b32.xlu0 %v7212, 32
        %v7282 = vpop.permute.xlu0 %7281
        %7283 = vrot.lane.b32.xlu0 %v7220, 32
        %v7284 = vpop.permute.xlu0 %7283
        %7285 = vrot.lane.b32.xlu0 %v7228, 32
        %v7286 = vpop.permute.xlu0 %7285
        %7287 = vrot.lane.b32.xlu0 %v7236, 32
        %v7288 = vpop.permute.xlu0 %7287
        %7289 = vrot.lane.b32.xlu0 %v7244, 32
        %v7290 = vpop.permute.xlu0 %7289
        %7291 = vrot.lane.b32.xlu0 %v7252, 32
        %v7292 = vpop.permute.xlu0 %7291
        %7293 = vrot.lane.b32.xlu0 %v7260, 32
        %v7294 = vpop.permute.xlu0 %7293
        %7295 = vrot.lane.b32.xlu0 %v7268, 32
        %v7296 = vpop.permute.xlu0 %7295
        %vm7312 = vcmask 1046528
        %v7313 = vrot.slane %v7137, 1
        %v7314 = vrot.slane %v7138, 1
        %v7315 = vsel %vm7312, %v7313, %v7314
        %v7316 = vrot.slane %v7139, 1
        %v7317 = vsel %vm7312, %v7314, %v7316
        %v7318 = vrot.slane %v7140, 1
        %v7319 = vsel %vm7312, %v7316, %v7318
        %v7320 = vrot.slane %v7141, 1
        %v7321 = vsel %vm7312, %v7318, %v7320
        %v7322 = vrot.slane %v7142, 1
        %v7323 = vsel %vm7312, %v7320, %v7322
        %v7324 = vrot.slane %v7143, 1
        %v7325 = vsel %vm7312, %v7322, %v7324
        %v7326 = vrot.slane %v7144, 1
        %v7327 = vsel %vm7312, %v7324, %v7326
        %v7328 = vrot.slane %v7145, 1
        %v7329 = vsel %vm7312, %v7326, %v7328
        %v7330 = vrot.slane %v7146, 1
        %v7331 = vsel %vm7312, %v7328, %v7330
        %v7332 = vrot.slane %v7147, 1
        %v7333 = vsel %vm7312, %v7330, %v7332
        %v7334 = vrot.slane %v7148, 1
        %v7335 = vsel %vm7312, %v7332, %v7334
        %v7336 = vrot.slane %v7149, 1
        %v7337 = vsel %vm7312, %v7334, %v7336
        %v7338 = vrot.slane %v7150, 1
        %v7339 = vsel %vm7312, %v7336, %v7338
        %v7340 = vrot.slane %v7151, 1
        %v7341 = vsel %vm7312, %v7338, %v7340
        %7342 = vrot.lane.b32.xlu0 %v7315, 64
        %v7343 = vpop.permute.xlu0 %7342
        %7344 = vrot.lane.b32.xlu0 %v7317, 64
        %v7345 = vpop.permute.xlu0 %7344
        %7346 = vrot.lane.b32.xlu0 %v7319, 64
        %v7347 = vpop.permute.xlu0 %7346
        %7348 = vrot.lane.b32.xlu0 %v7321, 64
        %v7349 = vpop.permute.xlu0 %7348
        %7350 = vrot.lane.b32.xlu0 %v7323, 64
        %v7351 = vpop.permute.xlu0 %7350
        %7352 = vrot.lane.b32.xlu0 %v7325, 64
        %v7353 = vpop.permute.xlu0 %7352
        %7354 = vrot.lane.b32.xlu0 %v7327, 64
        %v7355 = vpop.permute.xlu0 %7354
        %7356 = vrot.lane.b32.xlu0 %v7329, 64
        %v7357 = vpop.permute.xlu0 %7356
        %7358 = vrot.lane.b32.xlu0 %v7331, 64
        %v7359 = vpop.permute.xlu0 %7358
        %7360 = vrot.lane.b32.xlu0 %v7333, 64
        %v7361 = vpop.permute.xlu0 %7360
        %7362 = vrot.lane.b32.xlu0 %v7335, 64
        %v7363 = vpop.permute.xlu0 %7362
        %7364 = vrot.lane.b32.xlu0 %v7337, 64
        %v7365 = vpop.permute.xlu0 %7364
        %7366 = vrot.lane.b32.xlu0 %v7339, 64
        %v7367 = vpop.permute.xlu0 %7366
        %7368 = vrot.lane.b32.xlu0 %v7341, 64
        %v7369 = vpop.permute.xlu0 %7368
        %vm7370 = vsmask.f32 6400
        %v7371 = vrot.slane %v7154, 1
        %v7372 = vrot.slane %v7156, 2
        %v7373 = vor.u32 %v7371, %v7372
        %v7374 = vrot.slane %v7165, 1
        %v7375 = vrot.slane %v7161, 2
        %v7376 = vor.u32 %v7374, %v7375
        %v7377 = vsel %vm7370, %v7373, %v7376
        %v7378 = vrot.slane %v7173, 1
        %v7379 = vrot.slane %v7169, 2
        %v7380 = vor.u32 %v7378, %v7379
        %v7381 = vsel %vm7370, %v7376, %v7380
        %v7382 = vrot.slane %v7181, 1
        %v7383 = vrot.slane %v7177, 2
        %v7384 = vor.u32 %v7382, %v7383
        %v7385 = vsel %vm7370, %v7380, %v7384
        %v7386 = vrot.slane %v7189, 1
        %v7387 = vrot.slane %v7185, 2
        %v7388 = vor.u32 %v7386, %v7387
        %v7389 = vsel %vm7370, %v7384, %v7388
        %v7390 = vrot.slane %v7197, 1
        %v7391 = vrot.slane %v7193, 2
        %v7392 = vor.u32 %v7390, %v7391
        %v7393 = vsel %vm7370, %v7388, %v7392
        %v7394 = vrot.slane %v7205, 1
        %v7395 = vrot.slane %v7201, 2
        %v7396 = vor.u32 %v7394, %v7395
        %v7397 = vsel %vm7370, %v7392, %v7396
        %v7398 = vrot.slane %v7213, 1
        %v7399 = vrot.slane %v7209, 2
        %v7400 = vor.u32 %v7398, %v7399
        %v7401 = vsel %vm7370, %v7396, %v7400
        %v7402 = vrot.slane %v7221, 1
        %v7403 = vrot.slane %v7217, 2
        %v7404 = vor.u32 %v7402, %v7403
        %v7405 = vsel %vm7370, %v7400, %v7404
        %v7406 = vrot.slane %v7229, 1
        %v7407 = vrot.slane %v7225, 2
        %v7408 = vor.u32 %v7406, %v7407
        %v7409 = vsel %vm7370, %v7404, %v7408
        %v7410 = vrot.slane %v7237, 1
        %v7411 = vrot.slane %v7233, 2
        %v7412 = vor.u32 %v7410, %v7411
        %v7413 = vsel %vm7370, %v7408, %v7412
        %v7414 = vrot.slane %v7245, 1
        %v7415 = vrot.slane %v7241, 2
        %v7416 = vor.u32 %v7414, %v7415
        %v7417 = vsel %vm7370, %v7412, %v7416
        %v7418 = vrot.slane %v7253, 1
        %v7419 = vrot.slane %v7249, 2
        %v7420 = vor.u32 %v7418, %v7419
        %v7421 = vsel %vm7370, %v7416, %v7420
        %v7422 = vrot.slane %v7261, 1
        %v7423 = vrot.slane %v7257, 2
        %v7424 = vor.u32 %v7422, %v7423
        %v7425 = vsel %vm7370, %v7420, %v7424
        %v7426 = vshrl.u32 %v7151, 16
        %v7428 = vrot.slane %v7426, 1
        %v7429 = vrot.slane %v7265, 2
        %v7430 = vor.u32 %v7428, %v7429
        %v7431 = vsel %vm7370, %v7424, %v7430
        %7432 = vrot.lane.b32.xlu0 %v7377, 96
        %v7433 = vpop.permute.xlu0 %7432
        %7434 = vrot.lane.b32.xlu0 %v7381, 96
        %v7435 = vpop.permute.xlu0 %7434
        %7436 = vrot.lane.b32.xlu0 %v7385, 96
        %v7437 = vpop.permute.xlu0 %7436
        %7438 = vrot.lane.b32.xlu0 %v7389, 96
        %v7439 = vpop.permute.xlu0 %7438
        %7440 = vrot.lane.b32.xlu0 %v7393, 96
        %v7441 = vpop.permute.xlu0 %7440
        %7442 = vrot.lane.b32.xlu0 %v7397, 96
        %v7443 = vpop.permute.xlu0 %7442
        %7444 = vrot.lane.b32.xlu0 %v7401, 96
        %v7445 = vpop.permute.xlu0 %7444
        %7446 = vrot.lane.b32.xlu0 %v7405, 96
        %v7447 = vpop.permute.xlu0 %7446
        %7448 = vrot.lane.b32.xlu0 %v7409, 96
        %v7449 = vpop.permute.xlu0 %7448
        %7450 = vrot.lane.b32.xlu0 %v7413, 96
        %v7451 = vpop.permute.xlu0 %7450
        %7452 = vrot.lane.b32.xlu0 %v7417, 96
        %v7453 = vpop.permute.xlu0 %7452
        %7454 = vrot.lane.b32.xlu0 %v7421, 96
        %v7455 = vpop.permute.xlu0 %7454
        %7456 = vrot.lane.b32.xlu0 %v7425, 96
        %v7457 = vpop.permute.xlu0 %7456
        %7458 = vrot.lane.b32.xlu0 %v7431, 96
        %v7459 = vpop.permute.xlu0 %7458
        %vm7460 = vcmask 1045504
        %v7461 = vrot.slane %v7137, 2
        %v7462 = vrot.slane %v7138, 2
        %v7463 = vsel %vm7460, %v7461, %v7462
        %v7464 = vrot.slane %v7139, 2
        %v7465 = vsel %vm7460, %v7462, %v7464
        %v7466 = vrot.slane %v7140, 2
        %v7467 = vsel %vm7460, %v7464, %v7466
        %v7468 = vrot.slane %v7141, 2
        %v7469 = vsel %vm7460, %v7466, %v7468
        %v7470 = vrot.slane %v7142, 2
        %v7471 = vsel %vm7460, %v7468, %v7470
        %v7472 = vrot.slane %v7143, 2
        %v7473 = vsel %vm7460, %v7470, %v7472
        %v7474 = vrot.slane %v7144, 2
        %v7475 = vsel %vm7460, %v7472, %v7474
        %v7476 = vrot.slane %v7145, 2
        %v7477 = vsel %vm7460, %v7474, %v7476
        %v7478 = vrot.slane %v7146, 2
        %v7479 = vsel %vm7460, %v7476, %v7478
        %v7480 = vrot.slane %v7147, 2
        %v7481 = vsel %vm7460, %v7478, %v7480
        %v7482 = vrot.slane %v7148, 2
        %v7483 = vsel %vm7460, %v7480, %v7482
        %v7484 = vrot.slane %v7149, 2
        %v7485 = vsel %vm7460, %v7482, %v7484
        %v7486 = vrot.slane %v7150, 2
        %v7487 = vsel %vm7460, %v7484, %v7486
        %v7488 = vrot.slane %v7151, 2
        %v7489 = vsel %vm7460, %v7486, %v7488
        %vm7490 = vcmask 261120
        %v7492 = vsel %vm7490, %v7137, %v7270
        %v7494 = vsel %vm7490, %v7138, %v7272
        %v7496 = vsel %vm7490, %v7139, %v7274
        %v7498 = vsel %vm7490, %v7140, %v7276
        %v7500 = vsel %vm7490, %v7141, %v7278
        %v7502 = vsel %vm7490, %v7142, %v7280
        %v7504 = vsel %vm7490, %v7143, %v7282
        %v7506 = vsel %vm7490, %v7144, %v7284
        %v7508 = vsel %vm7490, %v7145, %v7286
        %v7510 = vsel %vm7490, %v7146, %v7288
        %v7512 = vsel %vm7490, %v7147, %v7290
        %v7514 = vsel %vm7490, %v7148, %v7292
        %v7516 = vsel %vm7490, %v7149, %v7294
        %v7518 = vsel %vm7490, %v7150, %v7296
        %vm7519 = vcmask 523264
        %v7521 = vsel %vm7519, %v7492, %v7343
        %v7523 = vsel %vm7519, %v7494, %v7345
        %v7525 = vsel %vm7519, %v7496, %v7347
        %v7527 = vsel %vm7519, %v7498, %v7349
        %v7529 = vsel %vm7519, %v7500, %v7351
        %v7531 = vsel %vm7519, %v7502, %v7353
        %v7533 = vsel %vm7519, %v7504, %v7355
        %v7535 = vsel %vm7519, %v7506, %v7357
        %v7537 = vsel %vm7519, %v7508, %v7359
        %v7539 = vsel %vm7519, %v7510, %v7361
        %v7541 = vsel %vm7519, %v7512, %v7363
        %v7543 = vsel %vm7519, %v7514, %v7365
        %v7545 = vsel %vm7519, %v7516, %v7367
        %v7547 = vsel %vm7519, %v7518, %v7369
        %vm7548 = vcmask 785408
        %v7550 = vsel %vm7548, %v7521, %v7433
        %v7553 = vsel %vm7548, %v7523, %v7435
        %v7556 = vsel %vm7548, %v7525, %v7437
        %v7559 = vsel %vm7548, %v7527, %v7439
        %v7562 = vsel %vm7548, %v7529, %v7441
        %v7565 = vsel %vm7548, %v7531, %v7443
        %v7568 = vsel %vm7548, %v7533, %v7445
        %v7571 = vsel %vm7548, %v7535, %v7447
        %v7574 = vsel %vm7548, %v7537, %v7449
        %v7577 = vsel %vm7548, %v7539, %v7451
        %v7580 = vsel %vm7548, %v7541, %v7453
        %v7583 = vsel %vm7548, %v7543, %v7455
        %v7586 = vsel %vm7548, %v7545, %v7457
        %v7589 = vsel %vm7548, %v7547, %v7459
        %v7591 = vld [vmem:[%s4] sm:$0xf]
        %v7592 = vld [vmem:[%s4 + $0x4] sm:$0xf]
        %v7593 = vld [vmem:[%s4 + $0x8] sm:$0xf]
        %v7594 = vld [vmem:[%s4 + $0xc] sm:$0xf]
        %v7595 = vld [vmem:[%s4 + $0x10] sm:$0xf]
        %v7596 = vld [vmem:[%s4 + $0x14] sm:$0xf]
        %v7597 = vld [vmem:[%s4 + $0x18] sm:$0xf]
        %v7598 = vld [vmem:[%s4 + $0x1c] sm:$0xf]
        %v7599 = vld [vmem:[%s4 + $0x20] sm:$0xf]
        %v7600 = vld [vmem:[%s4 + $0x24] sm:$0xf]
        %v7601 = vld [vmem:[%s4 + $0x28] sm:$0xf]
        %v7602 = vld [vmem:[%s4 + $0x2c] sm:$0xf]
        %v7603 = vld [vmem:[%s4 + $0x30] sm:$0xf]
        %v7604 = vld [vmem:[%s4 + $0x34] sm:$0xf]
        %v7605 = vld [vmem:[%s4 + $0x38] sm:$0xf]
        %v7606 = vld [vmem:[%s4 + $0x3c] sm:$0xf]
        %v7607 = vld [vmem:[%s4 + $0x40] sm:$0xf]
        %v7608 = vld [vmem:[%s4 + $0x44] sm:$0xf]
        %v7609 = vld [vmem:[%s4 + $0x48] sm:$0xf]
        %v7610 = vld [vmem:[%s4 + $0x4c] sm:$0xf]
        %v7611 = vld [vmem:[%s4 + $0x50] sm:$0xf]
        %v7612 = vld [vmem:[%s4 + $0x54] sm:$0xf]
        %v7613 = vld [vmem:[%s4 + $0x58] sm:$0xf]
        %v7614 = vld [vmem:[%s4 + $0x5c] sm:$0xf]
        %v7615 = vld [vmem:[%s4 + $0x60] sm:$0xf]
        %v7616 = vld [vmem:[%s4 + $0x64] sm:$0xf]
        %v7617 = vld [vmem:[%s4 + $0x68] sm:$0xf]
        %v7618 = vld [vmem:[%s4 + $0x6c] sm:$0xf]
        %v7619 = vld [vmem:[%s4 + $0x70] sm:$0xf]
        %v7620 = vld [vmem:[%s4 + $0x74] sm:$0xf]
        %v7621 = vld [vmem:[%s4 + $0x78] sm:$0xf]
        %v7622 = vld [vmem:[%s4 + $0x7c] sm:$0xf]
        %v7623 = vld [vmem:[%s4 + $0x80] sm:$0xf]
        %v7624 = vld [vmem:[%s4 + $0x84] sm:$0xf]
        %v7625 = vld [vmem:[%s4 + $0x88] sm:$0xf]
        %v7626 = vld [vmem:[%s4 + $0x8c] sm:$0xf]
        %v7627 = vld [vmem:[%s4 + $0x90] sm:$0xf]
        %v7628 = vld [vmem:[%s4 + $0x94] sm:$0xf]
        %v7629 = vld [vmem:[%s4 + $0x98] sm:$0xf]
        %v7630 = vld [vmem:[%s4 + $0x9c] sm:$0xf]
        %v7651 = vunpack.c.l.b16 %v7611
        %v7652 = vunpack.c.l.b16 %v7612
        %v7653 = vunpack.c.l.b16 %v7613
        %v7654 = vunpack.c.l.b16 %v7614
        %v7655 = vunpack.c.l.b16 %v7615
        %v7656 = vunpack.c.l.b16 %v7616
        %v7657 = vunpack.c.l.b16 %v7617
        %v7658 = vunpack.c.l.b16 %v7618
        %v7659 = vunpack.c.l.b16 %v7619
        %v7660 = vunpack.c.l.b16 %v7620
        %v7661 = vunpack.c.l.b16 %v7621
        %v7662 = vunpack.c.l.b16 %v7622
        %v7663 = vunpack.c.l.b16 %v7623
        %v7664 = vunpack.c.l.b16 %v7624
        %v7665 = vunpack.c.l.b16 %v7625
        %v7666 = vunpack.c.l.b16 %v7626
        %v7667 = vunpack.c.l.b16 %v7627
        %v7668 = vunpack.c.l.b16 %v7628
        %v7669 = vunpack.c.l.b16 %v7629
        %v7670 = vunpack.c.l.b16 %v7630
        %v7671 = vpack.c.b16 %v7652, %v7651
        %v7672 = vpack.c.b16 %v7654, %v7653
        %v7673 = vpack.c.b16 %v7656, %v7655
        %v7674 = vpack.c.b16 %v7658, %v7657
        %v7675 = vpack.c.b16 %v7660, %v7659
        %v7676 = vpack.c.b16 %v7662, %v7661
        %v7677 = vpack.c.b16 %v7664, %v7663
        %v7678 = vpack.c.b16 %v7666, %v7665
        %v7679 = vpack.c.b16 %v7668, %v7667
        %v7680 = vpack.c.b16 %v7670, %v7669
        %v7692 = vsel %vm7490, %v7465, 0
        %v7695 = vsel %vm7490, %v7467, 0
        %v7698 = vsel %vm7490, %v7469, 0
        %v7701 = vsel %vm7490, %v7471, 0
        %v7704 = vsel %vm7490, %v7473, 0
        %v7707 = vsel %vm7490, %v7475, 0
        %v7710 = vsel %vm7490, %v7477, 0
        %v7713 = vsel %vm7490, %v7479, 0
        %v7716 = vsel %vm7490, %v7481, 0
        %v7719 = vsel %vm7490, %v7483, 0
        %7721 = vmatprep.subr.bf16.mxu0 0
        %7722 = vmatpush1.bf16.msra.mxu0 %v7671
        %7723 = vmatprep.subr.bf16.mxu0 0
        %7724 = vmatpush1.bf16.msra.mxu0 %v7672
        %7725 = vmatprep.subr.bf16.mxu0 0
        %7726 = vmatpush1.bf16.msra.mxu0 %v7673
        %7727 = vmatprep.subr.bf16.mxu0 0
        %7728 = vmatpush1.bf16.msra.mxu0 %v7674
        %7729 = vmatprep.subr.bf16.mxu0 0
        %7730 = vmatpush1.bf16.msra.mxu0 %v7675
        %7731 = vmatprep.subr.bf16.mxu0 0
        %7732 = vmatpush1.bf16.msra.mxu0 %v7676
        %7733 = vmatprep.subr.bf16.mxu0 0
        %7734 = vmatpush1.bf16.msra.mxu0 %v7677
        %7735 = vmatprep.subr.bf16.mxu0 0
        %7736 = vmatpush1.bf16.msra.mxu0 %v7678
        %7737 = vmatprep.subr.bf16.mxu0 0
        %7738 = vmatpush1.bf16.msra.mxu0 %v7679
        %7739 = vmatprep.subr.bf16.mxu0 0
        %7740 = vmatpush1.bf16.msra.mxu0 %v7680
        %7741 = vmatprep.subr.bf16.mxu0 0
        %7742 = vmatpush1.bf16.msra.mxu0 0
        %7743 = vmatprep.subr.bf16.mxu0 0
        %7744 = vmatpush1.bf16.msra.mxu0 0
        %7745 = vmatprep.subr.bf16.mxu0 0
        %7746 = vmatpush1.bf16.msra.mxu0 0
        %7747 = vmatprep.subr.bf16.mxu0 0
        %7748 = vmatpush1.bf16.msra.mxu0 0
        %7749 = vmatprep.subr.bf16.mxu0 0
        %7750 = vmatpush1.bf16.msra.mxu0 0
        %7751 = vmatprep.subr.bf16.mxu0 0
        %7752 = vmatpush1.bf16.msra.mxu0 0
        %7753 = vmatprep.mubr.bf16.mxu0 %v7692
        %7754 = vmatmul.mubr.bf16.gmra.mrb[0].mxu0 %v7553
        %v7755 = vpop.f32.mrb[0].mxu0
        %v7756 = vadd.f32 0.0, %v7755
        %v7757 = vpop.f32.mrb[0].mxu0
        %v7758 = vpop.f32.mrb[0].mxu0
        %v7759 = vadd.f32 0.0, %v7758
        %v7760 = vpop.f32.mrb[0].mxu0
        %7761 = vmatprep.mubr.bf16.mxu0 %v7695
        %7762 = vmatmul.mubr.bf16.gmra.mrb[0].mxu0 %v7556
        %v7763 = vpop.f32.mrb[0].mxu0
        %v7764 = vadd.f32 0.0, %v7763
        %v7765 = vpop.f32.mrb[0].mxu0
        %v7766 = vpop.f32.mrb[0].mxu0
        %v7767 = vadd.f32 0.0, %v7766
        %v7768 = vpop.f32.mrb[0].mxu0
        %7769 = vmatprep.mubr.bf16.mxu0 %v7698
        %7770 = vmatmul.mubr.bf16.gmra.mrb[0].mxu0 %v7559
        %v7771 = vpop.f32.mrb[0].mxu0
        %v7772 = vadd.f32 0.0, %v7771
        %v7773 = vpop.f32.mrb[0].mxu0
        %v7774 = vpop.f32.mrb[0].mxu0
        %v7775 = vadd.f32 0.0, %v7774
        %v7776 = vpop.f32.mrb[0].mxu0
        %7777 = vmatprep.mubr.bf16.mxu0 %v7701
        %7778 = vmatmul.mubr.bf16.gmra.mrb[0].mxu0 %v7562
        %v7779 = vpop.f32.mrb[0].mxu0
        %v7780 = vadd.f32 0.0, %v7779
        %v7781 = vpop.f32.mrb[0].mxu0
        %v7782 = vpop.f32.mrb[0].mxu0
        %v7783 = vadd.f32 0.0, %v7782
        %v7784 = vpop.f32.mrb[0].mxu0
        %7785 = vmatprep.mubr.bf16.mxu0 %v7704
        %7786 = vmatmul.mubr.bf16.gmra.mrb[0].mxu0 %v7565
        %v7787 = vpop.f32.mrb[0].mxu0
        %v7788 = vadd.f32 0.0, %v7787
        %v7789 = vpop.f32.mrb[0].mxu0
        %v7790 = vpop.f32.mrb[0].mxu0
        %v7791 = vadd.f32 0.0, %v7790
        %v7792 = vpop.f32.mrb[0].mxu0
        %7793 = vmatprep.mubr.bf16.mxu0 %v7707
        %7794 = vmatmul.mubr.bf16.gmra.mrb[0].mxu0 %v7568
        %v7795 = vpop.f32.mrb[0].mxu0
        %v7796 = vadd.f32 0.0, %v7795
        %v7797 = vpop.f32.mrb[0].mxu0
        %v7798 = vpop.f32.mrb[0].mxu0
        %v7799 = vadd.f32 0.0, %v7798
        %v7800 = vpop.f32.mrb[0].mxu0
        %7801 = vmatprep.mubr.bf16.mxu0 %v7710
        %7802 = vmatmul.mubr.bf16.gmra.mrb[0].mxu0 %v7571
        %v7803 = vpop.f32.mrb[0].mxu0
        %v7804 = vadd.f32 0.0, %v7803
        %v7805 = vpop.f32.mrb[0].mxu0
        %v7806 = vpop.f32.mrb[0].mxu0
        %v7807 = vadd.f32 0.0, %v7806
        %v7808 = vpop.f32.mrb[0].mxu0
        %7809 = vmatprep.mubr.bf16.mxu0 %v7713
        %7810 = vmatmul.mubr.bf16.gmra.mrb[0].mxu0 %v7574
        %v7811 = vpop.f32.mrb[0].mxu0
        %v7812 = vadd.f32 0.0, %v7811
        %v7813 = vpop.f32.mrb[0].mxu0
        %v7814 = vpop.f32.mrb[0].mxu0
        %v7815 = vadd.f32 0.0, %v7814
        %v7816 = vpop.f32.mrb[0].mxu0
        %7817 = vmatprep.mubr.bf16.mxu0 %v7716
        %7818 = vmatmul.mubr.bf16.gmra.mrb[0].mxu0 %v7577
        %v7819 = vpop.f32.mrb[0].mxu0
        %v7820 = vadd.f32 0.0, %v7819
        %v7821 = vpop.f32.mrb[0].mxu0
        %v7822 = vpop.f32.mrb[0].mxu0
        %v7823 = vadd.f32 0.0, %v7822
        %v7824 = vpop.f32.mrb[0].mxu0
        %7825 = vmatprep.mubr.bf16.mxu0 %v7719
        %7826 = vmatmul.mubr.bf16.gmra.mrb[0].mxu0 %v7580
        %v7827 = vpop.f32.mrb[0].mxu0
        %v7828 = vadd.f32 0.0, %v7827
        %v7829 = vpop.f32.mrb[0].mxu0
        %v7830 = vpop.f32.mrb[0].mxu0
        %v7831 = vadd.f32 0.0, %v7830
        %v7832 = vpop.f32.mrb[0].mxu0
        %7833 = vdwg.mxu0
        %v7854 = vunpack.c.l.b16 %v7591
        %v7855 = vunpack.c.l.b16 %v7592
        %v7856 = vunpack.c.l.b16 %v7593
        %v7857 = vunpack.c.l.b16 %v7594
        %v7858 = vunpack.c.l.b16 %v7595
        %v7859 = vunpack.c.l.b16 %v7596
        %v7860 = vunpack.c.l.b16 %v7597
        %v7861 = vunpack.c.l.b16 %v7598
        %v7862 = vunpack.c.l.b16 %v7599
        %v7863 = vunpack.c.l.b16 %v7600
        %v7864 = vunpack.c.l.b16 %v7601
        %v7865 = vunpack.c.l.b16 %v7602
        %v7866 = vunpack.c.l.b16 %v7603
        %v7867 = vunpack.c.l.b16 %v7604
        %v7868 = vunpack.c.l.b16 %v7605
        %v7869 = vunpack.c.l.b16 %v7606
        %v7870 = vunpack.c.l.b16 %v7607
        %v7871 = vunpack.c.l.b16 %v7608
        %v7872 = vunpack.c.l.b16 %v7609
        %v7873 = vunpack.c.l.b16 %v7610
        %v7874 = vpack.c.b16 %v7855, %v7854
        %v7875 = vpack.c.b16 %v7857, %v7856
        %v7876 = vpack.c.b16 %v7859, %v7858
        %v7877 = vpack.c.b16 %v7861, %v7860
        %v7878 = vpack.c.b16 %v7863, %v7862
        %v7879 = vpack.c.b16 %v7865, %v7864
        %v7880 = vpack.c.b16 %v7867, %v7866
        %v7881 = vpack.c.b16 %v7869, %v7868
        %v7882 = vpack.c.b16 %v7871, %v7870
        %v7883 = vpack.c.b16 %v7873, %v7872
        %v7895 = vsel %vm7490, %v7463, 0
        %7897 = vmatprep.subr.bf16.mxu0 0
        %7898 = vmatpush1.bf16.msra.mxu0 %v7874
        %7899 = vmatprep.subr.bf16.mxu0 0
        %7900 = vmatpush1.bf16.msra.mxu0 %v7875
        %7901 = vmatprep.subr.bf16.mxu0 0
        %7902 = vmatpush1.bf16.msra.mxu0 %v7876
        %7903 = vmatprep.subr.bf16.mxu0 0
        %7904 = vmatpush1.bf16.msra.mxu0 %v7877
        %7905 = vmatprep.subr.bf16.mxu0 0
        %7906 = vmatpush1.bf16.msra.mxu0 %v7878
        %7907 = vmatprep.subr.bf16.mxu0 0
        %7908 = vmatpush1.bf16.msra.mxu0 %v7879
        %7909 = vmatprep.subr.bf16.mxu0 0
        %7910 = vmatpush1.bf16.msra.mxu0 %v7880
        %7911 = vmatprep.subr.bf16.mxu0 0
        %7912 = vmatpush1.bf16.msra.mxu0 %v7881
        %7913 = vmatprep.subr.bf16.mxu0 0
        %7914 = vmatpush1.bf16.msra.mxu0 %v7882
        %7915 = vmatprep.subr.bf16.mxu0 0
        %7916 = vmatpush1.bf16.msra.mxu0 %v7883
        %7917 = vmatprep.subr.bf16.mxu0 0
        %7918 = vmatpush1.bf16.msra.mxu0 0
        %7919 = vmatprep.subr.bf16.mxu0 0
        %7920 = vmatpush1.bf16.msra.mxu0 0
        %7921 = vmatprep.subr.bf16.mxu0 0
        %7922 = vmatpush1.bf16.msra.mxu0 0
        %7923 = vmatprep.subr.bf16.mxu0 0
        %7924 = vmatpush1.bf16.msra.mxu0 0
        %7925 = vmatprep.subr.bf16.mxu0 0
        %7926 = vmatpush1.bf16.msra.mxu0 0
        %7927 = vmatprep.subr.bf16.mxu0 0
        %7928 = vmatpush1.bf16.msra.mxu0 0
        %7929 = vmatprep.mubr.bf16.mxu0 %v7895
        %7930 = vmatmul.mubr.bf16.gmra.mrb[0].mxu0 %v7550
        %v7931 = vpop.f32.mrb[0].mxu0
        %v7932 = vadd.f32 %v7756, %v7931
        %v7933 = vpop.f32.mrb[0].mxu0
        %v7934 = vpop.f32.mrb[0].mxu0
        %v7935 = vadd.f32 %v7759, %v7934
        %v7936 = vpop.f32.mrb[0].mxu0
        %7937 = vmatprep.mubr.bf16.mxu0 %v7692
        %7938 = vmatmul.mubr.bf16.gmra.mrb[0].mxu0 %v7553
        %v7939 = vpop.f32.mrb[0].mxu0
        %v7940 = vadd.f32 %v7764, %v7939
        %v7941 = vpop.f32.mrb[0].mxu0
        %v7942 = vpop.f32.mrb[0].mxu0
        %v7943 = vadd.f32 %v7767, %v7942
        %v7944 = vpop.f32.mrb[0].mxu0
        %7945 = vmatprep.mubr.bf16.mxu0 %v7695
        %7946 = vmatmul.mubr.bf16.gmra.mrb[0].mxu0 %v7556
        %v7947 = vpop.f32.mrb[0].mxu0
        %v7948 = vadd.f32 %v7772, %v7947
        %v7949 = vpop.f32.mrb[0].mxu0
        %v7950 = vpop.f32.mrb[0].mxu0
        %v7951 = vadd.f32 %v7775, %v7950
        %v7952 = vpop.f32.mrb[0].mxu0
        %7953 = vmatprep.mubr.bf16.mxu0 %v7698
        %7954 = vmatmul.mubr.bf16.gmra.mrb[0].mxu0 %v7559
        %v7955 = vpop.f32.mrb[0].mxu0
        %v7956 = vadd.f32 %v7780, %v7955
        %v7957 = vpop.f32.mrb[0].mxu0
        %v7958 = vpop.f32.mrb[0].mxu0
        %v7959 = vadd.f32 %v7783, %v7958
        %v7960 = vpop.f32.mrb[0].mxu0
        %7961 = vmatprep.mubr.bf16.mxu0 %v7701
        %7962 = vmatmul.mubr.bf16.gmra.mrb[0].mxu0 %v7562
        %v7963 = vpop.f32.mrb[0].mxu0
        %v7964 = vadd.f32 %v7788, %v7963
        %v7965 = vpop.f32.mrb[0].mxu0
        %v7966 = vpop.f32.mrb[0].mxu0
        %v7967 = vadd.f32 %v7791, %v7966
        %v7968 = vpop.f32.mrb[0].mxu0
        %7969 = vmatprep.mubr.bf16.mxu0 %v7704
        %7970 = vmatmul.mubr.bf16.gmra.mrb[0].mxu0 %v7565
        %v7971 = vpop.f32.mrb[0].mxu0
        %v7972 = vadd.f32 %v7796, %v7971
        %v7973 = vpop.f32.mrb[0].mxu0
        %v7974 = vpop.f32.mrb[0].mxu0
        %v7975 = vadd.f32 %v7799, %v7974
        %v7976 = vpop.f32.mrb[0].mxu0
        %7977 = vmatprep.mubr.bf16.mxu0 %v7707
        %7978 = vmatmul.mubr.bf16.gmra.mrb[0].mxu0 %v7568
        %v7979 = vpop.f32.mrb[0].mxu0
        %v7980 = vadd.f32 %v7804, %v7979
        %v7981 = vpop.f32.mrb[0].mxu0
        %v7982 = vpop.f32.mrb[0].mxu0
        %v7983 = vadd.f32 %v7807, %v7982
        %v7984 = vpop.f32.mrb[0].mxu0
        %7985 = vmatprep.mubr.bf16.mxu0 %v7710
        %7986 = vmatmul.mubr.bf16.gmra.mrb[0].mxu0 %v7571
        %v7987 = vpop.f32.mrb[0].mxu0
        %v7988 = vadd.f32 %v7812, %v7987
        %v7989 = vpop.f32.mrb[0].mxu0
        %v7990 = vpop.f32.mrb[0].mxu0
        %v7991 = vadd.f32 %v7815, %v7990
        %v7992 = vpop.f32.mrb[0].mxu0
        %7993 = vmatprep.mubr.bf16.mxu0 %v7713
        %7994 = vmatmul.mubr.bf16.gmra.mrb[0].mxu0 %v7574
        %v7995 = vpop.f32.mrb[0].mxu0
        %v7996 = vadd.f32 %v7820, %v7995
        %v7997 = vpop.f32.mrb[0].mxu0
        %v7998 = vpop.f32.mrb[0].mxu0
        %v7999 = vadd.f32 %v7823, %v7998
        %v8000 = vpop.f32.mrb[0].mxu0
        %8001 = vmatprep.mubr.bf16.mxu0 %v7716
        %8002 = vmatmul.mubr.bf16.gmra.mrb[0].mxu0 %v7577
        %v8003 = vpop.f32.mrb[0].mxu0
        %v8004 = vadd.f32 %v7828, %v8003
        %v8005 = vpop.f32.mrb[0].mxu0
        %v8006 = vpop.f32.mrb[0].mxu0
        %v8007 = vadd.f32 %v7831, %v8006
        %v8008 = vpop.f32.mrb[0].mxu0
        %8009 = vdwg.mxu0
        %v8010 = vld [vmem:[%s4 + $0xa0] sm:$0xf]
        %v8011 = vld [vmem:[%s4 + $0xa4] sm:$0xf]
        %v8012 = vld [vmem:[%s4 + $0xa8] sm:$0xf]
        %v8013 = vld [vmem:[%s4 + $0xac] sm:$0xf]
        %v8014 = vld [vmem:[%s4 + $0xb0] sm:$0xf]
        %v8015 = vld [vmem:[%s4 + $0xb4] sm:$0xf]
        %v8016 = vld [vmem:[%s4 + $0xb8] sm:$0xf]
        %v8017 = vld [vmem:[%s4 + $0xbc] sm:$0xf]
        %v8018 = vld [vmem:[%s4 + $0xc0] sm:$0xf]
        %v8019 = vld [vmem:[%s4 + $0xc4] sm:$0xf]
        %v8020 = vld [vmem:[%s4 + $0xc8] sm:$0xf]
        %v8021 = vld [vmem:[%s4 + $0xcc] sm:$0xf]
        %v8022 = vld [vmem:[%s4 + $0xd0] sm:$0xf]
        %v8023 = vld [vmem:[%s4 + $0xd4] sm:$0xf]
        %v8024 = vld [vmem:[%s4 + $0xd8] sm:$0xf]
        %v8025 = vld [vmem:[%s4 + $0xdc] sm:$0xf]
        %v8026 = vld [vmem:[%s4 + $0xe0] sm:$0xf]
        %v8027 = vld [vmem:[%s4 + $0xe4] sm:$0xf]
        %v8028 = vld [vmem:[%s4 + $0xe8] sm:$0xf]
        %v8029 = vld [vmem:[%s4 + $0xec] sm:$0xf]
        %v8050 = vunpack.c.l.b16 %v8010
        %v8051 = vunpack.c.l.b16 %v8011
        %v8052 = vunpack.c.l.b16 %v8012
        %v8053 = vunpack.c.l.b16 %v8013
        %v8054 = vunpack.c.l.b16 %v8014
        %v8055 = vunpack.c.l.b16 %v8015
        %v8056 = vunpack.c.l.b16 %v8016
        %v8057 = vunpack.c.l.b16 %v8017
        %v8058 = vunpack.c.l.b16 %v8018
        %v8059 = vunpack.c.l.b16 %v8019
        %v8060 = vunpack.c.l.b16 %v8020
        %v8061 = vunpack.c.l.b16 %v8021
        %v8062 = vunpack.c.l.b16 %v8022
        %v8063 = vunpack.c.l.b16 %v8023
        %v8064 = vunpack.c.l.b16 %v8024
        %v8065 = vunpack.c.l.b16 %v8025
        %v8066 = vunpack.c.l.b16 %v8026
        %v8067 = vunpack.c.l.b16 %v8027
        %v8068 = vunpack.c.l.b16 %v8028
        %v8069 = vunpack.c.l.b16 %v8029
        %v8070 = vpack.c.b16 %v8051, %v8050
        %v8071 = vpack.c.b16 %v8053, %v8052
        %v8072 = vpack.c.b16 %v8055, %v8054
        %v8073 = vpack.c.b16 %v8057, %v8056
        %v8074 = vpack.c.b16 %v8059, %v8058
        %v8075 = vpack.c.b16 %v8061, %v8060
        %v8076 = vpack.c.b16 %v8063, %v8062
        %v8077 = vpack.c.b16 %v8065, %v8064
        %v8078 = vpack.c.b16 %v8067, %v8066
        %v8079 = vpack.c.b16 %v8069, %v8068
        %v8091 = vsel %vm7490, %v7485, 0
        %8093 = vmatprep.subr.bf16.mxu0 0
        %8094 = vmatpush1.bf16.msra.mxu0 %v8070
        %8095 = vmatprep.subr.bf16.mxu0 0
        %8096 = vmatpush1.bf16.msra.mxu0 %v8071
        %8097 = vmatprep.subr.bf16.mxu0 0
        %8098 = vmatpush1.bf16.msra.mxu0 %v8072
        %8099 = vmatprep.subr.bf16.mxu0 0
        %8100 = vmatpush1.bf16.msra.mxu0 %v8073
        %8101 = vmatprep.subr.bf16.mxu0 0
        %8102 = vmatpush1.bf16.msra.mxu0 %v8074
        %8103 = vmatprep.subr.bf16.mxu0 0
        %8104 = vmatpush1.bf16.msra.mxu0 %v8075
        %8105 = vmatprep.subr.bf16.mxu0 0
        %8106 = vmatpush1.bf16.msra.mxu0 %v8076
        %8107 = vmatprep.subr.bf16.mxu0 0
        %8108 = vmatpush1.bf16.msra.mxu0 %v8077
        %8109 = vmatprep.subr.bf16.mxu0 0
        %8110 = vmatpush1.bf16.msra.mxu0 %v8078
        %8111 = vmatprep.subr.bf16.mxu0 0
        %8112 = vmatpush1.bf16.msra.mxu0 %v8079
        %8113 = vmatprep.subr.bf16.mxu0 0
        %8114 = vmatpush1.bf16.msra.mxu0 0
        %8115 = vmatprep.subr.bf16.mxu0 0
        %8116 = vmatpush1.bf16.msra.mxu0 0
        %8117 = vmatprep.subr.bf16.mxu0 0
        %8118 = vmatpush1.bf16.msra.mxu0 0
        %8119 = vmatprep.subr.bf16.mxu0 0
        %8120 = vmatpush1.bf16.msra.mxu0 0
        %8121 = vmatprep.subr.bf16.mxu0 0
        %8122 = vmatpush1.bf16.msra.mxu0 0
        %8123 = vmatprep.subr.bf16.mxu0 0
        %8124 = vmatpush1.bf16.msra.mxu0 0
        %8125 = vmatprep.mubr.bf16.mxu0 %v7695
        %8126 = vmatmul.mubr.bf16.gmra.mrb[0].mxu0 %v7556
        %v8127 = vpop.f32.mrb[0].mxu0
        %v8128 = vadd.f32 0.0, %v8127
        %v8129 = vpop.f32.mrb[0].mxu0
        %v8130 = vpop.f32.mrb[0].mxu0
        %v8131 = vadd.f32 0.0, %v8130
        %v8132 = vpop.f32.mrb[0].mxu0
        %8133 = vmatprep.mubr.bf16.mxu0 %v7698
        %8134 = vmatmul.mubr.bf16.gmra.mrb[0].mxu0 %v7559
        %v8135 = vpop.f32.mrb[0].mxu0
        %v8136 = vadd.f32 0.0, %v8135
        %v8137 = vpop.f32.mrb[0].mxu0
        %v8138 = vpop.f32.mrb[0].mxu0
        %v8139 = vadd.f32 0.0, %v8138
        %v8140 = vpop.f32.mrb[0].mxu0
        %8141 = vmatprep.mubr.bf16.mxu0 %v7701
        %8142 = vmatmul.mubr.bf16.gmra.mrb[0].mxu0 %v7562
        %v8143 = vpop.f32.mrb[0].mxu0
        %v8144 = vadd.f32 0.0, %v8143
        %v8145 = vpop.f32.mrb[0].mxu0
        %v8146 = vpop.f32.mrb[0].mxu0
        %v8147 = vadd.f32 0.0, %v8146
        %v8148 = vpop.f32.mrb[0].mxu0
        %8149 = vmatprep.mubr.bf16.mxu0 %v7704
        %8150 = vmatmul.mubr.bf16.gmra.mrb[0].mxu0 %v7565
        %v8151 = vpop.f32.mrb[0].mxu0
        %v8152 = vadd.f32 0.0, %v8151
        %v8153 = vpop.f32.mrb[0].mxu0
        %v8154 = vpop.f32.mrb[0].mxu0
        %v8155 = vadd.f32 0.0, %v8154
        %v8156 = vpop.f32.mrb[0].mxu0
        %8157 = vmatprep.mubr.bf16.mxu0 %v7707
        %8158 = vmatmul.mubr.bf16.gmra.mrb[0].mxu0 %v7568
        %v8159 = vpop.f32.mrb[0].mxu0
        %v8160 = vadd.f32 0.0, %v8159
        %v8161 = vpop.f32.mrb[0].mxu0
        %v8162 = vpop.f32.mrb[0].mxu0
        %v8163 = vadd.f32 0.0, %v8162
        %v8164 = vpop.f32.mrb[0].mxu0
        %8165 = vmatprep.mubr.bf16.mxu0 %v7710
        %8166 = vmatmul.mubr.bf16.gmra.mrb[0].mxu0 %v7571
        %v8167 = vpop.f32.mrb[0].mxu0
        %v8168 = vadd.f32 0.0, %v8167
        %v8169 = vpop.f32.mrb[0].mxu0
        %v8170 = vpop.f32.mrb[0].mxu0
        %v8171 = vadd.f32 0.0, %v8170
        %v8172 = vpop.f32.mrb[0].mxu0
        %8173 = vmatprep.mubr.bf16.mxu0 %v7713
        %8174 = vmatmul.mubr.bf16.gmra.mrb[0].mxu0 %v7574
        %v8175 = vpop.f32.mrb[0].mxu0
        %v8176 = vadd.f32 0.0, %v8175
        %v8177 = vpop.f32.mrb[0].mxu0
        %v8178 = vpop.f32.mrb[0].mxu0
        %v8179 = vadd.f32 0.0, %v8178
        %v8180 = vpop.f32.mrb[0].mxu0
        %8181 = vmatprep.mubr.bf16.mxu0 %v7716
        %8182 = vmatmul.mubr.bf16.gmra.mrb[0].mxu0 %v7577
        %v8183 = vpop.f32.mrb[0].mxu0
        %v8184 = vadd.f32 0.0, %v8183
        %v8185 = vpop.f32.mrb[0].mxu0
        %v8186 = vpop.f32.mrb[0].mxu0
        %v8187 = vadd.f32 0.0, %v8186
        %v8188 = vpop.f32.mrb[0].mxu0
        %8189 = vmatprep.mubr.bf16.mxu0 %v7719
        %8190 = vmatmul.mubr.bf16.gmra.mrb[0].mxu0 %v7580
        %v8191 = vpop.f32.mrb[0].mxu0
        %v8192 = vadd.f32 0.0, %v8191
        %v8193 = vpop.f32.mrb[0].mxu0
        %v8194 = vpop.f32.mrb[0].mxu0
        %v8195 = vadd.f32 0.0, %v8194
        %v8196 = vpop.f32.mrb[0].mxu0
        %8197 = vmatprep.mubr.bf16.mxu0 %v8091
        %8198 = vmatmul.mubr.bf16.gmra.mrb[0].mxu0 %v7583
        %v8199 = vpop.f32.mrb[0].mxu0
        %v8200 = vadd.f32 0.0, %v8199
        %v8201 = vpop.f32.mrb[0].mxu0
        %v8202 = vpop.f32.mrb[0].mxu0
        %v8203 = vadd.f32 0.0, %v8202
        %v8204 = vpop.f32.mrb[0].mxu0
        %8205 = vdwg.mxu0
        %v8206 = vadd.f32 %v7932, %v8128
        %v8207 = vadd.f32 %v7935, %v8131
        %v8208 = vadd.f32 %v7940, %v8136
        %v8209 = vadd.f32 %v7943, %v8139
        %v8210 = vadd.f32 %v7948, %v8144
        %v8211 = vadd.f32 %v7951, %v8147
        %v8212 = vadd.f32 %v7956, %v8152
        %v8213 = vadd.f32 %v7959, %v8155
        %v8214 = vadd.f32 %v7964, %v8160
        %v8215 = vadd.f32 %v7967, %v8163
        %v8216 = vadd.f32 %v7972, %v8168
        %v8217 = vadd.f32 %v7975, %v8171
        %v8218 = vadd.f32 %v7980, %v8176
        %v8219 = vadd.f32 %v7983, %v8179
        %v8220 = vadd.f32 %v7988, %v8184
        %v8221 = vadd.f32 %v7991, %v8187
        %v8222 = vadd.f32 %v7996, %v8192
        %v8223 = vadd.f32 %v7999, %v8195
        %v8224 = vadd.f32 %v8004, %v8200
        %v8225 = vadd.f32 %v8007, %v8203
        %v8226 = vld [vmem:[%s4 + $0xf0] sm:$0xf]
        %v8227 = vld [vmem:[%s4 + $0xf4] sm:$0xf]
        %v8228 = vld [vmem:[%s4 + $0xf8] sm:$0xf]
        %v8229 = vld [vmem:[%s4 + $0xfc] sm:$0xf]
        %v8230 = vld [vmem:[%s4 + $0x100] sm:$0xf]
        %v8231 = vld [vmem:[%s4 + $0x104] sm:$0xf]
        %v8232 = vld [vmem:[%s4 + $0x108] sm:$0xf]
        %v8233 = vld [vmem:[%s4 + $0x10c] sm:$0xf]
        %v8234 = vld [vmem:[%s4 + $0x110] sm:$0xf]
        %v8235 = vld [vmem:[%s4 + $0x114] sm:$0xf]
        %v8236 = vld [vmem:[%s4 + $0x118] sm:$0xf]
        %v8237 = vld [vmem:[%s4 + $0x11c] sm:$0xf]
        %v8238 = vld [vmem:[%s4 + $0x120] sm:$0xf]
        %v8239 = vld [vmem:[%s4 + $0x124] sm:$0xf]
        %v8240 = vld [vmem:[%s4 + $0x128] sm:$0xf]
        %v8241 = vld [vmem:[%s4 + $0x12c] sm:$0xf]
        %v8242 = vld [vmem:[%s4 + $0x130] sm:$0xf]
        %v8243 = vld [vmem:[%s4 + $0x134] sm:$0xf]
        %v8244 = vld [vmem:[%s4 + $0x138] sm:$0xf]
        %v8245 = vld [vmem:[%s4 + $0x13c] sm:$0xf]
        %v8266 = vunpack.c.l.b16 %v8226
        %v8267 = vunpack.c.l.b16 %v8227
        %v8268 = vunpack.c.l.b16 %v8228
        %v8269 = vunpack.c.l.b16 %v8229
        %v8270 = vunpack.c.l.b16 %v8230
        %v8271 = vunpack.c.l.b16 %v8231
        %v8272 = vunpack.c.l.b16 %v8232
        %v8273 = vunpack.c.l.b16 %v8233
        %v8274 = vunpack.c.l.b16 %v8234
        %v8275 = vunpack.c.l.b16 %v8235
        %v8276 = vunpack.c.l.b16 %v8236
        %v8277 = vunpack.c.l.b16 %v8237
        %v8278 = vunpack.c.l.b16 %v8238
        %v8279 = vunpack.c.l.b16 %v8239
        %v8280 = vunpack.c.l.b16 %v8240
        %v8281 = vunpack.c.l.b16 %v8241
        %v8282 = vunpack.c.l.b16 %v8242
        %v8283 = vunpack.c.l.b16 %v8243
        %v8284 = vunpack.c.l.b16 %v8244
        %v8285 = vunpack.c.l.b16 %v8245
        %v8286 = vpack.c.b16 %v8267, %v8266
        %v8287 = vpack.c.b16 %v8269, %v8268
        %v8288 = vpack.c.b16 %v8271, %v8270
        %v8289 = vpack.c.b16 %v8273, %v8272
        %v8290 = vpack.c.b16 %v8275, %v8274
        %v8291 = vpack.c.b16 %v8277, %v8276
        %v8292 = vpack.c.b16 %v8279, %v8278
        %v8293 = vpack.c.b16 %v8281, %v8280
        %v8294 = vpack.c.b16 %v8283, %v8282
        %v8295 = vpack.c.b16 %v8285, %v8284
        %v8307 = vsel %vm7490, %v7487, 0
        %8309 = vmatprep.subr.bf16.mxu0 0
        %8310 = vmatpush1.bf16.msra.mxu0 %v8286
        %8311 = vmatprep.subr.bf16.mxu0 0
        %8312 = vmatpush1.bf16.msra.mxu0 %v8287
        %8313 = vmatprep.subr.bf16.mxu0 0
        %8314 = vmatpush1.bf16.msra.mxu0 %v8288
        %8315 = vmatprep.subr.bf16.mxu0 0
        %8316 = vmatpush1.bf16.msra.mxu0 %v8289
        %8317 = vmatprep.subr.bf16.mxu0 0
        %8318 = vmatpush1.bf16.msra.mxu0 %v8290
        %8319 = vmatprep.subr.bf16.mxu0 0
        %8320 = vmatpush1.bf16.msra.mxu0 %v8291
        %8321 = vmatprep.subr.bf16.mxu0 0
        %8322 = vmatpush1.bf16.msra.mxu0 %v8292
        %8323 = vmatprep.subr.bf16.mxu0 0
        %8324 = vmatpush1.bf16.msra.mxu0 %v8293
        %8325 = vmatprep.subr.bf16.mxu0 0
        %8326 = vmatpush1.bf16.msra.mxu0 %v8294
        %8327 = vmatprep.subr.bf16.mxu0 0
        %8328 = vmatpush1.bf16.msra.mxu0 %v8295
        %8329 = vmatprep.subr.bf16.mxu0 0
        %8330 = vmatpush1.bf16.msra.mxu0 0
        %8331 = vmatprep.subr.bf16.mxu0 0
        %8332 = vmatpush1.bf16.msra.mxu0 0
        %8333 = vmatprep.subr.bf16.mxu0 0
        %8334 = vmatpush1.bf16.msra.mxu0 0
        %8335 = vmatprep.subr.bf16.mxu0 0
        %8336 = vmatpush1.bf16.msra.mxu0 0
        %8337 = vmatprep.subr.bf16.mxu0 0
        %8338 = vmatpush1.bf16.msra.mxu0 0
        %8339 = vmatprep.subr.bf16.mxu0 0
        %8340 = vmatpush1.bf16.msra.mxu0 0
        %8341 = vmatprep.mubr.bf16.mxu0 %v7698
        %8342 = vmatmul.mubr.bf16.gmra.mrb[0].mxu0 %v7559
        %v8343 = vpop.f32.mrb[0].mxu0
        %v8344 = vadd.f32 0.0, %v8343
        %v8345 = vpop.f32.mrb[0].mxu0
        %v8346 = vpop.f32.mrb[0].mxu0
        %v8347 = vadd.f32 0.0, %v8346
        %v8348 = vpop.f32.mrb[0].mxu0
        %8349 = vmatprep.mubr.bf16.mxu0 %v7701
        %8350 = vmatmul.mubr.bf16.gmra.mrb[0].mxu0 %v7562
        %v8351 = vpop.f32.mrb[0].mxu0
        %v8352 = vadd.f32 0.0, %v8351
        %v8353 = vpop.f32.mrb[0].mxu0
        %v8354 = vpop.f32.mrb[0].mxu0
        %v8355 = vadd.f32 0.0, %v8354
        %v8356 = vpop.f32.mrb[0].mxu0
        %8357 = vmatprep.mubr.bf16.mxu0 %v7704
        %8358 = vmatmul.mubr.bf16.gmra.mrb[0].mxu0 %v7565
        %v8359 = vpop.f32.mrb[0].mxu0
        %v8360 = vadd.f32 0.0, %v8359
        %v8361 = vpop.f32.mrb[0].mxu0
        %v8362 = vpop.f32.mrb[0].mxu0
        %v8363 = vadd.f32 0.0, %v8362
        %v8364 = vpop.f32.mrb[0].mxu0
        %8365 = vmatprep.mubr.bf16.mxu0 %v7707
        %8366 = vmatmul.mubr.bf16.gmra.mrb[0].mxu0 %v7568
        %v8367 = vpop.f32.mrb[0].mxu0
        %v8368 = vadd.f32 0.0, %v8367
        %v8369 = vpop.f32.mrb[0].mxu0
        %v8370 = vpop.f32.mrb[0].mxu0
        %v8371 = vadd.f32 0.0, %v8370
        %v8372 = vpop.f32.mrb[0].mxu0
        %8373 = vmatprep.mubr.bf16.mxu0 %v7710
        %8374 = vmatmul.mubr.bf16.gmra.mrb[0].mxu0 %v7571
        %v8375 = vpop.f32.mrb[0].mxu0
        %v8376 = vadd.f32 0.0, %v8375
        %v8377 = vpop.f32.mrb[0].mxu0
        %v8378 = vpop.f32.mrb[0].mxu0
        %v8379 = vadd.f32 0.0, %v8378
        %v8380 = vpop.f32.mrb[0].mxu0
        %8381 = vmatprep.mubr.bf16.mxu0 %v7713
        %8382 = vmatmul.mubr.bf16.gmra.mrb[0].mxu0 %v7574
        %v8383 = vpop.f32.mrb[0].mxu0
        %v8384 = vadd.f32 0.0, %v8383
        %v8385 = vpop.f32.mrb[0].mxu0
        %v8386 = vpop.f32.mrb[0].mxu0
        %v8387 = vadd.f32 0.0, %v8386
        %v8388 = vpop.f32.mrb[0].mxu0
        %8389 = vmatprep.mubr.bf16.mxu0 %v7716
        %8390 = vmatmul.mubr.bf16.gmra.mrb[0].mxu0 %v7577
        %v8391 = vpop.f32.mrb[0].mxu0
        %v8392 = vadd.f32 0.0, %v8391
        %v8393 = vpop.f32.mrb[0].mxu0
        %v8394 = vpop.f32.mrb[0].mxu0
        %v8395 = vadd.f32 0.0, %v8394
        %v8396 = vpop.f32.mrb[0].mxu0
        %8397 = vmatprep.mubr.bf16.mxu0 %v7719
        %8398 = vmatmul.mubr.bf16.gmra.mrb[0].mxu0 %v7580
        %v8399 = vpop.f32.mrb[0].mxu0
        %v8400 = vadd.f32 0.0, %v8399
        %v8401 = vpop.f32.mrb[0].mxu0
        %v8402 = vpop.f32.mrb[0].mxu0
        %v8403 = vadd.f32 0.0, %v8402
        %v8404 = vpop.f32.mrb[0].mxu0
        %8405 = vmatprep.mubr.bf16.mxu0 %v8091
        %8406 = vmatmul.mubr.bf16.gmra.mrb[0].mxu0 %v7583
        %v8407 = vpop.f32.mrb[0].mxu0
        %v8408 = vadd.f32 0.0, %v8407
        %v8409 = vpop.f32.mrb[0].mxu0
        %v8410 = vpop.f32.mrb[0].mxu0
        %v8411 = vadd.f32 0.0, %v8410
        %v8412 = vpop.f32.mrb[0].mxu0
        %8413 = vmatprep.mubr.bf16.mxu0 %v8307
        %8414 = vmatmul.mubr.bf16.gmra.mrb[0].mxu0 %v7586
        %v8415 = vpop.f32.mrb[0].mxu0
        %v8416 = vadd.f32 0.0, %v8415
        %v8417 = vpop.f32.mrb[0].mxu0
        %v8418 = vpop.f32.mrb[0].mxu0
        %v8419 = vadd.f32 0.0, %v8418
        %v8420 = vpop.f32.mrb[0].mxu0
        %8421 = vdwg.mxu0
        %v8422 = vadd.f32 %v8206, %v8344
        %v8423 = vadd.f32 %v8207, %v8347
        %v8424 = vadd.f32 %v8208, %v8352
        %v8425 = vadd.f32 %v8209, %v8355
        %v8426 = vadd.f32 %v8210, %v8360
        %v8427 = vadd.f32 %v8211, %v8363
        %v8428 = vadd.f32 %v8212, %v8368
        %v8429 = vadd.f32 %v8213, %v8371
        %v8430 = vadd.f32 %v8214, %v8376
        %v8431 = vadd.f32 %v8215, %v8379
        %v8432 = vadd.f32 %v8216, %v8384
        %v8433 = vadd.f32 %v8217, %v8387
        %v8434 = vadd.f32 %v8218, %v8392
        %v8435 = vadd.f32 %v8219, %v8395
        %v8436 = vadd.f32 %v8220, %v8400
        %v8437 = vadd.f32 %v8221, %v8403
        %v8438 = vadd.f32 %v8222, %v8408
        %v8439 = vadd.f32 %v8223, %v8411
        %v8440 = vadd.f32 %v8224, %v8416
        %v8441 = vadd.f32 %v8225, %v8419
        %v8442 = vld [vmem:[%s4 + $0x140] sm:$0xf]
        %v8443 = vld [vmem:[%s4 + $0x144] sm:$0xf]
        %v8444 = vld [vmem:[%s4 + $0x148] sm:$0xf]
        %v8445 = vld [vmem:[%s4 + $0x14c] sm:$0xf]
        %v8446 = vld [vmem:[%s4 + $0x150] sm:$0xf]
        %v8447 = vld [vmem:[%s4 + $0x154] sm:$0xf]
        %v8448 = vld [vmem:[%s4 + $0x158] sm:$0xf]
        %v8449 = vld [vmem:[%s4 + $0x15c] sm:$0xf]
        %v8450 = vld [vmem:[%s4 + $0x160] sm:$0xf]
        %v8451 = vld [vmem:[%s4 + $0x164] sm:$0xf]
        %v8452 = vld [vmem:[%s4 + $0x168] sm:$0xf]
        %v8453 = vld [vmem:[%s4 + $0x16c] sm:$0xf]
        %v8454 = vld [vmem:[%s4 + $0x170] sm:$0xf]
        %v8455 = vld [vmem:[%s4 + $0x174] sm:$0xf]
        %v8456 = vld [vmem:[%s4 + $0x178] sm:$0xf]
        %v8457 = vld [vmem:[%s4 + $0x17c] sm:$0xf]
        %v8458 = vld [vmem:[%s4 + $0x180] sm:$0xf]
        %v8459 = vld [vmem:[%s4 + $0x184] sm:$0xf]
        %v8460 = vld [vmem:[%s4 + $0x188] sm:$0xf]
        %v8461 = vld [vmem:[%s4 + $0x18c] sm:$0xf]
        %v8482 = vunpack.c.l.b16 %v8442
        %v8483 = vunpack.c.l.b16 %v8443
        %v8484 = vunpack.c.l.b16 %v8444
        %v8485 = vunpack.c.l.b16 %v8445
        %v8486 = vunpack.c.l.b16 %v8446
        %v8487 = vunpack.c.l.b16 %v8447
        %v8488 = vunpack.c.l.b16 %v8448
        %v8489 = vunpack.c.l.b16 %v8449
        %v8490 = vunpack.c.l.b16 %v8450
        %v8491 = vunpack.c.l.b16 %v8451
        %v8492 = vunpack.c.l.b16 %v8452
        %v8493 = vunpack.c.l.b16 %v8453
        %v8494 = vunpack.c.l.b16 %v8454
        %v8495 = vunpack.c.l.b16 %v8455
        %v8496 = vunpack.c.l.b16 %v8456
        %v8497 = vunpack.c.l.b16 %v8457
        %v8498 = vunpack.c.l.b16 %v8458
        %v8499 = vunpack.c.l.b16 %v8459
        %v8500 = vunpack.c.l.b16 %v8460
        %v8501 = vunpack.c.l.b16 %v8461
        %v8502 = vpack.c.b16 %v8483, %v8482
        %v8503 = vpack.c.b16 %v8485, %v8484
        %v8504 = vpack.c.b16 %v8487, %v8486
        %v8505 = vpack.c.b16 %v8489, %v8488
        %v8506 = vpack.c.b16 %v8491, %v8490
        %v8507 = vpack.c.b16 %v8493, %v8492
        %v8508 = vpack.c.b16 %v8495, %v8494
        %v8509 = vpack.c.b16 %v8497, %v8496
        %v8510 = vpack.c.b16 %v8499, %v8498
        %v8511 = vpack.c.b16 %v8501, %v8500
        %v8523 = vsel %vm7490, %v7489, 0
        %8525 = vmatprep.subr.bf16.mxu0 0
        %8526 = vmatpush1.bf16.msra.mxu0 %v8502
        %8527 = vmatprep.subr.bf16.mxu0 0
        %8528 = vmatpush1.bf16.msra.mxu0 %v8503
        %8529 = vmatprep.subr.bf16.mxu0 0
        %8530 = vmatpush1.bf16.msra.mxu0 %v8504
        %8531 = vmatprep.subr.bf16.mxu0 0
        %8532 = vmatpush1.bf16.msra.mxu0 %v8505
        %8533 = vmatprep.subr.bf16.mxu0 0
        %8534 = vmatpush1.bf16.msra.mxu0 %v8506
        %8535 = vmatprep.subr.bf16.mxu0 0
        %8536 = vmatpush1.bf16.msra.mxu0 %v8507
        %8537 = vmatprep.subr.bf16.mxu0 0
        %8538 = vmatpush1.bf16.msra.mxu0 %v8508
        %8539 = vmatprep.subr.bf16.mxu0 0
        %8540 = vmatpush1.bf16.msra.mxu0 %v8509
        %8541 = vmatprep.subr.bf16.mxu0 0
        %8542 = vmatpush1.bf16.msra.mxu0 %v8510
        %8543 = vmatprep.subr.bf16.mxu0 0
        %8544 = vmatpush1.bf16.msra.mxu0 %v8511
        %8545 = vmatprep.subr.bf16.mxu0 0
        %8546 = vmatpush1.bf16.msra.mxu0 0
        %8547 = vmatprep.subr.bf16.mxu0 0
        %8548 = vmatpush1.bf16.msra.mxu0 0
        %8549 = vmatprep.subr.bf16.mxu0 0
        %8550 = vmatpush1.bf16.msra.mxu0 0
        %8551 = vmatprep.subr.bf16.mxu0 0
        %8552 = vmatpush1.bf16.msra.mxu0 0
        %8553 = vmatprep.subr.bf16.mxu0 0
        %8554 = vmatpush1.bf16.msra.mxu0 0
        %8555 = vmatprep.subr.bf16.mxu0 0
        %8556 = vmatpush1.bf16.msra.mxu0 0
        %8557 = vmatprep.mubr.bf16.mxu0 %v7701
        %8558 = vmatmul.mubr.bf16.gmra.mrb[0].mxu0 %v7562
        %v8559 = vpop.f32.mrb[0].mxu0
        %v8560 = vadd.f32 0.0, %v8559
        %v8561 = vpop.f32.mrb[0].mxu0
        %v8562 = vpop.f32.mrb[0].mxu0
        %v8563 = vadd.f32 0.0, %v8562
        %v8564 = vpop.f32.mrb[0].mxu0
        %8565 = vmatprep.mubr.bf16.mxu0 %v7704
        %8566 = vmatmul.mubr.bf16.gmra.mrb[0].mxu0 %v7565
        %v8567 = vpop.f32.mrb[0].mxu0
        %v8568 = vadd.f32 0.0, %v8567
        %v8569 = vpop.f32.mrb[0].mxu0
        %v8570 = vpop.f32.mrb[0].mxu0
        %v8571 = vadd.f32 0.0, %v8570
        %v8572 = vpop.f32.mrb[0].mxu0
        %8573 = vmatprep.mubr.bf16.mxu0 %v7707
        %8574 = vmatmul.mubr.bf16.gmra.mrb[0].mxu0 %v7568
        %v8575 = vpop.f32.mrb[0].mxu0
        %v8576 = vadd.f32 0.0, %v8575
        %v8577 = vpop.f32.mrb[0].mxu0
        %v8578 = vpop.f32.mrb[0].mxu0
        %v8579 = vadd.f32 0.0, %v8578
        %v8580 = vpop.f32.mrb[0].mxu0
        %8581 = vmatprep.mubr.bf16.mxu0 %v7710
        %8582 = vmatmul.mubr.bf16.gmra.mrb[0].mxu0 %v7571
        %v8583 = vpop.f32.mrb[0].mxu0
        %v8584 = vadd.f32 0.0, %v8583
        %v8585 = vpop.f32.mrb[0].mxu0
        %v8586 = vpop.f32.mrb[0].mxu0
        %v8587 = vadd.f32 0.0, %v8586
        %v8588 = vpop.f32.mrb[0].mxu0
        %8589 = vmatprep.mubr.bf16.mxu0 %v7713
        %8590 = vmatmul.mubr.bf16.gmra.mrb[0].mxu0 %v7574
        %v8591 = vpop.f32.mrb[0].mxu0
        %v8592 = vadd.f32 0.0, %v8591
        %v8593 = vpop.f32.mrb[0].mxu0
        %v8594 = vpop.f32.mrb[0].mxu0
        %v8595 = vadd.f32 0.0, %v8594
        %v8596 = vpop.f32.mrb[0].mxu0
        %8597 = vmatprep.mubr.bf16.mxu0 %v7716
        %8598 = vmatmul.mubr.bf16.gmra.mrb[0].mxu0 %v7577
        %v8599 = vpop.f32.mrb[0].mxu0
        %v8600 = vadd.f32 0.0, %v8599
        %v8601 = vpop.f32.mrb[0].mxu0
        %v8602 = vpop.f32.mrb[0].mxu0
        %v8603 = vadd.f32 0.0, %v8602
        %v8604 = vpop.f32.mrb[0].mxu0
        %8605 = vmatprep.mubr.bf16.mxu0 %v7719
        %8606 = vmatmul.mubr.bf16.gmra.mrb[0].mxu0 %v7580
        %v8607 = vpop.f32.mrb[0].mxu0
        %v8608 = vadd.f32 0.0, %v8607
        %v8609 = vpop.f32.mrb[0].mxu0
        %v8610 = vpop.f32.mrb[0].mxu0
        %v8611 = vadd.f32 0.0, %v8610
        %v8612 = vpop.f32.mrb[0].mxu0
        %8613 = vmatprep.mubr.bf16.mxu0 %v8091
        %8614 = vmatmul.mubr.bf16.gmra.mrb[0].mxu0 %v7583
        %v8615 = vpop.f32.mrb[0].mxu0
        %v8616 = vadd.f32 0.0, %v8615
        %v8617 = vpop.f32.mrb[0].mxu0
        %v8618 = vpop.f32.mrb[0].mxu0
        %v8619 = vadd.f32 0.0, %v8618
        %v8620 = vpop.f32.mrb[0].mxu0
        %8621 = vmatprep.mubr.bf16.mxu0 %v8307
        %8622 = vmatmul.mubr.bf16.gmra.mrb[0].mxu0 %v7586
        %v8623 = vpop.f32.mrb[0].mxu0
        %v8624 = vadd.f32 0.0, %v8623
        %v8625 = vpop.f32.mrb[0].mxu0
        %v8626 = vpop.f32.mrb[0].mxu0
        %v8627 = vadd.f32 0.0, %v8626
        %v8628 = vpop.f32.mrb[0].mxu0
        %8629 = vmatprep.mubr.bf16.mxu0 %v8523
        %8630 = vmatmul.mubr.bf16.gmra.mrb[0].mxu0 %v7589
        %v8631 = vpop.f32.mrb[0].mxu0
        %v8632 = vadd.f32 0.0, %v8631
        %v8633 = vpop.f32.mrb[0].mxu0
        %v8634 = vpop.f32.mrb[0].mxu0
        %v8635 = vadd.f32 0.0, %v8634
        %v8636 = vpop.f32.mrb[0].mxu0
        %8637 = vdwg.mxu0
        %v8638 = vadd.f32 %v8422, %v8560
        %v8639 = vadd.f32 %v8423, %v8563
        %v8640 = vadd.f32 %v8424, %v8568
        %v8641 = vadd.f32 %v8425, %v8571
        %v8642 = vadd.f32 %v8426, %v8576
        %v8643 = vadd.f32 %v8427, %v8579
        %v8644 = vadd.f32 %v8428, %v8584
        %v8645 = vadd.f32 %v8429, %v8587
        %v8646 = vadd.f32 %v8430, %v8592
        %v8647 = vadd.f32 %v8431, %v8595
        %v8648 = vadd.f32 %v8432, %v8600
        %v8649 = vadd.f32 %v8433, %v8603
        %v8650 = vadd.f32 %v8434, %v8608
        %v8651 = vadd.f32 %v8435, %v8611
        %v8652 = vadd.f32 %v8436, %v8616
        %v8653 = vadd.f32 %v8437, %v8619
        %v8654 = vadd.f32 %v8438, %v8624
        %v8655 = vadd.f32 %v8439, %v8627
        %v8656 = vadd.f32 %v8440, %v8632
        %v8657 = vadd.f32 %v8441, %v8635
        %v8659 = vlaneseq
        %v8660 = vshrl.u32 %v8659, 7
        %v8661 = vsub.s32 0, %v8660
        %v8662 = vrot.slane %v440, %v8661
        %v8664 = vadd.f32 %v8638, %v8662
        %v8665 = vadd.f32 %v8639, %v8662
        %v8666 = vadd.f32 %v8640, %v8662
        %v8667 = vadd.f32 %v8641, %v8662
        %v8668 = vadd.f32 %v8642, %v8662
        %v8669 = vadd.f32 %v8643, %v8662
        %v8670 = vadd.f32 %v8644, %v8662
        %v8671 = vadd.f32 %v8645, %v8662
        %v8672 = vadd.f32 %v8646, %v8662
        %v8673 = vadd.f32 %v8647, %v8662
        %v8674 = vadd.f32 %v8648, %v8662
        %v8675 = vadd.f32 %v8649, %v8662
        %v8676 = vadd.f32 %v8650, %v8662
        %v8677 = vadd.f32 %v8651, %v8662
        %v8678 = vadd.f32 %v8652, %v8662
        %v8679 = vadd.f32 %v8653, %v8662
        %v8680 = vadd.f32 %v8654, %v8662
        %v8681 = vadd.f32 %v8655, %v8662
        %v8682 = vadd.f32 %v8656, %v8662
        %v8683 = vadd.f32 %v8657, %v8662
        %v8684 = vtanh.pop %v8664
        %v8685 = vtanh.pop %v8665
        %v8686 = vtanh.pop %v8666
        %v8687 = vtanh.pop %v8667
        %v8688 = vtanh.pop %v8668
        %v8689 = vtanh.pop %v8669
        %v8690 = vtanh.pop %v8670
        %v8691 = vtanh.pop %v8671
        %v8692 = vtanh.pop %v8672
        %v8693 = vtanh.pop %v8673
        %v8694 = vtanh.pop %v8674
        %v8695 = vtanh.pop %v8675
        %v8696 = vtanh.pop %v8676
        %v8697 = vtanh.pop %v8677
        %v8698 = vtanh.pop %v8678
        %v8699 = vtanh.pop %v8679
        %v8700 = vtanh.pop %v8680
        %v8701 = vtanh.pop %v8681
        %v8702 = vtanh.pop %v8682
        %v8703 = vtanh.pop %v8683
        %v8704 = vpack.c.bf16 %v8685, %v8684
        %v8705 = vpack.c.bf16 %v8687, %v8686
        %v8706 = vpack.c.bf16 %v8689, %v8688
        %v8707 = vpack.c.bf16 %v8691, %v8690
        %v8708 = vpack.c.bf16 %v8693, %v8692
        %v8709 = vpack.c.bf16 %v8695, %v8694
        %v8710 = vpack.c.bf16 %v8697, %v8696
        %v8711 = vpack.c.bf16 %v8699, %v8698
        %v8712 = vpack.c.bf16 %v8701, %v8700
        %v8713 = vpack.c.bf16 %v8703, %v8702
        %v8718 = vunpack.c.l.b16 %v557
        %v8719 = vunpack.c.h.b16 %v557
        %v8720 = vunpack.c.l.b16 %v558
        %v8721 = vunpack.c.h.b16 %v558
        %v8722 = vunpack.c.l.b16 %v559
        %v8723 = vunpack.c.h.b16 %v559
        %v8724 = vunpack.c.l.b16 %v560
        %v8725 = vunpack.c.h.b16 %v560
        %v8726 = vpack.c.b16 %v8720, %v8718
        %v8727 = vpack.c.b16 %v8721, %v8719
        %v8728 = vpack.c.b16 %v8724, %v8722
        %v8729 = vpack.c.b16 %v8725, %v8723
        %v8733 = vsel %vm7490, %v8727, 0
        %v8736 = vsel %vm7490, %v8729, 0
        %8738 = vmatprep.subr.bf16.mxu0 0
        %8739 = vmatpush1.bf16.msra.mxu0 %v8704
        %8740 = vmatprep.subr.bf16.mxu0 0
        %8741 = vmatpush1.bf16.msra.mxu0 %v8705
        %8742 = vmatprep.subr.bf16.mxu0 0
        %8743 = vmatpush1.bf16.msra.mxu0 %v8706
        %8744 = vmatprep.subr.bf16.mxu0 0
        %8745 = vmatpush1.bf16.msra.mxu0 %v8707
        %8746 = vmatprep.subr.bf16.mxu0 0
        %8747 = vmatpush1.bf16.msra.mxu0 %v8708
        %8748 = vmatprep.subr.bf16.mxu0 0
        %8749 = vmatpush1.bf16.msra.mxu0 %v8709
        %8750 = vmatprep.subr.bf16.mxu0 0
        %8751 = vmatpush1.bf16.msra.mxu0 %v8710
        %8752 = vmatprep.subr.bf16.mxu0 0
        %8753 = vmatpush1.bf16.msra.mxu0 %v8711
        %8754 = vmatprep.subr.bf16.mxu0 0
        %8755 = vmatpush1.bf16.msra.mxu0 %v8712
        %8756 = vmatprep.subr.bf16.mxu0 0
        %8757 = vmatpush1.bf16.msra.mxu0 %v8713
        %8758 = vmatprep.subr.bf16.mxu0 0
        %8759 = vmatpush1.bf16.msra.mxu0 0
        %8760 = vmatprep.subr.bf16.mxu0 0
        %8761 = vmatpush1.bf16.msra.mxu0 0
        %8762 = vmatprep.subr.bf16.mxu0 0
        %8763 = vmatpush1.bf16.msra.mxu0 0
        %8764 = vmatprep.subr.bf16.mxu0 0
        %8765 = vmatpush1.bf16.msra.mxu0 0
        %8766 = vmatprep.subr.bf16.mxu0 0
        %8767 = vmatpush1.bf16.msra.mxu0 0
        %8768 = vmatprep.subr.bf16.mxu0 0
        %8769 = vmatpush1.bf16.msra.mxu0 0
        %8770 = vmatprep.mubr.bf16.mxu0 %v8733
        %8771 = vmatmul.mubr.bf16.gmra.mrb[0].mxu0 %v8726
        %v8772 = vpop.f32.mrb[0].mxu0
        %v8773 = vadd.f32 0.0, %v8772
        %v8774 = vpop.f32.mrb[0].mxu0
        %v8775 = vpop.f32.mrb[0].mxu0
        %v8776 = vadd.f32 0.0, %v8775
        %v8777 = vpop.f32.mrb[0].mxu0
        %8778 = vmatprep.mubr.bf16.mxu0 %v8736
        %8779 = vmatmul.mubr.bf16.gmra.mrb[0].mxu0 %v8728
        %v8780 = vpop.f32.mrb[0].mxu0
        %v8781 = vadd.f32 0.0, %v8780
        %v8782 = vpop.f32.mrb[0].mxu0
        %v8783 = vpop.f32.mrb[0].mxu0
        %v8784 = vadd.f32 0.0, %v8783
        %v8785 = vpop.f32.mrb[0].mxu0
        %8786 = vdwg.mxu0
        %v8787 = vpack.c.bf16 %v8776, %v8773
        %v8788 = vpack.c.bf16 %v8784, %v8781
        %v8789 = vld [vmem:[%s7] sm:$0xf]
        %v8790 = vld [vmem:[%s7 + $0x4] sm:$0xf]
        %v8791 = vld [vmem:[%s7 + $0x8] sm:$0xf]
        %v8792 = vld [vmem:[%s7 + $0xc] sm:$0xf]
        %v8793 = vld [vmem:[%s7 + $0x10] sm:$0xf]
        %v8794 = vld [vmem:[%s7 + $0x14] sm:$0xf]
        %v8795 = vld [vmem:[%s7 + $0x18] sm:$0xf]
        %v8796 = vld [vmem:[%s7 + $0x1c] sm:$0xf]
        %v8797 = vld [vmem:[%s7 + $0x20] sm:$0xf]
        %v8798 = vld [vmem:[%s7 + $0x24] sm:$0xf]
        %v8799 = vld [vmem:[%s7 + $0x28] sm:$0xf]
        %v8800 = vld [vmem:[%s7 + $0x2c] sm:$0xf]
        %v8801 = vld [vmem:[%s7 + $0x30] sm:$0xf]
        %v8802 = vld [vmem:[%s7 + $0x34] sm:$0xf]
        %v8803 = vld [vmem:[%s7 + $0x38] sm:$0xf]
        %v8804 = vld [vmem:[%s7 + $0x3c] sm:$0xf]
        %s8805 = scalar_lea.vmem %s7, 64
        %v8806 = vld [vmem:[%s8805] sm:$0xf]
        %v8807 = vld [vmem:[%s8805 + $0x4] sm:$0xf]
        %v8808 = vld [vmem:[%s8805 + $0x8] sm:$0xf]
        %v8809 = vld [vmem:[%s8805 + $0xc] sm:$0xf]
        %v8810 = vld [vmem:[%s8805 + $0x10] sm:$0xf]
        %v8811 = vld [vmem:[%s8805 + $0x14] sm:$0xf]
        %v8812 = vld [vmem:[%s8805 + $0x18] sm:$0xf]
        %v8813 = vld [vmem:[%s8805 + $0x1c] sm:$0xf]
        %v8814 = vld [vmem:[%s8805 + $0x20] sm:$0xf]
        %v8815 = vld [vmem:[%s8805 + $0x24] sm:$0xf]
        %v8816 = vld [vmem:[%s8805 + $0x28] sm:$0xf]
        %v8817 = vld [vmem:[%s8805 + $0x2c] sm:$0xf]
        %v8818 = vld [vmem:[%s8805 + $0x30] sm:$0xf]
        %v8819 = vld [vmem:[%s8805 + $0x34] sm:$0xf]
        %v8820 = vld [vmem:[%s8805 + $0x38] sm:$0xf]
        %v8821 = vld [vmem:[%s8805 + $0x3c] sm:$0xf]
        %v8823 = vshrl.u32 %v8787, 16
        %v8842 = vunpack.c.l.b16 %v8806
        %v8843 = vunpack.c.l.b16 %v8807
        %v8844 = vunpack.c.l.b16 %v8808
        %v8845 = vunpack.c.l.b16 %v8809
        %v8846 = vunpack.c.l.b16 %v8810
        %v8847 = vunpack.c.l.b16 %v8811
        %v8848 = vunpack.c.l.b16 %v8812
        %v8849 = vunpack.c.l.b16 %v8813
        %v8850 = vunpack.c.l.b16 %v8814
        %v8851 = vunpack.c.l.b16 %v8815
        %v8852 = vunpack.c.l.b16 %v8816
        %v8853 = vunpack.c.l.b16 %v8817
        %v8854 = vunpack.c.l.b16 %v8818
        %v8855 = vunpack.c.l.b16 %v8819
        %v8856 = vunpack.c.l.b16 %v8820
        %v8857 = vunpack.c.l.b16 %v8821
        %v8858 = vpack.c.b16 %v8843, %v8842
        %v8859 = vpack.c.b16 %v8845, %v8844
        %v8860 = vpack.c.b16 %v8847, %v8846
        %v8861 = vpack.c.b16 %v8849, %v8848
        %v8862 = vpack.c.b16 %v8851, %v8850
        %v8863 = vpack.c.b16 %v8853, %v8852
        %v8864 = vpack.c.b16 %v8855, %v8854
        %v8865 = vpack.c.b16 %v8857, %v8856
        %8874 = vmatprep.subr.bf16.mxu0 0
        %8875 = vmatpush1.bf16.msra.mxu0 %v8858
        %8876 = vmatprep.subr.bf16.mxu0 0
        %8877 = vmatpush1.bf16.msra.mxu0 %v8859
        %8878 = vmatprep.subr.bf16.mxu0 0
        %8879 = vmatpush1.bf16.msra.mxu0 %v8860
        %8880 = vmatprep.subr.bf16.mxu0 0
        %8881 = vmatpush1.bf16.msra.mxu0 %v8861
        %8882 = vmatprep.subr.bf16.mxu0 0
        %8883 = vmatpush1.bf16.msra.mxu0 %v8862
        %8884 = vmatprep.subr.bf16.mxu0 0
        %8885 = vmatpush1.bf16.msra.mxu0 %v8863
        %8886 = vmatprep.subr.bf16.mxu0 0
        %8887 = vmatpush1.bf16.msra.mxu0 %v8864
        %8888 = vmatprep.subr.bf16.mxu0 0
        %8889 = vmatpush1.bf16.msra.mxu0 %v8865
        %8890 = vmatprep.subr.bf16.mxu0 0
        %8891 = vmatpush1.bf16.msra.mxu0 0
        %8892 = vmatprep.subr.bf16.mxu0 0
        %8893 = vmatpush1.bf16.msra.mxu0 0
        %8894 = vmatprep.subr.bf16.mxu0 0
        %8895 = vmatpush1.bf16.msra.mxu0 0
        %8896 = vmatprep.subr.bf16.mxu0 0
        %8897 = vmatpush1.bf16.msra.mxu0 0
        %8898 = vmatprep.subr.bf16.mxu0 0
        %8899 = vmatpush1.bf16.msra.mxu0 0
        %8900 = vmatprep.subr.bf16.mxu0 0
        %8901 = vmatpush1.bf16.msra.mxu0 0
        %8902 = vmatprep.subr.bf16.mxu0 0
        %8903 = vmatpush1.bf16.msra.mxu0 0
        %8904 = vmatprep.subr.bf16.mxu0 0
        %8905 = vmatpush1.bf16.msra.mxu0 0
        %8906 = vmatprep.mubr.bf16.mxu0 0
        %8907 = vmatmul.mubr.bf16.gmra.mrb[0].mxu0 %v8823
        %v8908 = vpop.f32.mrb[0].mxu0
        %v8909 = vadd.f32 0.0, %v8908
        %v8910 = vpop.f32.mrb[0].mxu0
        %v8911 = vpop.f32.mrb[0].mxu0
        %v8912 = vpop.f32.mrb[0].mxu0
        %8913 = vdwg.mxu0
        %v8930 = vunpack.c.l.b16 %v8789
        %v8931 = vunpack.c.l.b16 %v8790
        %v8932 = vunpack.c.l.b16 %v8791
        %v8933 = vunpack.c.l.b16 %v8792
        %v8934 = vunpack.c.l.b16 %v8793
        %v8935 = vunpack.c.l.b16 %v8794
        %v8936 = vunpack.c.l.b16 %v8795
        %v8937 = vunpack.c.l.b16 %v8796
        %v8938 = vunpack.c.l.b16 %v8797
        %v8939 = vunpack.c.l.b16 %v8798
        %v8940 = vunpack.c.l.b16 %v8799
        %v8941 = vunpack.c.l.b16 %v8800
        %v8942 = vunpack.c.l.b16 %v8801
        %v8943 = vunpack.c.l.b16 %v8802
        %v8944 = vunpack.c.l.b16 %v8803
        %v8945 = vunpack.c.l.b16 %v8804
        %v8946 = vpack.c.b16 %v8931, %v8930
        %v8947 = vpack.c.b16 %v8933, %v8932
        %v8948 = vpack.c.b16 %v8935, %v8934
        %v8949 = vpack.c.b16 %v8937, %v8936
        %v8950 = vpack.c.b16 %v8939, %v8938
        %v8951 = vpack.c.b16 %v8941, %v8940
        %v8952 = vpack.c.b16 %v8943, %v8942
        %v8953 = vpack.c.b16 %v8945, %v8944
        %8962 = vmatprep.subr.bf16.mxu0 0
        %8963 = vmatpush1.bf16.msra.mxu0 %v8946
        %8964 = vmatprep.subr.bf16.mxu0 0
        %8965 = vmatpush1.bf16.msra.mxu0 %v8947
        %8966 = vmatprep.subr.bf16.mxu0 0
        %8967 = vmatpush1.bf16.msra.mxu0 %v8948
        %8968 = vmatprep.subr.bf16.mxu0 0
        %8969 = vmatpush1.bf16.msra.mxu0 %v8949
        %8970 = vmatprep.subr.bf16.mxu0 0
        %8971 = vmatpush1.bf16.msra.mxu0 %v8950
        %8972 = vmatprep.subr.bf16.mxu0 0
        %8973 = vmatpush1.bf16.msra.mxu0 %v8951
        %8974 = vmatprep.subr.bf16.mxu0 0
        %8975 = vmatpush1.bf16.msra.mxu0 %v8952
        %8976 = vmatprep.subr.bf16.mxu0 0
        %8977 = vmatpush1.bf16.msra.mxu0 %v8953
        %8978 = vmatprep.subr.bf16.mxu0 0
        %8979 = vmatpush1.bf16.msra.mxu0 0
        %8980 = vmatprep.subr.bf16.mxu0 0
        %8981 = vmatpush1.bf16.msra.mxu0 0
        %8982 = vmatprep.subr.bf16.mxu0 0
        %8983 = vmatpush1.bf16.msra.mxu0 0
        %8984 = vmatprep.subr.bf16.mxu0 0
        %8985 = vmatpush1.bf16.msra.mxu0 0
        %8986 = vmatprep.subr.bf16.mxu0 0
        %8987 = vmatpush1.bf16.msra.mxu0 0
        %8988 = vmatprep.subr.bf16.mxu0 0
        %8989 = vmatpush1.bf16.msra.mxu0 0
        %8990 = vmatprep.subr.bf16.mxu0 0
        %8991 = vmatpush1.bf16.msra.mxu0 0
        %8992 = vmatprep.subr.bf16.mxu0 0
        %8993 = vmatpush1.bf16.msra.mxu0 0
        %8994 = vmatprep.mubr.bf16.mxu0 0
        %8995 = vmatmul.mubr.bf16.gmra.mrb[0].mxu0 %v8787
        %v8996 = vpop.f32.mrb[0].mxu0
        %v8997 = vadd.f32 %v8909, %v8996
        %v8998 = vpop.f32.mrb[0].mxu0
        %v8999 = vpop.f32.mrb[0].mxu0
        %v9000 = vpop.f32.mrb[0].mxu0
        %9001 = vdwg.mxu0
        %s9002 = scalar_lea.vmem %s7, 128
        %v9003 = vld [vmem:[%s9002] sm:$0xf]
        %v9004 = vld [vmem:[%s9002 + $0x4] sm:$0xf]
        %v9005 = vld [vmem:[%s9002 + $0x8] sm:$0xf]
        %v9006 = vld [vmem:[%s9002 + $0xc] sm:$0xf]
        %v9007 = vld [vmem:[%s9002 + $0x10] sm:$0xf]
        %v9008 = vld [vmem:[%s9002 + $0x14] sm:$0xf]
        %v9009 = vld [vmem:[%s9002 + $0x18] sm:$0xf]
        %v9010 = vld [vmem:[%s9002 + $0x1c] sm:$0xf]
        %v9011 = vld [vmem:[%s9002 + $0x20] sm:$0xf]
        %v9012 = vld [vmem:[%s9002 + $0x24] sm:$0xf]
        %v9013 = vld [vmem:[%s9002 + $0x28] sm:$0xf]
        %v9014 = vld [vmem:[%s9002 + $0x2c] sm:$0xf]
        %v9015 = vld [vmem:[%s9002 + $0x30] sm:$0xf]
        %v9016 = vld [vmem:[%s9002 + $0x34] sm:$0xf]
        %v9017 = vld [vmem:[%s9002 + $0x38] sm:$0xf]
        %v9018 = vld [vmem:[%s9002 + $0x3c] sm:$0xf]
        %v9020 = vrot.slane %v8787, 1
        %v9038 = vunpack.c.l.b16 %v9003
        %v9039 = vunpack.c.l.b16 %v9004
        %v9040 = vunpack.c.l.b16 %v9005
        %v9041 = vunpack.c.l.b16 %v9006
        %v9042 = vunpack.c.l.b16 %v9007
        %v9043 = vunpack.c.l.b16 %v9008
        %v9044 = vunpack.c.l.b16 %v9009
        %v9045 = vunpack.c.l.b16 %v9010
        %v9046 = vunpack.c.l.b16 %v9011
        %v9047 = vunpack.c.l.b16 %v9012
        %v9048 = vunpack.c.l.b16 %v9013
        %v9049 = vunpack.c.l.b16 %v9014
        %v9050 = vunpack.c.l.b16 %v9015
        %v9051 = vunpack.c.l.b16 %v9016
        %v9052 = vunpack.c.l.b16 %v9017
        %v9053 = vunpack.c.l.b16 %v9018
        %v9054 = vpack.c.b16 %v9039, %v9038
        %v9055 = vpack.c.b16 %v9041, %v9040
        %v9056 = vpack.c.b16 %v9043, %v9042
        %v9057 = vpack.c.b16 %v9045, %v9044
        %v9058 = vpack.c.b16 %v9047, %v9046
        %v9059 = vpack.c.b16 %v9049, %v9048
        %v9060 = vpack.c.b16 %v9051, %v9050
        %v9061 = vpack.c.b16 %v9053, %v9052
        %9070 = vmatprep.subr.bf16.mxu0 0
        %9071 = vmatpush1.bf16.msra.mxu0 %v9054
        %9072 = vmatprep.subr.bf16.mxu0 0
        %9073 = vmatpush1.bf16.msra.mxu0 %v9055
        %9074 = vmatprep.subr.bf16.mxu0 0
        %9075 = vmatpush1.bf16.msra.mxu0 %v9056
        %9076 = vmatprep.subr.bf16.mxu0 0
        %9077 = vmatpush1.bf16.msra.mxu0 %v9057
        %9078 = vmatprep.subr.bf16.mxu0 0
        %9079 = vmatpush1.bf16.msra.mxu0 %v9058
        %9080 = vmatprep.subr.bf16.mxu0 0
        %9081 = vmatpush1.bf16.msra.mxu0 %v9059
        %9082 = vmatprep.subr.bf16.mxu0 0
        %9083 = vmatpush1.bf16.msra.mxu0 %v9060
        %9084 = vmatprep.subr.bf16.mxu0 0
        %9085 = vmatpush1.bf16.msra.mxu0 %v9061
        %9086 = vmatprep.subr.bf16.mxu0 0
        %9087 = vmatpush1.bf16.msra.mxu0 0
        %9088 = vmatprep.subr.bf16.mxu0 0
        %9089 = vmatpush1.bf16.msra.mxu0 0
        %9090 = vmatprep.subr.bf16.mxu0 0
        %9091 = vmatpush1.bf16.msra.mxu0 0
        %9092 = vmatprep.subr.bf16.mxu0 0
        %9093 = vmatpush1.bf16.msra.mxu0 0
        %9094 = vmatprep.subr.bf16.mxu0 0
        %9095 = vmatpush1.bf16.msra.mxu0 0
        %9096 = vmatprep.subr.bf16.mxu0 0
        %9097 = vmatpush1.bf16.msra.mxu0 0
        %9098 = vmatprep.subr.bf16.mxu0 0
        %9099 = vmatpush1.bf16.msra.mxu0 0
        %9100 = vmatprep.subr.bf16.mxu0 0
        %9101 = vmatpush1.bf16.msra.mxu0 0
        %9102 = vmatprep.mubr.bf16.mxu0 0
        %9103 = vmatmul.mubr.bf16.gmra.mrb[0].mxu0 %v9020
        %v9104 = vpop.f32.mrb[0].mxu0
        %v9105 = vadd.f32 0.0, %v9104
        %v9106 = vpop.f32.mrb[0].mxu0
        %v9107 = vpop.f32.mrb[0].mxu0
        %v9108 = vpop.f32.mrb[0].mxu0
        %9109 = vdwg.mxu0
        %v9110 = vadd.f32 %v8997, %v9105
        %s9111 = scalar_lea.vmem %s7, 192
        %v9112 = vld [vmem:[%s9111] sm:$0xf]
        %v9113 = vld [vmem:[%s9111 + $0x4] sm:$0xf]
        %v9114 = vld [vmem:[%s9111 + $0x8] sm:$0xf]
        %v9115 = vld [vmem:[%s9111 + $0xc] sm:$0xf]
        %v9116 = vld [vmem:[%s9111 + $0x10] sm:$0xf]
        %v9117 = vld [vmem:[%s9111 + $0x14] sm:$0xf]
        %v9118 = vld [vmem:[%s9111 + $0x18] sm:$0xf]
        %v9119 = vld [vmem:[%s9111 + $0x1c] sm:$0xf]
        %v9120 = vld [vmem:[%s9111 + $0x20] sm:$0xf]
        %v9121 = vld [vmem:[%s9111 + $0x24] sm:$0xf]
        %v9122 = vld [vmem:[%s9111 + $0x28] sm:$0xf]
        %v9123 = vld [vmem:[%s9111 + $0x2c] sm:$0xf]
        %v9124 = vld [vmem:[%s9111 + $0x30] sm:$0xf]
        %v9125 = vld [vmem:[%s9111 + $0x34] sm:$0xf]
        %v9126 = vld [vmem:[%s9111 + $0x38] sm:$0xf]
        %v9127 = vld [vmem:[%s9111 + $0x3c] sm:$0xf]
        %v9128 = vrot.slane %v8823, 1
        %v9146 = vunpack.c.l.b16 %v9112
        %v9147 = vunpack.c.l.b16 %v9113
        %v9148 = vunpack.c.l.b16 %v9114
        %v9149 = vunpack.c.l.b16 %v9115
        %v9150 = vunpack.c.l.b16 %v9116
        %v9151 = vunpack.c.l.b16 %v9117
        %v9152 = vunpack.c.l.b16 %v9118
        %v9153 = vunpack.c.l.b16 %v9119
        %v9154 = vunpack.c.l.b16 %v9120
        %v9155 = vunpack.c.l.b16 %v9121
        %v9156 = vunpack.c.l.b16 %v9122
        %v9157 = vunpack.c.l.b16 %v9123
        %v9158 = vunpack.c.l.b16 %v9124
        %v9159 = vunpack.c.l.b16 %v9125
        %v9160 = vunpack.c.l.b16 %v9126
        %v9161 = vunpack.c.l.b16 %v9127
        %v9162 = vpack.c.b16 %v9147, %v9146
        %v9163 = vpack.c.b16 %v9149, %v9148
        %v9164 = vpack.c.b16 %v9151, %v9150
        %v9165 = vpack.c.b16 %v9153, %v9152
        %v9166 = vpack.c.b16 %v9155, %v9154
        %v9167 = vpack.c.b16 %v9157, %v9156
        %v9168 = vpack.c.b16 %v9159, %v9158
        %v9169 = vpack.c.b16 %v9161, %v9160
        %9178 = vmatprep.subr.bf16.mxu0 0
        %9179 = vmatpush1.bf16.msra.mxu0 %v9162
        %9180 = vmatprep.subr.bf16.mxu0 0
        %9181 = vmatpush1.bf16.msra.mxu0 %v9163
        %9182 = vmatprep.subr.bf16.mxu0 0
        %9183 = vmatpush1.bf16.msra.mxu0 %v9164
        %9184 = vmatprep.subr.bf16.mxu0 0
        %9185 = vmatpush1.bf16.msra.mxu0 %v9165
        %9186 = vmatprep.subr.bf16.mxu0 0
        %9187 = vmatpush1.bf16.msra.mxu0 %v9166
        %9188 = vmatprep.subr.bf16.mxu0 0
        %9189 = vmatpush1.bf16.msra.mxu0 %v9167
        %9190 = vmatprep.subr.bf16.mxu0 0
        %9191 = vmatpush1.bf16.msra.mxu0 %v9168
        %9192 = vmatprep.subr.bf16.mxu0 0
        %9193 = vmatpush1.bf16.msra.mxu0 %v9169
        %9194 = vmatprep.subr.bf16.mxu0 0
        %9195 = vmatpush1.bf16.msra.mxu0 0
        %9196 = vmatprep.subr.bf16.mxu0 0
        %9197 = vmatpush1.bf16.msra.mxu0 0
        %9198 = vmatprep.subr.bf16.mxu0 0
        %9199 = vmatpush1.bf16.msra.mxu0 0
        %9200 = vmatprep.subr.bf16.mxu0 0
        %9201 = vmatpush1.bf16.msra.mxu0 0
        %9202 = vmatprep.subr.bf16.mxu0 0
        %9203 = vmatpush1.bf16.msra.mxu0 0
        %9204 = vmatprep.subr.bf16.mxu0 0
        %9205 = vmatpush1.bf16.msra.mxu0 0
        %9206 = vmatprep.subr.bf16.mxu0 0
        %9207 = vmatpush1.bf16.msra.mxu0 0
        %9208 = vmatprep.subr.bf16.mxu0 0
        %9209 = vmatpush1.bf16.msra.mxu0 0
        %9210 = vmatprep.mubr.bf16.mxu0 0
        %9211 = vmatmul.mubr.bf16.gmra.mrb[0].mxu0 %v9128
        %v9212 = vpop.f32.mrb[0].mxu0
        %v9213 = vadd.f32 0.0, %v9212
        %v9214 = vpop.f32.mrb[0].mxu0
        %v9215 = vpop.f32.mrb[0].mxu0
        %v9216 = vpop.f32.mrb[0].mxu0
        %9217 = vdwg.mxu0
        %v9218 = vadd.f32 %v9110, %v9213
        %s9219 = scalar_lea.vmem %s7, 256
        %v9220 = vld [vmem:[%s9219] sm:$0xf]
        %v9221 = vld [vmem:[%s9219 + $0x4] sm:$0xf]
        %v9222 = vld [vmem:[%s9219 + $0x8] sm:$0xf]
        %v9223 = vld [vmem:[%s9219 + $0xc] sm:$0xf]
        %v9224 = vld [vmem:[%s9219 + $0x10] sm:$0xf]
        %v9225 = vld [vmem:[%s9219 + $0x14] sm:$0xf]
        %v9226 = vld [vmem:[%s9219 + $0x18] sm:$0xf]
        %v9227 = vld [vmem:[%s9219 + $0x1c] sm:$0xf]
        %v9228 = vld [vmem:[%s9219 + $0x20] sm:$0xf]
        %v9229 = vld [vmem:[%s9219 + $0x24] sm:$0xf]
        %v9230 = vld [vmem:[%s9219 + $0x28] sm:$0xf]
        %v9231 = vld [vmem:[%s9219 + $0x2c] sm:$0xf]
        %v9232 = vld [vmem:[%s9219 + $0x30] sm:$0xf]
        %v9233 = vld [vmem:[%s9219 + $0x34] sm:$0xf]
        %v9234 = vld [vmem:[%s9219 + $0x38] sm:$0xf]
        %v9235 = vld [vmem:[%s9219 + $0x3c] sm:$0xf]
        %v9236 = vrot.slane %v8787, 2
        %v9254 = vunpack.c.l.b16 %v9220
        %v9255 = vunpack.c.l.b16 %v9221
        %v9256 = vunpack.c.l.b16 %v9222
        %v9257 = vunpack.c.l.b16 %v9223
        %v9258 = vunpack.c.l.b16 %v9224
        %v9259 = vunpack.c.l.b16 %v9225
        %v9260 = vunpack.c.l.b16 %v9226
        %v9261 = vunpack.c.l.b16 %v9227
        %v9262 = vunpack.c.l.b16 %v9228
        %v9263 = vunpack.c.l.b16 %v9229
        %v9264 = vunpack.c.l.b16 %v9230
        %v9265 = vunpack.c.l.b16 %v9231
        %v9266 = vunpack.c.l.b16 %v9232
        %v9267 = vunpack.c.l.b16 %v9233
        %v9268 = vunpack.c.l.b16 %v9234
        %v9269 = vunpack.c.l.b16 %v9235
        %v9270 = vpack.c.b16 %v9255, %v9254
        %v9271 = vpack.c.b16 %v9257, %v9256
        %v9272 = vpack.c.b16 %v9259, %v9258
        %v9273 = vpack.c.b16 %v9261, %v9260
        %v9274 = vpack.c.b16 %v9263, %v9262
        %v9275 = vpack.c.b16 %v9265, %v9264
        %v9276 = vpack.c.b16 %v9267, %v9266
        %v9277 = vpack.c.b16 %v9269, %v9268
        %9286 = vmatprep.subr.bf16.mxu0 0
        %9287 = vmatpush1.bf16.msra.mxu0 %v9270
        %9288 = vmatprep.subr.bf16.mxu0 0
        %9289 = vmatpush1.bf16.msra.mxu0 %v9271
        %9290 = vmatprep.subr.bf16.mxu0 0
        %9291 = vmatpush1.bf16.msra.mxu0 %v9272
        %9292 = vmatprep.subr.bf16.mxu0 0
        %9293 = vmatpush1.bf16.msra.mxu0 %v9273
        %9294 = vmatprep.subr.bf16.mxu0 0
        %9295 = vmatpush1.bf16.msra.mxu0 %v9274
        %9296 = vmatprep.subr.bf16.mxu0 0
        %9297 = vmatpush1.bf16.msra.mxu0 %v9275
        %9298 = vmatprep.subr.bf16.mxu0 0
        %9299 = vmatpush1.bf16.msra.mxu0 %v9276
        %9300 = vmatprep.subr.bf16.mxu0 0
        %9301 = vmatpush1.bf16.msra.mxu0 %v9277
        %9302 = vmatprep.subr.bf16.mxu0 0
        %9303 = vmatpush1.bf16.msra.mxu0 0
        %9304 = vmatprep.subr.bf16.mxu0 0
        %9305 = vmatpush1.bf16.msra.mxu0 0
        %9306 = vmatprep.subr.bf16.mxu0 0
        %9307 = vmatpush1.bf16.msra.mxu0 0
        %9308 = vmatprep.subr.bf16.mxu0 0
        %9309 = vmatpush1.bf16.msra.mxu0 0
        %9310 = vmatprep.subr.bf16.mxu0 0
        %9311 = vmatpush1.bf16.msra.mxu0 0
        %9312 = vmatprep.subr.bf16.mxu0 0
        %9313 = vmatpush1.bf16.msra.mxu0 0
        %9314 = vmatprep.subr.bf16.mxu0 0
        %9315 = vmatpush1.bf16.msra.mxu0 0
        %9316 = vmatprep.subr.bf16.mxu0 0
        %9317 = vmatpush1.bf16.msra.mxu0 0
        %9318 = vmatprep.mubr.bf16.mxu0 0
        %9319 = vmatmul.mubr.bf16.gmra.mrb[0].mxu0 %v9236
        %v9320 = vpop.f32.mrb[0].mxu0
        %v9321 = vadd.f32 0.0, %v9320
        %v9322 = vpop.f32.mrb[0].mxu0
        %v9323 = vpop.f32.mrb[0].mxu0
        %v9324 = vpop.f32.mrb[0].mxu0
        %9325 = vdwg.mxu0
        %v9326 = vadd.f32 %v9218, %v9321
        %s9327 = scalar_lea.vmem %s7, 320
        %v9328 = vld [vmem:[%s9327] sm:$0xf]
        %v9329 = vld [vmem:[%s9327 + $0x4] sm:$0xf]
        %v9330 = vld [vmem:[%s9327 + $0x8] sm:$0xf]
        %v9331 = vld [vmem:[%s9327 + $0xc] sm:$0xf]
        %v9332 = vld [vmem:[%s9327 + $0x10] sm:$0xf]
        %v9333 = vld [vmem:[%s9327 + $0x14] sm:$0xf]
        %v9334 = vld [vmem:[%s9327 + $0x18] sm:$0xf]
        %v9335 = vld [vmem:[%s9327 + $0x1c] sm:$0xf]
        %v9336 = vld [vmem:[%s9327 + $0x20] sm:$0xf]
        %v9337 = vld [vmem:[%s9327 + $0x24] sm:$0xf]
        %v9338 = vld [vmem:[%s9327 + $0x28] sm:$0xf]
        %v9339 = vld [vmem:[%s9327 + $0x2c] sm:$0xf]
        %v9340 = vld [vmem:[%s9327 + $0x30] sm:$0xf]
        %v9341 = vld [vmem:[%s9327 + $0x34] sm:$0xf]
        %v9342 = vld [vmem:[%s9327 + $0x38] sm:$0xf]
        %v9343 = vld [vmem:[%s9327 + $0x3c] sm:$0xf]
        %v9344 = vrot.slane %v8823, 2
        %v9362 = vunpack.c.l.b16 %v9328
        %v9363 = vunpack.c.l.b16 %v9329
        %v9364 = vunpack.c.l.b16 %v9330
        %v9365 = vunpack.c.l.b16 %v9331
        %v9366 = vunpack.c.l.b16 %v9332
        %v9367 = vunpack.c.l.b16 %v9333
        %v9368 = vunpack.c.l.b16 %v9334
        %v9369 = vunpack.c.l.b16 %v9335
        %v9370 = vunpack.c.l.b16 %v9336
        %v9371 = vunpack.c.l.b16 %v9337
        %v9372 = vunpack.c.l.b16 %v9338
        %v9373 = vunpack.c.l.b16 %v9339
        %v9374 = vunpack.c.l.b16 %v9340
        %v9375 = vunpack.c.l.b16 %v9341
        %v9376 = vunpack.c.l.b16 %v9342
        %v9377 = vunpack.c.l.b16 %v9343
        %v9378 = vpack.c.b16 %v9363, %v9362
        %v9379 = vpack.c.b16 %v9365, %v9364
        %v9380 = vpack.c.b16 %v9367, %v9366
        %v9381 = vpack.c.b16 %v9369, %v9368
        %v9382 = vpack.c.b16 %v9371, %v9370
        %v9383 = vpack.c.b16 %v9373, %v9372
        %v9384 = vpack.c.b16 %v9375, %v9374
        %v9385 = vpack.c.b16 %v9377, %v9376
        %9394 = vmatprep.subr.bf16.mxu0 0
        %9395 = vmatpush1.bf16.msra.mxu0 %v9378
        %9396 = vmatprep.subr.bf16.mxu0 0
        %9397 = vmatpush1.bf16.msra.mxu0 %v9379
        %9398 = vmatprep.subr.bf16.mxu0 0
        %9399 = vmatpush1.bf16.msra.mxu0 %v9380
        %9400 = vmatprep.subr.bf16.mxu0 0
        %9401 = vmatpush1.bf16.msra.mxu0 %v9381
        %9402 = vmatprep.subr.bf16.mxu0 0
        %9403 = vmatpush1.bf16.msra.mxu0 %v9382
        %9404 = vmatprep.subr.bf16.mxu0 0
        %9405 = vmatpush1.bf16.msra.mxu0 %v9383
        %9406 = vmatprep.subr.bf16.mxu0 0
        %9407 = vmatpush1.bf16.msra.mxu0 %v9384
        %9408 = vmatprep.subr.bf16.mxu0 0
        %9409 = vmatpush1.bf16.msra.mxu0 %v9385
        %9410 = vmatprep.subr.bf16.mxu0 0
        %9411 = vmatpush1.bf16.msra.mxu0 0
        %9412 = vmatprep.subr.bf16.mxu0 0
        %9413 = vmatpush1.bf16.msra.mxu0 0
        %9414 = vmatprep.subr.bf16.mxu0 0
        %9415 = vmatpush1.bf16.msra.mxu0 0
        %9416 = vmatprep.subr.bf16.mxu0 0
        %9417 = vmatpush1.bf16.msra.mxu0 0
        %9418 = vmatprep.subr.bf16.mxu0 0
        %9419 = vmatpush1.bf16.msra.mxu0 0
        %9420 = vmatprep.subr.bf16.mxu0 0
        %9421 = vmatpush1.bf16.msra.mxu0 0
        %9422 = vmatprep.subr.bf16.mxu0 0
        %9423 = vmatpush1.bf16.msra.mxu0 0
        %9424 = vmatprep.subr.bf16.mxu0 0
        %9425 = vmatpush1.bf16.msra.mxu0 0
        %9426 = vmatprep.mubr.bf16.mxu0 0
        %9427 = vmatmul.mubr.bf16.gmra.mrb[0].mxu0 %v9344
        %v9428 = vpop.f32.mrb[0].mxu0
        %v9429 = vadd.f32 0.0, %v9428
        %v9430 = vpop.f32.mrb[0].mxu0
        %v9431 = vpop.f32.mrb[0].mxu0
        %v9432 = vpop.f32.mrb[0].mxu0
        %9433 = vdwg.mxu0
        %v9434 = vadd.f32 %v9326, %v9429
        %s9435 = scalar_lea.vmem %s7, 384
        %v9436 = vld [vmem:[%s9435] sm:$0xf]
        %v9437 = vld [vmem:[%s9435 + $0x4] sm:$0xf]
        %v9438 = vld [vmem:[%s9435 + $0x8] sm:$0xf]
        %v9439 = vld [vmem:[%s9435 + $0xc] sm:$0xf]
        %v9440 = vld [vmem:[%s9435 + $0x10] sm:$0xf]
        %v9441 = vld [vmem:[%s9435 + $0x14] sm:$0xf]
        %v9442 = vld [vmem:[%s9435 + $0x18] sm:$0xf]
        %v9443 = vld [vmem:[%s9435 + $0x1c] sm:$0xf]
        %v9444 = vld [vmem:[%s9435 + $0x20] sm:$0xf]
        %v9445 = vld [vmem:[%s9435 + $0x24] sm:$0xf]
        %v9446 = vld [vmem:[%s9435 + $0x28] sm:$0xf]
        %v9447 = vld [vmem:[%s9435 + $0x2c] sm:$0xf]
        %v9448 = vld [vmem:[%s9435 + $0x30] sm:$0xf]
        %v9449 = vld [vmem:[%s9435 + $0x34] sm:$0xf]
        %v9450 = vld [vmem:[%s9435 + $0x38] sm:$0xf]
        %v9451 = vld [vmem:[%s9435 + $0x3c] sm:$0xf]
        %v9452 = vrot.slane %v8787, 3
        %v9470 = vunpack.c.l.b16 %v9436
        %v9471 = vunpack.c.l.b16 %v9437
        %v9472 = vunpack.c.l.b16 %v9438
        %v9473 = vunpack.c.l.b16 %v9439
        %v9474 = vunpack.c.l.b16 %v9440
        %v9475 = vunpack.c.l.b16 %v9441
        %v9476 = vunpack.c.l.b16 %v9442
        %v9477 = vunpack.c.l.b16 %v9443
        %v9478 = vunpack.c.l.b16 %v9444
        %v9479 = vunpack.c.l.b16 %v9445
        %v9480 = vunpack.c.l.b16 %v9446
        %v9481 = vunpack.c.l.b16 %v9447
        %v9482 = vunpack.c.l.b16 %v9448
        %v9483 = vunpack.c.l.b16 %v9449
        %v9484 = vunpack.c.l.b16 %v9450
        %v9485 = vunpack.c.l.b16 %v9451
        %v9486 = vpack.c.b16 %v9471, %v9470
        %v9487 = vpack.c.b16 %v9473, %v9472
        %v9488 = vpack.c.b16 %v9475, %v9474
        %v9489 = vpack.c.b16 %v9477, %v9476
        %v9490 = vpack.c.b16 %v9479, %v9478
        %v9491 = vpack.c.b16 %v9481, %v9480
        %v9492 = vpack.c.b16 %v9483, %v9482
        %v9493 = vpack.c.b16 %v9485, %v9484
        %9502 = vmatprep.subr.bf16.mxu0 0
        %9503 = vmatpush1.bf16.msra.mxu0 %v9486
        %9504 = vmatprep.subr.bf16.mxu0 0
        %9505 = vmatpush1.bf16.msra.mxu0 %v9487
        %9506 = vmatprep.subr.bf16.mxu0 0
        %9507 = vmatpush1.bf16.msra.mxu0 %v9488
        %9508 = vmatprep.subr.bf16.mxu0 0
        %9509 = vmatpush1.bf16.msra.mxu0 %v9489
        %9510 = vmatprep.subr.bf16.mxu0 0
        %9511 = vmatpush1.bf16.msra.mxu0 %v9490
        %9512 = vmatprep.subr.bf16.mxu0 0
        %9513 = vmatpush1.bf16.msra.mxu0 %v9491
        %9514 = vmatprep.subr.bf16.mxu0 0
        %9515 = vmatpush1.bf16.msra.mxu0 %v9492
        %9516 = vmatprep.subr.bf16.mxu0 0
        %9517 = vmatpush1.bf16.msra.mxu0 %v9493
        %9518 = vmatprep.subr.bf16.mxu0 0
        %9519 = vmatpush1.bf16.msra.mxu0 0
        %9520 = vmatprep.subr.bf16.mxu0 0
        %9521 = vmatpush1.bf16.msra.mxu0 0
        %9522 = vmatprep.subr.bf16.mxu0 0
        %9523 = vmatpush1.bf16.msra.mxu0 0
        %9524 = vmatprep.subr.bf16.mxu0 0
        %9525 = vmatpush1.bf16.msra.mxu0 0
        %9526 = vmatprep.subr.bf16.mxu0 0
        %9527 = vmatpush1.bf16.msra.mxu0 0
        %9528 = vmatprep.subr.bf16.mxu0 0
        %9529 = vmatpush1.bf16.msra.mxu0 0
        %9530 = vmatprep.subr.bf16.mxu0 0
        %9531 = vmatpush1.bf16.msra.mxu0 0
        %9532 = vmatprep.subr.bf16.mxu0 0
        %9533 = vmatpush1.bf16.msra.mxu0 0
        %9534 = vmatprep.mubr.bf16.mxu0 0
        %9535 = vmatmul.mubr.bf16.gmra.mrb[0].mxu0 %v9452
        %v9536 = vpop.f32.mrb[0].mxu0
        %v9537 = vadd.f32 0.0, %v9536
        %v9538 = vpop.f32.mrb[0].mxu0
        %v9539 = vpop.f32.mrb[0].mxu0
        %v9540 = vpop.f32.mrb[0].mxu0
        %9541 = vdwg.mxu0
        %v9542 = vadd.f32 %v9434, %v9537
        %s9543 = scalar_lea.vmem %s7, 448
        %v9544 = vld [vmem:[%s9543] sm:$0xf]
        %v9545 = vld [vmem:[%s9543 + $0x4] sm:$0xf]
        %v9546 = vld [vmem:[%s9543 + $0x8] sm:$0xf]
        %v9547 = vld [vmem:[%s9543 + $0xc] sm:$0xf]
        %v9548 = vld [vmem:[%s9543 + $0x10] sm:$0xf]
        %v9549 = vld [vmem:[%s9543 + $0x14] sm:$0xf]
        %v9550 = vld [vmem:[%s9543 + $0x18] sm:$0xf]
        %v9551 = vld [vmem:[%s9543 + $0x1c] sm:$0xf]
        %v9552 = vld [vmem:[%s9543 + $0x20] sm:$0xf]
        %v9553 = vld [vmem:[%s9543 + $0x24] sm:$0xf]
        %v9554 = vld [vmem:[%s9543 + $0x28] sm:$0xf]
        %v9555 = vld [vmem:[%s9543 + $0x2c] sm:$0xf]
        %v9556 = vld [vmem:[%s9543 + $0x30] sm:$0xf]
        %v9557 = vld [vmem:[%s9543 + $0x34] sm:$0xf]
        %v9558 = vld [vmem:[%s9543 + $0x38] sm:$0xf]
        %v9559 = vld [vmem:[%s9543 + $0x3c] sm:$0xf]
        %v9560 = vrot.slane %v8823, 3
        %v9578 = vunpack.c.l.b16 %v9544
        %v9579 = vunpack.c.l.b16 %v9545
        %v9580 = vunpack.c.l.b16 %v9546
        %v9581 = vunpack.c.l.b16 %v9547
        %v9582 = vunpack.c.l.b16 %v9548
        %v9583 = vunpack.c.l.b16 %v9549
        %v9584 = vunpack.c.l.b16 %v9550
        %v9585 = vunpack.c.l.b16 %v9551
        %v9586 = vunpack.c.l.b16 %v9552
        %v9587 = vunpack.c.l.b16 %v9553
        %v9588 = vunpack.c.l.b16 %v9554
        %v9589 = vunpack.c.l.b16 %v9555
        %v9590 = vunpack.c.l.b16 %v9556
        %v9591 = vunpack.c.l.b16 %v9557
        %v9592 = vunpack.c.l.b16 %v9558
        %v9593 = vunpack.c.l.b16 %v9559
        %v9594 = vpack.c.b16 %v9579, %v9578
        %v9595 = vpack.c.b16 %v9581, %v9580
        %v9596 = vpack.c.b16 %v9583, %v9582
        %v9597 = vpack.c.b16 %v9585, %v9584
        %v9598 = vpack.c.b16 %v9587, %v9586
        %v9599 = vpack.c.b16 %v9589, %v9588
        %v9600 = vpack.c.b16 %v9591, %v9590
        %v9601 = vpack.c.b16 %v9593, %v9592
        %9610 = vmatprep.subr.bf16.mxu0 0
        %9611 = vmatpush1.bf16.msra.mxu0 %v9594
        %9612 = vmatprep.subr.bf16.mxu0 0
        %9613 = vmatpush1.bf16.msra.mxu0 %v9595
        %9614 = vmatprep.subr.bf16.mxu0 0
        %9615 = vmatpush1.bf16.msra.mxu0 %v9596
        %9616 = vmatprep.subr.bf16.mxu0 0
        %9617 = vmatpush1.bf16.msra.mxu0 %v9597
        %9618 = vmatprep.subr.bf16.mxu0 0
        %9619 = vmatpush1.bf16.msra.mxu0 %v9598
        %9620 = vmatprep.subr.bf16.mxu0 0
        %9621 = vmatpush1.bf16.msra.mxu0 %v9599
        %9622 = vmatprep.subr.bf16.mxu0 0
        %9623 = vmatpush1.bf16.msra.mxu0 %v9600
        %9624 = vmatprep.subr.bf16.mxu0 0
        %9625 = vmatpush1.bf16.msra.mxu0 %v9601
        %9626 = vmatprep.subr.bf16.mxu0 0
        %9627 = vmatpush1.bf16.msra.mxu0 0
        %9628 = vmatprep.subr.bf16.mxu0 0
        %9629 = vmatpush1.bf16.msra.mxu0 0
        %9630 = vmatprep.subr.bf16.mxu0 0
        %9631 = vmatpush1.bf16.msra.mxu0 0
        %9632 = vmatprep.subr.bf16.mxu0 0
        %9633 = vmatpush1.bf16.msra.mxu0 0
        %9634 = vmatprep.subr.bf16.mxu0 0
        %9635 = vmatpush1.bf16.msra.mxu0 0
        %9636 = vmatprep.subr.bf16.mxu0 0
        %9637 = vmatpush1.bf16.msra.mxu0 0
        %9638 = vmatprep.subr.bf16.mxu0 0
        %9639 = vmatpush1.bf16.msra.mxu0 0
        %9640 = vmatprep.subr.bf16.mxu0 0
        %9641 = vmatpush1.bf16.msra.mxu0 0
        %9642 = vmatprep.mubr.bf16.mxu0 0
        %9643 = vmatmul.mubr.bf16.gmra.mrb[0].mxu0 %v9560
        %v9644 = vpop.f32.mrb[0].mxu0
        %v9645 = vadd.f32 0.0, %v9644
        %v9646 = vpop.f32.mrb[0].mxu0
        %v9647 = vpop.f32.mrb[0].mxu0
        %v9648 = vpop.f32.mrb[0].mxu0
        %9649 = vdwg.mxu0
        %v9650 = vadd.f32 %v9542, %v9645
        %s9651 = scalar_lea.vmem %s7, 512
        %v9652 = vld [vmem:[%s9651] sm:$0xf]
        %v9653 = vld [vmem:[%s9651 + $0x4] sm:$0xf]
        %v9654 = vld [vmem:[%s9651 + $0x8] sm:$0xf]
        %v9655 = vld [vmem:[%s9651 + $0xc] sm:$0xf]
        %v9656 = vld [vmem:[%s9651 + $0x10] sm:$0xf]
        %v9657 = vld [vmem:[%s9651 + $0x14] sm:$0xf]
        %v9658 = vld [vmem:[%s9651 + $0x18] sm:$0xf]
        %v9659 = vld [vmem:[%s9651 + $0x1c] sm:$0xf]
        %v9660 = vld [vmem:[%s9651 + $0x20] sm:$0xf]
        %v9661 = vld [vmem:[%s9651 + $0x24] sm:$0xf]
        %v9662 = vld [vmem:[%s9651 + $0x28] sm:$0xf]
        %v9663 = vld [vmem:[%s9651 + $0x2c] sm:$0xf]
        %v9664 = vld [vmem:[%s9651 + $0x30] sm:$0xf]
        %v9665 = vld [vmem:[%s9651 + $0x34] sm:$0xf]
        %v9666 = vld [vmem:[%s9651 + $0x38] sm:$0xf]
        %v9667 = vld [vmem:[%s9651 + $0x3c] sm:$0xf]
        %v9668 = vrot.slane %v8787, 4
        %v9686 = vunpack.c.l.b16 %v9652
        %v9687 = vunpack.c.l.b16 %v9653
        %v9688 = vunpack.c.l.b16 %v9654
        %v9689 = vunpack.c.l.b16 %v9655
        %v9690 = vunpack.c.l.b16 %v9656
        %v9691 = vunpack.c.l.b16 %v9657
        %v9692 = vunpack.c.l.b16 %v9658
        %v9693 = vunpack.c.l.b16 %v9659
        %v9694 = vunpack.c.l.b16 %v9660
        %v9695 = vunpack.c.l.b16 %v9661
        %v9696 = vunpack.c.l.b16 %v9662
        %v9697 = vunpack.c.l.b16 %v9663
        %v9698 = vunpack.c.l.b16 %v9664
        %v9699 = vunpack.c.l.b16 %v9665
        %v9700 = vunpack.c.l.b16 %v9666
        %v9701 = vunpack.c.l.b16 %v9667
        %v9702 = vpack.c.b16 %v9687, %v9686
        %v9703 = vpack.c.b16 %v9689, %v9688
        %v9704 = vpack.c.b16 %v9691, %v9690
        %v9705 = vpack.c.b16 %v9693, %v9692
        %v9706 = vpack.c.b16 %v9695, %v9694
        %v9707 = vpack.c.b16 %v9697, %v9696
        %v9708 = vpack.c.b16 %v9699, %v9698
        %v9709 = vpack.c.b16 %v9701, %v9700
        %9718 = vmatprep.subr.bf16.mxu0 0
        %9719 = vmatpush1.bf16.msra.mxu0 %v9702
        %9720 = vmatprep.subr.bf16.mxu0 0
        %9721 = vmatpush1.bf16.msra.mxu0 %v9703
        %9722 = vmatprep.subr.bf16.mxu0 0
        %9723 = vmatpush1.bf16.msra.mxu0 %v9704
        %9724 = vmatprep.subr.bf16.mxu0 0
        %9725 = vmatpush1.bf16.msra.mxu0 %v9705
        %9726 = vmatprep.subr.bf16.mxu0 0
        %9727 = vmatpush1.bf16.msra.mxu0 %v9706
        %9728 = vmatprep.subr.bf16.mxu0 0
        %9729 = vmatpush1.bf16.msra.mxu0 %v9707
        %9730 = vmatprep.subr.bf16.mxu0 0
        %9731 = vmatpush1.bf16.msra.mxu0 %v9708
        %9732 = vmatprep.subr.bf16.mxu0 0
        %9733 = vmatpush1.bf16.msra.mxu0 %v9709
        %9734 = vmatprep.subr.bf16.mxu0 0
        %9735 = vmatpush1.bf16.msra.mxu0 0
        %9736 = vmatprep.subr.bf16.mxu0 0
        %9737 = vmatpush1.bf16.msra.mxu0 0
        %9738 = vmatprep.subr.bf16.mxu0 0
        %9739 = vmatpush1.bf16.msra.mxu0 0
        %9740 = vmatprep.subr.bf16.mxu0 0
        %9741 = vmatpush1.bf16.msra.mxu0 0
        %9742 = vmatprep.subr.bf16.mxu0 0
        %9743 = vmatpush1.bf16.msra.mxu0 0
        %9744 = vmatprep.subr.bf16.mxu0 0
        %9745 = vmatpush1.bf16.msra.mxu0 0
        %9746 = vmatprep.subr.bf16.mxu0 0
        %9747 = vmatpush1.bf16.msra.mxu0 0
        %9748 = vmatprep.subr.bf16.mxu0 0
        %9749 = vmatpush1.bf16.msra.mxu0 0
        %9750 = vmatprep.mubr.bf16.mxu0 0
        %9751 = vmatmul.mubr.bf16.gmra.mrb[0].mxu0 %v9668
        %v9752 = vpop.f32.mrb[0].mxu0
        %v9753 = vadd.f32 0.0, %v9752
        %v9754 = vpop.f32.mrb[0].mxu0
        %v9755 = vpop.f32.mrb[0].mxu0
        %v9756 = vpop.f32.mrb[0].mxu0
        %9757 = vdwg.mxu0
        %v9758 = vadd.f32 %v9650, %v9753
        %s9759 = scalar_lea.vmem %s7, 576
        %v9760 = vld [vmem:[%s9759] sm:$0xf]
        %v9761 = vld [vmem:[%s9759 + $0x4] sm:$0xf]
        %v9762 = vld [vmem:[%s9759 + $0x8] sm:$0xf]
        %v9763 = vld [vmem:[%s9759 + $0xc] sm:$0xf]
        %v9764 = vld [vmem:[%s9759 + $0x10] sm:$0xf]
        %v9765 = vld [vmem:[%s9759 + $0x14] sm:$0xf]
        %v9766 = vld [vmem:[%s9759 + $0x18] sm:$0xf]
        %v9767 = vld [vmem:[%s9759 + $0x1c] sm:$0xf]
        %v9768 = vld [vmem:[%s9759 + $0x20] sm:$0xf]
        %v9769 = vld [vmem:[%s9759 + $0x24] sm:$0xf]
        %v9770 = vld [vmem:[%s9759 + $0x28] sm:$0xf]
        %v9771 = vld [vmem:[%s9759 + $0x2c] sm:$0xf]
        %v9772 = vld [vmem:[%s9759 + $0x30] sm:$0xf]
        %v9773 = vld [vmem:[%s9759 + $0x34] sm:$0xf]
        %v9774 = vld [vmem:[%s9759 + $0x38] sm:$0xf]
        %v9775 = vld [vmem:[%s9759 + $0x3c] sm:$0xf]
        %v9776 = vrot.slane %v8823, 4
        %v9794 = vunpack.c.l.b16 %v9760
        %v9795 = vunpack.c.l.b16 %v9761
        %v9796 = vunpack.c.l.b16 %v9762
        %v9797 = vunpack.c.l.b16 %v9763
        %v9798 = vunpack.c.l.b16 %v9764
        %v9799 = vunpack.c.l.b16 %v9765
        %v9800 = vunpack.c.l.b16 %v9766
        %v9801 = vunpack.c.l.b16 %v9767
        %v9802 = vunpack.c.l.b16 %v9768
        %v9803 = vunpack.c.l.b16 %v9769
        %v9804 = vunpack.c.l.b16 %v9770
        %v9805 = vunpack.c.l.b16 %v9771
        %v9806 = vunpack.c.l.b16 %v9772
        %v9807 = vunpack.c.l.b16 %v9773
        %v9808 = vunpack.c.l.b16 %v9774
        %v9809 = vunpack.c.l.b16 %v9775
        %v9810 = vpack.c.b16 %v9795, %v9794
        %v9811 = vpack.c.b16 %v9797, %v9796
        %v9812 = vpack.c.b16 %v9799, %v9798
        %v9813 = vpack.c.b16 %v9801, %v9800
        %v9814 = vpack.c.b16 %v9803, %v9802
        %v9815 = vpack.c.b16 %v9805, %v9804
        %v9816 = vpack.c.b16 %v9807, %v9806
        %v9817 = vpack.c.b16 %v9809, %v9808
        %9826 = vmatprep.subr.bf16.mxu0 0
        %9827 = vmatpush1.bf16.msra.mxu0 %v9810
        %9828 = vmatprep.subr.bf16.mxu0 0
        %9829 = vmatpush1.bf16.msra.mxu0 %v9811
        %9830 = vmatprep.subr.bf16.mxu0 0
        %9831 = vmatpush1.bf16.msra.mxu0 %v9812
        %9832 = vmatprep.subr.bf16.mxu0 0
        %9833 = vmatpush1.bf16.msra.mxu0 %v9813
        %9834 = vmatprep.subr.bf16.mxu0 0
        %9835 = vmatpush1.bf16.msra.mxu0 %v9814
        %9836 = vmatprep.subr.bf16.mxu0 0
        %9837 = vmatpush1.bf16.msra.mxu0 %v9815
        %9838 = vmatprep.subr.bf16.mxu0 0
        %9839 = vmatpush1.bf16.msra.mxu0 %v9816
        %9840 = vmatprep.subr.bf16.mxu0 0
        %9841 = vmatpush1.bf16.msra.mxu0 %v9817
        %9842 = vmatprep.subr.bf16.mxu0 0
        %9843 = vmatpush1.bf16.msra.mxu0 0
        %9844 = vmatprep.subr.bf16.mxu0 0
        %9845 = vmatpush1.bf16.msra.mxu0 0
        %9846 = vmatprep.subr.bf16.mxu0 0
        %9847 = vmatpush1.bf16.msra.mxu0 0
        %9848 = vmatprep.subr.bf16.mxu0 0
        %9849 = vmatpush1.bf16.msra.mxu0 0
        %9850 = vmatprep.subr.bf16.mxu0 0
        %9851 = vmatpush1.bf16.msra.mxu0 0
        %9852 = vmatprep.subr.bf16.mxu0 0
        %9853 = vmatpush1.bf16.msra.mxu0 0
        %9854 = vmatprep.subr.bf16.mxu0 0
        %9855 = vmatpush1.bf16.msra.mxu0 0
        %9856 = vmatprep.subr.bf16.mxu0 0
        %9857 = vmatpush1.bf16.msra.mxu0 0
        %9858 = vmatprep.mubr.bf16.mxu0 0
        %9859 = vmatmul.mubr.bf16.gmra.mrb[0].mxu0 %v9776
        %v9860 = vpop.f32.mrb[0].mxu0
        %v9861 = vadd.f32 0.0, %v9860
        %v9862 = vpop.f32.mrb[0].mxu0
        %v9863 = vpop.f32.mrb[0].mxu0
        %v9864 = vpop.f32.mrb[0].mxu0
        %9865 = vdwg.mxu0
        %v9866 = vadd.f32 %v9758, %v9861
        %s9867 = scalar_lea.vmem %s7, 640
        %v9868 = vld [vmem:[%s9867] sm:$0xf]
        %v9869 = vld [vmem:[%s9867 + $0x4] sm:$0xf]
        %v9870 = vld [vmem:[%s9867 + $0x8] sm:$0xf]
        %v9871 = vld [vmem:[%s9867 + $0xc] sm:$0xf]
        %v9872 = vld [vmem:[%s9867 + $0x10] sm:$0xf]
        %v9873 = vld [vmem:[%s9867 + $0x14] sm:$0xf]
        %v9874 = vld [vmem:[%s9867 + $0x18] sm:$0xf]
        %v9875 = vld [vmem:[%s9867 + $0x1c] sm:$0xf]
        %v9876 = vld [vmem:[%s9867 + $0x20] sm:$0xf]
        %v9877 = vld [vmem:[%s9867 + $0x24] sm:$0xf]
        %v9878 = vld [vmem:[%s9867 + $0x28] sm:$0xf]
        %v9879 = vld [vmem:[%s9867 + $0x2c] sm:$0xf]
        %v9880 = vld [vmem:[%s9867 + $0x30] sm:$0xf]
        %v9881 = vld [vmem:[%s9867 + $0x34] sm:$0xf]
        %v9882 = vld [vmem:[%s9867 + $0x38] sm:$0xf]
        %v9883 = vld [vmem:[%s9867 + $0x3c] sm:$0xf]
        %v9884 = vrot.slane %v8787, 5
        %v9902 = vunpack.c.l.b16 %v9868
        %v9903 = vunpack.c.l.b16 %v9869
        %v9904 = vunpack.c.l.b16 %v9870
        %v9905 = vunpack.c.l.b16 %v9871
        %v9906 = vunpack.c.l.b16 %v9872
        %v9907 = vunpack.c.l.b16 %v9873
        %v9908 = vunpack.c.l.b16 %v9874
        %v9909 = vunpack.c.l.b16 %v9875
        %v9910 = vunpack.c.l.b16 %v9876
        %v9911 = vunpack.c.l.b16 %v9877
        %v9912 = vunpack.c.l.b16 %v9878
        %v9913 = vunpack.c.l.b16 %v9879
        %v9914 = vunpack.c.l.b16 %v9880
        %v9915 = vunpack.c.l.b16 %v9881
        %v9916 = vunpack.c.l.b16 %v9882
        %v9917 = vunpack.c.l.b16 %v9883
        %v9918 = vpack.c.b16 %v9903, %v9902
        %v9919 = vpack.c.b16 %v9905, %v9904
        %v9920 = vpack.c.b16 %v9907, %v9906
        %v9921 = vpack.c.b16 %v9909, %v9908
        %v9922 = vpack.c.b16 %v9911, %v9910
        %v9923 = vpack.c.b16 %v9913, %v9912
        %v9924 = vpack.c.b16 %v9915, %v9914
        %v9925 = vpack.c.b16 %v9917, %v9916
        %9934 = vmatprep.subr.bf16.mxu0 0
        %9935 = vmatpush1.bf16.msra.mxu0 %v9918
        %9936 = vmatprep.subr.bf16.mxu0 0
        %9937 = vmatpush1.bf16.msra.mxu0 %v9919
        %9938 = vmatprep.subr.bf16.mxu0 0
        %9939 = vmatpush1.bf16.msra.mxu0 %v9920
        %9940 = vmatprep.subr.bf16.mxu0 0
        %9941 = vmatpush1.bf16.msra.mxu0 %v9921
        %9942 = vmatprep.subr.bf16.mxu0 0
        %9943 = vmatpush1.bf16.msra.mxu0 %v9922
        %9944 = vmatprep.subr.bf16.mxu0 0
        %9945 = vmatpush1.bf16.msra.mxu0 %v9923
        %9946 = vmatprep.subr.bf16.mxu0 0
        %9947 = vmatpush1.bf16.msra.mxu0 %v9924
        %9948 = vmatprep.subr.bf16.mxu0 0
        %9949 = vmatpush1.bf16.msra.mxu0 %v9925
        %9950 = vmatprep.subr.bf16.mxu0 0
        %9951 = vmatpush1.bf16.msra.mxu0 0
        %9952 = vmatprep.subr.bf16.mxu0 0
        %9953 = vmatpush1.bf16.msra.mxu0 0
        %9954 = vmatprep.subr.bf16.mxu0 0
        %9955 = vmatpush1.bf16.msra.mxu0 0
        %9956 = vmatprep.subr.bf16.mxu0 0
        %9957 = vmatpush1.bf16.msra.mxu0 0
        %9958 = vmatprep.subr.bf16.mxu0 0
        %9959 = vmatpush1.bf16.msra.mxu0 0
        %9960 = vmatprep.subr.bf16.mxu0 0
        %9961 = vmatpush1.bf16.msra.mxu0 0
        %9962 = vmatprep.subr.bf16.mxu0 0
        %9963 = vmatpush1.bf16.msra.mxu0 0
        %9964 = vmatprep.subr.bf16.mxu0 0
        %9965 = vmatpush1.bf16.msra.mxu0 0
        %9966 = vmatprep.mubr.bf16.mxu0 0
        %9967 = vmatmul.mubr.bf16.gmra.mrb[0].mxu0 %v9884
        %v9968 = vpop.f32.mrb[0].mxu0
        %v9969 = vadd.f32 0.0, %v9968
        %v9970 = vpop.f32.mrb[0].mxu0
        %v9971 = vpop.f32.mrb[0].mxu0
        %v9972 = vpop.f32.mrb[0].mxu0
        %9973 = vdwg.mxu0
        %v9974 = vadd.f32 %v9866, %v9969
        %s9975 = scalar_lea.vmem %s7, 704
        %v9976 = vld [vmem:[%s9975] sm:$0xf]
        %v9977 = vld [vmem:[%s9975 + $0x4] sm:$0xf]
        %v9978 = vld [vmem:[%s9975 + $0x8] sm:$0xf]
        %v9979 = vld [vmem:[%s9975 + $0xc] sm:$0xf]
        %v9980 = vld [vmem:[%s9975 + $0x10] sm:$0xf]
        %v9981 = vld [vmem:[%s9975 + $0x14] sm:$0xf]
        %v9982 = vld [vmem:[%s9975 + $0x18] sm:$0xf]
        %v9983 = vld [vmem:[%s9975 + $0x1c] sm:$0xf]
        %v9984 = vld [vmem:[%s9975 + $0x20] sm:$0xf]
        %v9985 = vld [vmem:[%s9975 + $0x24] sm:$0xf]
        %v9986 = vld [vmem:[%s9975 + $0x28] sm:$0xf]
        %v9987 = vld [vmem:[%s9975 + $0x2c] sm:$0xf]
        %v9988 = vld [vmem:[%s9975 + $0x30] sm:$0xf]
        %v9989 = vld [vmem:[%s9975 + $0x34] sm:$0xf]
        %v9990 = vld [vmem:[%s9975 + $0x38] sm:$0xf]
        %v9991 = vld [vmem:[%s9975 + $0x3c] sm:$0xf]
        %v9992 = vrot.slane %v8823, 5
        %v10010 = vunpack.c.l.b16 %v9976
        %v10011 = vunpack.c.l.b16 %v9977
        %v10012 = vunpack.c.l.b16 %v9978
        %v10013 = vunpack.c.l.b16 %v9979
        %v10014 = vunpack.c.l.b16 %v9980
        %v10015 = vunpack.c.l.b16 %v9981
        %v10016 = vunpack.c.l.b16 %v9982
        %v10017 = vunpack.c.l.b16 %v9983
        %v10018 = vunpack.c.l.b16 %v9984
        %v10019 = vunpack.c.l.b16 %v9985
        %v10020 = vunpack.c.l.b16 %v9986
        %v10021 = vunpack.c.l.b16 %v9987
        %v10022 = vunpack.c.l.b16 %v9988
        %v10023 = vunpack.c.l.b16 %v9989
        %v10024 = vunpack.c.l.b16 %v9990
        %v10025 = vunpack.c.l.b16 %v9991
        %v10026 = vpack.c.b16 %v10011, %v10010
        %v10027 = vpack.c.b16 %v10013, %v10012
        %v10028 = vpack.c.b16 %v10015, %v10014
        %v10029 = vpack.c.b16 %v10017, %v10016
        %v10030 = vpack.c.b16 %v10019, %v10018
        %v10031 = vpack.c.b16 %v10021, %v10020
        %v10032 = vpack.c.b16 %v10023, %v10022
        %v10033 = vpack.c.b16 %v10025, %v10024
        %10042 = vmatprep.subr.bf16.mxu0 0
        %10043 = vmatpush1.bf16.msra.mxu0 %v10026
        %10044 = vmatprep.subr.bf16.mxu0 0
        %10045 = vmatpush1.bf16.msra.mxu0 %v10027
        %10046 = vmatprep.subr.bf16.mxu0 0
        %10047 = vmatpush1.bf16.msra.mxu0 %v10028
        %10048 = vmatprep.subr.bf16.mxu0 0
        %10049 = vmatpush1.bf16.msra.mxu0 %v10029
        %10050 = vmatprep.subr.bf16.mxu0 0
        %10051 = vmatpush1.bf16.msra.mxu0 %v10030
        %10052 = vmatprep.subr.bf16.mxu0 0
        %10053 = vmatpush1.bf16.msra.mxu0 %v10031
        %10054 = vmatprep.subr.bf16.mxu0 0
        %10055 = vmatpush1.bf16.msra.mxu0 %v10032
        %10056 = vmatprep.subr.bf16.mxu0 0
        %10057 = vmatpush1.bf16.msra.mxu0 %v10033
        %10058 = vmatprep.subr.bf16.mxu0 0
        %10059 = vmatpush1.bf16.msra.mxu0 0
        %10060 = vmatprep.subr.bf16.mxu0 0
        %10061 = vmatpush1.bf16.msra.mxu0 0
        %10062 = vmatprep.subr.bf16.mxu0 0
        %10063 = vmatpush1.bf16.msra.mxu0 0
        %10064 = vmatprep.subr.bf16.mxu0 0
        %10065 = vmatpush1.bf16.msra.mxu0 0
        %10066 = vmatprep.subr.bf16.mxu0 0
        %10067 = vmatpush1.bf16.msra.mxu0 0
        %10068 = vmatprep.subr.bf16.mxu0 0
        %10069 = vmatpush1.bf16.msra.mxu0 0
        %10070 = vmatprep.subr.bf16.mxu0 0
        %10071 = vmatpush1.bf16.msra.mxu0 0
        %10072 = vmatprep.subr.bf16.mxu0 0
        %10073 = vmatpush1.bf16.msra.mxu0 0
        %10074 = vmatprep.mubr.bf16.mxu0 0
        %10075 = vmatmul.mubr.bf16.gmra.mrb[0].mxu0 %v9992
        %v10076 = vpop.f32.mrb[0].mxu0
        %v10077 = vadd.f32 0.0, %v10076
        %v10078 = vpop.f32.mrb[0].mxu0
        %v10079 = vpop.f32.mrb[0].mxu0
        %v10080 = vpop.f32.mrb[0].mxu0
        %10081 = vdwg.mxu0
        %v10082 = vadd.f32 %v9974, %v10077
        %s10083 = scalar_lea.vmem %s7, 768
        %v10084 = vld [vmem:[%s10083] sm:$0xf]
        %v10085 = vld [vmem:[%s10083 + $0x4] sm:$0xf]
        %v10086 = vld [vmem:[%s10083 + $0x8] sm:$0xf]
        %v10087 = vld [vmem:[%s10083 + $0xc] sm:$0xf]
        %v10088 = vld [vmem:[%s10083 + $0x10] sm:$0xf]
        %v10089 = vld [vmem:[%s10083 + $0x14] sm:$0xf]
        %v10090 = vld [vmem:[%s10083 + $0x18] sm:$0xf]
        %v10091 = vld [vmem:[%s10083 + $0x1c] sm:$0xf]
        %v10092 = vld [vmem:[%s10083 + $0x20] sm:$0xf]
        %v10093 = vld [vmem:[%s10083 + $0x24] sm:$0xf]
        %v10094 = vld [vmem:[%s10083 + $0x28] sm:$0xf]
        %v10095 = vld [vmem:[%s10083 + $0x2c] sm:$0xf]
        %v10096 = vld [vmem:[%s10083 + $0x30] sm:$0xf]
        %v10097 = vld [vmem:[%s10083 + $0x34] sm:$0xf]
        %v10098 = vld [vmem:[%s10083 + $0x38] sm:$0xf]
        %v10099 = vld [vmem:[%s10083 + $0x3c] sm:$0xf]
        %v10100 = vrot.slane %v8787, 6
        %v10118 = vunpack.c.l.b16 %v10084
        %v10119 = vunpack.c.l.b16 %v10085
        %v10120 = vunpack.c.l.b16 %v10086
        %v10121 = vunpack.c.l.b16 %v10087
        %v10122 = vunpack.c.l.b16 %v10088
        %v10123 = vunpack.c.l.b16 %v10089
        %v10124 = vunpack.c.l.b16 %v10090
        %v10125 = vunpack.c.l.b16 %v10091
        %v10126 = vunpack.c.l.b16 %v10092
        %v10127 = vunpack.c.l.b16 %v10093
        %v10128 = vunpack.c.l.b16 %v10094
        %v10129 = vunpack.c.l.b16 %v10095
        %v10130 = vunpack.c.l.b16 %v10096
        %v10131 = vunpack.c.l.b16 %v10097
        %v10132 = vunpack.c.l.b16 %v10098
        %v10133 = vunpack.c.l.b16 %v10099
        %v10134 = vpack.c.b16 %v10119, %v10118
        %v10135 = vpack.c.b16 %v10121, %v10120
        %v10136 = vpack.c.b16 %v10123, %v10122
        %v10137 = vpack.c.b16 %v10125, %v10124
        %v10138 = vpack.c.b16 %v10127, %v10126
        %v10139 = vpack.c.b16 %v10129, %v10128
        %v10140 = vpack.c.b16 %v10131, %v10130
        %v10141 = vpack.c.b16 %v10133, %v10132
        %10150 = vmatprep.subr.bf16.mxu0 0
        %10151 = vmatpush1.bf16.msra.mxu0 %v10134
        %10152 = vmatprep.subr.bf16.mxu0 0
        %10153 = vmatpush1.bf16.msra.mxu0 %v10135
        %10154 = vmatprep.subr.bf16.mxu0 0
        %10155 = vmatpush1.bf16.msra.mxu0 %v10136
        %10156 = vmatprep.subr.bf16.mxu0 0
        %10157 = vmatpush1.bf16.msra.mxu0 %v10137
        %10158 = vmatprep.subr.bf16.mxu0 0
        %10159 = vmatpush1.bf16.msra.mxu0 %v10138
        %10160 = vmatprep.subr.bf16.mxu0 0
        %10161 = vmatpush1.bf16.msra.mxu0 %v10139
        %10162 = vmatprep.subr.bf16.mxu0 0
        %10163 = vmatpush1.bf16.msra.mxu0 %v10140
        %10164 = vmatprep.subr.bf16.mxu0 0
        %10165 = vmatpush1.bf16.msra.mxu0 %v10141
        %10166 = vmatprep.subr.bf16.mxu0 0
        %10167 = vmatpush1.bf16.msra.mxu0 0
        %10168 = vmatprep.subr.bf16.mxu0 0
        %10169 = vmatpush1.bf16.msra.mxu0 0
        %10170 = vmatprep.subr.bf16.mxu0 0
        %10171 = vmatpush1.bf16.msra.mxu0 0
        %10172 = vmatprep.subr.bf16.mxu0 0
        %10173 = vmatpush1.bf16.msra.mxu0 0
        %10174 = vmatprep.subr.bf16.mxu0 0
        %10175 = vmatpush1.bf16.msra.mxu0 0
        %10176 = vmatprep.subr.bf16.mxu0 0
        %10177 = vmatpush1.bf16.msra.mxu0 0
        %10178 = vmatprep.subr.bf16.mxu0 0
        %10179 = vmatpush1.bf16.msra.mxu0 0
        %10180 = vmatprep.subr.bf16.mxu0 0
        %10181 = vmatpush1.bf16.msra.mxu0 0
        %10182 = vmatprep.mubr.bf16.mxu0 0
        %10183 = vmatmul.mubr.bf16.gmra.mrb[0].mxu0 %v10100
        %v10184 = vpop.f32.mrb[0].mxu0
        %v10185 = vadd.f32 0.0, %v10184
        %v10186 = vpop.f32.mrb[0].mxu0
        %v10187 = vpop.f32.mrb[0].mxu0
        %v10188 = vpop.f32.mrb[0].mxu0
        %10189 = vdwg.mxu0
        %v10190 = vadd.f32 %v10082, %v10185
        %s10191 = scalar_lea.vmem %s7, 832
        %v10192 = vld [vmem:[%s10191] sm:$0xf]
        %v10193 = vld [vmem:[%s10191 + $0x4] sm:$0xf]
        %v10194 = vld [vmem:[%s10191 + $0x8] sm:$0xf]
        %v10195 = vld [vmem:[%s10191 + $0xc] sm:$0xf]
        %v10196 = vld [vmem:[%s10191 + $0x10] sm:$0xf]
        %v10197 = vld [vmem:[%s10191 + $0x14] sm:$0xf]
        %v10198 = vld [vmem:[%s10191 + $0x18] sm:$0xf]
        %v10199 = vld [vmem:[%s10191 + $0x1c] sm:$0xf]
        %v10200 = vld [vmem:[%s10191 + $0x20] sm:$0xf]
        %v10201 = vld [vmem:[%s10191 + $0x24] sm:$0xf]
        %v10202 = vld [vmem:[%s10191 + $0x28] sm:$0xf]
        %v10203 = vld [vmem:[%s10191 + $0x2c] sm:$0xf]
        %v10204 = vld [vmem:[%s10191 + $0x30] sm:$0xf]
        %v10205 = vld [vmem:[%s10191 + $0x34] sm:$0xf]
        %v10206 = vld [vmem:[%s10191 + $0x38] sm:$0xf]
        %v10207 = vld [vmem:[%s10191 + $0x3c] sm:$0xf]
        %v10208 = vrot.slane %v8823, 6
        %v10226 = vunpack.c.l.b16 %v10192
        %v10227 = vunpack.c.l.b16 %v10193
        %v10228 = vunpack.c.l.b16 %v10194
        %v10229 = vunpack.c.l.b16 %v10195
        %v10230 = vunpack.c.l.b16 %v10196
        %v10231 = vunpack.c.l.b16 %v10197
        %v10232 = vunpack.c.l.b16 %v10198
        %v10233 = vunpack.c.l.b16 %v10199
        %v10234 = vunpack.c.l.b16 %v10200
        %v10235 = vunpack.c.l.b16 %v10201
        %v10236 = vunpack.c.l.b16 %v10202
        %v10237 = vunpack.c.l.b16 %v10203
        %v10238 = vunpack.c.l.b16 %v10204
        %v10239 = vunpack.c.l.b16 %v10205
        %v10240 = vunpack.c.l.b16 %v10206
        %v10241 = vunpack.c.l.b16 %v10207
        %v10242 = vpack.c.b16 %v10227, %v10226
        %v10243 = vpack.c.b16 %v10229, %v10228
        %v10244 = vpack.c.b16 %v10231, %v10230
        %v10245 = vpack.c.b16 %v10233, %v10232
        %v10246 = vpack.c.b16 %v10235, %v10234
        %v10247 = vpack.c.b16 %v10237, %v10236
        %v10248 = vpack.c.b16 %v10239, %v10238
        %v10249 = vpack.c.b16 %v10241, %v10240
        %10258 = vmatprep.subr.bf16.mxu0 0
        %10259 = vmatpush1.bf16.msra.mxu0 %v10242
        %10260 = vmatprep.subr.bf16.mxu0 0
        %10261 = vmatpush1.bf16.msra.mxu0 %v10243
        %10262 = vmatprep.subr.bf16.mxu0 0
        %10263 = vmatpush1.bf16.msra.mxu0 %v10244
        %10264 = vmatprep.subr.bf16.mxu0 0
        %10265 = vmatpush1.bf16.msra.mxu0 %v10245
        %10266 = vmatprep.subr.bf16.mxu0 0
        %10267 = vmatpush1.bf16.msra.mxu0 %v10246
        %10268 = vmatprep.subr.bf16.mxu0 0
        %10269 = vmatpush1.bf16.msra.mxu0 %v10247
        %10270 = vmatprep.subr.bf16.mxu0 0
        %10271 = vmatpush1.bf16.msra.mxu0 %v10248
        %10272 = vmatprep.subr.bf16.mxu0 0
        %10273 = vmatpush1.bf16.msra.mxu0 %v10249
        %10274 = vmatprep.subr.bf16.mxu0 0
        %10275 = vmatpush1.bf16.msra.mxu0 0
        %10276 = vmatprep.subr.bf16.mxu0 0
        %10277 = vmatpush1.bf16.msra.mxu0 0
        %10278 = vmatprep.subr.bf16.mxu0 0
        %10279 = vmatpush1.bf16.msra.mxu0 0
        %10280 = vmatprep.subr.bf16.mxu0 0
        %10281 = vmatpush1.bf16.msra.mxu0 0
        %10282 = vmatprep.subr.bf16.mxu0 0
        %10283 = vmatpush1.bf16.msra.mxu0 0
        %10284 = vmatprep.subr.bf16.mxu0 0
        %10285 = vmatpush1.bf16.msra.mxu0 0
        %10286 = vmatprep.subr.bf16.mxu0 0
        %10287 = vmatpush1.bf16.msra.mxu0 0
        %10288 = vmatprep.subr.bf16.mxu0 0
        %10289 = vmatpush1.bf16.msra.mxu0 0
        %10290 = vmatprep.mubr.bf16.mxu0 0
        %10291 = vmatmul.mubr.bf16.gmra.mrb[0].mxu0 %v10208
        %v10292 = vpop.f32.mrb[0].mxu0
        %v10293 = vadd.f32 0.0, %v10292
        %v10294 = vpop.f32.mrb[0].mxu0
        %v10295 = vpop.f32.mrb[0].mxu0
        %v10296 = vpop.f32.mrb[0].mxu0
        %10297 = vdwg.mxu0
        %v10298 = vadd.f32 %v10190, %v10293
        %s10299 = scalar_lea.vmem %s7, 896
        %v10300 = vld [vmem:[%s10299] sm:$0xf]
        %v10301 = vld [vmem:[%s10299 + $0x4] sm:$0xf]
        %v10302 = vld [vmem:[%s10299 + $0x8] sm:$0xf]
        %v10303 = vld [vmem:[%s10299 + $0xc] sm:$0xf]
        %v10304 = vld [vmem:[%s10299 + $0x10] sm:$0xf]
        %v10305 = vld [vmem:[%s10299 + $0x14] sm:$0xf]
        %v10306 = vld [vmem:[%s10299 + $0x18] sm:$0xf]
        %v10307 = vld [vmem:[%s10299 + $0x1c] sm:$0xf]
        %v10308 = vld [vmem:[%s10299 + $0x20] sm:$0xf]
        %v10309 = vld [vmem:[%s10299 + $0x24] sm:$0xf]
        %v10310 = vld [vmem:[%s10299 + $0x28] sm:$0xf]
        %v10311 = vld [vmem:[%s10299 + $0x2c] sm:$0xf]
        %v10312 = vld [vmem:[%s10299 + $0x30] sm:$0xf]
        %v10313 = vld [vmem:[%s10299 + $0x34] sm:$0xf]
        %v10314 = vld [vmem:[%s10299 + $0x38] sm:$0xf]
        %v10315 = vld [vmem:[%s10299 + $0x3c] sm:$0xf]
        %v10316 = vrot.slane %v8787, 7
        %v10334 = vunpack.c.l.b16 %v10300
        %v10335 = vunpack.c.l.b16 %v10301
        %v10336 = vunpack.c.l.b16 %v10302
        %v10337 = vunpack.c.l.b16 %v10303
        %v10338 = vunpack.c.l.b16 %v10304
        %v10339 = vunpack.c.l.b16 %v10305
        %v10340 = vunpack.c.l.b16 %v10306
        %v10341 = vunpack.c.l.b16 %v10307
        %v10342 = vunpack.c.l.b16 %v10308
        %v10343 = vunpack.c.l.b16 %v10309
        %v10344 = vunpack.c.l.b16 %v10310
        %v10345 = vunpack.c.l.b16 %v10311
        %v10346 = vunpack.c.l.b16 %v10312
        %v10347 = vunpack.c.l.b16 %v10313
        %v10348 = vunpack.c.l.b16 %v10314
        %v10349 = vunpack.c.l.b16 %v10315
        %v10350 = vpack.c.b16 %v10335, %v10334
        %v10351 = vpack.c.b16 %v10337, %v10336
        %v10352 = vpack.c.b16 %v10339, %v10338
        %v10353 = vpack.c.b16 %v10341, %v10340
        %v10354 = vpack.c.b16 %v10343, %v10342
        %v10355 = vpack.c.b16 %v10345, %v10344
        %v10356 = vpack.c.b16 %v10347, %v10346
        %v10357 = vpack.c.b16 %v10349, %v10348
        %10366 = vmatprep.subr.bf16.mxu0 0
        %10367 = vmatpush1.bf16.msra.mxu0 %v10350
        %10368 = vmatprep.subr.bf16.mxu0 0
        %10369 = vmatpush1.bf16.msra.mxu0 %v10351
        %10370 = vmatprep.subr.bf16.mxu0 0
        %10371 = vmatpush1.bf16.msra.mxu0 %v10352
        %10372 = vmatprep.subr.bf16.mxu0 0
        %10373 = vmatpush1.bf16.msra.mxu0 %v10353
        %10374 = vmatprep.subr.bf16.mxu0 0
        %10375 = vmatpush1.bf16.msra.mxu0 %v10354
        %10376 = vmatprep.subr.bf16.mxu0 0
        %10377 = vmatpush1.bf16.msra.mxu0 %v10355
        %10378 = vmatprep.subr.bf16.mxu0 0
        %10379 = vmatpush1.bf16.msra.mxu0 %v10356
        %10380 = vmatprep.subr.bf16.mxu0 0
        %10381 = vmatpush1.bf16.msra.mxu0 %v10357
        %10382 = vmatprep.subr.bf16.mxu0 0
        %10383 = vmatpush1.bf16.msra.mxu0 0
        %10384 = vmatprep.subr.bf16.mxu0 0
        %10385 = vmatpush1.bf16.msra.mxu0 0
        %10386 = vmatprep.subr.bf16.mxu0 0
        %10387 = vmatpush1.bf16.msra.mxu0 0
        %10388 = vmatprep.subr.bf16.mxu0 0
        %10389 = vmatpush1.bf16.msra.mxu0 0
        %10390 = vmatprep.subr.bf16.mxu0 0
        %10391 = vmatpush1.bf16.msra.mxu0 0
        %10392 = vmatprep.subr.bf16.mxu0 0
        %10393 = vmatpush1.bf16.msra.mxu0 0
        %10394 = vmatprep.subr.bf16.mxu0 0
        %10395 = vmatpush1.bf16.msra.mxu0 0
        %10396 = vmatprep.subr.bf16.mxu0 0
        %10397 = vmatpush1.bf16.msra.mxu0 0
        %10398 = vmatprep.mubr.bf16.mxu0 0
        %10399 = vmatmul.mubr.bf16.gmra.mrb[0].mxu0 %v10316
        %v10400 = vpop.f32.mrb[0].mxu0
        %v10401 = vadd.f32 0.0, %v10400
        %v10402 = vpop.f32.mrb[0].mxu0
        %v10403 = vpop.f32.mrb[0].mxu0
        %v10404 = vpop.f32.mrb[0].mxu0
        %10405 = vdwg.mxu0
        %v10406 = vadd.f32 %v10298, %v10401
        %s10407 = scalar_lea.vmem %s7, 960
        %v10408 = vld [vmem:[%s10407] sm:$0xf]
        %v10409 = vld [vmem:[%s10407 + $0x4] sm:$0xf]
        %v10410 = vld [vmem:[%s10407 + $0x8] sm:$0xf]
        %v10411 = vld [vmem:[%s10407 + $0xc] sm:$0xf]
        %v10412 = vld [vmem:[%s10407 + $0x10] sm:$0xf]
        %v10413 = vld [vmem:[%s10407 + $0x14] sm:$0xf]
        %v10414 = vld [vmem:[%s10407 + $0x18] sm:$0xf]
        %v10415 = vld [vmem:[%s10407 + $0x1c] sm:$0xf]
        %v10416 = vld [vmem:[%s10407 + $0x20] sm:$0xf]
        %v10417 = vld [vmem:[%s10407 + $0x24] sm:$0xf]
        %v10418 = vld [vmem:[%s10407 + $0x28] sm:$0xf]
        %v10419 = vld [vmem:[%s10407 + $0x2c] sm:$0xf]
        %v10420 = vld [vmem:[%s10407 + $0x30] sm:$0xf]
        %v10421 = vld [vmem:[%s10407 + $0x34] sm:$0xf]
        %v10422 = vld [vmem:[%s10407 + $0x38] sm:$0xf]
        %v10423 = vld [vmem:[%s10407 + $0x3c] sm:$0xf]
        %v10424 = vrot.slane %v8823, 7
        %v10442 = vunpack.c.l.b16 %v10408
        %v10443 = vunpack.c.l.b16 %v10409
        %v10444 = vunpack.c.l.b16 %v10410
        %v10445 = vunpack.c.l.b16 %v10411
        %v10446 = vunpack.c.l.b16 %v10412
        %v10447 = vunpack.c.l.b16 %v10413
        %v10448 = vunpack.c.l.b16 %v10414
        %v10449 = vunpack.c.l.b16 %v10415
        %v10450 = vunpack.c.l.b16 %v10416
        %v10451 = vunpack.c.l.b16 %v10417
        %v10452 = vunpack.c.l.b16 %v10418
        %v10453 = vunpack.c.l.b16 %v10419
        %v10454 = vunpack.c.l.b16 %v10420
        %v10455 = vunpack.c.l.b16 %v10421
        %v10456 = vunpack.c.l.b16 %v10422
        %v10457 = vunpack.c.l.b16 %v10423
        %v10458 = vpack.c.b16 %v10443, %v10442
        %v10459 = vpack.c.b16 %v10445, %v10444
        %v10460 = vpack.c.b16 %v10447, %v10446
        %v10461 = vpack.c.b16 %v10449, %v10448
        %v10462 = vpack.c.b16 %v10451, %v10450
        %v10463 = vpack.c.b16 %v10453, %v10452
        %v10464 = vpack.c.b16 %v10455, %v10454
        %v10465 = vpack.c.b16 %v10457, %v10456
        %10474 = vmatprep.subr.bf16.mxu0 0
        %10475 = vmatpush1.bf16.msra.mxu0 %v10458
        %10476 = vmatprep.subr.bf16.mxu0 0
        %10477 = vmatpush1.bf16.msra.mxu0 %v10459
        %10478 = vmatprep.subr.bf16.mxu0 0
        %10479 = vmatpush1.bf16.msra.mxu0 %v10460
        %10480 = vmatprep.subr.bf16.mxu0 0
        %10481 = vmatpush1.bf16.msra.mxu0 %v10461
        %10482 = vmatprep.subr.bf16.mxu0 0
        %10483 = vmatpush1.bf16.msra.mxu0 %v10462
        %10484 = vmatprep.subr.bf16.mxu0 0
        %10485 = vmatpush1.bf16.msra.mxu0 %v10463
        %10486 = vmatprep.subr.bf16.mxu0 0
        %10487 = vmatpush1.bf16.msra.mxu0 %v10464
        %10488 = vmatprep.subr.bf16.mxu0 0
        %10489 = vmatpush1.bf16.msra.mxu0 %v10465
        %10490 = vmatprep.subr.bf16.mxu0 0
        %10491 = vmatpush1.bf16.msra.mxu0 0
        %10492 = vmatprep.subr.bf16.mxu0 0
        %10493 = vmatpush1.bf16.msra.mxu0 0
        %10494 = vmatprep.subr.bf16.mxu0 0
        %10495 = vmatpush1.bf16.msra.mxu0 0
        %10496 = vmatprep.subr.bf16.mxu0 0
        %10497 = vmatpush1.bf16.msra.mxu0 0
        %10498 = vmatprep.subr.bf16.mxu0 0
        %10499 = vmatpush1.bf16.msra.mxu0 0
        %10500 = vmatprep.subr.bf16.mxu0 0
        %10501 = vmatpush1.bf16.msra.mxu0 0
        %10502 = vmatprep.subr.bf16.mxu0 0
        %10503 = vmatpush1.bf16.msra.mxu0 0
        %10504 = vmatprep.subr.bf16.mxu0 0
        %10505 = vmatpush1.bf16.msra.mxu0 0
        %10506 = vmatprep.mubr.bf16.mxu0 0
        %10507 = vmatmul.mubr.bf16.gmra.mrb[0].mxu0 %v10424
        %v10508 = vpop.f32.mrb[0].mxu0
        %v10509 = vadd.f32 0.0, %v10508
        %v10510 = vpop.f32.mrb[0].mxu0
        %v10511 = vpop.f32.mrb[0].mxu0
        %v10512 = vpop.f32.mrb[0].mxu0
        %10513 = vdwg.mxu0
        %v10514 = vadd.f32 %v10406, %v10509
        %s10515 = scalar_lea.vmem %s7, 1024
        %v10516 = vld [vmem:[%s10515] sm:$0xf]
        %v10517 = vld [vmem:[%s10515 + $0x4] sm:$0xf]
        %v10518 = vld [vmem:[%s10515 + $0x8] sm:$0xf]
        %v10519 = vld [vmem:[%s10515 + $0xc] sm:$0xf]
        %v10520 = vld [vmem:[%s10515 + $0x10] sm:$0xf]
        %v10521 = vld [vmem:[%s10515 + $0x14] sm:$0xf]
        %v10522 = vld [vmem:[%s10515 + $0x18] sm:$0xf]
        %v10523 = vld [vmem:[%s10515 + $0x1c] sm:$0xf]
        %v10524 = vld [vmem:[%s10515 + $0x20] sm:$0xf]
        %v10525 = vld [vmem:[%s10515 + $0x24] sm:$0xf]
        %v10526 = vld [vmem:[%s10515 + $0x28] sm:$0xf]
        %v10527 = vld [vmem:[%s10515 + $0x2c] sm:$0xf]
        %v10528 = vld [vmem:[%s10515 + $0x30] sm:$0xf]
        %v10529 = vld [vmem:[%s10515 + $0x34] sm:$0xf]
        %v10530 = vld [vmem:[%s10515 + $0x38] sm:$0xf]
        %v10531 = vld [vmem:[%s10515 + $0x3c] sm:$0xf]
        %v10548 = vunpack.c.l.b16 %v10516
        %v10549 = vunpack.c.l.b16 %v10517
        %v10550 = vunpack.c.l.b16 %v10518
        %v10551 = vunpack.c.l.b16 %v10519
        %v10552 = vunpack.c.l.b16 %v10520
        %v10553 = vunpack.c.l.b16 %v10521
        %v10554 = vunpack.c.l.b16 %v10522
        %v10555 = vunpack.c.l.b16 %v10523
        %v10556 = vunpack.c.l.b16 %v10524
        %v10557 = vunpack.c.l.b16 %v10525
        %v10558 = vunpack.c.l.b16 %v10526
        %v10559 = vunpack.c.l.b16 %v10527
        %v10560 = vunpack.c.l.b16 %v10528
        %v10561 = vunpack.c.l.b16 %v10529
        %v10562 = vunpack.c.l.b16 %v10530
        %v10563 = vunpack.c.l.b16 %v10531
        %v10564 = vpack.c.b16 %v10549, %v10548
        %v10565 = vpack.c.b16 %v10551, %v10550
        %v10566 = vpack.c.b16 %v10553, %v10552
        %v10567 = vpack.c.b16 %v10555, %v10554
        %v10568 = vpack.c.b16 %v10557, %v10556
        %v10569 = vpack.c.b16 %v10559, %v10558
        %v10570 = vpack.c.b16 %v10561, %v10560
        %v10571 = vpack.c.b16 %v10563, %v10562
        %10580 = vmatprep.subr.bf16.mxu0 0
        %10581 = vmatpush1.bf16.msra.mxu0 %v10564
        %10582 = vmatprep.subr.bf16.mxu0 0
        %10583 = vmatpush1.bf16.msra.mxu0 %v10565
        %10584 = vmatprep.subr.bf16.mxu0 0
        %10585 = vmatpush1.bf16.msra.mxu0 %v10566
        %10586 = vmatprep.subr.bf16.mxu0 0
        %10587 = vmatpush1.bf16.msra.mxu0 %v10567
        %10588 = vmatprep.subr.bf16.mxu0 0
        %10589 = vmatpush1.bf16.msra.mxu0 %v10568
        %10590 = vmatprep.subr.bf16.mxu0 0
        %10591 = vmatpush1.bf16.msra.mxu0 %v10569
        %10592 = vmatprep.subr.bf16.mxu0 0
        %10593 = vmatpush1.bf16.msra.mxu0 %v10570
        %10594 = vmatprep.subr.bf16.mxu0 0
        %10595 = vmatpush1.bf16.msra.mxu0 %v10571
        %10596 = vmatprep.subr.bf16.mxu0 0
        %10597 = vmatpush1.bf16.msra.mxu0 0
        %10598 = vmatprep.subr.bf16.mxu0 0
        %10599 = vmatpush1.bf16.msra.mxu0 0
        %10600 = vmatprep.subr.bf16.mxu0 0
        %10601 = vmatpush1.bf16.msra.mxu0 0
        %10602 = vmatprep.subr.bf16.mxu0 0
        %10603 = vmatpush1.bf16.msra.mxu0 0
        %10604 = vmatprep.subr.bf16.mxu0 0
        %10605 = vmatpush1.bf16.msra.mxu0 0
        %10606 = vmatprep.subr.bf16.mxu0 0
        %10607 = vmatpush1.bf16.msra.mxu0 0
        %10608 = vmatprep.subr.bf16.mxu0 0
        %10609 = vmatpush1.bf16.msra.mxu0 0
        %10610 = vmatprep.subr.bf16.mxu0 0
        %10611 = vmatpush1.bf16.msra.mxu0 0
        %10612 = vmatprep.mubr.bf16.mxu0 0
        %10613 = vmatmul.mubr.bf16.gmra.mrb[0].mxu0 %v8788
        %v10614 = vpop.f32.mrb[0].mxu0
        %v10615 = vadd.f32 0.0, %v10614
        %v10616 = vpop.f32.mrb[0].mxu0
        %v10617 = vpop.f32.mrb[0].mxu0
        %v10618 = vpop.f32.mrb[0].mxu0
        %10619 = vdwg.mxu0
        %v10620 = vadd.f32 %v10514, %v10615
        %s10621 = scalar_lea.vmem %s7, 1088
        %v10622 = vld [vmem:[%s10621] sm:$0xf]
        %v10623 = vld [vmem:[%s10621 + $0x4] sm:$0xf]
        %v10624 = vld [vmem:[%s10621 + $0x8] sm:$0xf]
        %v10625 = vld [vmem:[%s10621 + $0xc] sm:$0xf]
        %v10626 = vld [vmem:[%s10621 + $0x10] sm:$0xf]
        %v10627 = vld [vmem:[%s10621 + $0x14] sm:$0xf]
        %v10628 = vld [vmem:[%s10621 + $0x18] sm:$0xf]
        %v10629 = vld [vmem:[%s10621 + $0x1c] sm:$0xf]
        %v10630 = vld [vmem:[%s10621 + $0x20] sm:$0xf]
        %v10631 = vld [vmem:[%s10621 + $0x24] sm:$0xf]
        %v10632 = vld [vmem:[%s10621 + $0x28] sm:$0xf]
        %v10633 = vld [vmem:[%s10621 + $0x2c] sm:$0xf]
        %v10634 = vld [vmem:[%s10621 + $0x30] sm:$0xf]
        %v10635 = vld [vmem:[%s10621 + $0x34] sm:$0xf]
        %v10636 = vld [vmem:[%s10621 + $0x38] sm:$0xf]
        %v10637 = vld [vmem:[%s10621 + $0x3c] sm:$0xf]
        %v10639 = vshrl.u32 %v8788, 16
        %v10658 = vunpack.c.l.b16 %v10622
        %v10659 = vunpack.c.l.b16 %v10623
        %v10660 = vunpack.c.l.b16 %v10624
        %v10661 = vunpack.c.l.b16 %v10625
        %v10662 = vunpack.c.l.b16 %v10626
        %v10663 = vunpack.c.l.b16 %v10627
        %v10664 = vunpack.c.l.b16 %v10628
        %v10665 = vunpack.c.l.b16 %v10629
        %v10666 = vunpack.c.l.b16 %v10630
        %v10667 = vunpack.c.l.b16 %v10631
        %v10668 = vunpack.c.l.b16 %v10632
        %v10669 = vunpack.c.l.b16 %v10633
        %v10670 = vunpack.c.l.b16 %v10634
        %v10671 = vunpack.c.l.b16 %v10635
        %v10672 = vunpack.c.l.b16 %v10636
        %v10673 = vunpack.c.l.b16 %v10637
        %v10674 = vpack.c.b16 %v10659, %v10658
        %v10675 = vpack.c.b16 %v10661, %v10660
        %v10676 = vpack.c.b16 %v10663, %v10662
        %v10677 = vpack.c.b16 %v10665, %v10664
        %v10678 = vpack.c.b16 %v10667, %v10666
        %v10679 = vpack.c.b16 %v10669, %v10668
        %v10680 = vpack.c.b16 %v10671, %v10670
        %v10681 = vpack.c.b16 %v10673, %v10672
        %10690 = vmatprep.subr.bf16.mxu0 0
        %10691 = vmatpush1.bf16.msra.mxu0 %v10674
        %10692 = vmatprep.subr.bf16.mxu0 0
        %10693 = vmatpush1.bf16.msra.mxu0 %v10675
        %10694 = vmatprep.subr.bf16.mxu0 0
        %10695 = vmatpush1.bf16.msra.mxu0 %v10676
        %10696 = vmatprep.subr.bf16.mxu0 0
        %10697 = vmatpush1.bf16.msra.mxu0 %v10677
        %10698 = vmatprep.subr.bf16.mxu0 0
        %10699 = vmatpush1.bf16.msra.mxu0 %v10678
        %10700 = vmatprep.subr.bf16.mxu0 0
        %10701 = vmatpush1.bf16.msra.mxu0 %v10679
        %10702 = vmatprep.subr.bf16.mxu0 0
        %10703 = vmatpush1.bf16.msra.mxu0 %v10680
        %10704 = vmatprep.subr.bf16.mxu0 0
        %10705 = vmatpush1.bf16.msra.mxu0 %v10681
        %10706 = vmatprep.subr.bf16.mxu0 0
        %10707 = vmatpush1.bf16.msra.mxu0 0
        %10708 = vmatprep.subr.bf16.mxu0 0
        %10709 = vmatpush1.bf16.msra.mxu0 0
        %10710 = vmatprep.subr.bf16.mxu0 0
        %10711 = vmatpush1.bf16.msra.mxu0 0
        %10712 = vmatprep.subr.bf16.mxu0 0
        %10713 = vmatpush1.bf16.msra.mxu0 0
        %10714 = vmatprep.subr.bf16.mxu0 0
        %10715 = vmatpush1.bf16.msra.mxu0 0
        %10716 = vmatprep.subr.bf16.mxu0 0
        %10717 = vmatpush1.bf16.msra.mxu0 0
        %10718 = vmatprep.subr.bf16.mxu0 0
        %10719 = vmatpush1.bf16.msra.mxu0 0
        %10720 = vmatprep.subr.bf16.mxu0 0
        %10721 = vmatpush1.bf16.msra.mxu0 0
        %10722 = vmatprep.mubr.bf16.mxu0 0
        %10723 = vmatmul.mubr.bf16.gmra.mrb[0].mxu0 %v10639
        %v10724 = vpop.f32.mrb[0].mxu0
        %v10725 = vadd.f32 0.0, %v10724
        %v10726 = vpop.f32.mrb[0].mxu0
        %v10727 = vpop.f32.mrb[0].mxu0
        %v10728 = vpop.f32.mrb[0].mxu0
        %10729 = vdwg.mxu0
        %v10730 = vadd.f32 %v10620, %v10725
        %s10731 = scalar_lea.vmem %s7, 1152
        %v10732 = vld [vmem:[%s10731] sm:$0xf]
        %v10733 = vld [vmem:[%s10731 + $0x4] sm:$0xf]
        %v10734 = vld [vmem:[%s10731 + $0x8] sm:$0xf]
        %v10735 = vld [vmem:[%s10731 + $0xc] sm:$0xf]
        %v10736 = vld [vmem:[%s10731 + $0x10] sm:$0xf]
        %v10737 = vld [vmem:[%s10731 + $0x14] sm:$0xf]
        %v10738 = vld [vmem:[%s10731 + $0x18] sm:$0xf]
        %v10739 = vld [vmem:[%s10731 + $0x1c] sm:$0xf]
        %v10740 = vld [vmem:[%s10731 + $0x20] sm:$0xf]
        %v10741 = vld [vmem:[%s10731 + $0x24] sm:$0xf]
        %v10742 = vld [vmem:[%s10731 + $0x28] sm:$0xf]
        %v10743 = vld [vmem:[%s10731 + $0x2c] sm:$0xf]
        %v10744 = vld [vmem:[%s10731 + $0x30] sm:$0xf]
        %v10745 = vld [vmem:[%s10731 + $0x34] sm:$0xf]
        %v10746 = vld [vmem:[%s10731 + $0x38] sm:$0xf]
        %v10747 = vld [vmem:[%s10731 + $0x3c] sm:$0xf]
        %v10749 = vrot.slane %v8788, 1
        %v10767 = vunpack.c.l.b16 %v10732
        %v10768 = vunpack.c.l.b16 %v10733
        %v10769 = vunpack.c.l.b16 %v10734
        %v10770 = vunpack.c.l.b16 %v10735
        %v10771 = vunpack.c.l.b16 %v10736
        %v10772 = vunpack.c.l.b16 %v10737
        %v10773 = vunpack.c.l.b16 %v10738
        %v10774 = vunpack.c.l.b16 %v10739
        %v10775 = vunpack.c.l.b16 %v10740
        %v10776 = vunpack.c.l.b16 %v10741
        %v10777 = vunpack.c.l.b16 %v10742
        %v10778 = vunpack.c.l.b16 %v10743
        %v10779 = vunpack.c.l.b16 %v10744
        %v10780 = vunpack.c.l.b16 %v10745
        %v10781 = vunpack.c.l.b16 %v10746
        %v10782 = vunpack.c.l.b16 %v10747
        %v10783 = vpack.c.b16 %v10768, %v10767
        %v10784 = vpack.c.b16 %v10770, %v10769
        %v10785 = vpack.c.b16 %v10772, %v10771
        %v10786 = vpack.c.b16 %v10774, %v10773
        %v10787 = vpack.c.b16 %v10776, %v10775
        %v10788 = vpack.c.b16 %v10778, %v10777
        %v10789 = vpack.c.b16 %v10780, %v10779
        %v10790 = vpack.c.b16 %v10782, %v10781
        %10799 = vmatprep.subr.bf16.mxu0 0
        %10800 = vmatpush1.bf16.msra.mxu0 %v10783
        %10801 = vmatprep.subr.bf16.mxu0 0
        %10802 = vmatpush1.bf16.msra.mxu0 %v10784
        %10803 = vmatprep.subr.bf16.mxu0 0
        %10804 = vmatpush1.bf16.msra.mxu0 %v10785
        %10805 = vmatprep.subr.bf16.mxu0 0
        %10806 = vmatpush1.bf16.msra.mxu0 %v10786
        %10807 = vmatprep.subr.bf16.mxu0 0
        %10808 = vmatpush1.bf16.msra.mxu0 %v10787
        %10809 = vmatprep.subr.bf16.mxu0 0
        %10810 = vmatpush1.bf16.msra.mxu0 %v10788
        %10811 = vmatprep.subr.bf16.mxu0 0
        %10812 = vmatpush1.bf16.msra.mxu0 %v10789
        %10813 = vmatprep.subr.bf16.mxu0 0
        %10814 = vmatpush1.bf16.msra.mxu0 %v10790
        %10815 = vmatprep.subr.bf16.mxu0 0
        %10816 = vmatpush1.bf16.msra.mxu0 0
        %10817 = vmatprep.subr.bf16.mxu0 0
        %10818 = vmatpush1.bf16.msra.mxu0 0
        %10819 = vmatprep.subr.bf16.mxu0 0
        %10820 = vmatpush1.bf16.msra.mxu0 0
        %10821 = vmatprep.subr.bf16.mxu0 0
        %10822 = vmatpush1.bf16.msra.mxu0 0
        %10823 = vmatprep.subr.bf16.mxu0 0
        %10824 = vmatpush1.bf16.msra.mxu0 0
        %10825 = vmatprep.subr.bf16.mxu0 0
        %10826 = vmatpush1.bf16.msra.mxu0 0
        %10827 = vmatprep.subr.bf16.mxu0 0
        %10828 = vmatpush1.bf16.msra.mxu0 0
        %10829 = vmatprep.subr.bf16.mxu0 0
        %10830 = vmatpush1.bf16.msra.mxu0 0
        %10831 = vmatprep.mubr.bf16.mxu0 0
        %10832 = vmatmul.mubr.bf16.gmra.mrb[0].mxu0 %v10749
        %v10833 = vpop.f32.mrb[0].mxu0
        %v10834 = vadd.f32 0.0, %v10833
        %v10835 = vpop.f32.mrb[0].mxu0
        %v10836 = vpop.f32.mrb[0].mxu0
        %v10837 = vpop.f32.mrb[0].mxu0
        %10838 = vdwg.mxu0
        %v10839 = vadd.f32 %v10730, %v10834
        %s10840 = scalar_lea.vmem %s7, 1216
        %v10841 = vld [vmem:[%s10840] sm:$0xf]
        %v10842 = vld [vmem:[%s10840 + $0x4] sm:$0xf]
        %v10843 = vld [vmem:[%s10840 + $0x8] sm:$0xf]
        %v10844 = vld [vmem:[%s10840 + $0xc] sm:$0xf]
        %v10845 = vld [vmem:[%s10840 + $0x10] sm:$0xf]
        %v10846 = vld [vmem:[%s10840 + $0x14] sm:$0xf]
        %v10847 = vld [vmem:[%s10840 + $0x18] sm:$0xf]
        %v10848 = vld [vmem:[%s10840 + $0x1c] sm:$0xf]
        %v10849 = vld [vmem:[%s10840 + $0x20] sm:$0xf]
        %v10850 = vld [vmem:[%s10840 + $0x24] sm:$0xf]
        %v10851 = vld [vmem:[%s10840 + $0x28] sm:$0xf]
        %v10852 = vld [vmem:[%s10840 + $0x2c] sm:$0xf]
        %v10853 = vld [vmem:[%s10840 + $0x30] sm:$0xf]
        %v10854 = vld [vmem:[%s10840 + $0x34] sm:$0xf]
        %v10855 = vld [vmem:[%s10840 + $0x38] sm:$0xf]
        %v10856 = vld [vmem:[%s10840 + $0x3c] sm:$0xf]
        %v10857 = vrot.slane %v10639, 1
        %v10875 = vunpack.c.l.b16 %v10841
        %v10876 = vunpack.c.l.b16 %v10842
        %v10877 = vunpack.c.l.b16 %v10843
        %v10878 = vunpack.c.l.b16 %v10844
        %v10879 = vunpack.c.l.b16 %v10845
        %v10880 = vunpack.c.l.b16 %v10846
        %v10881 = vunpack.c.l.b16 %v10847
        %v10882 = vunpack.c.l.b16 %v10848
        %v10883 = vunpack.c.l.b16 %v10849
        %v10884 = vunpack.c.l.b16 %v10850
        %v10885 = vunpack.c.l.b16 %v10851
        %v10886 = vunpack.c.l.b16 %v10852
        %v10887 = vunpack.c.l.b16 %v10853
        %v10888 = vunpack.c.l.b16 %v10854
        %v10889 = vunpack.c.l.b16 %v10855
        %v10890 = vunpack.c.l.b16 %v10856
        %v10891 = vpack.c.b16 %v10876, %v10875
        %v10892 = vpack.c.b16 %v10878, %v10877
        %v10893 = vpack.c.b16 %v10880, %v10879
        %v10894 = vpack.c.b16 %v10882, %v10881
        %v10895 = vpack.c.b16 %v10884, %v10883
        %v10896 = vpack.c.b16 %v10886, %v10885
        %v10897 = vpack.c.b16 %v10888, %v10887
        %v10898 = vpack.c.b16 %v10890, %v10889
        %10907 = vmatprep.subr.bf16.mxu0 0
        %10908 = vmatpush1.bf16.msra.mxu0 %v10891
        %10909 = vmatprep.subr.bf16.mxu0 0
        %10910 = vmatpush1.bf16.msra.mxu0 %v10892
        %10911 = vmatprep.subr.bf16.mxu0 0
        %10912 = vmatpush1.bf16.msra.mxu0 %v10893
        %10913 = vmatprep.subr.bf16.mxu0 0
        %10914 = vmatpush1.bf16.msra.mxu0 %v10894
        %10915 = vmatprep.subr.bf16.mxu0 0
        %10916 = vmatpush1.bf16.msra.mxu0 %v10895
        %10917 = vmatprep.subr.bf16.mxu0 0
        %10918 = vmatpush1.bf16.msra.mxu0 %v10896
        %10919 = vmatprep.subr.bf16.mxu0 0
        %10920 = vmatpush1.bf16.msra.mxu0 %v10897
        %10921 = vmatprep.subr.bf16.mxu0 0
        %10922 = vmatpush1.bf16.msra.mxu0 %v10898
        %10923 = vmatprep.subr.bf16.mxu0 0
        %10924 = vmatpush1.bf16.msra.mxu0 0
        %10925 = vmatprep.subr.bf16.mxu0 0
        %10926 = vmatpush1.bf16.msra.mxu0 0
        %10927 = vmatprep.subr.bf16.mxu0 0
        %10928 = vmatpush1.bf16.msra.mxu0 0
        %10929 = vmatprep.subr.bf16.mxu0 0
        %10930 = vmatpush1.bf16.msra.mxu0 0
        %10931 = vmatprep.subr.bf16.mxu0 0
        %10932 = vmatpush1.bf16.msra.mxu0 0
        %10933 = vmatprep.subr.bf16.mxu0 0
        %10934 = vmatpush1.bf16.msra.mxu0 0
        %10935 = vmatprep.subr.bf16.mxu0 0
        %10936 = vmatpush1.bf16.msra.mxu0 0
        %10937 = vmatprep.subr.bf16.mxu0 0
        %10938 = vmatpush1.bf16.msra.mxu0 0
        %10939 = vmatprep.mubr.bf16.mxu0 0
        %10940 = vmatmul.mubr.bf16.gmra.mrb[0].mxu0 %v10857
        %v10941 = vpop.f32.mrb[0].mxu0
        %v10942 = vadd.f32 0.0, %v10941
        %v10943 = vpop.f32.mrb[0].mxu0
        %v10944 = vpop.f32.mrb[0].mxu0
        %v10945 = vpop.f32.mrb[0].mxu0
        %10946 = vdwg.mxu0
        %v10947 = vadd.f32 %v10839, %v10942
        %s10948 = scalar_lea.vmem %s7, 1280
        %v10949 = vld [vmem:[%s10948] sm:$0xf]
        %v10950 = vld [vmem:[%s10948 + $0x4] sm:$0xf]
        %v10951 = vld [vmem:[%s10948 + $0x8] sm:$0xf]
        %v10952 = vld [vmem:[%s10948 + $0xc] sm:$0xf]
        %v10953 = vld [vmem:[%s10948 + $0x10] sm:$0xf]
        %v10954 = vld [vmem:[%s10948 + $0x14] sm:$0xf]
        %v10955 = vld [vmem:[%s10948 + $0x18] sm:$0xf]
        %v10956 = vld [vmem:[%s10948 + $0x1c] sm:$0xf]
        %v10957 = vld [vmem:[%s10948 + $0x20] sm:$0xf]
        %v10958 = vld [vmem:[%s10948 + $0x24] sm:$0xf]
        %v10959 = vld [vmem:[%s10948 + $0x28] sm:$0xf]
        %v10960 = vld [vmem:[%s10948 + $0x2c] sm:$0xf]
        %v10961 = vld [vmem:[%s10948 + $0x30] sm:$0xf]
        %v10962 = vld [vmem:[%s10948 + $0x34] sm:$0xf]
        %v10963 = vld [vmem:[%s10948 + $0x38] sm:$0xf]
        %v10964 = vld [vmem:[%s10948 + $0x3c] sm:$0xf]
        %v10965 = vrot.slane %v8788, 2
        %v10983 = vunpack.c.l.b16 %v10949
        %v10984 = vunpack.c.l.b16 %v10950
        %v10985 = vunpack.c.l.b16 %v10951
        %v10986 = vunpack.c.l.b16 %v10952
        %v10987 = vunpack.c.l.b16 %v10953
        %v10988 = vunpack.c.l.b16 %v10954
        %v10989 = vunpack.c.l.b16 %v10955
        %v10990 = vunpack.c.l.b16 %v10956
        %v10991 = vunpack.c.l.b16 %v10957
        %v10992 = vunpack.c.l.b16 %v10958
        %v10993 = vunpack.c.l.b16 %v10959
        %v10994 = vunpack.c.l.b16 %v10960
        %v10995 = vunpack.c.l.b16 %v10961
        %v10996 = vunpack.c.l.b16 %v10962
        %v10997 = vunpack.c.l.b16 %v10963
        %v10998 = vunpack.c.l.b16 %v10964
        %v10999 = vpack.c.b16 %v10984, %v10983
        %v11000 = vpack.c.b16 %v10986, %v10985
        %v11001 = vpack.c.b16 %v10988, %v10987
        %v11002 = vpack.c.b16 %v10990, %v10989
        %v11003 = vpack.c.b16 %v10992, %v10991
        %v11004 = vpack.c.b16 %v10994, %v10993
        %v11005 = vpack.c.b16 %v10996, %v10995
        %v11006 = vpack.c.b16 %v10998, %v10997
        %11015 = vmatprep.subr.bf16.mxu0 0
        %11016 = vmatpush1.bf16.msra.mxu0 %v10999
        %11017 = vmatprep.subr.bf16.mxu0 0
        %11018 = vmatpush1.bf16.msra.mxu0 %v11000
        %11019 = vmatprep.subr.bf16.mxu0 0
        %11020 = vmatpush1.bf16.msra.mxu0 %v11001
        %11021 = vmatprep.subr.bf16.mxu0 0
        %11022 = vmatpush1.bf16.msra.mxu0 %v11002
        %11023 = vmatprep.subr.bf16.mxu0 0
        %11024 = vmatpush1.bf16.msra.mxu0 %v11003
        %11025 = vmatprep.subr.bf16.mxu0 0
        %11026 = vmatpush1.bf16.msra.mxu0 %v11004
        %11027 = vmatprep.subr.bf16.mxu0 0
        %11028 = vmatpush1.bf16.msra.mxu0 %v11005
        %11029 = vmatprep.subr.bf16.mxu0 0
        %11030 = vmatpush1.bf16.msra.mxu0 %v11006
        %11031 = vmatprep.subr.bf16.mxu0 0
        %11032 = vmatpush1.bf16.msra.mxu0 0
        %11033 = vmatprep.subr.bf16.mxu0 0
        %11034 = vmatpush1.bf16.msra.mxu0 0
        %11035 = vmatprep.subr.bf16.mxu0 0
        %11036 = vmatpush1.bf16.msra.mxu0 0
        %11037 = vmatprep.subr.bf16.mxu0 0
        %11038 = vmatpush1.bf16.msra.mxu0 0
        %11039 = vmatprep.subr.bf16.mxu0 0
        %11040 = vmatpush1.bf16.msra.mxu0 0
        %11041 = vmatprep.subr.bf16.mxu0 0
        %11042 = vmatpush1.bf16.msra.mxu0 0
        %11043 = vmatprep.subr.bf16.mxu0 0
        %11044 = vmatpush1.bf16.msra.mxu0 0
        %11045 = vmatprep.subr.bf16.mxu0 0
        %11046 = vmatpush1.bf16.msra.mxu0 0
        %11047 = vmatprep.mubr.bf16.mxu0 0
        %11048 = vmatmul.mubr.bf16.gmra.mrb[0].mxu0 %v10965
        %v11049 = vpop.f32.mrb[0].mxu0
        %v11050 = vadd.f32 0.0, %v11049
        %v11051 = vpop.f32.mrb[0].mxu0
        %v11052 = vpop.f32.mrb[0].mxu0
        %v11053 = vpop.f32.mrb[0].mxu0
        %11054 = vdwg.mxu0
        %v11055 = vadd.f32 %v10947, %v11050
        %s11056 = scalar_lea.vmem %s7, 1344
        %v11057 = vld [vmem:[%s11056] sm:$0xf]
        %v11058 = vld [vmem:[%s11056 + $0x4] sm:$0xf]
        %v11059 = vld [vmem:[%s11056 + $0x8] sm:$0xf]
        %v11060 = vld [vmem:[%s11056 + $0xc] sm:$0xf]
        %v11061 = vld [vmem:[%s11056 + $0x10] sm:$0xf]
        %v11062 = vld [vmem:[%s11056 + $0x14] sm:$0xf]
        %v11063 = vld [vmem:[%s11056 + $0x18] sm:$0xf]
        %v11064 = vld [vmem:[%s11056 + $0x1c] sm:$0xf]
        %v11065 = vld [vmem:[%s11056 + $0x20] sm:$0xf]
        %v11066 = vld [vmem:[%s11056 + $0x24] sm:$0xf]
        %v11067 = vld [vmem:[%s11056 + $0x28] sm:$0xf]
        %v11068 = vld [vmem:[%s11056 + $0x2c] sm:$0xf]
        %v11069 = vld [vmem:[%s11056 + $0x30] sm:$0xf]
        %v11070 = vld [vmem:[%s11056 + $0x34] sm:$0xf]
        %v11071 = vld [vmem:[%s11056 + $0x38] sm:$0xf]
        %v11072 = vld [vmem:[%s11056 + $0x3c] sm:$0xf]
        %v11073 = vrot.slane %v10639, 2
        %v11091 = vunpack.c.l.b16 %v11057
        %v11092 = vunpack.c.l.b16 %v11058
        %v11093 = vunpack.c.l.b16 %v11059
        %v11094 = vunpack.c.l.b16 %v11060
        %v11095 = vunpack.c.l.b16 %v11061
        %v11096 = vunpack.c.l.b16 %v11062
        %v11097 = vunpack.c.l.b16 %v11063
        %v11098 = vunpack.c.l.b16 %v11064
        %v11099 = vunpack.c.l.b16 %v11065
        %v11100 = vunpack.c.l.b16 %v11066
        %v11101 = vunpack.c.l.b16 %v11067
        %v11102 = vunpack.c.l.b16 %v11068
        %v11103 = vunpack.c.l.b16 %v11069
        %v11104 = vunpack.c.l.b16 %v11070
        %v11105 = vunpack.c.l.b16 %v11071
        %v11106 = vunpack.c.l.b16 %v11072
        %v11107 = vpack.c.b16 %v11092, %v11091
        %v11108 = vpack.c.b16 %v11094, %v11093
        %v11109 = vpack.c.b16 %v11096, %v11095
        %v11110 = vpack.c.b16 %v11098, %v11097
        %v11111 = vpack.c.b16 %v11100, %v11099
        %v11112 = vpack.c.b16 %v11102, %v11101
        %v11113 = vpack.c.b16 %v11104, %v11103
        %v11114 = vpack.c.b16 %v11106, %v11105
        %11123 = vmatprep.subr.bf16.mxu0 0
        %11124 = vmatpush1.bf16.msra.mxu0 %v11107
        %11125 = vmatprep.subr.bf16.mxu0 0
        %11126 = vmatpush1.bf16.msra.mxu0 %v11108
        %11127 = vmatprep.subr.bf16.mxu0 0
        %11128 = vmatpush1.bf16.msra.mxu0 %v11109
        %11129 = vmatprep.subr.bf16.mxu0 0
        %11130 = vmatpush1.bf16.msra.mxu0 %v11110
        %11131 = vmatprep.subr.bf16.mxu0 0
        %11132 = vmatpush1.bf16.msra.mxu0 %v11111
        %11133 = vmatprep.subr.bf16.mxu0 0
        %11134 = vmatpush1.bf16.msra.mxu0 %v11112
        %11135 = vmatprep.subr.bf16.mxu0 0
        %11136 = vmatpush1.bf16.msra.mxu0 %v11113
        %11137 = vmatprep.subr.bf16.mxu0 0
        %11138 = vmatpush1.bf16.msra.mxu0 %v11114
        %11139 = vmatprep.subr.bf16.mxu0 0
        %11140 = vmatpush1.bf16.msra.mxu0 0
        %11141 = vmatprep.subr.bf16.mxu0 0
        %11142 = vmatpush1.bf16.msra.mxu0 0
        %11143 = vmatprep.subr.bf16.mxu0 0
        %11144 = vmatpush1.bf16.msra.mxu0 0
        %11145 = vmatprep.subr.bf16.mxu0 0
        %11146 = vmatpush1.bf16.msra.mxu0 0
        %11147 = vmatprep.subr.bf16.mxu0 0
        %11148 = vmatpush1.bf16.msra.mxu0 0
        %11149 = vmatprep.subr.bf16.mxu0 0
        %11150 = vmatpush1.bf16.msra.mxu0 0
        %11151 = vmatprep.subr.bf16.mxu0 0
        %11152 = vmatpush1.bf16.msra.mxu0 0
        %11153 = vmatprep.subr.bf16.mxu0 0
        %11154 = vmatpush1.bf16.msra.mxu0 0
        %11155 = vmatprep.mubr.bf16.mxu0 0
        %11156 = vmatmul.mubr.bf16.gmra.mrb[0].mxu0 %v11073
        %v11157 = vpop.f32.mrb[0].mxu0
        %v11158 = vadd.f32 0.0, %v11157
        %v11159 = vpop.f32.mrb[0].mxu0
        %v11160 = vpop.f32.mrb[0].mxu0
        %v11161 = vpop.f32.mrb[0].mxu0
        %11162 = vdwg.mxu0
        %v11163 = vadd.f32 %v11055, %v11158
        %s11164 = scalar_lea.vmem %s7, 1408
        %v11165 = vld [vmem:[%s11164] sm:$0xf]
        %v11166 = vld [vmem:[%s11164 + $0x4] sm:$0xf]
        %v11167 = vld [vmem:[%s11164 + $0x8] sm:$0xf]
        %v11168 = vld [vmem:[%s11164 + $0xc] sm:$0xf]
        %v11169 = vld [vmem:[%s11164 + $0x10] sm:$0xf]
        %v11170 = vld [vmem:[%s11164 + $0x14] sm:$0xf]
        %v11171 = vld [vmem:[%s11164 + $0x18] sm:$0xf]
        %v11172 = vld [vmem:[%s11164 + $0x1c] sm:$0xf]
        %v11173 = vld [vmem:[%s11164 + $0x20] sm:$0xf]
        %v11174 = vld [vmem:[%s11164 + $0x24] sm:$0xf]
        %v11175 = vld [vmem:[%s11164 + $0x28] sm:$0xf]
        %v11176 = vld [vmem:[%s11164 + $0x2c] sm:$0xf]
        %v11177 = vld [vmem:[%s11164 + $0x30] sm:$0xf]
        %v11178 = vld [vmem:[%s11164 + $0x34] sm:$0xf]
        %v11179 = vld [vmem:[%s11164 + $0x38] sm:$0xf]
        %v11180 = vld [vmem:[%s11164 + $0x3c] sm:$0xf]
        %v11181 = vrot.slane %v8788, 3
        %v11199 = vunpack.c.l.b16 %v11165
        %v11200 = vunpack.c.l.b16 %v11166
        %v11201 = vunpack.c.l.b16 %v11167
        %v11202 = vunpack.c.l.b16 %v11168
        %v11203 = vunpack.c.l.b16 %v11169
        %v11204 = vunpack.c.l.b16 %v11170
        %v11205 = vunpack.c.l.b16 %v11171
        %v11206 = vunpack.c.l.b16 %v11172
        %v11207 = vunpack.c.l.b16 %v11173
        %v11208 = vunpack.c.l.b16 %v11174
        %v11209 = vunpack.c.l.b16 %v11175
        %v11210 = vunpack.c.l.b16 %v11176
        %v11211 = vunpack.c.l.b16 %v11177
        %v11212 = vunpack.c.l.b16 %v11178
        %v11213 = vunpack.c.l.b16 %v11179
        %v11214 = vunpack.c.l.b16 %v11180
        %v11215 = vpack.c.b16 %v11200, %v11199
        %v11216 = vpack.c.b16 %v11202, %v11201
        %v11217 = vpack.c.b16 %v11204, %v11203
        %v11218 = vpack.c.b16 %v11206, %v11205
        %v11219 = vpack.c.b16 %v11208, %v11207
        %v11220 = vpack.c.b16 %v11210, %v11209
        %v11221 = vpack.c.b16 %v11212, %v11211
        %v11222 = vpack.c.b16 %v11214, %v11213
        %11231 = vmatprep.subr.bf16.mxu0 0
        %11232 = vmatpush1.bf16.msra.mxu0 %v11215
        %11233 = vmatprep.subr.bf16.mxu0 0
        %11234 = vmatpush1.bf16.msra.mxu0 %v11216
        %11235 = vmatprep.subr.bf16.mxu0 0
        %11236 = vmatpush1.bf16.msra.mxu0 %v11217
        %11237 = vmatprep.subr.bf16.mxu0 0
        %11238 = vmatpush1.bf16.msra.mxu0 %v11218
        %11239 = vmatprep.subr.bf16.mxu0 0
        %11240 = vmatpush1.bf16.msra.mxu0 %v11219
        %11241 = vmatprep.subr.bf16.mxu0 0
        %11242 = vmatpush1.bf16.msra.mxu0 %v11220
        %11243 = vmatprep.subr.bf16.mxu0 0
        %11244 = vmatpush1.bf16.msra.mxu0 %v11221
        %11245 = vmatprep.subr.bf16.mxu0 0
        %11246 = vmatpush1.bf16.msra.mxu0 %v11222
        %11247 = vmatprep.subr.bf16.mxu0 0
        %11248 = vmatpush1.bf16.msra.mxu0 0
        %11249 = vmatprep.subr.bf16.mxu0 0
        %11250 = vmatpush1.bf16.msra.mxu0 0
        %11251 = vmatprep.subr.bf16.mxu0 0
        %11252 = vmatpush1.bf16.msra.mxu0 0
        %11253 = vmatprep.subr.bf16.mxu0 0
        %11254 = vmatpush1.bf16.msra.mxu0 0
        %11255 = vmatprep.subr.bf16.mxu0 0
        %11256 = vmatpush1.bf16.msra.mxu0 0
        %11257 = vmatprep.subr.bf16.mxu0 0
        %11258 = vmatpush1.bf16.msra.mxu0 0
        %11259 = vmatprep.subr.bf16.mxu0 0
        %11260 = vmatpush1.bf16.msra.mxu0 0
        %11261 = vmatprep.subr.bf16.mxu0 0
        %11262 = vmatpush1.bf16.msra.mxu0 0
        %11263 = vmatprep.mubr.bf16.mxu0 0
        %11264 = vmatmul.mubr.bf16.gmra.mrb[0].mxu0 %v11181
        %v11265 = vpop.f32.mrb[0].mxu0
        %v11266 = vadd.f32 0.0, %v11265
        %v11267 = vpop.f32.mrb[0].mxu0
        %v11268 = vpop.f32.mrb[0].mxu0
        %v11269 = vpop.f32.mrb[0].mxu0
        %11270 = vdwg.mxu0
        %v11271 = vadd.f32 %v11163, %v11266
        %s11272 = scalar_lea.vmem %s7, 1472
        %v11273 = vld [vmem:[%s11272] sm:$0xf]
        %v11274 = vld [vmem:[%s11272 + $0x4] sm:$0xf]
        %v11275 = vld [vmem:[%s11272 + $0x8] sm:$0xf]
        %v11276 = vld [vmem:[%s11272 + $0xc] sm:$0xf]
        %v11277 = vld [vmem:[%s11272 + $0x10] sm:$0xf]
        %v11278 = vld [vmem:[%s11272 + $0x14] sm:$0xf]
        %v11279 = vld [vmem:[%s11272 + $0x18] sm:$0xf]
        %v11280 = vld [vmem:[%s11272 + $0x1c] sm:$0xf]
        %v11281 = vld [vmem:[%s11272 + $0x20] sm:$0xf]
        %v11282 = vld [vmem:[%s11272 + $0x24] sm:$0xf]
        %v11283 = vld [vmem:[%s11272 + $0x28] sm:$0xf]
        %v11284 = vld [vmem:[%s11272 + $0x2c] sm:$0xf]
        %v11285 = vld [vmem:[%s11272 + $0x30] sm:$0xf]
        %v11286 = vld [vmem:[%s11272 + $0x34] sm:$0xf]
        %v11287 = vld [vmem:[%s11272 + $0x38] sm:$0xf]
        %v11288 = vld [vmem:[%s11272 + $0x3c] sm:$0xf]
        %v11289 = vrot.slane %v10639, 3
        %v11307 = vunpack.c.l.b16 %v11273
        %v11308 = vunpack.c.l.b16 %v11274
        %v11309 = vunpack.c.l.b16 %v11275
        %v11310 = vunpack.c.l.b16 %v11276
        %v11311 = vunpack.c.l.b16 %v11277
        %v11312 = vunpack.c.l.b16 %v11278
        %v11313 = vunpack.c.l.b16 %v11279
        %v11314 = vunpack.c.l.b16 %v11280
        %v11315 = vunpack.c.l.b16 %v11281
        %v11316 = vunpack.c.l.b16 %v11282
        %v11317 = vunpack.c.l.b16 %v11283
        %v11318 = vunpack.c.l.b16 %v11284
        %v11319 = vunpack.c.l.b16 %v11285
        %v11320 = vunpack.c.l.b16 %v11286
        %v11321 = vunpack.c.l.b16 %v11287
        %v11322 = vunpack.c.l.b16 %v11288
        %v11323 = vpack.c.b16 %v11308, %v11307
        %v11324 = vpack.c.b16 %v11310, %v11309
        %v11325 = vpack.c.b16 %v11312, %v11311
        %v11326 = vpack.c.b16 %v11314, %v11313
        %v11327 = vpack.c.b16 %v11316, %v11315
        %v11328 = vpack.c.b16 %v11318, %v11317
        %v11329 = vpack.c.b16 %v11320, %v11319
        %v11330 = vpack.c.b16 %v11322, %v11321
        %11339 = vmatprep.subr.bf16.mxu0 0
        %11340 = vmatpush1.bf16.msra.mxu0 %v11323
        %11341 = vmatprep.subr.bf16.mxu0 0
        %11342 = vmatpush1.bf16.msra.mxu0 %v11324
        %11343 = vmatprep.subr.bf16.mxu0 0
        %11344 = vmatpush1.bf16.msra.mxu0 %v11325
        %11345 = vmatprep.subr.bf16.mxu0 0
        %11346 = vmatpush1.bf16.msra.mxu0 %v11326
        %11347 = vmatprep.subr.bf16.mxu0 0
        %11348 = vmatpush1.bf16.msra.mxu0 %v11327
        %11349 = vmatprep.subr.bf16.mxu0 0
        %11350 = vmatpush1.bf16.msra.mxu0 %v11328
        %11351 = vmatprep.subr.bf16.mxu0 0
        %11352 = vmatpush1.bf16.msra.mxu0 %v11329
        %11353 = vmatprep.subr.bf16.mxu0 0
        %11354 = vmatpush1.bf16.msra.mxu0 %v11330
        %11355 = vmatprep.subr.bf16.mxu0 0
        %11356 = vmatpush1.bf16.msra.mxu0 0
        %11357 = vmatprep.subr.bf16.mxu0 0
        %11358 = vmatpush1.bf16.msra.mxu0 0
        %11359 = vmatprep.subr.bf16.mxu0 0
        %11360 = vmatpush1.bf16.msra.mxu0 0
        %11361 = vmatprep.subr.bf16.mxu0 0
        %11362 = vmatpush1.bf16.msra.mxu0 0
        %11363 = vmatprep.subr.bf16.mxu0 0
        %11364 = vmatpush1.bf16.msra.mxu0 0
        %11365 = vmatprep.subr.bf16.mxu0 0
        %11366 = vmatpush1.bf16.msra.mxu0 0
        %11367 = vmatprep.subr.bf16.mxu0 0
        %11368 = vmatpush1.bf16.msra.mxu0 0
        %11369 = vmatprep.subr.bf16.mxu0 0
        %11370 = vmatpush1.bf16.msra.mxu0 0
        %11371 = vmatprep.mubr.bf16.mxu0 0
        %11372 = vmatmul.mubr.bf16.gmra.mrb[0].mxu0 %v11289
        %v11373 = vpop.f32.mrb[0].mxu0
        %v11374 = vadd.f32 0.0, %v11373
        %v11375 = vpop.f32.mrb[0].mxu0
        %v11376 = vpop.f32.mrb[0].mxu0
        %v11377 = vpop.f32.mrb[0].mxu0
        %11378 = vdwg.mxu0
        %v11379 = vadd.f32 %v11271, %v11374
        %s11380 = scalar_lea.vmem %s7, 1536
        %v11381 = vld [vmem:[%s11380] sm:$0xf]
        %v11382 = vld [vmem:[%s11380 + $0x4] sm:$0xf]
        %v11383 = vld [vmem:[%s11380 + $0x8] sm:$0xf]
        %v11384 = vld [vmem:[%s11380 + $0xc] sm:$0xf]
        %v11385 = vld [vmem:[%s11380 + $0x10] sm:$0xf]
        %v11386 = vld [vmem:[%s11380 + $0x14] sm:$0xf]
        %v11387 = vld [vmem:[%s11380 + $0x18] sm:$0xf]
        %v11388 = vld [vmem:[%s11380 + $0x1c] sm:$0xf]
        %v11389 = vld [vmem:[%s11380 + $0x20] sm:$0xf]
        %v11390 = vld [vmem:[%s11380 + $0x24] sm:$0xf]
        %v11391 = vld [vmem:[%s11380 + $0x28] sm:$0xf]
        %v11392 = vld [vmem:[%s11380 + $0x2c] sm:$0xf]
        %v11393 = vld [vmem:[%s11380 + $0x30] sm:$0xf]
        %v11394 = vld [vmem:[%s11380 + $0x34] sm:$0xf]
        %v11395 = vld [vmem:[%s11380 + $0x38] sm:$0xf]
        %v11396 = vld [vmem:[%s11380 + $0x3c] sm:$0xf]
        %v11397 = vrot.slane %v8788, 4
        %v11415 = vunpack.c.l.b16 %v11381
        %v11416 = vunpack.c.l.b16 %v11382
        %v11417 = vunpack.c.l.b16 %v11383
        %v11418 = vunpack.c.l.b16 %v11384
        %v11419 = vunpack.c.l.b16 %v11385
        %v11420 = vunpack.c.l.b16 %v11386
        %v11421 = vunpack.c.l.b16 %v11387
        %v11422 = vunpack.c.l.b16 %v11388
        %v11423 = vunpack.c.l.b16 %v11389
        %v11424 = vunpack.c.l.b16 %v11390
        %v11425 = vunpack.c.l.b16 %v11391
        %v11426 = vunpack.c.l.b16 %v11392
        %v11427 = vunpack.c.l.b16 %v11393
        %v11428 = vunpack.c.l.b16 %v11394
        %v11429 = vunpack.c.l.b16 %v11395
        %v11430 = vunpack.c.l.b16 %v11396
        %v11431 = vpack.c.b16 %v11416, %v11415
        %v11432 = vpack.c.b16 %v11418, %v11417
        %v11433 = vpack.c.b16 %v11420, %v11419
        %v11434 = vpack.c.b16 %v11422, %v11421
        %v11435 = vpack.c.b16 %v11424, %v11423
        %v11436 = vpack.c.b16 %v11426, %v11425
        %v11437 = vpack.c.b16 %v11428, %v11427
        %v11438 = vpack.c.b16 %v11430, %v11429
        %11447 = vmatprep.subr.bf16.mxu0 0
        %11448 = vmatpush1.bf16.msra.mxu0 %v11431
        %11449 = vmatprep.subr.bf16.mxu0 0
        %11450 = vmatpush1.bf16.msra.mxu0 %v11432
        %11451 = vmatprep.subr.bf16.mxu0 0
        %11452 = vmatpush1.bf16.msra.mxu0 %v11433
        %11453 = vmatprep.subr.bf16.mxu0 0
        %11454 = vmatpush1.bf16.msra.mxu0 %v11434
        %11455 = vmatprep.subr.bf16.mxu0 0
        %11456 = vmatpush1.bf16.msra.mxu0 %v11435
        %11457 = vmatprep.subr.bf16.mxu0 0
        %11458 = vmatpush1.bf16.msra.mxu0 %v11436
        %11459 = vmatprep.subr.bf16.mxu0 0
        %11460 = vmatpush1.bf16.msra.mxu0 %v11437
        %11461 = vmatprep.subr.bf16.mxu0 0
        %11462 = vmatpush1.bf16.msra.mxu0 %v11438
        %11463 = vmatprep.subr.bf16.mxu0 0
        %11464 = vmatpush1.bf16.msra.mxu0 0
        %11465 = vmatprep.subr.bf16.mxu0 0
        %11466 = vmatpush1.bf16.msra.mxu0 0
        %11467 = vmatprep.subr.bf16.mxu0 0
        %11468 = vmatpush1.bf16.msra.mxu0 0
        %11469 = vmatprep.subr.bf16.mxu0 0
        %11470 = vmatpush1.bf16.msra.mxu0 0
        %11471 = vmatprep.subr.bf16.mxu0 0
        %11472 = vmatpush1.bf16.msra.mxu0 0
        %11473 = vmatprep.subr.bf16.mxu0 0
        %11474 = vmatpush1.bf16.msra.mxu0 0
        %11475 = vmatprep.subr.bf16.mxu0 0
        %11476 = vmatpush1.bf16.msra.mxu0 0
        %11477 = vmatprep.subr.bf16.mxu0 0
        %11478 = vmatpush1.bf16.msra.mxu0 0
        %11479 = vmatprep.mubr.bf16.mxu0 0
        %11480 = vmatmul.mubr.bf16.gmra.mrb[0].mxu0 %v11397
        %v11481 = vpop.f32.mrb[0].mxu0
        %v11482 = vadd.f32 0.0, %v11481
        %v11483 = vpop.f32.mrb[0].mxu0
        %v11484 = vpop.f32.mrb[0].mxu0
        %v11485 = vpop.f32.mrb[0].mxu0
        %11486 = vdwg.mxu0
        %v11487 = vadd.f32 %v11379, %v11482
        %v11488 = vadd.f32 %v11487, %v561
        %v11489 = vtanh.pop %v11488
        %v11490 = vpack.c.bf16 %v11489, %v11489
        %v11507 = vunpack.c.l.b16 %v564
        %v11508 = vunpack.c.l.b16 %v565
        %v11509 = vunpack.c.l.b16 %v566
        %v11510 = vunpack.c.l.b16 %v567
        %v11511 = vunpack.c.l.b16 %v568
        %v11512 = vunpack.c.l.b16 %v569
        %v11513 = vunpack.c.l.b16 %v570
        %v11514 = vunpack.c.l.b16 %v571
        %v11515 = vunpack.c.l.b16 %v572
        %v11516 = vunpack.c.l.b16 %v573
        %v11517 = vunpack.c.l.b16 %v574
        %v11518 = vunpack.c.l.b16 %v575
        %v11519 = vunpack.c.l.b16 %v576
        %v11520 = vunpack.c.l.b16 %v577
        %v11521 = vunpack.c.l.b16 %v578
        %v11522 = vunpack.c.l.b16 %v579
        %v11523 = vpack.c.b16 %v11508, %v11507
        %v11524 = vpack.c.b16 %v11510, %v11509
        %v11525 = vpack.c.b16 %v11512, %v11511
        %v11526 = vpack.c.b16 %v11514, %v11513
        %v11527 = vpack.c.b16 %v11516, %v11515
        %v11528 = vpack.c.b16 %v11518, %v11517
        %v11529 = vpack.c.b16 %v11520, %v11519
        %v11530 = vpack.c.b16 %v11522, %v11521
        %11539 = vmatprep.subr.bf16.mxu0 0
        %11540 = vmatpush1.bf16.msra.mxu0 %v11523
        %11541 = vmatprep.subr.bf16.mxu0 0
        %11542 = vmatpush1.bf16.msra.mxu0 %v11524
        %11543 = vmatprep.subr.bf16.mxu0 0
        %11544 = vmatpush1.bf16.msra.mxu0 %v11525
        %11545 = vmatprep.subr.bf16.mxu0 0
        %11546 = vmatpush1.bf16.msra.mxu0 %v11526
        %11547 = vmatprep.subr.bf16.mxu0 0
        %11548 = vmatpush1.bf16.msra.mxu0 %v11527
        %11549 = vmatprep.subr.bf16.mxu0 0
        %11550 = vmatpush1.bf16.msra.mxu0 %v11528
        %11551 = vmatprep.subr.bf16.mxu0 0
        %11552 = vmatpush1.bf16.msra.mxu0 %v11529
        %11553 = vmatprep.subr.bf16.mxu0 0
        %11554 = vmatpush1.bf16.msra.mxu0 %v11530
        %11555 = vmatprep.subr.bf16.mxu0 0
        %11556 = vmatpush1.bf16.msra.mxu0 0
        %11557 = vmatprep.subr.bf16.mxu0 0
        %11558 = vmatpush1.bf16.msra.mxu0 0
        %11559 = vmatprep.subr.bf16.mxu0 0
        %11560 = vmatpush1.bf16.msra.mxu0 0
        %11561 = vmatprep.subr.bf16.mxu0 0
        %11562 = vmatpush1.bf16.msra.mxu0 0
        %11563 = vmatprep.subr.bf16.mxu0 0
        %11564 = vmatpush1.bf16.msra.mxu0 0
        %11565 = vmatprep.subr.bf16.mxu0 0
        %11566 = vmatpush1.bf16.msra.mxu0 0
        %11567 = vmatprep.subr.bf16.mxu0 0
        %11568 = vmatpush1.bf16.msra.mxu0 0
        %11569 = vmatprep.subr.bf16.mxu0 0
        %11570 = vmatpush1.bf16.msra.mxu0 0
        %11571 = vmatprep.mubr.bf16.mxu0 0
        %11572 = vmatmul.mubr.bf16.gmra.mrb[0].mxu0 %v11490
        %v11573 = vpop.f32.mrb[0].mxu0
        %v11574 = vadd.f32 %v562, %v11573
        %v11575 = vpop.f32.mrb[0].mxu0
        %v11576 = vpop.f32.mrb[0].mxu0
        %v11577 = vpop.f32.mrb[0].mxu0
        %11578 = vdwg.mxu0
        %v11579 = vtanh.pop %v11574
        %v11580 = vpack.c.bf16 %v11579, %v11579
        %v11597 = vunpack.c.l.b16 %v580
        %v11598 = vunpack.c.l.b16 %v581
        %v11599 = vunpack.c.l.b16 %v582
        %v11600 = vunpack.c.l.b16 %v583
        %v11601 = vunpack.c.l.b16 %v584
        %v11602 = vunpack.c.l.b16 %v585
        %v11603 = vunpack.c.l.b16 %v586
        %v11604 = vunpack.c.l.b16 %v587
        %v11605 = vunpack.c.l.b16 %v588
        %v11606 = vunpack.c.l.b16 %v589
        %v11607 = vunpack.c.l.b16 %v590
        %v11608 = vunpack.c.l.b16 %v591
        %v11609 = vunpack.c.l.b16 %v592
        %v11610 = vunpack.c.l.b16 %v593
        %v11611 = vunpack.c.l.b16 %v594
        %v11612 = vunpack.c.l.b16 %v595
        %v11613 = vpack.c.b16 %v11598, %v11597
        %v11614 = vpack.c.b16 %v11600, %v11599
        %v11615 = vpack.c.b16 %v11602, %v11601
        %v11616 = vpack.c.b16 %v11604, %v11603
        %v11617 = vpack.c.b16 %v11606, %v11605
        %v11618 = vpack.c.b16 %v11608, %v11607
        %v11619 = vpack.c.b16 %v11610, %v11609
        %v11620 = vpack.c.b16 %v11612, %v11611
        %11629 = vmatprep.subr.bf16.mxu0 0
        %11630 = vmatpush1.bf16.msra.mxu0 %v11613
        %11631 = vmatprep.subr.bf16.mxu0 0
        %11632 = vmatpush1.bf16.msra.mxu0 %v11614
        %11633 = vmatprep.subr.bf16.mxu0 0
        %11634 = vmatpush1.bf16.msra.mxu0 %v11615
        %11635 = vmatprep.subr.bf16.mxu0 0
        %11636 = vmatpush1.bf16.msra.mxu0 %v11616
        %11637 = vmatprep.subr.bf16.mxu0 0
        %11638 = vmatpush1.bf16.msra.mxu0 %v11617
        %11639 = vmatprep.subr.bf16.mxu0 0
        %11640 = vmatpush1.bf16.msra.mxu0 %v11618
        %11641 = vmatprep.subr.bf16.mxu0 0
        %11642 = vmatpush1.bf16.msra.mxu0 %v11619
        %11643 = vmatprep.subr.bf16.mxu0 0
        %11644 = vmatpush1.bf16.msra.mxu0 %v11620
        %11645 = vmatprep.subr.bf16.mxu0 0
        %11646 = vmatpush1.bf16.msra.mxu0 0
        %11647 = vmatprep.subr.bf16.mxu0 0
        %11648 = vmatpush1.bf16.msra.mxu0 0
        %11649 = vmatprep.subr.bf16.mxu0 0
        %11650 = vmatpush1.bf16.msra.mxu0 0
        %11651 = vmatprep.subr.bf16.mxu0 0
        %11652 = vmatpush1.bf16.msra.mxu0 0
        %11653 = vmatprep.subr.bf16.mxu0 0
        %11654 = vmatpush1.bf16.msra.mxu0 0
        %11655 = vmatprep.subr.bf16.mxu0 0
        %11656 = vmatpush1.bf16.msra.mxu0 0
        %11657 = vmatprep.subr.bf16.mxu0 0
        %11658 = vmatpush1.bf16.msra.mxu0 0
        %11659 = vmatprep.subr.bf16.mxu0 0
        %11660 = vmatpush1.bf16.msra.mxu0 0
        %11661 = vmatprep.mubr.bf16.mxu0 0
        %11662 = vmatmul.mubr.bf16.gmra.mrb[0].mxu0 %v11580
        %v11663 = vpop.f32.mrb[0].mxu0
        %v11664 = vadd.f32 %v563, %v11663
        %v11665 = vpop.f32.mrb[0].mxu0
        %v11666 = vpop.f32.mrb[0].mxu0
        %v11667 = vpop.f32.mrb[0].mxu0
        %11668 = vdwg.mxu0
        %vm11669 = vcmask 8192
        %11670 = vst.msk [vmem:[%s432] sm:$0x1] %vm11669, %v11664
        %s11671 = sand.u32 %s313, 1
        %s11672 = scalar_lea.sflag [#allocation3], %s11671
        %s11673 = sand.u32 %s313, 1
        %s11674 = scalar_lea.vmem [#allocation2], %s11673
        // Predicated region
        $region73: #{net_forward.1} parent=71 // pred_check
          %p11675 = pneg %p323
        $region74: #{net_forward.1} parent=71 // pred_check_branch
          %11677 = sbr.rel (%p11675) target = $region76
        $region75: #{net_forward.1} parent=71 // pred_region
          %s11679 = ssub.s32 16, 16
          %11680 = vsyncadd %s11672, %s11679
          %s11681 = smul.addr %s27, 16
          %s11682 = scalar_lea.hbm %s13, %s11681
          %s11684 = sshll.u32 %s11674, 4
          %s11685 = int_to_ptr.vmem [resolvable:$true] %s11684
          %11687 = dma.vmem_to_hbm [thread:$0]  %s11685, 16, %s11682, %s11672
        $region76: #{net_forward.1} parent=71 // pred_fallthru
          _
      $region72: #{net_forward.1} parent=5 // pred_fallthru
        _
      %p11688 = scmp.le.s32.totalorder 2, %s22
      // Predicated region
      $region77: #{net_forward.1} parent=5 // pred_check
        %p11689 = pneg %p11688
      $region78: #{net_forward.1} parent=5 // pred_check_branch
        %11691 = sbr.rel (%p11689) target = $region80
      $region79: #{net_forward.1} parent=5 // pred_region
        %s11692 = ssub.s32 %s22, 2
        // Predicated region
        $region81: #{net_forward.1} parent=79 // pred_check
          %p11693 = pneg %p329
        $region82: #{net_forward.1} parent=79 // pred_check_branch
          %11695 = sbr.rel (%p11693) target = $region84
        $region83: #{net_forward.1} parent=79 // pred_region
          %s11696 = sand.u32 %s314, 1
          %s11697 = scalar_lea.sflag [#allocation3], %s11696
          %s11698 = sand.u32 %s314, 1
          %s11699 = scalar_lea.vmem [#allocation2], %s11698
          %11700 = dma.done %s11697, 16
        $region84: #{net_forward.1} parent=79 // pred_fallthru
          _
      $region80: #{net_forward.1} parent=5 // pred_fallthru
        _
    $region6: #{net_forward.1} parent=1 // loop_footer
      %s26 = sadd.s32 1, %s22
    $region7: #{net_forward.1} parent=1 // loop_footer_branch
      %21 = sbr.rel target = $region3
    $region8: #{net_forward.1} parent=1 // loop_exit
      _
    %11701 = vsyncpa [#allocation3], 1
    %s11702 = scalar_lea.sflag [#allocation3], 1
    %11703 = vsyncpa %s11702, 1

</llo_original>
